<compile_context>
chip_gen: v6e
topology: v6e:2x2x1
jax: 0.10.0
libtpu: 0.0.40
codegen_flags: <defaults>
</compile_context>

<pallas_src>
import numpy as np
import jax
import jax.numpy as jnp
from jax import lax
from jax.experimental import pallas as pl
from jax.experimental.pallas import tpu as pltpu


# --------------------------------- fused kernel ---------------------------------
def net_kernel(x_ref, bias_ref, b1w_ref, b2w_ref, pool_ref, wf1_ref, fc_ref, o_ref):
    bf16 = jnp.bfloat16
    n_batch = x_ref.shape[0]

    def mm(a, b):
        return jnp.dot(a, b, preferred_element_type=jnp.float32)

    # ---- loop-invariant loads / broadcasts hoisted out of the batch loop ----
    b1b = jnp.broadcast_to(bias_ref[0:1, 0:240], (60, 240))   # conv1 bias, lane = w*6+oc
    b2b = jnp.broadcast_to(bias_ref[1:2, 0:288], (24, 288))   # conv2 bias, lane = w*16+oc
    bf1 = bias_ref[2:3, 0:120]
    bf2 = bias_ref[3:4, 0:84]
    bf3 = bias_ref[4:5, 0:2]
    sv1e = pool_ref[0:30, 0:59]        # (30, 59)  0/1: keep even rows of row-pair max
    sh1e = pool_ref[32:266, 0:120]     # (234,120) 0/1: keep even width-groups (width 6)
    sh2e = pool_ref[272:544, 0:144]    # (272,144) 0/1: keep even width-groups (width 16)
    wf2 = fc_ref[0:120, 0:84]          # (120, 84)
    wf3 = fc_ref[128:212, 0:2]         # (84, 2)

    def band_conv(src, w_ref, m_rows):
        # 7-tap banded conv as bf16 MXU matmuls; balanced add tree for the sum.
        p = [mm(src[kh:kh + m_rows, :].astype(bf16), w_ref[kh]) for kh in range(7)]
        return ((p[0] + p[1]) + (p[2] + p[3])) + ((p[4] + p[5]) + p[6])

    p2s = []
    for n in range(n_batch):                               # unrolled tiny batch
        xn = x_ref[n]                                      # (66, 42) f32

        # conv1 (1->6, k=(7,3)) + bias + ReLU -> (60, 240), lane = w*6 + oc
        y1 = jnp.maximum(band_conv(xn, b1w_ref, 60) + b1b, 0.0)

        # 2x2 max-pool: pairwise max via static-offset slices, even-index
        # compaction via a single 0/1 matmul per axis.
        r1 = jnp.maximum(y1[0:59, :], y1[1:60, :])         # (59, 240) row-pair max
        a1 = mm(sv1e, r1.astype(bf16))                     # (30, 240) keep even rows
        c1 = jnp.maximum(a1[:, 0:234], a1[:, 6:240])       # (30, 234) width-pair max
        p1 = mm(c1.astype(bf16), sh1e)                     # (30, 120) lane = w*6 + ic

        # conv2 (6->16, k=(7,3)) + bias + ReLU -> (24, 288), lane = w*16 + oc
        y2 = jnp.maximum(band_conv(p1, b2w_ref, 24) + b2b, 0.0)

        # 2x2 max-pool; rows stay uncompacted (valid at even indices) because
        # fc1 reads them with static even-row slices — no row selector needed.
        r2 = jnp.maximum(y2[0:23, :], y2[1:24, :])         # (23, 288)
        c2 = jnp.maximum(r2[:, 0:272], r2[:, 16:288])      # (23, 272)
        p2s.append(mm(c2.astype(bf16), sh2e))              # (23, 144), rows 0,2,..,22 valid

    # fc1 (1728->120) + ReLU: 12 slab matmuls at M = batch (no in-kernel flatten)
    h = jnp.broadcast_to(bf1, (n_batch, 120))
    for r in range(12):
        lhs = jnp.concatenate(
            [p2s[n][2 * r:2 * r + 1, :] for n in range(n_batch)], axis=0)   # (N, 144)
        h = h + mm(lhs.astype(bf16), wf1_ref[r])
    h1 = jnp.maximum(h, 0.0)

    h2 = jnp.maximum(mm(h1.astype(bf16), wf2) + bf2, 0.0)                   # (N, 84)
    o_ref[...] = mm(h2.astype(bf16), wf3) + bf3                             # (N, 2)


# ------------------------- host-side weight repacking ---------------------------
def _band_conv1(w1):                      # w1: (6,1,7,3) torch layout
    OC, _, KH, KW = w1.shape
    W_IN, W_OUT = 42, 40
    B = np.zeros((KH, W_IN, W_OUT * OC), np.float32)
    for kh in range(KH):
        for wo in range(W_OUT):
            for kw in range(KW):
                B[kh, wo + kw, wo * OC:(wo + 1) * OC] = w1[:, 0, kh, kw]
    return B                                              # (7, 42, 240)


def _band_conv2(w2):                      # w2: (16,6,7,3) torch layout
    OC, IC, KH, KW = w2.shape
    W_IN, W_OUT = 20, 18
    B = np.zeros((KH, W_IN * IC, W_OUT * OC), np.float32)
    for kh in range(KH):
        for wo in range(W_OUT):
            for kw in range(KW):
                for ic in range(IC):
                    B[kh, (wo + kw) * IC + ic, wo * OC:(wo + 1) * OC] = w2[:, ic, kh, kw]
    return B                                              # (7, 120, 288)


def _row_pool_even(n_out, n_in):          # (n_out, n_in): 1 at (i, 2i)
    S = np.zeros((n_out, n_in), np.float32)
    S[np.arange(n_out), 2 * np.arange(n_out)] = 1.0
    return S


def _col_pool_even(w_out, c, n_in):       # (n_in, w_out*c): 1 at ((2w)*c+ch, w*c+ch)
    S = np.zeros((n_in, w_out * c), np.float32)
    for wo in range(w_out):
        for ch in range(c):
            S[(2 * wo) * c + ch, wo * c + ch] = 1.0
    return S


def pack_params(w1c, b1c, w2c, b2c, wf1, bf1, wf2, bf2, wf3, bf3):
    """Repack torch-layout weights into 7 merged, lane-dense kernel operands."""
    w1c, b1c, w2c, b2c, wf1, bf1, wf2, bf2, wf3, bf3 = [
        np.asarray(a, np.float32) for a in
        (w1c, b1c, w2c, b2c, wf1, bf1, wf2, bf2, wf3, bf3)]

    # All f32 biases in one (8, 288) buffer (single DMA).
    bias = np.zeros((8, 288), np.float32)
    bias[0, 0:240] = np.tile(b1c, 40)                     # conv1 bias, lane = w*6 + oc
    bias[1, 0:288] = np.tile(b2c, 18)                     # conv2 bias, lane = w*16 + oc
    bias[2, 0:120] = bf1
    bias[3, 0:84] = bf2
    bias[4, 0:2] = bf3

    # Pool even-index selectors in one bf16 buffer (row offsets 16-aligned).
    pool = np.zeros((544, 144), np.float32)
    pool[0:30, 0:59] = _row_pool_even(30, 59)             # sv1e
    pool[32:266, 0:120] = _col_pool_even(20, 6, 234)      # sh1e
    pool[272:544, 0:144] = _col_pool_even(9, 16, 272)     # sh2e

    # fc2 + fc3 weights in one bf16 buffer.
    fc23 = np.zeros((216, 84), np.float32)
    fc23[0:120, 0:84] = wf2.T                             # (120, 84)
    fc23[128:212, 0:2] = wf3.T                            # (84, 2)

    # fc1 weight rows permuted from torch CHW-flatten order to the kernel's
    # (h, w*16+oc) lane-dense layout, split into 12 per-row slabs.
    wf1p = wf1.T.reshape(16, 12, 9, 120).transpose(1, 2, 0, 3).reshape(12, 144, 120)

    return dict(
        bias=jnp.asarray(bias, jnp.float32),              # (8, 288)    f32
        b1w=jnp.asarray(_band_conv1(w1c), jnp.bfloat16),  # (7, 42, 240) bf16
        b2w=jnp.asarray(_band_conv2(w2c), jnp.bfloat16),  # (7, 120, 288) bf16
        pool=jnp.asarray(pool, jnp.bfloat16),             # (544, 144)  bf16
        wf1=jnp.asarray(wf1p, jnp.bfloat16),              # (12, 144, 120) bf16
        fc23=jnp.asarray(fc23, jnp.bfloat16),             # (216, 84)   bf16
    )


# ------------------------------------ forward -----------------------------------
@jax.jit
def net_forward(x, params):
    n = x.shape[0]
    x2 = x[:, 0, :, :]                                    # (N, 66, 42); C=1 squeezed
    vmem = pl.BlockSpec(memory_space=pltpu.MemorySpace.VMEM)
    operands = (x2, params["bias"], params["b1w"], params["b2w"],
                params["pool"], params["wf1"], params["fc23"])
    return pl.pallas_call(
        net_kernel,
        out_shape=jax.ShapeDtypeStruct((n, 2), jnp.float32),
        in_specs=[vmem] * len(operands),
        out_specs=vmem,
    )(*operands)


# ------------------------------ pure-JAX reference ------------------------------
def reference_forward(x, w1c, b1c, w2c, b2c, wf1, bf1, wf2, bf2, wf3, bf3):
    hp = lax.Precision.HIGHEST
    y = lax.conv_general_dilated(x, w1c, (1, 1), "VALID",
                                 dimension_numbers=("NCHW", "OIHW", "NCHW"),
                                 precision=hp)
    y = jnp.maximum(y + b1c[None, :, None, None], 0.0)
    y = lax.reduce_window(y, -jnp.inf, lax.max, (1, 1, 2, 2), (1, 1, 2, 2), "VALID")
    y = lax.conv_general_dilated(y, w2c, (1, 1), "VALID",
                                 dimension_numbers=("NCHW", "OIHW", "NCHW"),
                                 precision=hp)
    y = jnp.maximum(y + b2c[None, :, None, None], 0.0)
    y = lax.reduce_window(y, -jnp.inf, lax.max, (1, 1, 2, 2), (1, 1, 2, 2), "VALID")
    y = y.reshape(y.shape[0], -1)                         # torch CHW flatten order
    y = jnp.maximum(jnp.dot(y, wf1.T, precision=hp) + bf1, 0.0)
    y = jnp.maximum(jnp.dot(y, wf2.T, precision=hp) + bf2, 0.0)
    return jnp.dot(y, wf3.T, precision=hp) + bf3


if __name__ == "__main__":
    key = jax.random.PRNGKey(0)
    ks = jax.random.split(key, 11)

    def uinit(k, shape, fan_in):
        bound = 1.0 / float(np.sqrt(fan_in))
        return jax.random.uniform(k, shape, jnp.float32, -bound, bound)

    # Parameters in PyTorch layouts.
    w1c = uinit(ks[0], (6, 1, 7, 3), 1 * 7 * 3)           # conv1.weight
    b1c = uinit(ks[1], (6,), 1 * 7 * 3)                   # conv1.bias
    w2c = uinit(ks[2], (16, 6, 7, 3), 6 * 7 * 3)          # conv2.weight
    b2c = uinit(ks[3], (16,), 6 * 7 * 3)                  # conv2.bias
    wf1 = uinit(ks[4], (120, 1728), 1728)                 # fc1.weight
    bf1 = uinit(ks[5], (120,), 1728)                      # fc1.bias
    wf2 = uinit(ks[6], (84, 120), 120)                    # fc2.weight
    bf2 = uinit(ks[7], (84,), 120)                        # fc2.bias
    wf3 = uinit(ks[8], (2, 84), 84)                       # fc3.weight
    bf3 = uinit(ks[9], (2,), 84)                          # fc3.bias

    # Input NCHW = (2, 1, 66, 42): the spatial size implied by fc1's 1728 = 16*12*9.
    x = jax.random.normal(ks[10], (2, 1, 66, 42), jnp.float32)

    params = pack_params(w1c, b1c, w2c, b2c, wf1, bf1, wf2, bf2, wf3, bf3)
    out = jax.block_until_ready(net_forward(x, params))
    assert out.shape == (2, 2) and out.dtype == jnp.float32

    ref = jax.block_until_ready(
        reference_forward(x, w1c, b1c, w2c, b2c, wf1, bf1, wf2, bf2, wf3, bf3))
    # bf16 matmul operands with f32 accumulation: ~1% relative error budget.
    np.testing.assert_allclose(np.asarray(out), np.asarray(ref), rtol=5e-2, atol=3e-2)
    print("KERNEL_OK")
</pallas_src>

<mosaic_0001>
module attributes {stable_mosaic.version = 11 : i64} {
  func.func @net_kernel(%arg0: memref<2x66x42xf32, #tpu.memory_space<vmem>>, %arg1: memref<8x288xf32, #tpu.memory_space<vmem>>, %arg2: memref<7x42x240xbf16, #tpu.memory_space<vmem>>, %arg3: memref<7x120x288xbf16, #tpu.memory_space<vmem>>, %arg4: memref<544x144xbf16, #tpu.memory_space<vmem>>, %arg5: memref<12x144x120xbf16, #tpu.memory_space<vmem>>, %arg6: memref<216x84xbf16, #tpu.memory_space<vmem>>, %arg7: memref<2x2xf32, #tpu.memory_space<vmem>>) attributes {dimension_semantics = [], scalar_prefetch = 0 : i64, scratch_operands = 0 : i64, tpu.core_type = #tpu.core_type<tc>} {
    %c0 = arith.constant 0 : index
    %c0_0 = arith.constant 0 : index
    %0 = vector.load %arg1[%c0, %c0_0] : memref<8x288xf32, #tpu.memory_space<vmem>>, vector<1x240xf32>
    %1 = vector.shape_cast %0 : vector<1x240xf32> to vector<1x240xf32>
    %2 = vector.broadcast %1 : vector<1x240xf32> to vector<60x240xf32>
    %c1 = arith.constant 1 : index
    %c0_1 = arith.constant 0 : index
    %3 = vector.load %arg1[%c1, %c0_1] : memref<8x288xf32, #tpu.memory_space<vmem>>, vector<1x288xf32>
    %4 = vector.shape_cast %3 : vector<1x288xf32> to vector<1x288xf32>
    %5 = vector.broadcast %4 : vector<1x288xf32> to vector<24x288xf32>
    %c2 = arith.constant 2 : index
    %c0_2 = arith.constant 0 : index
    %6 = vector.load %arg1[%c2, %c0_2] : memref<8x288xf32, #tpu.memory_space<vmem>>, vector<1x120xf32>
    %c3 = arith.constant 3 : index
    %c0_3 = arith.constant 0 : index
    %7 = vector.load %arg1[%c3, %c0_3] : memref<8x288xf32, #tpu.memory_space<vmem>>, vector<1x84xf32>
    %c4 = arith.constant 4 : index
    %c0_4 = arith.constant 0 : index
    %8 = vector.load %arg1[%c4, %c0_4] : memref<8x288xf32, #tpu.memory_space<vmem>>, vector<1x2xf32>
    %c0_5 = arith.constant 0 : index
    %c0_6 = arith.constant 0 : index
    %9 = vector.load %arg4[%c0_5, %c0_6] : memref<544x144xbf16, #tpu.memory_space<vmem>>, vector<30x59xbf16>
    %c32 = arith.constant 32 : index
    %c0_7 = arith.constant 0 : index
    %10 = vector.load %arg4[%c32, %c0_7] : memref<544x144xbf16, #tpu.memory_space<vmem>>, vector<234x120xbf16>
    %c272 = arith.constant 272 : index
    %c0_8 = arith.constant 0 : index
    %11 = vector.load %arg4[%c272, %c0_8] : memref<544x144xbf16, #tpu.memory_space<vmem>>, vector<272x144xbf16>
    %c0_9 = arith.constant 0 : index
    %c0_10 = arith.constant 0 : index
    %12 = vector.load %arg6[%c0_9, %c0_10] : memref<216x84xbf16, #tpu.memory_space<vmem>>, vector<120x84xbf16>
    %c128 = arith.constant 128 : index
    %c0_11 = arith.constant 0 : index
    %13 = vector.load %arg6[%c128, %c0_11] : memref<216x84xbf16, #tpu.memory_space<vmem>>, vector<84x2xbf16>
    %c0_12 = arith.constant 0 : index
    %c0_13 = arith.constant 0 : index
    %c0_14 = arith.constant 0 : index
    %14 = vector.load %arg0[%c0_12, %c0_13, %c0_14] : memref<2x66x42xf32, #tpu.memory_space<vmem>>, vector<1x66x42xf32>
    %15 = vector.shape_cast %14 : vector<1x66x42xf32> to vector<66x42xf32>
    %16 = vector.extract_strided_slice %15 {offsets = [0, 0], sizes = [60, 42], strides = [1, 1]} : vector<66x42xf32> to vector<60x42xf32>
    %17 = arith.truncf %16 : vector<60x42xf32> to vector<60x42xbf16>
    %c0_15 = arith.constant 0 : index
    %c0_16 = arith.constant 0 : index
    %c0_17 = arith.constant 0 : index
    %18 = vector.load %arg2[%c0_15, %c0_16, %c0_17] : memref<7x42x240xbf16, #tpu.memory_space<vmem>>, vector<1x42x240xbf16>
    %19 = vector.shape_cast %18 : vector<1x42x240xbf16> to vector<42x240xbf16>
    %cst = arith.constant dense<0.000000e+00> : vector<60x240xf32>
    %20 = tpu.matmul %17, %19, %cst {dimension_numbers = #tpu.dot_dimension_numbers<[1], [0], [0], [1], [0, 0, 1, 1], [], []>} : vector<60x42xbf16>, vector<42x240xbf16>, vector<60x240xf32> -> vector<60x240xf32>
    %21 = vector.extract_strided_slice %15 {offsets = [1, 0], sizes = [60, 42], strides = [1, 1]} : vector<66x42xf32> to vector<60x42xf32>
    %22 = arith.truncf %21 : vector<60x42xf32> to vector<60x42xbf16>
    %c1_18 = arith.constant 1 : index
    %c0_19 = arith.constant 0 : index
    %c0_20 = arith.constant 0 : index
    %23 = vector.load %arg2[%c1_18, %c0_19, %c0_20] : memref<7x42x240xbf16, #tpu.memory_space<vmem>>, vector<1x42x240xbf16>
    %24 = vector.shape_cast %23 : vector<1x42x240xbf16> to vector<42x240xbf16>
    %cst_21 = arith.constant dense<0.000000e+00> : vector<60x240xf32>
    %25 = tpu.matmul %22, %24, %cst_21 {dimension_numbers = #tpu.dot_dimension_numbers<[1], [0], [0], [1], [0, 0, 1, 1], [], []>} : vector<60x42xbf16>, vector<42x240xbf16>, vector<60x240xf32> -> vector<60x240xf32>
    %26 = vector.extract_strided_slice %15 {offsets = [2, 0], sizes = [60, 42], strides = [1, 1]} : vector<66x42xf32> to vector<60x42xf32>
    %27 = arith.truncf %26 : vector<60x42xf32> to vector<60x42xbf16>
    %c2_22 = arith.constant 2 : index
    %c0_23 = arith.constant 0 : index
    %c0_24 = arith.constant 0 : index
    %28 = vector.load %arg2[%c2_22, %c0_23, %c0_24] : memref<7x42x240xbf16, #tpu.memory_space<vmem>>, vector<1x42x240xbf16>
    %29 = vector.shape_cast %28 : vector<1x42x240xbf16> to vector<42x240xbf16>
    %cst_25 = arith.constant dense<0.000000e+00> : vector<60x240xf32>
    %30 = tpu.matmul %27, %29, %cst_25 {dimension_numbers = #tpu.dot_dimension_numbers<[1], [0], [0], [1], [0, 0, 1, 1], [], []>} : vector<60x42xbf16>, vector<42x240xbf16>, vector<60x240xf32> -> vector<60x240xf32>
    %31 = vector.extract_strided_slice %15 {offsets = [3, 0], sizes = [60, 42], strides = [1, 1]} : vector<66x42xf32> to vector<60x42xf32>
    %32 = arith.truncf %31 : vector<60x42xf32> to vector<60x42xbf16>
    %c3_26 = arith.constant 3 : index
    %c0_27 = arith.constant 0 : index
    %c0_28 = arith.constant 0 : index
    %33 = vector.load %arg2[%c3_26, %c0_27, %c0_28] : memref<7x42x240xbf16, #tpu.memory_space<vmem>>, vector<1x42x240xbf16>
    %34 = vector.shape_cast %33 : vector<1x42x240xbf16> to vector<42x240xbf16>
    %cst_29 = arith.constant dense<0.000000e+00> : vector<60x240xf32>
    %35 = tpu.matmul %32, %34, %cst_29 {dimension_numbers = #tpu.dot_dimension_numbers<[1], [0], [0], [1], [0, 0, 1, 1], [], []>} : vector<60x42xbf16>, vector<42x240xbf16>, vector<60x240xf32> -> vector<60x240xf32>
    %36 = vector.extract_strided_slice %15 {offsets = [4, 0], sizes = [60, 42], strides = [1, 1]} : vector<66x42xf32> to vector<60x42xf32>
    %37 = arith.truncf %36 : vector<60x42xf32> to vector<60x42xbf16>
    %c4_30 = arith.constant 4 : index
    %c0_31 = arith.constant 0 : index
    %c0_32 = arith.constant 0 : index
    %38 = vector.load %arg2[%c4_30, %c0_31, %c0_32] : memref<7x42x240xbf16, #tpu.memory_space<vmem>>, vector<1x42x240xbf16>
    %39 = vector.shape_cast %38 : vector<1x42x240xbf16> to vector<42x240xbf16>
    %cst_33 = arith.constant dense<0.000000e+00> : vector<60x240xf32>
    %40 = tpu.matmul %37, %39, %cst_33 {dimension_numbers = #tpu.dot_dimension_numbers<[1], [0], [0], [1], [0, 0, 1, 1], [], []>} : vector<60x42xbf16>, vector<42x240xbf16>, vector<60x240xf32> -> vector<60x240xf32>
    %41 = vector.extract_strided_slice %15 {offsets = [5, 0], sizes = [60, 42], strides = [1, 1]} : vector<66x42xf32> to vector<60x42xf32>
    %42 = arith.truncf %41 : vector<60x42xf32> to vector<60x42xbf16>
    %c5 = arith.constant 5 : index
    %c0_34 = arith.constant 0 : index
    %c0_35 = arith.constant 0 : index
    %43 = vector.load %arg2[%c5, %c0_34, %c0_35] : memref<7x42x240xbf16, #tpu.memory_space<vmem>>, vector<1x42x240xbf16>
    %44 = vector.shape_cast %43 : vector<1x42x240xbf16> to vector<42x240xbf16>
    %cst_36 = arith.constant dense<0.000000e+00> : vector<60x240xf32>
    %45 = tpu.matmul %42, %44, %cst_36 {dimension_numbers = #tpu.dot_dimension_numbers<[1], [0], [0], [1], [0, 0, 1, 1], [], []>} : vector<60x42xbf16>, vector<42x240xbf16>, vector<60x240xf32> -> vector<60x240xf32>
    %46 = vector.extract_strided_slice %15 {offsets = [6, 0], sizes = [60, 42], strides = [1, 1]} : vector<66x42xf32> to vector<60x42xf32>
    %47 = arith.truncf %46 : vector<60x42xf32> to vector<60x42xbf16>
    %c6 = arith.constant 6 : index
    %c0_37 = arith.constant 0 : index
    %c0_38 = arith.constant 0 : index
    %48 = vector.load %arg2[%c6, %c0_37, %c0_38] : memref<7x42x240xbf16, #tpu.memory_space<vmem>>, vector<1x42x240xbf16>
    %49 = vector.shape_cast %48 : vector<1x42x240xbf16> to vector<42x240xbf16>
    %cst_39 = arith.constant dense<0.000000e+00> : vector<60x240xf32>
    %50 = tpu.matmul %47, %49, %cst_39 {dimension_numbers = #tpu.dot_dimension_numbers<[1], [0], [0], [1], [0, 0, 1, 1], [], []>} : vector<60x42xbf16>, vector<42x240xbf16>, vector<60x240xf32> -> vector<60x240xf32>
    %51 = arith.addf %20, %25 : vector<60x240xf32>
    %52 = arith.addf %30, %35 : vector<60x240xf32>
    %53 = arith.addf %51, %52 : vector<60x240xf32>
    %54 = arith.addf %40, %45 : vector<60x240xf32>
    %55 = arith.addf %54, %50 : vector<60x240xf32>
    %56 = arith.addf %53, %55 : vector<60x240xf32>
    %57 = arith.addf %56, %2 : vector<60x240xf32>
    %cst_40 = arith.constant 0.000000e+00 : f32
    %58 = vector.broadcast %cst_40 : f32 to vector<60x240xf32>
    %59 = arith.maximumf %57, %58 : vector<60x240xf32>
    %60 = vector.extract_strided_slice %59 {offsets = [0, 0], sizes = [59, 240], strides = [1, 1]} : vector<60x240xf32> to vector<59x240xf32>
    %61 = vector.extract_strided_slice %59 {offsets = [1, 0], sizes = [59, 240], strides = [1, 1]} : vector<60x240xf32> to vector<59x240xf32>
    %62 = arith.maximumf %60, %61 : vector<59x240xf32>
    %63 = arith.truncf %62 : vector<59x240xf32> to vector<59x240xbf16>
    %cst_41 = arith.constant dense<0.000000e+00> : vector<30x240xf32>
    %64 = tpu.matmul %9, %63, %cst_41 {dimension_numbers = #tpu.dot_dimension_numbers<[1], [0], [0], [1], [0, 0, 1, 1], [], []>} : vector<30x59xbf16>, vector<59x240xbf16>, vector<30x240xf32> -> vector<30x240xf32>
    %65 = vector.extract_strided_slice %64 {offsets = [0, 0], sizes = [30, 234], strides = [1, 1]} : vector<30x240xf32> to vector<30x234xf32>
    %66 = vector.extract_strided_slice %64 {offsets = [0, 6], sizes = [30, 234], strides = [1, 1]} : vector<30x240xf32> to vector<30x234xf32>
    %67 = arith.maximumf %65, %66 : vector<30x234xf32>
    %68 = arith.truncf %67 : vector<30x234xf32> to vector<30x234xbf16>
    %cst_42 = arith.constant dense<0.000000e+00> : vector<30x120xf32>
    %69 = tpu.matmul %68, %10, %cst_42 {dimension_numbers = #tpu.dot_dimension_numbers<[1], [0], [0], [1], [0, 0, 1, 1], [], []>} : vector<30x234xbf16>, vector<234x120xbf16>, vector<30x120xf32> -> vector<30x120xf32>
    %70 = vector.extract_strided_slice %69 {offsets = [0, 0], sizes = [24, 120], strides = [1, 1]} : vector<30x120xf32> to vector<24x120xf32>
    %71 = arith.truncf %70 : vector<24x120xf32> to vector<24x120xbf16>
    %c0_43 = arith.constant 0 : index
    %c0_44 = arith.constant 0 : index
    %c0_45 = arith.constant 0 : index
    %72 = vector.load %arg3[%c0_43, %c0_44, %c0_45] : memref<7x120x288xbf16, #tpu.memory_space<vmem>>, vector<1x120x288xbf16>
    %73 = vector.shape_cast %72 : vector<1x120x288xbf16> to vector<120x288xbf16>
    %cst_46 = arith.constant dense<0.000000e+00> : vector<24x288xf32>
    %74 = tpu.matmul %71, %73, %cst_46 {dimension_numbers = #tpu.dot_dimension_numbers<[1], [0], [0], [1], [0, 0, 1, 1], [], []>} : vector<24x120xbf16>, vector<120x288xbf16>, vector<24x288xf32> -> vector<24x288xf32>
    %75 = vector.extract_strided_slice %69 {offsets = [1, 0], sizes = [24, 120], strides = [1, 1]} : vector<30x120xf32> to vector<24x120xf32>
    %76 = arith.truncf %75 : vector<24x120xf32> to vector<24x120xbf16>
    %c1_47 = arith.constant 1 : index
    %c0_48 = arith.constant 0 : index
    %c0_49 = arith.constant 0 : index
    %77 = vector.load %arg3[%c1_47, %c0_48, %c0_49] : memref<7x120x288xbf16, #tpu.memory_space<vmem>>, vector<1x120x288xbf16>
    %78 = vector.shape_cast %77 : vector<1x120x288xbf16> to vector<120x288xbf16>
    %cst_50 = arith.constant dense<0.000000e+00> : vector<24x288xf32>
    %79 = tpu.matmul %76, %78, %cst_50 {dimension_numbers = #tpu.dot_dimension_numbers<[1], [0], [0], [1], [0, 0, 1, 1], [], []>} : vector<24x120xbf16>, vector<120x288xbf16>, vector<24x288xf32> -> vector<24x288xf32>
    %80 = vector.extract_strided_slice %69 {offsets = [2, 0], sizes = [24, 120], strides = [1, 1]} : vector<30x120xf32> to vector<24x120xf32>
    %81 = arith.truncf %80 : vector<24x120xf32> to vector<24x120xbf16>
    %c2_51 = arith.constant 2 : index
    %c0_52 = arith.constant 0 : index
    %c0_53 = arith.constant 0 : index
    %82 = vector.load %arg3[%c2_51, %c0_52, %c0_53] : memref<7x120x288xbf16, #tpu.memory_space<vmem>>, vector<1x120x288xbf16>
    %83 = vector.shape_cast %82 : vector<1x120x288xbf16> to vector<120x288xbf16>
    %cst_54 = arith.constant dense<0.000000e+00> : vector<24x288xf32>
    %84 = tpu.matmul %81, %83, %cst_54 {dimension_numbers = #tpu.dot_dimension_numbers<[1], [0], [0], [1], [0, 0, 1, 1], [], []>} : vector<24x120xbf16>, vector<120x288xbf16>, vector<24x288xf32> -> vector<24x288xf32>
    %85 = vector.extract_strided_slice %69 {offsets = [3, 0], sizes = [24, 120], strides = [1, 1]} : vector<30x120xf32> to vector<24x120xf32>
    %86 = arith.truncf %85 : vector<24x120xf32> to vector<24x120xbf16>
    %c3_55 = arith.constant 3 : index
    %c0_56 = arith.constant 0 : index
    %c0_57 = arith.constant 0 : index
    %87 = vector.load %arg3[%c3_55, %c0_56, %c0_57] : memref<7x120x288xbf16, #tpu.memory_space<vmem>>, vector<1x120x288xbf16>
    %88 = vector.shape_cast %87 : vector<1x120x288xbf16> to vector<120x288xbf16>
    %cst_58 = arith.constant dense<0.000000e+00> : vector<24x288xf32>
    %89 = tpu.matmul %86, %88, %cst_58 {dimension_numbers = #tpu.dot_dimension_numbers<[1], [0], [0], [1], [0, 0, 1, 1], [], []>} : vector<24x120xbf16>, vector<120x288xbf16>, vector<24x288xf32> -> vector<24x288xf32>
    %90 = vector.extract_strided_slice %69 {offsets = [4, 0], sizes = [24, 120], strides = [1, 1]} : vector<30x120xf32> to vector<24x120xf32>
    %91 = arith.truncf %90 : vector<24x120xf32> to vector<24x120xbf16>
    %c4_59 = arith.constant 4 : index
    %c0_60 = arith.constant 0 : index
    %c0_61 = arith.constant 0 : index
    %92 = vector.load %arg3[%c4_59, %c0_60, %c0_61] : memref<7x120x288xbf16, #tpu.memory_space<vmem>>, vector<1x120x288xbf16>
    %93 = vector.shape_cast %92 : vector<1x120x288xbf16> to vector<120x288xbf16>
    %cst_62 = arith.constant dense<0.000000e+00> : vector<24x288xf32>
    %94 = tpu.matmul %91, %93, %cst_62 {dimension_numbers = #tpu.dot_dimension_numbers<[1], [0], [0], [1], [0, 0, 1, 1], [], []>} : vector<24x120xbf16>, vector<120x288xbf16>, vector<24x288xf32> -> vector<24x288xf32>
    %95 = vector.extract_strided_slice %69 {offsets = [5, 0], sizes = [24, 120], strides = [1, 1]} : vector<30x120xf32> to vector<24x120xf32>
    %96 = arith.truncf %95 : vector<24x120xf32> to vector<24x120xbf16>
    %c5_63 = arith.constant 5 : index
    %c0_64 = arith.constant 0 : index
    %c0_65 = arith.constant 0 : index
    %97 = vector.load %arg3[%c5_63, %c0_64, %c0_65] : memref<7x120x288xbf16, #tpu.memory_space<vmem>>, vector<1x120x288xbf16>
    %98 = vector.shape_cast %97 : vector<1x120x288xbf16> to vector<120x288xbf16>
    %cst_66 = arith.constant dense<0.000000e+00> : vector<24x288xf32>
    %99 = tpu.matmul %96, %98, %cst_66 {dimension_numbers = #tpu.dot_dimension_numbers<[1], [0], [0], [1], [0, 0, 1, 1], [], []>} : vector<24x120xbf16>, vector<120x288xbf16>, vector<24x288xf32> -> vector<24x288xf32>
    %100 = vector.extract_strided_slice %69 {offsets = [6, 0], sizes = [24, 120], strides = [1, 1]} : vector<30x120xf32> to vector<24x120xf32>
    %101 = arith.truncf %100 : vector<24x120xf32> to vector<24x120xbf16>
    %c6_67 = arith.constant 6 : index
    %c0_68 = arith.constant 0 : index
    %c0_69 = arith.constant 0 : index
    %102 = vector.load %arg3[%c6_67, %c0_68, %c0_69] : memref<7x120x288xbf16, #tpu.memory_space<vmem>>, vector<1x120x288xbf16>
    %103 = vector.shape_cast %102 : vector<1x120x288xbf16> to vector<120x288xbf16>
    %cst_70 = arith.constant dense<0.000000e+00> : vector<24x288xf32>
    %104 = tpu.matmul %101, %103, %cst_70 {dimension_numbers = #tpu.dot_dimension_numbers<[1], [0], [0], [1], [0, 0, 1, 1], [], []>} : vector<24x120xbf16>, vector<120x288xbf16>, vector<24x288xf32> -> vector<24x288xf32>
    %105 = arith.addf %74, %79 : vector<24x288xf32>
    %106 = arith.addf %84, %89 : vector<24x288xf32>
    %107 = arith.addf %105, %106 : vector<24x288xf32>
    %108 = arith.addf %94, %99 : vector<24x288xf32>
    %109 = arith.addf %108, %104 : vector<24x288xf32>
    %110 = arith.addf %107, %109 : vector<24x288xf32>
    %111 = arith.addf %110, %5 : vector<24x288xf32>
    %cst_71 = arith.constant 0.000000e+00 : f32
    %112 = vector.broadcast %cst_71 : f32 to vector<24x288xf32>
    %113 = arith.maximumf %111, %112 : vector<24x288xf32>
    %114 = vector.extract_strided_slice %113 {offsets = [0, 0], sizes = [23, 288], strides = [1, 1]} : vector<24x288xf32> to vector<23x288xf32>
    %115 = vector.extract_strided_slice %113 {offsets = [1, 0], sizes = [23, 288], strides = [1, 1]} : vector<24x288xf32> to vector<23x288xf32>
    %116 = arith.maximumf %114, %115 : vector<23x288xf32>
    %117 = vector.extract_strided_slice %116 {offsets = [0, 0], sizes = [23, 272], strides = [1, 1]} : vector<23x288xf32> to vector<23x272xf32>
    %118 = vector.extract_strided_slice %116 {offsets = [0, 16], sizes = [23, 272], strides = [1, 1]} : vector<23x288xf32> to vector<23x272xf32>
    %119 = arith.maximumf %117, %118 : vector<23x272xf32>
    %120 = arith.truncf %119 : vector<23x272xf32> to vector<23x272xbf16>
    %cst_72 = arith.constant dense<0.000000e+00> : vector<23x144xf32>
    %121 = tpu.matmul %120, %11, %cst_72 {dimension_numbers = #tpu.dot_dimension_numbers<[1], [0], [0], [1], [0, 0, 1, 1], [], []>} : vector<23x272xbf16>, vector<272x144xbf16>, vector<23x144xf32> -> vector<23x144xf32>
    %c1_73 = arith.constant 1 : index
    %c0_74 = arith.constant 0 : index
    %c0_75 = arith.constant 0 : index
    %122 = vector.load %arg0[%c1_73, %c0_74, %c0_75] : memref<2x66x42xf32, #tpu.memory_space<vmem>>, vector<1x66x42xf32>
    %123 = vector.shape_cast %122 : vector<1x66x42xf32> to vector<66x42xf32>
    %124 = vector.extract_strided_slice %123 {offsets = [0, 0], sizes = [60, 42], strides = [1, 1]} : vector<66x42xf32> to vector<60x42xf32>
    %125 = arith.truncf %124 : vector<60x42xf32> to vector<60x42xbf16>
    %c0_76 = arith.constant 0 : index
    %c0_77 = arith.constant 0 : index
    %c0_78 = arith.constant 0 : index
    %126 = vector.load %arg2[%c0_76, %c0_77, %c0_78] : memref<7x42x240xbf16, #tpu.memory_space<vmem>>, vector<1x42x240xbf16>
    %127 = vector.shape_cast %126 : vector<1x42x240xbf16> to vector<42x240xbf16>
    %cst_79 = arith.constant dense<0.000000e+00> : vector<60x240xf32>
    %128 = tpu.matmul %125, %127, %cst_79 {dimension_numbers = #tpu.dot_dimension_numbers<[1], [0], [0], [1], [0, 0, 1, 1], [], []>} : vector<60x42xbf16>, vector<42x240xbf16>, vector<60x240xf32> -> vector<60x240xf32>
    %129 = vector.extract_strided_slice %123 {offsets = [1, 0], sizes = [60, 42], strides = [1, 1]} : vector<66x42xf32> to vector<60x42xf32>
    %130 = arith.truncf %129 : vector<60x42xf32> to vector<60x42xbf16>
    %c1_80 = arith.constant 1 : index
    %c0_81 = arith.constant 0 : index
    %c0_82 = arith.constant 0 : index
    %131 = vector.load %arg2[%c1_80, %c0_81, %c0_82] : memref<7x42x240xbf16, #tpu.memory_space<vmem>>, vector<1x42x240xbf16>
    %132 = vector.shape_cast %131 : vector<1x42x240xbf16> to vector<42x240xbf16>
    %cst_83 = arith.constant dense<0.000000e+00> : vector<60x240xf32>
    %133 = tpu.matmul %130, %132, %cst_83 {dimension_numbers = #tpu.dot_dimension_numbers<[1], [0], [0], [1], [0, 0, 1, 1], [], []>} : vector<60x42xbf16>, vector<42x240xbf16>, vector<60x240xf32> -> vector<60x240xf32>
    %134 = vector.extract_strided_slice %123 {offsets = [2, 0], sizes = [60, 42], strides = [1, 1]} : vector<66x42xf32> to vector<60x42xf32>
    %135 = arith.truncf %134 : vector<60x42xf32> to vector<60x42xbf16>
    %c2_84 = arith.constant 2 : index
    %c0_85 = arith.constant 0 : index
    %c0_86 = arith.constant 0 : index
    %136 = vector.load %arg2[%c2_84, %c0_85, %c0_86] : memref<7x42x240xbf16, #tpu.memory_space<vmem>>, vector<1x42x240xbf16>
    %137 = vector.shape_cast %136 : vector<1x42x240xbf16> to vector<42x240xbf16>
    %cst_87 = arith.constant dense<0.000000e+00> : vector<60x240xf32>
    %138 = tpu.matmul %135, %137, %cst_87 {dimension_numbers = #tpu.dot_dimension_numbers<[1], [0], [0], [1], [0, 0, 1, 1], [], []>} : vector<60x42xbf16>, vector<42x240xbf16>, vector<60x240xf32> -> vector<60x240xf32>
    %139 = vector.extract_strided_slice %123 {offsets = [3, 0], sizes = [60, 42], strides = [1, 1]} : vector<66x42xf32> to vector<60x42xf32>
    %140 = arith.truncf %139 : vector<60x42xf32> to vector<60x42xbf16>
    %c3_88 = arith.constant 3 : index
    %c0_89 = arith.constant 0 : index
    %c0_90 = arith.constant 0 : index
    %141 = vector.load %arg2[%c3_88, %c0_89, %c0_90] : memref<7x42x240xbf16, #tpu.memory_space<vmem>>, vector<1x42x240xbf16>
    %142 = vector.shape_cast %141 : vector<1x42x240xbf16> to vector<42x240xbf16>
    %cst_91 = arith.constant dense<0.000000e+00> : vector<60x240xf32>
    %143 = tpu.matmul %140, %142, %cst_91 {dimension_numbers = #tpu.dot_dimension_numbers<[1], [0], [0], [1], [0, 0, 1, 1], [], []>} : vector<60x42xbf16>, vector<42x240xbf16>, vector<60x240xf32> -> vector<60x240xf32>
    %144 = vector.extract_strided_slice %123 {offsets = [4, 0], sizes = [60, 42], strides = [1, 1]} : vector<66x42xf32> to vector<60x42xf32>
    %145 = arith.truncf %144 : vector<60x42xf32> to vector<60x42xbf16>
    %c4_92 = arith.constant 4 : index
    %c0_93 = arith.constant 0 : index
    %c0_94 = arith.constant 0 : index
    %146 = vector.load %arg2[%c4_92, %c0_93, %c0_94] : memref<7x42x240xbf16, #tpu.memory_space<vmem>>, vector<1x42x240xbf16>
    %147 = vector.shape_cast %146 : vector<1x42x240xbf16> to vector<42x240xbf16>
    %cst_95 = arith.constant dense<0.000000e+00> : vector<60x240xf32>
    %148 = tpu.matmul %145, %147, %cst_95 {dimension_numbers = #tpu.dot_dimension_numbers<[1], [0], [0], [1], [0, 0, 1, 1], [], []>} : vector<60x42xbf16>, vector<42x240xbf16>, vector<60x240xf32> -> vector<60x240xf32>
    %149 = vector.extract_strided_slice %123 {offsets = [5, 0], sizes = [60, 42], strides = [1, 1]} : vector<66x42xf32> to vector<60x42xf32>
    %150 = arith.truncf %149 : vector<60x42xf32> to vector<60x42xbf16>
    %c5_96 = arith.constant 5 : index
    %c0_97 = arith.constant 0 : index
    %c0_98 = arith.constant 0 : index
    %151 = vector.load %arg2[%c5_96, %c0_97, %c0_98] : memref<7x42x240xbf16, #tpu.memory_space<vmem>>, vector<1x42x240xbf16>
    %152 = vector.shape_cast %151 : vector<1x42x240xbf16> to vector<42x240xbf16>
    %cst_99 = arith.constant dense<0.000000e+00> : vector<60x240xf32>
    %153 = tpu.matmul %150, %152, %cst_99 {dimension_numbers = #tpu.dot_dimension_numbers<[1], [0], [0], [1], [0, 0, 1, 1], [], []>} : vector<60x42xbf16>, vector<42x240xbf16>, vector<60x240xf32> -> vector<60x240xf32>
    %154 = vector.extract_strided_slice %123 {offsets = [6, 0], sizes = [60, 42], strides = [1, 1]} : vector<66x42xf32> to vector<60x42xf32>
    %155 = arith.truncf %154 : vector<60x42xf32> to vector<60x42xbf16>
    %c6_100 = arith.constant 6 : index
    %c0_101 = arith.constant 0 : index
    %c0_102 = arith.constant 0 : index
    %156 = vector.load %arg2[%c6_100, %c0_101, %c0_102] : memref<7x42x240xbf16, #tpu.memory_space<vmem>>, vector<1x42x240xbf16>
    %157 = vector.shape_cast %156 : vector<1x42x240xbf16> to vector<42x240xbf16>
    %cst_103 = arith.constant dense<0.000000e+00> : vector<60x240xf32>
    %158 = tpu.matmul %155, %157, %cst_103 {dimension_numbers = #tpu.dot_dimension_numbers<[1], [0], [0], [1], [0, 0, 1, 1], [], []>} : vector<60x42xbf16>, vector<42x240xbf16>, vector<60x240xf32> -> vector<60x240xf32>
    %159 = arith.addf %128, %133 : vector<60x240xf32>
    %160 = arith.addf %138, %143 : vector<60x240xf32>
    %161 = arith.addf %159, %160 : vector<60x240xf32>
    %162 = arith.addf %148, %153 : vector<60x240xf32>
    %163 = arith.addf %162, %158 : vector<60x240xf32>
    %164 = arith.addf %161, %163 : vector<60x240xf32>
    %165 = arith.addf %164, %2 : vector<60x240xf32>
    %cst_104 = arith.constant 0.000000e+00 : f32
    %166 = vector.broadcast %cst_104 : f32 to vector<60x240xf32>
    %167 = arith.maximumf %165, %166 : vector<60x240xf32>
    %168 = vector.extract_strided_slice %167 {offsets = [0, 0], sizes = [59, 240], strides = [1, 1]} : vector<60x240xf32> to vector<59x240xf32>
    %169 = vector.extract_strided_slice %167 {offsets = [1, 0], sizes = [59, 240], strides = [1, 1]} : vector<60x240xf32> to vector<59x240xf32>
    %170 = arith.maximumf %168, %169 : vector<59x240xf32>
    %171 = arith.truncf %170 : vector<59x240xf32> to vector<59x240xbf16>
    %cst_105 = arith.constant dense<0.000000e+00> : vector<30x240xf32>
    %172 = tpu.matmul %9, %171, %cst_105 {dimension_numbers = #tpu.dot_dimension_numbers<[1], [0], [0], [1], [0, 0, 1, 1], [], []>} : vector<30x59xbf16>, vector<59x240xbf16>, vector<30x240xf32> -> vector<30x240xf32>
    %173 = vector.extract_strided_slice %172 {offsets = [0, 0], sizes = [30, 234], strides = [1, 1]} : vector<30x240xf32> to vector<30x234xf32>
    %174 = vector.extract_strided_slice %172 {offsets = [0, 6], sizes = [30, 234], strides = [1, 1]} : vector<30x240xf32> to vector<30x234xf32>
    %175 = arith.maximumf %173, %174 : vector<30x234xf32>
    %176 = arith.truncf %175 : vector<30x234xf32> to vector<30x234xbf16>
    %cst_106 = arith.constant dense<0.000000e+00> : vector<30x120xf32>
    %177 = tpu.matmul %176, %10, %cst_106 {dimension_numbers = #tpu.dot_dimension_numbers<[1], [0], [0], [1], [0, 0, 1, 1], [], []>} : vector<30x234xbf16>, vector<234x120xbf16>, vector<30x120xf32> -> vector<30x120xf32>
    %178 = vector.extract_strided_slice %177 {offsets = [0, 0], sizes = [24, 120], strides = [1, 1]} : vector<30x120xf32> to vector<24x120xf32>
    %179 = arith.truncf %178 : vector<24x120xf32> to vector<24x120xbf16>
    %c0_107 = arith.constant 0 : index
    %c0_108 = arith.constant 0 : index
    %c0_109 = arith.constant 0 : index
    %180 = vector.load %arg3[%c0_107, %c0_108, %c0_109] : memref<7x120x288xbf16, #tpu.memory_space<vmem>>, vector<1x120x288xbf16>
    %181 = vector.shape_cast %180 : vector<1x120x288xbf16> to vector<120x288xbf16>
    %cst_110 = arith.constant dense<0.000000e+00> : vector<24x288xf32>
    %182 = tpu.matmul %179, %181, %cst_110 {dimension_numbers = #tpu.dot_dimension_numbers<[1], [0], [0], [1], [0, 0, 1, 1], [], []>} : vector<24x120xbf16>, vector<120x288xbf16>, vector<24x288xf32> -> vector<24x288xf32>
    %183 = vector.extract_strided_slice %177 {offsets = [1, 0], sizes = [24, 120], strides = [1, 1]} : vector<30x120xf32> to vector<24x120xf32>
    %184 = arith.truncf %183 : vector<24x120xf32> to vector<24x120xbf16>
    %c1_111 = arith.constant 1 : index
    %c0_112 = arith.constant 0 : index
    %c0_113 = arith.constant 0 : index
    %185 = vector.load %arg3[%c1_111, %c0_112, %c0_113] : memref<7x120x288xbf16, #tpu.memory_space<vmem>>, vector<1x120x288xbf16>
    %186 = vector.shape_cast %185 : vector<1x120x288xbf16> to vector<120x288xbf16>
    %cst_114 = arith.constant dense<0.000000e+00> : vector<24x288xf32>
    %187 = tpu.matmul %184, %186, %cst_114 {dimension_numbers = #tpu.dot_dimension_numbers<[1], [0], [0], [1], [0, 0, 1, 1], [], []>} : vector<24x120xbf16>, vector<120x288xbf16>, vector<24x288xf32> -> vector<24x288xf32>
    %188 = vector.extract_strided_slice %177 {offsets = [2, 0], sizes = [24, 120], strides = [1, 1]} : vector<30x120xf32> to vector<24x120xf32>
    %189 = arith.truncf %188 : vector<24x120xf32> to vector<24x120xbf16>
    %c2_115 = arith.constant 2 : index
    %c0_116 = arith.constant 0 : index
    %c0_117 = arith.constant 0 : index
    %190 = vector.load %arg3[%c2_115, %c0_116, %c0_117] : memref<7x120x288xbf16, #tpu.memory_space<vmem>>, vector<1x120x288xbf16>
    %191 = vector.shape_cast %190 : vector<1x120x288xbf16> to vector<120x288xbf16>
    %cst_118 = arith.constant dense<0.000000e+00> : vector<24x288xf32>
    %192 = tpu.matmul %189, %191, %cst_118 {dimension_numbers = #tpu.dot_dimension_numbers<[1], [0], [0], [1], [0, 0, 1, 1], [], []>} : vector<24x120xbf16>, vector<120x288xbf16>, vector<24x288xf32> -> vector<24x288xf32>
    %193 = vector.extract_strided_slice %177 {offsets = [3, 0], sizes = [24, 120], strides = [1, 1]} : vector<30x120xf32> to vector<24x120xf32>
    %194 = arith.truncf %193 : vector<24x120xf32> to vector<24x120xbf16>
    %c3_119 = arith.constant 3 : index
    %c0_120 = arith.constant 0 : index
    %c0_121 = arith.constant 0 : index
    %195 = vector.load %arg3[%c3_119, %c0_120, %c0_121] : memref<7x120x288xbf16, #tpu.memory_space<vmem>>, vector<1x120x288xbf16>
    %196 = vector.shape_cast %195 : vector<1x120x288xbf16> to vector<120x288xbf16>
    %cst_122 = arith.constant dense<0.000000e+00> : vector<24x288xf32>
    %197 = tpu.matmul %194, %196, %cst_122 {dimension_numbers = #tpu.dot_dimension_numbers<[1], [0], [0], [1], [0, 0, 1, 1], [], []>} : vector<24x120xbf16>, vector<120x288xbf16>, vector<24x288xf32> -> vector<24x288xf32>
    %198 = vector.extract_strided_slice %177 {offsets = [4, 0], sizes = [24, 120], strides = [1, 1]} : vector<30x120xf32> to vector<24x120xf32>
    %199 = arith.truncf %198 : vector<24x120xf32> to vector<24x120xbf16>
    %c4_123 = arith.constant 4 : index
    %c0_124 = arith.constant 0 : index
    %c0_125 = arith.constant 0 : index
    %200 = vector.load %arg3[%c4_123, %c0_124, %c0_125] : memref<7x120x288xbf16, #tpu.memory_space<vmem>>, vector<1x120x288xbf16>
    %201 = vector.shape_cast %200 : vector<1x120x288xbf16> to vector<120x288xbf16>
    %cst_126 = arith.constant dense<0.000000e+00> : vector<24x288xf32>
    %202 = tpu.matmul %199, %201, %cst_126 {dimension_numbers = #tpu.dot_dimension_numbers<[1], [0], [0], [1], [0, 0, 1, 1], [], []>} : vector<24x120xbf16>, vector<120x288xbf16>, vector<24x288xf32> -> vector<24x288xf32>
    %203 = vector.extract_strided_slice %177 {offsets = [5, 0], sizes = [24, 120], strides = [1, 1]} : vector<30x120xf32> to vector<24x120xf32>
    %204 = arith.truncf %203 : vector<24x120xf32> to vector<24x120xbf16>
    %c5_127 = arith.constant 5 : index
    %c0_128 = arith.constant 0 : index
    %c0_129 = arith.constant 0 : index
    %205 = vector.load %arg3[%c5_127, %c0_128, %c0_129] : memref<7x120x288xbf16, #tpu.memory_space<vmem>>, vector<1x120x288xbf16>
    %206 = vector.shape_cast %205 : vector<1x120x288xbf16> to vector<120x288xbf16>
    %cst_130 = arith.constant dense<0.000000e+00> : vector<24x288xf32>
    %207 = tpu.matmul %204, %206, %cst_130 {dimension_numbers = #tpu.dot_dimension_numbers<[1], [0], [0], [1], [0, 0, 1, 1], [], []>} : vector<24x120xbf16>, vector<120x288xbf16>, vector<24x288xf32> -> vector<24x288xf32>
    %208 = vector.extract_strided_slice %177 {offsets = [6, 0], sizes = [24, 120], strides = [1, 1]} : vector<30x120xf32> to vector<24x120xf32>
    %209 = arith.truncf %208 : vector<24x120xf32> to vector<24x120xbf16>
    %c6_131 = arith.constant 6 : index
    %c0_132 = arith.constant 0 : index
    %c0_133 = arith.constant 0 : index
    %210 = vector.load %arg3[%c6_131, %c0_132, %c0_133] : memref<7x120x288xbf16, #tpu.memory_space<vmem>>, vector<1x120x288xbf16>
    %211 = vector.shape_cast %210 : vector<1x120x288xbf16> to vector<120x288xbf16>
    %cst_134 = arith.constant dense<0.000000e+00> : vector<24x288xf32>
    %212 = tpu.matmul %209, %211, %cst_134 {dimension_numbers = #tpu.dot_dimension_numbers<[1], [0], [0], [1], [0, 0, 1, 1], [], []>} : vector<24x120xbf16>, vector<120x288xbf16>, vector<24x288xf32> -> vector<24x288xf32>
    %213 = arith.addf %182, %187 : vector<24x288xf32>
    %214 = arith.addf %192, %197 : vector<24x288xf32>
    %215 = arith.addf %213, %214 : vector<24x288xf32>
    %216 = arith.addf %202, %207 : vector<24x288xf32>
    %217 = arith.addf %216, %212 : vector<24x288xf32>
    %218 = arith.addf %215, %217 : vector<24x288xf32>
    %219 = arith.addf %218, %5 : vector<24x288xf32>
    %cst_135 = arith.constant 0.000000e+00 : f32
    %220 = vector.broadcast %cst_135 : f32 to vector<24x288xf32>
    %221 = arith.maximumf %219, %220 : vector<24x288xf32>
    %222 = vector.extract_strided_slice %221 {offsets = [0, 0], sizes = [23, 288], strides = [1, 1]} : vector<24x288xf32> to vector<23x288xf32>
    %223 = vector.extract_strided_slice %221 {offsets = [1, 0], sizes = [23, 288], strides = [1, 1]} : vector<24x288xf32> to vector<23x288xf32>
    %224 = arith.maximumf %222, %223 : vector<23x288xf32>
    %225 = vector.extract_strided_slice %224 {offsets = [0, 0], sizes = [23, 272], strides = [1, 1]} : vector<23x288xf32> to vector<23x272xf32>
    %226 = vector.extract_strided_slice %224 {offsets = [0, 16], sizes = [23, 272], strides = [1, 1]} : vector<23x288xf32> to vector<23x272xf32>
    %227 = arith.maximumf %225, %226 : vector<23x272xf32>
    %228 = arith.truncf %227 : vector<23x272xf32> to vector<23x272xbf16>
    %cst_136 = arith.constant dense<0.000000e+00> : vector<23x144xf32>
    %229 = tpu.matmul %228, %11, %cst_136 {dimension_numbers = #tpu.dot_dimension_numbers<[1], [0], [0], [1], [0, 0, 1, 1], [], []>} : vector<23x272xbf16>, vector<272x144xbf16>, vector<23x144xf32> -> vector<23x144xf32>
    %230 = vector.shape_cast %6 : vector<1x120xf32> to vector<1x120xf32>
    %231 = vector.broadcast %230 : vector<1x120xf32> to vector<2x120xf32>
    %232 = vector.extract_strided_slice %121 {offsets = [0, 0], sizes = [1, 144], strides = [1, 1]} : vector<23x144xf32> to vector<1x144xf32>
    %233 = vector.extract_strided_slice %229 {offsets = [0, 0], sizes = [1, 144], strides = [1, 1]} : vector<23x144xf32> to vector<1x144xf32>
    %234 = tpu.concatenate %232, %233 in 0 : vector<1x144xf32>, vector<1x144xf32> -> vector<2x144xf32>
    %235 = arith.truncf %234 : vector<2x144xf32> to vector<2x144xbf16>
    %c0_137 = arith.constant 0 : index
    %c0_138 = arith.constant 0 : index
    %c0_139 = arith.constant 0 : index
    %236 = vector.load %arg5[%c0_137, %c0_138, %c0_139] : memref<12x144x120xbf16, #tpu.memory_space<vmem>>, vector<1x144x120xbf16>
    %237 = vector.shape_cast %236 : vector<1x144x120xbf16> to vector<144x120xbf16>
    %cst_140 = arith.constant dense<0.000000e+00> : vector<2x120xf32>
    %238 = tpu.matmul %235, %237, %cst_140 {dimension_numbers = #tpu.dot_dimension_numbers<[1], [0], [0], [1], [0, 0, 1, 1], [], []>} : vector<2x144xbf16>, vector<144x120xbf16>, vector<2x120xf32> -> vector<2x120xf32>
    %239 = arith.addf %231, %238 : vector<2x120xf32>
    %240 = vector.extract_strided_slice %121 {offsets = [2, 0], sizes = [1, 144], strides = [1, 1]} : vector<23x144xf32> to vector<1x144xf32>
    %241 = vector.extract_strided_slice %229 {offsets = [2, 0], sizes = [1, 144], strides = [1, 1]} : vector<23x144xf32> to vector<1x144xf32>
    %242 = tpu.concatenate %240, %241 in 0 : vector<1x144xf32>, vector<1x144xf32> -> vector<2x144xf32>
    %243 = arith.truncf %242 : vector<2x144xf32> to vector<2x144xbf16>
    %c1_141 = arith.constant 1 : index
    %c0_142 = arith.constant 0 : index
    %c0_143 = arith.constant 0 : index
    %244 = vector.load %arg5[%c1_141, %c0_142, %c0_143] : memref<12x144x120xbf16, #tpu.memory_space<vmem>>, vector<1x144x120xbf16>
    %245 = vector.shape_cast %244 : vector<1x144x120xbf16> to vector<144x120xbf16>
    %cst_144 = arith.constant dense<0.000000e+00> : vector<2x120xf32>
    %246 = tpu.matmul %243, %245, %cst_144 {dimension_numbers = #tpu.dot_dimension_numbers<[1], [0], [0], [1], [0, 0, 1, 1], [], []>} : vector<2x144xbf16>, vector<144x120xbf16>, vector<2x120xf32> -> vector<2x120xf32>
    %247 = arith.addf %239, %246 : vector<2x120xf32>
    %248 = vector.extract_strided_slice %121 {offsets = [4, 0], sizes = [1, 144], strides = [1, 1]} : vector<23x144xf32> to vector<1x144xf32>
    %249 = vector.extract_strided_slice %229 {offsets = [4, 0], sizes = [1, 144], strides = [1, 1]} : vector<23x144xf32> to vector<1x144xf32>
    %250 = tpu.concatenate %248, %249 in 0 : vector<1x144xf32>, vector<1x144xf32> -> vector<2x144xf32>
    %251 = arith.truncf %250 : vector<2x144xf32> to vector<2x144xbf16>
    %c2_145 = arith.constant 2 : index
    %c0_146 = arith.constant 0 : index
    %c0_147 = arith.constant 0 : index
    %252 = vector.load %arg5[%c2_145, %c0_146, %c0_147] : memref<12x144x120xbf16, #tpu.memory_space<vmem>>, vector<1x144x120xbf16>
    %253 = vector.shape_cast %252 : vector<1x144x120xbf16> to vector<144x120xbf16>
    %cst_148 = arith.constant dense<0.000000e+00> : vector<2x120xf32>
    %254 = tpu.matmul %251, %253, %cst_148 {dimension_numbers = #tpu.dot_dimension_numbers<[1], [0], [0], [1], [0, 0, 1, 1], [], []>} : vector<2x144xbf16>, vector<144x120xbf16>, vector<2x120xf32> -> vector<2x120xf32>
    %255 = arith.addf %247, %254 : vector<2x120xf32>
    %256 = vector.extract_strided_slice %121 {offsets = [6, 0], sizes = [1, 144], strides = [1, 1]} : vector<23x144xf32> to vector<1x144xf32>
    %257 = vector.extract_strided_slice %229 {offsets = [6, 0], sizes = [1, 144], strides = [1, 1]} : vector<23x144xf32> to vector<1x144xf32>
    %258 = tpu.concatenate %256, %257 in 0 : vector<1x144xf32>, vector<1x144xf32> -> vector<2x144xf32>
    %259 = arith.truncf %258 : vector<2x144xf32> to vector<2x144xbf16>
    %c3_149 = arith.constant 3 : index
    %c0_150 = arith.constant 0 : index
    %c0_151 = arith.constant 0 : index
    %260 = vector.load %arg5[%c3_149, %c0_150, %c0_151] : memref<12x144x120xbf16, #tpu.memory_space<vmem>>, vector<1x144x120xbf16>
    %261 = vector.shape_cast %260 : vector<1x144x120xbf16> to vector<144x120xbf16>
    %cst_152 = arith.constant dense<0.000000e+00> : vector<2x120xf32>
    %262 = tpu.matmul %259, %261, %cst_152 {dimension_numbers = #tpu.dot_dimension_numbers<[1], [0], [0], [1], [0, 0, 1, 1], [], []>} : vector<2x144xbf16>, vector<144x120xbf16>, vector<2x120xf32> -> vector<2x120xf32>
    %263 = arith.addf %255, %262 : vector<2x120xf32>
    %264 = vector.extract_strided_slice %121 {offsets = [8, 0], sizes = [1, 144], strides = [1, 1]} : vector<23x144xf32> to vector<1x144xf32>
    %265 = vector.extract_strided_slice %229 {offsets = [8, 0], sizes = [1, 144], strides = [1, 1]} : vector<23x144xf32> to vector<1x144xf32>
    %266 = tpu.concatenate %264, %265 in 0 : vector<1x144xf32>, vector<1x144xf32> -> vector<2x144xf32>
    %267 = arith.truncf %266 : vector<2x144xf32> to vector<2x144xbf16>
    %c4_153 = arith.constant 4 : index
    %c0_154 = arith.constant 0 : index
    %c0_155 = arith.constant 0 : index
    %268 = vector.load %arg5[%c4_153, %c0_154, %c0_155] : memref<12x144x120xbf16, #tpu.memory_space<vmem>>, vector<1x144x120xbf16>
    %269 = vector.shape_cast %268 : vector<1x144x120xbf16> to vector<144x120xbf16>
    %cst_156 = arith.constant dense<0.000000e+00> : vector<2x120xf32>
    %270 = tpu.matmul %267, %269, %cst_156 {dimension_numbers = #tpu.dot_dimension_numbers<[1], [0], [0], [1], [0, 0, 1, 1], [], []>} : vector<2x144xbf16>, vector<144x120xbf16>, vector<2x120xf32> -> vector<2x120xf32>
    %271 = arith.addf %263, %270 : vector<2x120xf32>
    %272 = vector.extract_strided_slice %121 {offsets = [10, 0], sizes = [1, 144], strides = [1, 1]} : vector<23x144xf32> to vector<1x144xf32>
    %273 = vector.extract_strided_slice %229 {offsets = [10, 0], sizes = [1, 144], strides = [1, 1]} : vector<23x144xf32> to vector<1x144xf32>
    %274 = tpu.concatenate %272, %273 in 0 : vector<1x144xf32>, vector<1x144xf32> -> vector<2x144xf32>
    %275 = arith.truncf %274 : vector<2x144xf32> to vector<2x144xbf16>
    %c5_157 = arith.constant 5 : index
    %c0_158 = arith.constant 0 : index
    %c0_159 = arith.constant 0 : index
    %276 = vector.load %arg5[%c5_157, %c0_158, %c0_159] : memref<12x144x120xbf16, #tpu.memory_space<vmem>>, vector<1x144x120xbf16>
    %277 = vector.shape_cast %276 : vector<1x144x120xbf16> to vector<144x120xbf16>
    %cst_160 = arith.constant dense<0.000000e+00> : vector<2x120xf32>
    %278 = tpu.matmul %275, %277, %cst_160 {dimension_numbers = #tpu.dot_dimension_numbers<[1], [0], [0], [1], [0, 0, 1, 1], [], []>} : vector<2x144xbf16>, vector<144x120xbf16>, vector<2x120xf32> -> vector<2x120xf32>
    %279 = arith.addf %271, %278 : vector<2x120xf32>
    %280 = vector.extract_strided_slice %121 {offsets = [12, 0], sizes = [1, 144], strides = [1, 1]} : vector<23x144xf32> to vector<1x144xf32>
    %281 = vector.extract_strided_slice %229 {offsets = [12, 0], sizes = [1, 144], strides = [1, 1]} : vector<23x144xf32> to vector<1x144xf32>
    %282 = tpu.concatenate %280, %281 in 0 : vector<1x144xf32>, vector<1x144xf32> -> vector<2x144xf32>
    %283 = arith.truncf %282 : vector<2x144xf32> to vector<2x144xbf16>
    %c6_161 = arith.constant 6 : index
    %c0_162 = arith.constant 0 : index
    %c0_163 = arith.constant 0 : index
    %284 = vector.load %arg5[%c6_161, %c0_162, %c0_163] : memref<12x144x120xbf16, #tpu.memory_space<vmem>>, vector<1x144x120xbf16>
    %285 = vector.shape_cast %284 : vector<1x144x120xbf16> to vector<144x120xbf16>
    %cst_164 = arith.constant dense<0.000000e+00> : vector<2x120xf32>
    %286 = tpu.matmul %283, %285, %cst_164 {dimension_numbers = #tpu.dot_dimension_numbers<[1], [0], [0], [1], [0, 0, 1, 1], [], []>} : vector<2x144xbf16>, vector<144x120xbf16>, vector<2x120xf32> -> vector<2x120xf32>
    %287 = arith.addf %279, %286 : vector<2x120xf32>
    %288 = vector.extract_strided_slice %121 {offsets = [14, 0], sizes = [1, 144], strides = [1, 1]} : vector<23x144xf32> to vector<1x144xf32>
    %289 = vector.extract_strided_slice %229 {offsets = [14, 0], sizes = [1, 144], strides = [1, 1]} : vector<23x144xf32> to vector<1x144xf32>
    %290 = tpu.concatenate %288, %289 in 0 : vector<1x144xf32>, vector<1x144xf32> -> vector<2x144xf32>
    %291 = arith.truncf %290 : vector<2x144xf32> to vector<2x144xbf16>
    %c7 = arith.constant 7 : index
    %c0_165 = arith.constant 0 : index
    %c0_166 = arith.constant 0 : index
    %292 = vector.load %arg5[%c7, %c0_165, %c0_166] : memref<12x144x120xbf16, #tpu.memory_space<vmem>>, vector<1x144x120xbf16>
    %293 = vector.shape_cast %292 : vector<1x144x120xbf16> to vector<144x120xbf16>
    %cst_167 = arith.constant dense<0.000000e+00> : vector<2x120xf32>
    %294 = tpu.matmul %291, %293, %cst_167 {dimension_numbers = #tpu.dot_dimension_numbers<[1], [0], [0], [1], [0, 0, 1, 1], [], []>} : vector<2x144xbf16>, vector<144x120xbf16>, vector<2x120xf32> -> vector<2x120xf32>
    %295 = arith.addf %287, %294 : vector<2x120xf32>
    %296 = vector.extract_strided_slice %121 {offsets = [16, 0], sizes = [1, 144], strides = [1, 1]} : vector<23x144xf32> to vector<1x144xf32>
    %297 = vector.extract_strided_slice %229 {offsets = [16, 0], sizes = [1, 144], strides = [1, 1]} : vector<23x144xf32> to vector<1x144xf32>
    %298 = tpu.concatenate %296, %297 in 0 : vector<1x144xf32>, vector<1x144xf32> -> vector<2x144xf32>
    %299 = arith.truncf %298 : vector<2x144xf32> to vector<2x144xbf16>
    %c8 = arith.constant 8 : index
    %c0_168 = arith.constant 0 : index
    %c0_169 = arith.constant 0 : index
    %300 = vector.load %arg5[%c8, %c0_168, %c0_169] : memref<12x144x120xbf16, #tpu.memory_space<vmem>>, vector<1x144x120xbf16>
    %301 = vector.shape_cast %300 : vector<1x144x120xbf16> to vector<144x120xbf16>
    %cst_170 = arith.constant dense<0.000000e+00> : vector<2x120xf32>
    %302 = tpu.matmul %299, %301, %cst_170 {dimension_numbers = #tpu.dot_dimension_numbers<[1], [0], [0], [1], [0, 0, 1, 1], [], []>} : vector<2x144xbf16>, vector<144x120xbf16>, vector<2x120xf32> -> vector<2x120xf32>
    %303 = arith.addf %295, %302 : vector<2x120xf32>
    %304 = vector.extract_strided_slice %121 {offsets = [18, 0], sizes = [1, 144], strides = [1, 1]} : vector<23x144xf32> to vector<1x144xf32>
    %305 = vector.extract_strided_slice %229 {offsets = [18, 0], sizes = [1, 144], strides = [1, 1]} : vector<23x144xf32> to vector<1x144xf32>
    %306 = tpu.concatenate %304, %305 in 0 : vector<1x144xf32>, vector<1x144xf32> -> vector<2x144xf32>
    %307 = arith.truncf %306 : vector<2x144xf32> to vector<2x144xbf16>
    %c9 = arith.constant 9 : index
    %c0_171 = arith.constant 0 : index
    %c0_172 = arith.constant 0 : index
    %308 = vector.load %arg5[%c9, %c0_171, %c0_172] : memref<12x144x120xbf16, #tpu.memory_space<vmem>>, vector<1x144x120xbf16>
    %309 = vector.shape_cast %308 : vector<1x144x120xbf16> to vector<144x120xbf16>
    %cst_173 = arith.constant dense<0.000000e+00> : vector<2x120xf32>
    %310 = tpu.matmul %307, %309, %cst_173 {dimension_numbers = #tpu.dot_dimension_numbers<[1], [0], [0], [1], [0, 0, 1, 1], [], []>} : vector<2x144xbf16>, vector<144x120xbf16>, vector<2x120xf32> -> vector<2x120xf32>
    %311 = arith.addf %303, %310 : vector<2x120xf32>
    %312 = vector.extract_strided_slice %121 {offsets = [20, 0], sizes = [1, 144], strides = [1, 1]} : vector<23x144xf32> to vector<1x144xf32>
    %313 = vector.extract_strided_slice %229 {offsets = [20, 0], sizes = [1, 144], strides = [1, 1]} : vector<23x144xf32> to vector<1x144xf32>
    %314 = tpu.concatenate %312, %313 in 0 : vector<1x144xf32>, vector<1x144xf32> -> vector<2x144xf32>
    %315 = arith.truncf %314 : vector<2x144xf32> to vector<2x144xbf16>
    %c10 = arith.constant 10 : index
    %c0_174 = arith.constant 0 : index
    %c0_175 = arith.constant 0 : index
    %316 = vector.load %arg5[%c10, %c0_174, %c0_175] : memref<12x144x120xbf16, #tpu.memory_space<vmem>>, vector<1x144x120xbf16>
    %317 = vector.shape_cast %316 : vector<1x144x120xbf16> to vector<144x120xbf16>
    %cst_176 = arith.constant dense<0.000000e+00> : vector<2x120xf32>
    %318 = tpu.matmul %315, %317, %cst_176 {dimension_numbers = #tpu.dot_dimension_numbers<[1], [0], [0], [1], [0, 0, 1, 1], [], []>} : vector<2x144xbf16>, vector<144x120xbf16>, vector<2x120xf32> -> vector<2x120xf32>
    %319 = arith.addf %311, %318 : vector<2x120xf32>
    %320 = vector.extract_strided_slice %121 {offsets = [22, 0], sizes = [1, 144], strides = [1, 1]} : vector<23x144xf32> to vector<1x144xf32>
    %321 = vector.extract_strided_slice %229 {offsets = [22, 0], sizes = [1, 144], strides = [1, 1]} : vector<23x144xf32> to vector<1x144xf32>
    %322 = tpu.concatenate %320, %321 in 0 : vector<1x144xf32>, vector<1x144xf32> -> vector<2x144xf32>
    %323 = arith.truncf %322 : vector<2x144xf32> to vector<2x144xbf16>
    %c11 = arith.constant 11 : index
    %c0_177 = arith.constant 0 : index
    %c0_178 = arith.constant 0 : index
    %324 = vector.load %arg5[%c11, %c0_177, %c0_178] : memref<12x144x120xbf16, #tpu.memory_space<vmem>>, vector<1x144x120xbf16>
    %325 = vector.shape_cast %324 : vector<1x144x120xbf16> to vector<144x120xbf16>
    %cst_179 = arith.constant dense<0.000000e+00> : vector<2x120xf32>
    %326 = tpu.matmul %323, %325, %cst_179 {dimension_numbers = #tpu.dot_dimension_numbers<[1], [0], [0], [1], [0, 0, 1, 1], [], []>} : vector<2x144xbf16>, vector<144x120xbf16>, vector<2x120xf32> -> vector<2x120xf32>
    %327 = arith.addf %319, %326 : vector<2x120xf32>
    %cst_180 = arith.constant 0.000000e+00 : f32
    %328 = vector.broadcast %cst_180 : f32 to vector<2x120xf32>
    %329 = arith.maximumf %327, %328 : vector<2x120xf32>
    %330 = arith.truncf %329 : vector<2x120xf32> to vector<2x120xbf16>
    %cst_181 = arith.constant dense<0.000000e+00> : vector<2x84xf32>
    %331 = tpu.matmul %330, %12, %cst_181 {dimension_numbers = #tpu.dot_dimension_numbers<[1], [0], [0], [1], [0, 0, 1, 1], [], []>} : vector<2x120xbf16>, vector<120x84xbf16>, vector<2x84xf32> -> vector<2x84xf32>
    %332 = vector.broadcast %7 : vector<1x84xf32> to vector<2x84xf32>
    %333 = arith.addf %331, %332 : vector<2x84xf32>
    %cst_182 = arith.constant 0.000000e+00 : f32
    %334 = vector.broadcast %cst_182 : f32 to vector<2x84xf32>
    %335 = arith.maximumf %333, %334 : vector<2x84xf32>
    %336 = arith.truncf %335 : vector<2x84xf32> to vector<2x84xbf16>
    %cst_183 = arith.constant dense<0.000000e+00> : vector<2x2xf32>
    %337 = tpu.matmul %336, %13, %cst_183 {dimension_numbers = #tpu.dot_dimension_numbers<[1], [0], [0], [1], [0, 0, 1, 1], [], []>} : vector<2x84xbf16>, vector<84x2xbf16>, vector<2x2xf32> -> vector<2x2xf32>
    %338 = vector.broadcast %8 : vector<1x2xf32> to vector<2x2xf32>
    %339 = arith.addf %337, %338 : vector<2x2xf32>
    %c0_184 = arith.constant 0 : index
    %c0_185 = arith.constant 0 : index
    %340 = vector.load %arg7[%c0_184, %c0_185] : memref<2x2xf32, #tpu.memory_space<vmem>>, vector<2x2xf32>
    tpu.vector_store %arg7[%c0_184, %c0_185], %339 {strides = array<i32>} : memref<2x2xf32, #tpu.memory_space<vmem>>, vector<2x2xf32>,
    return
  }
}

</mosaic_0001>

<llo_original>
// kernel: net_forward.1
$region0: #{net_forward.1}
  #allocation0 [shape = 'u32[]', space=smem, size = 0x4, offset = 0x4, fixed_abs, tag = 'smem constant byte address 0x4 - core index']
  #allocation1 [shape = 'u32[144,128]{1,0:T(1,128)}', space=vmem, size = 0x12000, scoped, tag = 'internal scratch']
  %s0 = inlined_call_operand.vmem [shape: f32[2,66,42], index: 0, kind: input, shape index: {}]
  %s1 = inlined_call_operand.vmem [shape: f32[8,288], index: 1, kind: input, shape index: {}]
  %s2 = inlined_call_operand.vmem [shape: bf16[7,42,240], index: 2, kind: input, shape index: {}]
  %s3 = inlined_call_operand.vmem [shape: bf16[7,120,288], index: 3, kind: input, shape index: {}]
  %s4 = inlined_call_operand.vmem [shape: bf16[544,144], index: 4, kind: input, shape index: {}]
  %s5 = inlined_call_operand.vmem [shape: bf16[12,144,120], index: 5, kind: input, shape index: {}]
  %s6 = inlined_call_operand.vmem [shape: bf16[216,84], index: 6, kind: input, shape index: {}]
  %s7 = inlined_call_operand.hbm [shape: f32[2,2], index: 7, kind: output, shape index: {}]
  %s8 = sld [smem:[#allocation0]]
  $region38: #{net_forward.1} parent=0
    _
  %s10 = ssub.s32 1, %s8
  %s11 = scalar_select 0, %s10, %s8
  $region1: #{net_forward.1} parent=0
    #allocation2 [shape = 'u8[1024]{0}', space=vmem, size = 0x400, scoped, tag = 'output window, operand 0, single buffered']
    #allocation3 [shape = 's32[1]{0}', space=sflag, size = 0x4, scoped, tag = 'scoped memory for net_forward.1']
    %12 = vsyncpa [#allocation3], 0
    // Predicated region
    $region2: #{net_forward.1} parent=1 // pred_check
      _
    $region3: #{net_forward.1} parent=1 // pred_check_branch
      %14 = sbr.rel (0) target = $region5
    $region4: #{net_forward.1} parent=1 // pred_region
      _
    $region5: #{net_forward.1} parent=1 // pred_fallthru
      _
    // Predicated region
    $region6: #{net_forward.1} parent=1 // pred_check
      _
    $region7: #{net_forward.1} parent=1 // pred_check_branch
      %16 = sbr.rel (0) target = $region9
    $region8: #{net_forward.1} parent=1 // pred_region
      _
    $region9: #{net_forward.1} parent=1 // pred_fallthru
      _
    // Predicated region
    $region10: #{net_forward.1} parent=1 // pred_check
      _
    $region11: #{net_forward.1} parent=1 // pred_check_branch
      %18 = sbr.rel (0) target = $region13
    $region12: #{net_forward.1} parent=1 // pred_region
      _
    $region13: #{net_forward.1} parent=1 // pred_fallthru
      _
    // Predicated region
    $region14: #{net_forward.1} parent=1 // pred_check
      _
    $region15: #{net_forward.1} parent=1 // pred_check_branch
      %20 = sbr.rel (0) target = $region17
    $region16: #{net_forward.1} parent=1 // pred_region
      _
    $region17: #{net_forward.1} parent=1 // pred_fallthru
      _
    // Predicated region
    $region18: #{net_forward.1} parent=1 // pred_check
      _
    $region19: #{net_forward.1} parent=1 // pred_check_branch
      %22 = sbr.rel (0) target = $region21
    $region20: #{net_forward.1} parent=1 // pred_region
      _
    $region21: #{net_forward.1} parent=1 // pred_fallthru
      _
    // Predicated region
    $region22: #{net_forward.1} parent=1 // pred_check
      _
    $region23: #{net_forward.1} parent=1 // pred_check_branch
      %24 = sbr.rel (0) target = $region25
    $region24: #{net_forward.1} parent=1 // pred_region
      _
    $region25: #{net_forward.1} parent=1 // pred_fallthru
      _
    // Predicated region
    $region26: #{net_forward.1} parent=1 // pred_check
      _
    $region27: #{net_forward.1} parent=1 // pred_check_branch
      %26 = sbr.rel (0) target = $region29
    $region28: #{net_forward.1} parent=1 // pred_region
      _
    $region29: #{net_forward.1} parent=1 // pred_fallthru
      _
    %v28 = vld [vmem:[%s1] ss:$8 sm:$0x3]
    %v30 = vlaneseq
    %v31 = vshrl.u32 %v30, 7
    %v32 = vsub.s32 0, %v31
    %v33 = vrot.slane %v28, %v32
    %v34 = vlaneseq
    %v35 = vshrl.u32 %v34, 7
    %v36 = vsub.s32 1, %v35
    %v37 = vrot.slane %v28, %v36
    %s40 = scalar_lea.vmem %s1, 1
    %v41 = vld [vmem:[%s40] ss:$8 sm:$0x7]
    %v43 = vlaneseq
    %v44 = vshrl.u32 %v43, 7
    %v45 = vsub.s32 0, %v44
    %v46 = vrot.slane %v41, %v45
    %v47 = vlaneseq
    %v48 = vshrl.u32 %v47, 7
    %v49 = vsub.s32 1, %v48
    %v50 = vrot.slane %v41, %v49
    %v51 = vlaneseq
    %v52 = vshrl.u32 %v51, 7
    %v53 = vsub.s32 2, %v52
    %v54 = vrot.slane %v41, %v53
    %v58 = vld [vmem:[%s1 + $0x2] ss:$0 sm:$0xff]
    %v59 = vld [vmem:[%s1 + $0x3] ss:$0 sm:$0xff]
    %v60 = vld [vmem:[%s1 + $0x4] ss:$0 sm:$0xff]
    %v61 = vld [vmem:[%s4] sm:$0xf]
    %v62 = vld [vmem:[%s4 + $0x8] sm:$0xf]
    %v63 = vld [vmem:[%s4 + $0x10] sm:$0xf]
    %v64 = vld [vmem:[%s4 + $0x18] sm:$0x7]
    %v65 = vld [vmem:[%s4 + $0x20] sm:$0xf]
    %v66 = vld [vmem:[%s4 + $0x28] sm:$0xf]
    %v67 = vld [vmem:[%s4 + $0x30] sm:$0xf]
    %v68 = vld [vmem:[%s4 + $0x38] sm:$0xf]
    %v69 = vld [vmem:[%s4 + $0x40] sm:$0xf]
    %v70 = vld [vmem:[%s4 + $0x48] sm:$0xf]
    %v71 = vld [vmem:[%s4 + $0x50] sm:$0xf]
    %v72 = vld [vmem:[%s4 + $0x58] sm:$0xf]
    %v73 = vld [vmem:[%s4 + $0x60] sm:$0xf]
    %v74 = vld [vmem:[%s4 + $0x68] sm:$0xf]
    %v75 = vld [vmem:[%s4 + $0x70] sm:$0xf]
    %v76 = vld [vmem:[%s4 + $0x78] sm:$0xf]
    %v77 = vld [vmem:[%s4 + $0x80] sm:$0xf]
    %v78 = vld [vmem:[%s4 + $0x88] sm:$0xf]
    %v79 = vld [vmem:[%s4 + $0x90] sm:$0xf]
    %v80 = vld [vmem:[%s4 + $0x98] sm:$0xf]
    %v81 = vld [vmem:[%s4 + $0xa0] sm:$0xf]
    %v82 = vld [vmem:[%s4 + $0xa8] sm:$0xf]
    %v83 = vld [vmem:[%s4 + $0xb0] sm:$0xf]
    %v84 = vld [vmem:[%s4 + $0xb8] sm:$0xf]
    %v85 = vld [vmem:[%s4 + $0xc0] sm:$0xf]
    %v86 = vld [vmem:[%s4 + $0xc8] sm:$0xf]
    %v87 = vld [vmem:[%s4 + $0xd0] sm:$0xf]
    %v88 = vld [vmem:[%s4 + $0xd8] sm:$0xf]
    %v89 = vld [vmem:[%s4 + $0xe0] sm:$0xf]
    %v90 = vld [vmem:[%s4 + $0xe8] sm:$0xf]
    %v91 = vld [vmem:[%s4 + $0xf0] sm:$0xf]
    %v92 = vld [vmem:[%s4 + $0xf8] sm:$0xf]
    %v93 = vld [vmem:[%s4 + $0x100] sm:$0xf]
    %v94 = vld [vmem:[%s4 + $0x108] sm:$0x1]
    %v95 = vld [vmem:[%s4 + $0x110] sm:$0xff]
    %v96 = vld [vmem:[%s4 + $0x118] sm:$0xff]
    %v97 = vld [vmem:[%s4 + $0x120] sm:$0xff]
    %v98 = vld [vmem:[%s4 + $0x128] sm:$0xff]
    %v99 = vld [vmem:[%s4 + $0x130] sm:$0xff]
    %v100 = vld [vmem:[%s4 + $0x138] sm:$0xff]
    %v101 = vld [vmem:[%s4 + $0x140] sm:$0xff]
    %v102 = vld [vmem:[%s4 + $0x148] sm:$0xff]
    %v103 = vld [vmem:[%s4 + $0x150] sm:$0xff]
    %v104 = vld [vmem:[%s4 + $0x158] sm:$0xff]
    %v105 = vld [vmem:[%s4 + $0x160] sm:$0xff]
    %v106 = vld [vmem:[%s4 + $0x168] sm:$0xff]
    %v107 = vld [vmem:[%s4 + $0x170] sm:$0xff]
    %v108 = vld [vmem:[%s4 + $0x178] sm:$0xff]
    %v109 = vld [vmem:[%s4 + $0x180] sm:$0xff]
    %v110 = vld [vmem:[%s4 + $0x188] sm:$0xff]
    %v111 = vld [vmem:[%s4 + $0x190] sm:$0xff]
    %v112 = vld [vmem:[%s4 + $0x198] sm:$0xff]
    %v113 = vld [vmem:[%s4 + $0x1a0] sm:$0xff]
    %v114 = vld [vmem:[%s4 + $0x1a8] sm:$0xff]
    %v115 = vld [vmem:[%s4 + $0x1b0] sm:$0xff]
    %v116 = vld [vmem:[%s4 + $0x1b8] sm:$0xff]
    %v117 = vld [vmem:[%s4 + $0x1c0] sm:$0xff]
    %v118 = vld [vmem:[%s4 + $0x1c8] sm:$0xff]
    %v119 = vld [vmem:[%s4 + $0x1d0] sm:$0xff]
    %v120 = vld [vmem:[%s4 + $0x1d8] sm:$0xff]
    %v121 = vld [vmem:[%s4 + $0x1e0] sm:$0xff]
    %v122 = vld [vmem:[%s4 + $0x1e8] sm:$0xff]
    %v123 = vld [vmem:[%s4 + $0x1f0] sm:$0xff]
    %v124 = vld [vmem:[%s4 + $0x1f8] sm:$0xff]
    %v125 = vld [vmem:[%s4 + $0x200] sm:$0xff]
    %v126 = vld [vmem:[%s4 + $0x208] sm:$0xff]
    %v127 = vld [vmem:[%s4 + $0x210] sm:$0xff]
    %v128 = vld [vmem:[%s4 + $0x218] sm:$0xff]
    %v129 = vld [vmem:[%s6] sm:$0xf]
    %v130 = vld [vmem:[%s6 + $0x4] sm:$0xf]
    %v131 = vld [vmem:[%s6 + $0x8] sm:$0xf]
    %v132 = vld [vmem:[%s6 + $0xc] sm:$0xf]
    %v133 = vld [vmem:[%s6 + $0x10] sm:$0xf]
    %v134 = vld [vmem:[%s6 + $0x14] sm:$0xf]
    %v135 = vld [vmem:[%s6 + $0x18] sm:$0xf]
    %v136 = vld [vmem:[%s6 + $0x1c] sm:$0xf]
    %v137 = vld [vmem:[%s6 + $0x20] sm:$0xf]
    %v138 = vld [vmem:[%s6 + $0x24] sm:$0xf]
    %v139 = vld [vmem:[%s6 + $0x28] sm:$0xf]
    %v140 = vld [vmem:[%s6 + $0x2c] sm:$0xf]
    %v141 = vld [vmem:[%s6 + $0x30] sm:$0xf]
    %v142 = vld [vmem:[%s6 + $0x34] sm:$0xf]
    %v143 = vld [vmem:[%s6 + $0x38] sm:$0xf]
    %v144 = vld [vmem:[%s6 + $0x40] sm:$0xf]
    %v145 = vld [vmem:[%s6 + $0x44] sm:$0xf]
    %v146 = vld [vmem:[%s6 + $0x48] sm:$0xf]
    %v147 = vld [vmem:[%s6 + $0x4c] sm:$0xf]
    %v148 = vld [vmem:[%s6 + $0x50] sm:$0xf]
    %v149 = vld [vmem:[%s6 + $0x54] sm:$0xf]
    %v150 = vld [vmem:[%s6 + $0x58] sm:$0xf]
    %v151 = vld [vmem:[%s6 + $0x5c] sm:$0xf]
    %v152 = vld [vmem:[%s6 + $0x60] sm:$0xf]
    %v153 = vld [vmem:[%s6 + $0x64] sm:$0xf]
    %v154 = vld [vmem:[%s6 + $0x68] sm:$0x3]
    %v155 = vld [vmem:[%s0] sm:$0xff]
    %v156 = vld [vmem:[%s0 + $0x8] sm:$0xff]
    %v157 = vld [vmem:[%s0 + $0x10] sm:$0xff]
    %v158 = vld [vmem:[%s0 + $0x18] sm:$0xff]
    %v159 = vld [vmem:[%s0 + $0x20] sm:$0xff]
    %v160 = vld [vmem:[%s0 + $0x28] sm:$0xff]
    %v161 = vld [vmem:[%s0 + $0x30] sm:$0xff]
    %v162 = vld [vmem:[%s0 + $0x38] sm:$0xff]
    %v163 = vld [vmem:[%s0 + $0x40] sm:$0x3]
    %v164 = vpack.c.bf16 %v156, %v155
    %v165 = vpack.c.bf16 %v158, %v157
    %v166 = vpack.c.bf16 %v160, %v159
    %v167 = vpack.c.bf16 %v162, %v161
    %v168 = vld [vmem:[%s2] sm:$0xff]
    %v169 = vld [vmem:[%s2 + $0x8] sm:$0xff]
    %v170 = vld [vmem:[%s2 + $0x10] sm:$0xff]
    %v171 = vld [vmem:[%s2 + $0x18] sm:$0xff]
    %v172 = vld [vmem:[%s2 + $0x20] sm:$0xff]
    %v173 = vld [vmem:[%s2 + $0x28] sm:$0x11]
    %s174 = scalar_lea.vmem %s2, 48
    %v175 = vld [vmem:[%s174] sm:$0xff]
    %v176 = vld [vmem:[%s174 + $0x8] sm:$0xff]
    %v177 = vld [vmem:[%s174 + $0x10] sm:$0xff]
    %v178 = vld [vmem:[%s174 + $0x18] sm:$0xff]
    %v179 = vld [vmem:[%s174 + $0x20] sm:$0xff]
    %v180 = vld [vmem:[%s174 + $0x28] sm:$0x11]
    %vm181 = vsmask.f32 7424
    %v183 = vshrl.u32 %v164, 16
    %v185 = vshll.u32 %v164, 16
    %v187 = vrot.slane %v185, 1
    %v188 = vor.u32 %v183, %v187
    %v190 = vshll.u32 %v165, 16
    %v192 = vrot.slane %v190, 1
    %v193 = vsel %vm181, %v188, %v192
    %v194 = vshrl.u32 %v165, 16
    %v196 = vor.u32 %v194, %v192
    %v198 = vshll.u32 %v166, 16
    %v200 = vrot.slane %v198, 1
    %v201 = vsel %vm181, %v196, %v200
    %v202 = vshrl.u32 %v166, 16
    %v204 = vor.u32 %v202, %v200
    %v206 = vshll.u32 %v167, 16
    %v208 = vrot.slane %v206, 1
    %v209 = vsel %vm181, %v204, %v208
    %v210 = vshrl.u32 %v167, 16
    %v212 = vor.u32 %v210, %v208
    %v219 = vunpack.c.l.b16 %v175
    %v220 = vunpack.c.h.b16 %v175
    %v221 = vunpack.c.l.b16 %v176
    %v222 = vunpack.c.h.b16 %v176
    %v223 = vunpack.c.l.b16 %v177
    %v224 = vunpack.c.h.b16 %v177
    %v225 = vunpack.c.l.b16 %v178
    %v226 = vunpack.c.h.b16 %v178
    %v227 = vunpack.c.l.b16 %v179
    %v228 = vunpack.c.h.b16 %v179
    %v229 = vunpack.c.l.b16 %v180
    %v230 = vunpack.c.h.b16 %v180
    %v231 = vpack.c.b16 %v221, %v219
    %v232 = vpack.c.b16 %v222, %v220
    %v233 = vpack.c.b16 %v225, %v223
    %v234 = vpack.c.b16 %v226, %v224
    %v235 = vpack.c.b16 %v229, %v227
    %v236 = vpack.c.b16 %v230, %v228
    %vm241 = vcmask 343040
    %v243 = vsel %vm241, %v193, 0
    %v246 = vsel %vm241, %v201, 0
    %v249 = vsel %vm241, %v209, 0
    %v252 = vsel %vm241, %v212, 0
    %vm254 = vcmask 1044480
    %v256 = vsel %vm254, %v235, 0
    %v259 = vsel %vm254, %v236, 0
    %261 = vmatprep.subr.bf16.mxu0 0
    %262 = vmatpush1.bf16.msra.mxu0 0
    %263 = vmatprep.subr.bf16.mxu0 0
    %264 = vmatpush1.bf16.msra.mxu0 0
    %265 = vmatprep.subr.bf16.mxu0 0
    %266 = vmatpush1.bf16.msra.mxu0 0
    %267 = vmatprep.subr.bf16.mxu0 0
    %268 = vmatpush1.bf16.msra.mxu0 0
    %269 = vmatprep.subr.bf16.mxu0 0
    %270 = vmatpush1.bf16.msra.mxu0 0
    %271 = vmatprep.subr.bf16.mxu0 %v259
    %272 = vmatpush1.bf16.msra.mxu0 %v256
    %273 = vmatprep.subr.bf16.mxu0 %v234
    %274 = vmatpush1.bf16.msra.mxu0 %v233
    %275 = vmatprep.subr.bf16.mxu0 %v232
    %276 = vmatpush1.bf16.msra.mxu0 %v231
    %277 = vmatprep.subr.bf16.mxu0 0
    %278 = vmatpush2.bf16.msra.mxu0 0
    %279 = vmatprep.subr.bf16.mxu0 0
    %280 = vmatpush2.bf16.msra.mxu0 0
    %281 = vmatprep.subr.bf16.mxu0 0
    %282 = vmatpush2.bf16.msra.mxu0 0
    %283 = vmatprep.subr.bf16.mxu0 0
    %284 = vmatpush2.bf16.msra.mxu0 0
    %285 = vmatprep.subr.bf16.mxu0 0
    %286 = vmatpush2.bf16.msra.mxu0 0
    %287 = vmatprep.subr.bf16.mxu0 0
    %288 = vmatpush2.bf16.msra.mxu0 0
    %289 = vmatprep.subr.bf16.mxu0 0
    %290 = vmatpush2.bf16.msra.mxu0 0
    %291 = vmatprep.subr.bf16.mxu0 0
    %292 = vmatpush2.bf16.msra.mxu0 0
    %293 = vmatprep.mubr.bf16.mxu0 0
    %294 = vmatmul.mubr.bf16.gmra.mxu0 %v243
    %v295 = vpop.f32.mrf.mxu0
    %v296 = vadd.f32 0.0, %v295
    %v297 = vpop.f32.mrf.mxu0
    %v298 = vadd.f32 0.0, %v297
    %v299 = vpop.f32.mrf.mxu0
    %v300 = vadd.f32 0.0, %v299
    %v301 = vpop.f32.mrf.mxu0
    %v302 = vadd.f32 0.0, %v301
    %303 = vmatprep.mubr.bf16.mxu0 0
    %304 = vmatmul.mubr.bf16.gmra.mxu0 %v246
    %v305 = vpop.f32.mrf.mxu0
    %v306 = vadd.f32 0.0, %v305
    %v307 = vpop.f32.mrf.mxu0
    %v308 = vadd.f32 0.0, %v307
    %v309 = vpop.f32.mrf.mxu0
    %v310 = vadd.f32 0.0, %v309
    %v311 = vpop.f32.mrf.mxu0
    %v312 = vadd.f32 0.0, %v311
    %313 = vmatprep.mubr.bf16.mxu0 0
    %314 = vmatmul.mubr.bf16.gmra.mxu0 %v249
    %v315 = vpop.f32.mrf.mxu0
    %v316 = vadd.f32 0.0, %v315
    %v317 = vpop.f32.mrf.mxu0
    %v318 = vadd.f32 0.0, %v317
    %v319 = vpop.f32.mrf.mxu0
    %v320 = vadd.f32 0.0, %v319
    %v321 = vpop.f32.mrf.mxu0
    %v322 = vadd.f32 0.0, %v321
    %323 = vmatprep.mubr.bf16.mxu0 0
    %324 = vmatmul.mubr.bf16.gmra.mxu0 %v252
    %v325 = vpop.f32.mrf.mxu0
    %v326 = vadd.f32 0.0, %v325
    %v327 = vpop.f32.mrf.mxu0
    %v328 = vadd.f32 0.0, %v327
    %v329 = vpop.f32.mrf.mxu0
    %v330 = vadd.f32 0.0, %v329
    %v331 = vpop.f32.mrf.mxu0
    %v332 = vadd.f32 0.0, %v331
    %333 = vdwg.mxu0
    %s334 = scalar_lea.vmem %s2, 96
    %v335 = vld [vmem:[%s334] sm:$0xff]
    %v336 = vld [vmem:[%s334 + $0x8] sm:$0xff]
    %v337 = vld [vmem:[%s334 + $0x10] sm:$0xff]
    %v338 = vld [vmem:[%s334 + $0x18] sm:$0xff]
    %v339 = vld [vmem:[%s334 + $0x20] sm:$0xff]
    %v340 = vld [vmem:[%s334 + $0x28] sm:$0x11]
    %s341 = scalar_lea.vmem %s2, 144
    %v342 = vld [vmem:[%s341] sm:$0xff]
    %v343 = vld [vmem:[%s341 + $0x8] sm:$0xff]
    %v344 = vld [vmem:[%s341 + $0x10] sm:$0xff]
    %v345 = vld [vmem:[%s341 + $0x18] sm:$0xff]
    %v346 = vld [vmem:[%s341 + $0x20] sm:$0xff]
    %v347 = vld [vmem:[%s341 + $0x28] sm:$0x11]
    %vm348 = vsmask.f32 6400
    %v349 = vrot.slane %v183, 1
    %v350 = vrot.slane %v185, 2
    %v351 = vor.u32 %v349, %v350
    %v352 = vrot.slane %v194, 1
    %v353 = vrot.slane %v190, 2
    %v354 = vor.u32 %v352, %v353
    %v355 = vsel %vm348, %v351, %v354
    %v356 = vrot.slane %v202, 1
    %v357 = vrot.slane %v198, 2
    %v358 = vor.u32 %v356, %v357
    %v359 = vsel %vm348, %v354, %v358
    %v360 = vrot.slane %v210, 1
    %v361 = vrot.slane %v206, 2
    %v362 = vor.u32 %v360, %v361
    %v363 = vsel %vm348, %v358, %v362
    %v370 = vunpack.c.l.b16 %v342
    %v371 = vunpack.c.h.b16 %v342
    %v372 = vunpack.c.l.b16 %v343
    %v373 = vunpack.c.h.b16 %v343
    %v374 = vunpack.c.l.b16 %v344
    %v375 = vunpack.c.h.b16 %v344
    %v376 = vunpack.c.l.b16 %v345
    %v377 = vunpack.c.h.b16 %v345
    %v378 = vunpack.c.l.b16 %v346
    %v379 = vunpack.c.h.b16 %v346
    %v380 = vunpack.c.l.b16 %v347
    %v381 = vunpack.c.h.b16 %v347
    %v382 = vpack.c.b16 %v372, %v370
    %v383 = vpack.c.b16 %v373, %v371
    %v384 = vpack.c.b16 %v376, %v374
    %v385 = vpack.c.b16 %v377, %v375
    %v386 = vpack.c.b16 %v380, %v378
    %v387 = vpack.c.b16 %v381, %v379
    %v393 = vsel %vm241, %v355, 0
    %v396 = vsel %vm241, %v359, 0
    %v399 = vsel %vm241, %v363, 0
    %v402 = vsel %vm241, %v362, 0
    %v405 = vsel %vm254, %v386, 0
    %v408 = vsel %vm254, %v387, 0
    %410 = vmatprep.subr.bf16.mxu0 0
    %411 = vmatpush1.bf16.msra.mxu0 0
    %412 = vmatprep.subr.bf16.mxu0 0
    %413 = vmatpush1.bf16.msra.mxu0 0
    %414 = vmatprep.subr.bf16.mxu0 0
    %415 = vmatpush1.bf16.msra.mxu0 0
    %416 = vmatprep.subr.bf16.mxu0 0
    %417 = vmatpush1.bf16.msra.mxu0 0
    %418 = vmatprep.subr.bf16.mxu0 0
    %419 = vmatpush1.bf16.msra.mxu0 0
    %420 = vmatprep.subr.bf16.mxu0 %v408
    %421 = vmatpush1.bf16.msra.mxu0 %v405
    %422 = vmatprep.subr.bf16.mxu0 %v385
    %423 = vmatpush1.bf16.msra.mxu0 %v384
    %424 = vmatprep.subr.bf16.mxu0 %v383
    %425 = vmatpush1.bf16.msra.mxu0 %v382
    %426 = vmatprep.subr.bf16.mxu0 0
    %427 = vmatpush2.bf16.msra.mxu0 0
    %428 = vmatprep.subr.bf16.mxu0 0
    %429 = vmatpush2.bf16.msra.mxu0 0
    %430 = vmatprep.subr.bf16.mxu0 0
    %431 = vmatpush2.bf16.msra.mxu0 0
    %432 = vmatprep.subr.bf16.mxu0 0
    %433 = vmatpush2.bf16.msra.mxu0 0
    %434 = vmatprep.subr.bf16.mxu0 0
    %435 = vmatpush2.bf16.msra.mxu0 0
    %436 = vmatprep.subr.bf16.mxu0 0
    %437 = vmatpush2.bf16.msra.mxu0 0
    %438 = vmatprep.subr.bf16.mxu0 0
    %439 = vmatpush2.bf16.msra.mxu0 0
    %440 = vmatprep.subr.bf16.mxu0 0
    %441 = vmatpush2.bf16.msra.mxu0 0
    %442 = vmatprep.mubr.bf16.mxu0 0
    %443 = vmatmul.mubr.bf16.gmra.mxu0 %v393
    %v444 = vpop.f32.mrf.mxu0
    %v445 = vadd.f32 0.0, %v444
    %v446 = vpop.f32.mrf.mxu0
    %v447 = vadd.f32 0.0, %v446
    %v448 = vpop.f32.mrf.mxu0
    %v449 = vadd.f32 0.0, %v448
    %v450 = vpop.f32.mrf.mxu0
    %v451 = vadd.f32 0.0, %v450
    %452 = vmatprep.mubr.bf16.mxu0 0
    %453 = vmatmul.mubr.bf16.gmra.mxu0 %v396
    %v454 = vpop.f32.mrf.mxu0
    %v455 = vadd.f32 0.0, %v454
    %v456 = vpop.f32.mrf.mxu0
    %v457 = vadd.f32 0.0, %v456
    %v458 = vpop.f32.mrf.mxu0
    %v459 = vadd.f32 0.0, %v458
    %v460 = vpop.f32.mrf.mxu0
    %v461 = vadd.f32 0.0, %v460
    %462 = vmatprep.mubr.bf16.mxu0 0
    %463 = vmatmul.mubr.bf16.gmra.mxu0 %v399
    %v464 = vpop.f32.mrf.mxu0
    %v465 = vadd.f32 0.0, %v464
    %v466 = vpop.f32.mrf.mxu0
    %v467 = vadd.f32 0.0, %v466
    %v468 = vpop.f32.mrf.mxu0
    %v469 = vadd.f32 0.0, %v468
    %v470 = vpop.f32.mrf.mxu0
    %v471 = vadd.f32 0.0, %v470
    %472 = vmatprep.mubr.bf16.mxu0 0
    %473 = vmatmul.mubr.bf16.gmra.mxu0 %v402
    %v474 = vpop.f32.mrf.mxu0
    %v475 = vadd.f32 0.0, %v474
    %v476 = vpop.f32.mrf.mxu0
    %v477 = vadd.f32 0.0, %v476
    %v478 = vpop.f32.mrf.mxu0
    %v479 = vadd.f32 0.0, %v478
    %v480 = vpop.f32.mrf.mxu0
    %v481 = vadd.f32 0.0, %v480
    %482 = vdwg.mxu0
    %s483 = scalar_lea.vmem %s2, 192
    %v484 = vld [vmem:[%s483] sm:$0xff]
    %v485 = vld [vmem:[%s483 + $0x8] sm:$0xff]
    %v486 = vld [vmem:[%s483 + $0x10] sm:$0xff]
    %v487 = vld [vmem:[%s483 + $0x18] sm:$0xff]
    %v488 = vld [vmem:[%s483 + $0x20] sm:$0xff]
    %v489 = vld [vmem:[%s483 + $0x28] sm:$0x11]
    %v490 = vpack.c.bf16 %v163, %v163
    %s491 = scalar_lea.vmem %s2, 240
    %v492 = vld [vmem:[%s491] sm:$0xff]
    %v493 = vld [vmem:[%s491 + $0x8] sm:$0xff]
    %v494 = vld [vmem:[%s491 + $0x10] sm:$0xff]
    %v495 = vld [vmem:[%s491 + $0x18] sm:$0xff]
    %v496 = vld [vmem:[%s491 + $0x20] sm:$0xff]
    %v497 = vld [vmem:[%s491 + $0x28] sm:$0x11]
    %vm498 = vsmask.f32 5376
    %v499 = vrot.slane %v183, 2
    %v500 = vrot.slane %v185, 3
    %v501 = vor.u32 %v499, %v500
    %v502 = vrot.slane %v194, 2
    %v503 = vrot.slane %v190, 3
    %v504 = vor.u32 %v502, %v503
    %v505 = vsel %vm498, %v501, %v504
    %v506 = vrot.slane %v202, 2
    %v507 = vrot.slane %v198, 3
    %v508 = vor.u32 %v506, %v507
    %v509 = vsel %vm498, %v504, %v508
    %v510 = vrot.slane %v210, 2
    %v511 = vrot.slane %v206, 3
    %v512 = vor.u32 %v510, %v511
    %v513 = vsel %vm498, %v508, %v512
    %v515 = vshll.u32 %v490, 16
    %v517 = vrot.slane %v515, 3
    %v518 = vsel %vm498, %v512, %v517
    %v525 = vunpack.c.l.b16 %v492
    %v526 = vunpack.c.h.b16 %v492
    %v527 = vunpack.c.l.b16 %v493
    %v528 = vunpack.c.h.b16 %v493
    %v529 = vunpack.c.l.b16 %v494
    %v530 = vunpack.c.h.b16 %v494
    %v531 = vunpack.c.l.b16 %v495
    %v532 = vunpack.c.h.b16 %v495
    %v533 = vunpack.c.l.b16 %v496
    %v534 = vunpack.c.h.b16 %v496
    %v535 = vunpack.c.l.b16 %v497
    %v536 = vunpack.c.h.b16 %v497
    %v537 = vpack.c.b16 %v527, %v525
    %v538 = vpack.c.b16 %v528, %v526
    %v539 = vpack.c.b16 %v531, %v529
    %v540 = vpack.c.b16 %v532, %v530
    %v541 = vpack.c.b16 %v535, %v533
    %v542 = vpack.c.b16 %v536, %v534
    %v548 = vsel %vm241, %v505, 0
    %v551 = vsel %vm241, %v509, 0
    %v554 = vsel %vm241, %v513, 0
    %v557 = vsel %vm241, %v518, 0
    %v560 = vsel %vm254, %v541, 0
    %v563 = vsel %vm254, %v542, 0
    %565 = vmatprep.subr.bf16.mxu0 0
    %566 = vmatpush1.bf16.msra.mxu0 0
    %567 = vmatprep.subr.bf16.mxu0 0
    %568 = vmatpush1.bf16.msra.mxu0 0
    %569 = vmatprep.subr.bf16.mxu0 0
    %570 = vmatpush1.bf16.msra.mxu0 0
    %571 = vmatprep.subr.bf16.mxu0 0
    %572 = vmatpush1.bf16.msra.mxu0 0
    %573 = vmatprep.subr.bf16.mxu0 0
    %574 = vmatpush1.bf16.msra.mxu0 0
    %575 = vmatprep.subr.bf16.mxu0 %v563
    %576 = vmatpush1.bf16.msra.mxu0 %v560
    %577 = vmatprep.subr.bf16.mxu0 %v540
    %578 = vmatpush1.bf16.msra.mxu0 %v539
    %579 = vmatprep.subr.bf16.mxu0 %v538
    %580 = vmatpush1.bf16.msra.mxu0 %v537
    %581 = vmatprep.subr.bf16.mxu0 0
    %582 = vmatpush2.bf16.msra.mxu0 0
    %583 = vmatprep.subr.bf16.mxu0 0
    %584 = vmatpush2.bf16.msra.mxu0 0
    %585 = vmatprep.subr.bf16.mxu0 0
    %586 = vmatpush2.bf16.msra.mxu0 0
    %587 = vmatprep.subr.bf16.mxu0 0
    %588 = vmatpush2.bf16.msra.mxu0 0
    %589 = vmatprep.subr.bf16.mxu0 0
    %590 = vmatpush2.bf16.msra.mxu0 0
    %591 = vmatprep.subr.bf16.mxu0 0
    %592 = vmatpush2.bf16.msra.mxu0 0
    %593 = vmatprep.subr.bf16.mxu0 0
    %594 = vmatpush2.bf16.msra.mxu0 0
    %595 = vmatprep.subr.bf16.mxu0 0
    %596 = vmatpush2.bf16.msra.mxu0 0
    %597 = vmatprep.mubr.bf16.mxu0 0
    %598 = vmatmul.mubr.bf16.gmra.mxu0 %v548
    %v599 = vpop.f32.mrf.mxu0
    %v600 = vadd.f32 0.0, %v599
    %v601 = vpop.f32.mrf.mxu0
    %v602 = vadd.f32 0.0, %v601
    %v603 = vpop.f32.mrf.mxu0
    %v604 = vadd.f32 0.0, %v603
    %v605 = vpop.f32.mrf.mxu0
    %v606 = vadd.f32 0.0, %v605
    %607 = vmatprep.mubr.bf16.mxu0 0
    %608 = vmatmul.mubr.bf16.gmra.mxu0 %v551
    %v609 = vpop.f32.mrf.mxu0
    %v610 = vadd.f32 0.0, %v609
    %v611 = vpop.f32.mrf.mxu0
    %v612 = vadd.f32 0.0, %v611
    %v613 = vpop.f32.mrf.mxu0
    %v614 = vadd.f32 0.0, %v613
    %v615 = vpop.f32.mrf.mxu0
    %v616 = vadd.f32 0.0, %v615
    %617 = vmatprep.mubr.bf16.mxu0 0
    %618 = vmatmul.mubr.bf16.gmra.mxu0 %v554
    %v619 = vpop.f32.mrf.mxu0
    %v620 = vadd.f32 0.0, %v619
    %v621 = vpop.f32.mrf.mxu0
    %v622 = vadd.f32 0.0, %v621
    %v623 = vpop.f32.mrf.mxu0
    %v624 = vadd.f32 0.0, %v623
    %v625 = vpop.f32.mrf.mxu0
    %v626 = vadd.f32 0.0, %v625
    %627 = vmatprep.mubr.bf16.mxu0 0
    %628 = vmatmul.mubr.bf16.gmra.mxu0 %v557
    %v629 = vpop.f32.mrf.mxu0
    %v630 = vadd.f32 0.0, %v629
    %v631 = vpop.f32.mrf.mxu0
    %v632 = vadd.f32 0.0, %v631
    %v633 = vpop.f32.mrf.mxu0
    %v634 = vadd.f32 0.0, %v633
    %v635 = vpop.f32.mrf.mxu0
    %v636 = vadd.f32 0.0, %v635
    %637 = vdwg.mxu0
    %s638 = scalar_lea.vmem %s2, 288
    %v639 = vld [vmem:[%s638] sm:$0xff]
    %v640 = vld [vmem:[%s638 + $0x8] sm:$0xff]
    %v641 = vld [vmem:[%s638 + $0x10] sm:$0xff]
    %v642 = vld [vmem:[%s638 + $0x18] sm:$0xff]
    %v643 = vld [vmem:[%s638 + $0x20] sm:$0xff]
    %v644 = vld [vmem:[%s638 + $0x28] sm:$0x11]
    %vm650 = vcmask 1044480
    %v651 = vrot.slane %v164, 3
    %v652 = vrot.slane %v165, 3
    %v653 = vsel %vm650, %v651, %v652
    %v654 = vrot.slane %v166, 3
    %v655 = vsel %vm650, %v652, %v654
    %v656 = vrot.slane %v167, 3
    %v657 = vsel %vm650, %v654, %v656
    %v658 = vrot.slane %v490, 3
    %v659 = vsel %vm650, %v656, %v658
    %v666 = vunpack.c.l.b16 %v639
    %v667 = vunpack.c.h.b16 %v639
    %v668 = vunpack.c.l.b16 %v640
    %v669 = vunpack.c.h.b16 %v640
    %v670 = vunpack.c.l.b16 %v641
    %v671 = vunpack.c.h.b16 %v641
    %v672 = vunpack.c.l.b16 %v642
    %v673 = vunpack.c.h.b16 %v642
    %v674 = vunpack.c.l.b16 %v643
    %v675 = vunpack.c.h.b16 %v643
    %v676 = vunpack.c.l.b16 %v644
    %v677 = vunpack.c.h.b16 %v644
    %v678 = vpack.c.b16 %v668, %v666
    %v679 = vpack.c.b16 %v669, %v667
    %v680 = vpack.c.b16 %v672, %v670
    %v681 = vpack.c.b16 %v673, %v671
    %v682 = vpack.c.b16 %v676, %v674
    %v683 = vpack.c.b16 %v677, %v675
    %v689 = vsel %vm241, %v653, 0
    %v692 = vsel %vm241, %v655, 0
    %v695 = vsel %vm241, %v657, 0
    %v698 = vsel %vm241, %v659, 0
    %v701 = vsel %vm254, %v682, 0
    %v704 = vsel %vm254, %v683, 0
    %706 = vmatprep.subr.bf16.mxu0 0
    %707 = vmatpush1.bf16.msra.mxu0 0
    %708 = vmatprep.subr.bf16.mxu0 0
    %709 = vmatpush1.bf16.msra.mxu0 0
    %710 = vmatprep.subr.bf16.mxu0 0
    %711 = vmatpush1.bf16.msra.mxu0 0
    %712 = vmatprep.subr.bf16.mxu0 0
    %713 = vmatpush1.bf16.msra.mxu0 0
    %714 = vmatprep.subr.bf16.mxu0 0
    %715 = vmatpush1.bf16.msra.mxu0 0
    %716 = vmatprep.subr.bf16.mxu0 %v704
    %717 = vmatpush1.bf16.msra.mxu0 %v701
    %718 = vmatprep.subr.bf16.mxu0 %v681
    %719 = vmatpush1.bf16.msra.mxu0 %v680
    %720 = vmatprep.subr.bf16.mxu0 %v679
    %721 = vmatpush1.bf16.msra.mxu0 %v678
    %722 = vmatprep.subr.bf16.mxu0 0
    %723 = vmatpush2.bf16.msra.mxu0 0
    %724 = vmatprep.subr.bf16.mxu0 0
    %725 = vmatpush2.bf16.msra.mxu0 0
    %726 = vmatprep.subr.bf16.mxu0 0
    %727 = vmatpush2.bf16.msra.mxu0 0
    %728 = vmatprep.subr.bf16.mxu0 0
    %729 = vmatpush2.bf16.msra.mxu0 0
    %730 = vmatprep.subr.bf16.mxu0 0
    %731 = vmatpush2.bf16.msra.mxu0 0
    %732 = vmatprep.subr.bf16.mxu0 0
    %733 = vmatpush2.bf16.msra.mxu0 0
    %734 = vmatprep.subr.bf16.mxu0 0
    %735 = vmatpush2.bf16.msra.mxu0 0
    %736 = vmatprep.subr.bf16.mxu0 0
    %737 = vmatpush2.bf16.msra.mxu0 0
    %738 = vmatprep.mubr.bf16.mxu0 0
    %739 = vmatmul.mubr.bf16.gmra.mxu0 %v689
    %v740 = vpop.f32.mrf.mxu0
    %v741 = vadd.f32 0.0, %v740
    %v742 = vpop.f32.mrf.mxu0
    %v743 = vadd.f32 0.0, %v742
    %v744 = vpop.f32.mrf.mxu0
    %v745 = vadd.f32 0.0, %v744
    %v746 = vpop.f32.mrf.mxu0
    %v747 = vadd.f32 0.0, %v746
    %748 = vmatprep.mubr.bf16.mxu0 0
    %749 = vmatmul.mubr.bf16.gmra.mxu0 %v692
    %v750 = vpop.f32.mrf.mxu0
    %v751 = vadd.f32 0.0, %v750
    %v752 = vpop.f32.mrf.mxu0
    %v753 = vadd.f32 0.0, %v752
    %v754 = vpop.f32.mrf.mxu0
    %v755 = vadd.f32 0.0, %v754
    %v756 = vpop.f32.mrf.mxu0
    %v757 = vadd.f32 0.0, %v756
    %758 = vmatprep.mubr.bf16.mxu0 0
    %759 = vmatmul.mubr.bf16.gmra.mxu0 %v695
    %v760 = vpop.f32.mrf.mxu0
    %v761 = vadd.f32 0.0, %v760
    %v762 = vpop.f32.mrf.mxu0
    %v763 = vadd.f32 0.0, %v762
    %v764 = vpop.f32.mrf.mxu0
    %v765 = vadd.f32 0.0, %v764
    %v766 = vpop.f32.mrf.mxu0
    %v767 = vadd.f32 0.0, %v766
    %768 = vmatprep.mubr.bf16.mxu0 0
    %769 = vmatmul.mubr.bf16.gmra.mxu0 %v698
    %v770 = vpop.f32.mrf.mxu0
    %v771 = vadd.f32 0.0, %v770
    %v772 = vpop.f32.mrf.mxu0
    %v773 = vadd.f32 0.0, %v772
    %v774 = vpop.f32.mrf.mxu0
    %v775 = vadd.f32 0.0, %v774
    %v776 = vpop.f32.mrf.mxu0
    %v777 = vadd.f32 0.0, %v776
    %778 = vdwg.mxu0
    %v785 = vunpack.c.l.b16 %v168
    %v786 = vunpack.c.h.b16 %v168
    %v787 = vunpack.c.l.b16 %v169
    %v788 = vunpack.c.h.b16 %v169
    %v789 = vunpack.c.l.b16 %v170
    %v790 = vunpack.c.h.b16 %v170
    %v791 = vunpack.c.l.b16 %v171
    %v792 = vunpack.c.h.b16 %v171
    %v793 = vunpack.c.l.b16 %v172
    %v794 = vunpack.c.h.b16 %v172
    %v795 = vunpack.c.l.b16 %v173
    %v796 = vunpack.c.h.b16 %v173
    %v797 = vpack.c.b16 %v787, %v785
    %v798 = vpack.c.b16 %v788, %v786
    %v799 = vpack.c.b16 %v791, %v789
    %v800 = vpack.c.b16 %v792, %v790
    %v801 = vpack.c.b16 %v795, %v793
    %v802 = vpack.c.b16 %v796, %v794
    %v807 = vsel %vm241, %v164, 0
    %v809 = vsel %vm241, %v165, 0
    %v811 = vsel %vm241, %v166, 0
    %v813 = vsel %vm241, %v167, 0
    %v816 = vsel %vm254, %v801, 0
    %v819 = vsel %vm254, %v802, 0
    %821 = vmatprep.subr.bf16.mxu0 0
    %822 = vmatpush1.bf16.msra.mxu0 0
    %823 = vmatprep.subr.bf16.mxu0 0
    %824 = vmatpush1.bf16.msra.mxu0 0
    %825 = vmatprep.subr.bf16.mxu0 0
    %826 = vmatpush1.bf16.msra.mxu0 0
    %827 = vmatprep.subr.bf16.mxu0 0
    %828 = vmatpush1.bf16.msra.mxu0 0
    %829 = vmatprep.subr.bf16.mxu0 0
    %830 = vmatpush1.bf16.msra.mxu0 0
    %831 = vmatprep.subr.bf16.mxu0 %v819
    %832 = vmatpush1.bf16.msra.mxu0 %v816
    %833 = vmatprep.subr.bf16.mxu0 %v800
    %834 = vmatpush1.bf16.msra.mxu0 %v799
    %835 = vmatprep.subr.bf16.mxu0 %v798
    %836 = vmatpush1.bf16.msra.mxu0 %v797
    %837 = vmatprep.subr.bf16.mxu0 0
    %838 = vmatpush2.bf16.msra.mxu0 0
    %839 = vmatprep.subr.bf16.mxu0 0
    %840 = vmatpush2.bf16.msra.mxu0 0
    %841 = vmatprep.subr.bf16.mxu0 0
    %842 = vmatpush2.bf16.msra.mxu0 0
    %843 = vmatprep.subr.bf16.mxu0 0
    %844 = vmatpush2.bf16.msra.mxu0 0
    %845 = vmatprep.subr.bf16.mxu0 0
    %846 = vmatpush2.bf16.msra.mxu0 0
    %847 = vmatprep.subr.bf16.mxu0 0
    %848 = vmatpush2.bf16.msra.mxu0 0
    %849 = vmatprep.subr.bf16.mxu0 0
    %850 = vmatpush2.bf16.msra.mxu0 0
    %851 = vmatprep.subr.bf16.mxu0 0
    %852 = vmatpush2.bf16.msra.mxu0 0
    %853 = vmatprep.mubr.bf16.mxu0 0
    %854 = vmatmul.mubr.bf16.gmra.mxu0 %v807
    %v855 = vpop.f32.mrf.mxu0
    %v856 = vadd.f32 %v296, %v855
    %v857 = vpop.f32.mrf.mxu0
    %v858 = vadd.f32 %v298, %v857
    %v859 = vpop.f32.mrf.mxu0
    %v860 = vadd.f32 %v300, %v859
    %v861 = vpop.f32.mrf.mxu0
    %v862 = vadd.f32 %v302, %v861
    %863 = vmatprep.mubr.bf16.mxu0 0
    %864 = vmatmul.mubr.bf16.gmra.mxu0 %v809
    %v865 = vpop.f32.mrf.mxu0
    %v866 = vadd.f32 %v306, %v865
    %v867 = vpop.f32.mrf.mxu0
    %v868 = vadd.f32 %v308, %v867
    %v869 = vpop.f32.mrf.mxu0
    %v870 = vadd.f32 %v310, %v869
    %v871 = vpop.f32.mrf.mxu0
    %v872 = vadd.f32 %v312, %v871
    %873 = vmatprep.mubr.bf16.mxu0 0
    %874 = vmatmul.mubr.bf16.gmra.mxu0 %v811
    %v875 = vpop.f32.mrf.mxu0
    %v876 = vadd.f32 %v316, %v875
    %v877 = vpop.f32.mrf.mxu0
    %v878 = vadd.f32 %v318, %v877
    %v879 = vpop.f32.mrf.mxu0
    %v880 = vadd.f32 %v320, %v879
    %v881 = vpop.f32.mrf.mxu0
    %v882 = vadd.f32 %v322, %v881
    %883 = vmatprep.mubr.bf16.mxu0 0
    %884 = vmatmul.mubr.bf16.gmra.mxu0 %v813
    %v885 = vpop.f32.mrf.mxu0
    %v886 = vadd.f32 %v326, %v885
    %v887 = vpop.f32.mrf.mxu0
    %v888 = vadd.f32 %v328, %v887
    %v889 = vpop.f32.mrf.mxu0
    %v890 = vadd.f32 %v330, %v889
    %v891 = vpop.f32.mrf.mxu0
    %v892 = vadd.f32 %v332, %v891
    %893 = vdwg.mxu0
    %vm894 = vcmask 1046528
    %v895 = vrot.slane %v164, 1
    %v896 = vrot.slane %v165, 1
    %v897 = vsel %vm894, %v895, %v896
    %v898 = vrot.slane %v166, 1
    %v899 = vsel %vm894, %v896, %v898
    %v900 = vrot.slane %v167, 1
    %v901 = vsel %vm894, %v898, %v900
    %v908 = vunpack.c.l.b16 %v335
    %v909 = vunpack.c.h.b16 %v335
    %v910 = vunpack.c.l.b16 %v336
    %v911 = vunpack.c.h.b16 %v336
    %v912 = vunpack.c.l.b16 %v337
    %v913 = vunpack.c.h.b16 %v337
    %v914 = vunpack.c.l.b16 %v338
    %v915 = vunpack.c.h.b16 %v338
    %v916 = vunpack.c.l.b16 %v339
    %v917 = vunpack.c.h.b16 %v339
    %v918 = vunpack.c.l.b16 %v340
    %v919 = vunpack.c.h.b16 %v340
    %v920 = vpack.c.b16 %v910, %v908
    %v921 = vpack.c.b16 %v911, %v909
    %v922 = vpack.c.b16 %v914, %v912
    %v923 = vpack.c.b16 %v915, %v913
    %v924 = vpack.c.b16 %v918, %v916
    %v925 = vpack.c.b16 %v919, %v917
    %v931 = vsel %vm241, %v897, 0
    %v934 = vsel %vm241, %v899, 0
    %v937 = vsel %vm241, %v901, 0
    %v940 = vsel %vm241, %v900, 0
    %v943 = vsel %vm254, %v924, 0
    %v946 = vsel %vm254, %v925, 0
    %948 = vmatprep.subr.bf16.mxu0 0
    %949 = vmatpush1.bf16.msra.mxu0 0
    %950 = vmatprep.subr.bf16.mxu0 0
    %951 = vmatpush1.bf16.msra.mxu0 0
    %952 = vmatprep.subr.bf16.mxu0 0
    %953 = vmatpush1.bf16.msra.mxu0 0
    %954 = vmatprep.subr.bf16.mxu0 0
    %955 = vmatpush1.bf16.msra.mxu0 0
    %956 = vmatprep.subr.bf16.mxu0 0
    %957 = vmatpush1.bf16.msra.mxu0 0
    %958 = vmatprep.subr.bf16.mxu0 %v946
    %959 = vmatpush1.bf16.msra.mxu0 %v943
    %960 = vmatprep.subr.bf16.mxu0 %v923
    %961 = vmatpush1.bf16.msra.mxu0 %v922
    %962 = vmatprep.subr.bf16.mxu0 %v921
    %963 = vmatpush1.bf16.msra.mxu0 %v920
    %964 = vmatprep.subr.bf16.mxu0 0
    %965 = vmatpush2.bf16.msra.mxu0 0
    %966 = vmatprep.subr.bf16.mxu0 0
    %967 = vmatpush2.bf16.msra.mxu0 0
    %968 = vmatprep.subr.bf16.mxu0 0
    %969 = vmatpush2.bf16.msra.mxu0 0
    %970 = vmatprep.subr.bf16.mxu0 0
    %971 = vmatpush2.bf16.msra.mxu0 0
    %972 = vmatprep.subr.bf16.mxu0 0
    %973 = vmatpush2.bf16.msra.mxu0 0
    %974 = vmatprep.subr.bf16.mxu0 0
    %975 = vmatpush2.bf16.msra.mxu0 0
    %976 = vmatprep.subr.bf16.mxu0 0
    %977 = vmatpush2.bf16.msra.mxu0 0
    %978 = vmatprep.subr.bf16.mxu0 0
    %979 = vmatpush2.bf16.msra.mxu0 0
    %980 = vmatprep.mubr.bf16.mxu0 0
    %981 = vmatmul.mubr.bf16.gmra.mxu0 %v931
    %v982 = vpop.f32.mrf.mxu0
    %v983 = vadd.f32 %v445, %v982
    %v984 = vpop.f32.mrf.mxu0
    %v985 = vadd.f32 %v447, %v984
    %v986 = vpop.f32.mrf.mxu0
    %v987 = vadd.f32 %v449, %v986
    %v988 = vpop.f32.mrf.mxu0
    %v989 = vadd.f32 %v451, %v988
    %990 = vmatprep.mubr.bf16.mxu0 0
    %991 = vmatmul.mubr.bf16.gmra.mxu0 %v934
    %v992 = vpop.f32.mrf.mxu0
    %v993 = vadd.f32 %v455, %v992
    %v994 = vpop.f32.mrf.mxu0
    %v995 = vadd.f32 %v457, %v994
    %v996 = vpop.f32.mrf.mxu0
    %v997 = vadd.f32 %v459, %v996
    %v998 = vpop.f32.mrf.mxu0
    %v999 = vadd.f32 %v461, %v998
    %1000 = vmatprep.mubr.bf16.mxu0 0
    %1001 = vmatmul.mubr.bf16.gmra.mxu0 %v937
    %v1002 = vpop.f32.mrf.mxu0
    %v1003 = vadd.f32 %v465, %v1002
    %v1004 = vpop.f32.mrf.mxu0
    %v1005 = vadd.f32 %v467, %v1004
    %v1006 = vpop.f32.mrf.mxu0
    %v1007 = vadd.f32 %v469, %v1006
    %v1008 = vpop.f32.mrf.mxu0
    %v1009 = vadd.f32 %v471, %v1008
    %1010 = vmatprep.mubr.bf16.mxu0 0
    %1011 = vmatmul.mubr.bf16.gmra.mxu0 %v940
    %v1012 = vpop.f32.mrf.mxu0
    %v1013 = vadd.f32 %v475, %v1012
    %v1014 = vpop.f32.mrf.mxu0
    %v1015 = vadd.f32 %v477, %v1014
    %v1016 = vpop.f32.mrf.mxu0
    %v1017 = vadd.f32 %v479, %v1016
    %v1018 = vpop.f32.mrf.mxu0
    %v1019 = vadd.f32 %v481, %v1018
    %1020 = vdwg.mxu0
    %v1021 = vadd.f32 %v856, %v983
    %v1022 = vadd.f32 %v858, %v985
    %v1023 = vadd.f32 %v860, %v987
    %v1024 = vadd.f32 %v862, %v989
    %v1025 = vadd.f32 %v866, %v993
    %v1026 = vadd.f32 %v868, %v995
    %v1027 = vadd.f32 %v870, %v997
    %v1028 = vadd.f32 %v872, %v999
    %v1029 = vadd.f32 %v876, %v1003
    %v1030 = vadd.f32 %v878, %v1005
    %v1031 = vadd.f32 %v880, %v1007
    %v1032 = vadd.f32 %v882, %v1009
    %v1033 = vadd.f32 %v886, %v1013
    %v1034 = vadd.f32 %v888, %v1015
    %v1035 = vadd.f32 %v890, %v1017
    %v1036 = vadd.f32 %v892, %v1019
    %vm1037 = vcmask 1045504
    %v1038 = vrot.slane %v164, 2
    %v1039 = vrot.slane %v165, 2
    %v1040 = vsel %vm1037, %v1038, %v1039
    %v1041 = vrot.slane %v166, 2
    %v1042 = vsel %vm1037, %v1039, %v1041
    %v1043 = vrot.slane %v167, 2
    %v1044 = vsel %vm1037, %v1041, %v1043
    %v1051 = vunpack.c.l.b16 %v484
    %v1052 = vunpack.c.h.b16 %v484
    %v1053 = vunpack.c.l.b16 %v485
    %v1054 = vunpack.c.h.b16 %v485
    %v1055 = vunpack.c.l.b16 %v486
    %v1056 = vunpack.c.h.b16 %v486
    %v1057 = vunpack.c.l.b16 %v487
    %v1058 = vunpack.c.h.b16 %v487
    %v1059 = vunpack.c.l.b16 %v488
    %v1060 = vunpack.c.h.b16 %v488
    %v1061 = vunpack.c.l.b16 %v489
    %v1062 = vunpack.c.h.b16 %v489
    %v1063 = vpack.c.b16 %v1053, %v1051
    %v1064 = vpack.c.b16 %v1054, %v1052
    %v1065 = vpack.c.b16 %v1057, %v1055
    %v1066 = vpack.c.b16 %v1058, %v1056
    %v1067 = vpack.c.b16 %v1061, %v1059
    %v1068 = vpack.c.b16 %v1062, %v1060
    %v1074 = vsel %vm241, %v1040, 0
    %v1077 = vsel %vm241, %v1042, 0
    %v1080 = vsel %vm241, %v1044, 0
    %v1083 = vsel %vm241, %v1043, 0
    %v1086 = vsel %vm254, %v1067, 0
    %v1089 = vsel %vm254, %v1068, 0
    %1091 = vmatprep.subr.bf16.mxu0 0
    %1092 = vmatpush1.bf16.msra.mxu0 0
    %1093 = vmatprep.subr.bf16.mxu0 0
    %1094 = vmatpush1.bf16.msra.mxu0 0
    %1095 = vmatprep.subr.bf16.mxu0 0
    %1096 = vmatpush1.bf16.msra.mxu0 0
    %1097 = vmatprep.subr.bf16.mxu0 0
    %1098 = vmatpush1.bf16.msra.mxu0 0
    %1099 = vmatprep.subr.bf16.mxu0 0
    %1100 = vmatpush1.bf16.msra.mxu0 0
    %1101 = vmatprep.subr.bf16.mxu0 %v1089
    %1102 = vmatpush1.bf16.msra.mxu0 %v1086
    %1103 = vmatprep.subr.bf16.mxu0 %v1066
    %1104 = vmatpush1.bf16.msra.mxu0 %v1065
    %1105 = vmatprep.subr.bf16.mxu0 %v1064
    %1106 = vmatpush1.bf16.msra.mxu0 %v1063
    %1107 = vmatprep.subr.bf16.mxu0 0
    %1108 = vmatpush2.bf16.msra.mxu0 0
    %1109 = vmatprep.subr.bf16.mxu0 0
    %1110 = vmatpush2.bf16.msra.mxu0 0
    %1111 = vmatprep.subr.bf16.mxu0 0
    %1112 = vmatpush2.bf16.msra.mxu0 0
    %1113 = vmatprep.subr.bf16.mxu0 0
    %1114 = vmatpush2.bf16.msra.mxu0 0
    %1115 = vmatprep.subr.bf16.mxu0 0
    %1116 = vmatpush2.bf16.msra.mxu0 0
    %1117 = vmatprep.subr.bf16.mxu0 0
    %1118 = vmatpush2.bf16.msra.mxu0 0
    %1119 = vmatprep.subr.bf16.mxu0 0
    %1120 = vmatpush2.bf16.msra.mxu0 0
    %1121 = vmatprep.subr.bf16.mxu0 0
    %1122 = vmatpush2.bf16.msra.mxu0 0
    %1123 = vmatprep.mubr.bf16.mxu0 0
    %1124 = vmatmul.mubr.bf16.gmra.mxu0 %v1074
    %v1125 = vpop.f32.mrf.mxu0
    %v1126 = vadd.f32 %v600, %v1125
    %v1127 = vpop.f32.mrf.mxu0
    %v1128 = vadd.f32 %v602, %v1127
    %v1129 = vpop.f32.mrf.mxu0
    %v1130 = vadd.f32 %v604, %v1129
    %v1131 = vpop.f32.mrf.mxu0
    %v1132 = vadd.f32 %v606, %v1131
    %1133 = vmatprep.mubr.bf16.mxu0 0
    %1134 = vmatmul.mubr.bf16.gmra.mxu0 %v1077
    %v1135 = vpop.f32.mrf.mxu0
    %v1136 = vadd.f32 %v610, %v1135
    %v1137 = vpop.f32.mrf.mxu0
    %v1138 = vadd.f32 %v612, %v1137
    %v1139 = vpop.f32.mrf.mxu0
    %v1140 = vadd.f32 %v614, %v1139
    %v1141 = vpop.f32.mrf.mxu0
    %v1142 = vadd.f32 %v616, %v1141
    %1143 = vmatprep.mubr.bf16.mxu0 0
    %1144 = vmatmul.mubr.bf16.gmra.mxu0 %v1080
    %v1145 = vpop.f32.mrf.mxu0
    %v1146 = vadd.f32 %v620, %v1145
    %v1147 = vpop.f32.mrf.mxu0
    %v1148 = vadd.f32 %v622, %v1147
    %v1149 = vpop.f32.mrf.mxu0
    %v1150 = vadd.f32 %v624, %v1149
    %v1151 = vpop.f32.mrf.mxu0
    %v1152 = vadd.f32 %v626, %v1151
    %1153 = vmatprep.mubr.bf16.mxu0 0
    %1154 = vmatmul.mubr.bf16.gmra.mxu0 %v1083
    %v1155 = vpop.f32.mrf.mxu0
    %v1156 = vadd.f32 %v630, %v1155
    %v1157 = vpop.f32.mrf.mxu0
    %v1158 = vadd.f32 %v632, %v1157
    %v1159 = vpop.f32.mrf.mxu0
    %v1160 = vadd.f32 %v634, %v1159
    %v1161 = vpop.f32.mrf.mxu0
    %v1162 = vadd.f32 %v636, %v1161
    %1163 = vdwg.mxu0
    %v1164 = vadd.f32 %v1126, %v741
    %v1165 = vadd.f32 %v1128, %v743
    %v1166 = vadd.f32 %v1130, %v745
    %v1167 = vadd.f32 %v1132, %v747
    %v1168 = vadd.f32 %v1136, %v751
    %v1169 = vadd.f32 %v1138, %v753
    %v1170 = vadd.f32 %v1140, %v755
    %v1171 = vadd.f32 %v1142, %v757
    %v1172 = vadd.f32 %v1146, %v761
    %v1173 = vadd.f32 %v1148, %v763
    %v1174 = vadd.f32 %v1150, %v765
    %v1175 = vadd.f32 %v1152, %v767
    %v1176 = vadd.f32 %v1156, %v771
    %v1177 = vadd.f32 %v1158, %v773
    %v1178 = vadd.f32 %v1160, %v775
    %v1179 = vadd.f32 %v1162, %v777
    %v1180 = vadd.f32 %v1021, %v1164
    %v1181 = vadd.f32 %v1022, %v1165
    %v1182 = vadd.f32 %v1023, %v1166
    %v1183 = vadd.f32 %v1024, %v1167
    %v1184 = vadd.f32 %v1025, %v1168
    %v1185 = vadd.f32 %v1026, %v1169
    %v1186 = vadd.f32 %v1027, %v1170
    %v1187 = vadd.f32 %v1028, %v1171
    %v1188 = vadd.f32 %v1029, %v1172
    %v1189 = vadd.f32 %v1030, %v1173
    %v1190 = vadd.f32 %v1031, %v1174
    %v1191 = vadd.f32 %v1032, %v1175
    %v1192 = vadd.f32 %v1033, %v1176
    %v1193 = vadd.f32 %v1034, %v1177
    %v1194 = vadd.f32 %v1035, %v1178
    %v1195 = vadd.f32 %v1036, %v1179
    %v1196 = vadd.f32 %v1180, %v33
    %v1197 = vadd.f32 %v1181, %v37
    %v1198 = vadd.f32 %v1182, %v33
    %v1199 = vadd.f32 %v1183, %v37
    %v1200 = vadd.f32 %v1184, %v33
    %v1201 = vadd.f32 %v1185, %v37
    %v1202 = vadd.f32 %v1186, %v33
    %v1203 = vadd.f32 %v1187, %v37
    %v1204 = vadd.f32 %v1188, %v33
    %v1205 = vadd.f32 %v1189, %v37
    %v1206 = vadd.f32 %v1190, %v33
    %v1207 = vadd.f32 %v1191, %v37
    %v1208 = vadd.f32 %v1192, %v33
    %v1209 = vadd.f32 %v1193, %v37
    %v1210 = vadd.f32 %v1194, %v33
    %v1211 = vadd.f32 %v1195, %v37
    %v1212 = vmax.f32 %v1196, 0.0
    %v1213 = vmax.f32 %v1197, 0.0
    %v1214 = vmax.f32 %v1198, 0.0
    %v1215 = vmax.f32 %v1199, 0.0
    %v1216 = vmax.f32 %v1200, 0.0
    %v1217 = vmax.f32 %v1201, 0.0
    %v1218 = vmax.f32 %v1202, 0.0
    %v1219 = vmax.f32 %v1203, 0.0
    %v1220 = vmax.f32 %v1204, 0.0
    %v1221 = vmax.f32 %v1205, 0.0
    %v1222 = vmax.f32 %v1206, 0.0
    %v1223 = vmax.f32 %v1207, 0.0
    %v1224 = vmax.f32 %v1208, 0.0
    %v1225 = vmax.f32 %v1209, 0.0
    %v1226 = vmax.f32 %v1210, 0.0
    %v1227 = vmax.f32 %v1211, 0.0
    %vm1244 = vcmask 1046528
    %v1245 = vrot.slane %v1212, 1
    %v1246 = vrot.slane %v1214, 1
    %v1247 = vsel %vm1244, %v1245, %v1246
    %v1248 = vrot.slane %v1213, 1
    %v1249 = vrot.slane %v1215, 1
    %v1250 = vsel %vm1244, %v1248, %v1249
    %v1251 = vrot.slane %v1216, 1
    %v1252 = vsel %vm1244, %v1246, %v1251
    %v1253 = vrot.slane %v1217, 1
    %v1254 = vsel %vm1244, %v1249, %v1253
    %v1255 = vrot.slane %v1218, 1
    %v1256 = vsel %vm1244, %v1251, %v1255
    %v1257 = vrot.slane %v1219, 1
    %v1258 = vsel %vm1244, %v1253, %v1257
    %v1259 = vrot.slane %v1220, 1
    %v1260 = vsel %vm1244, %v1255, %v1259
    %v1261 = vrot.slane %v1221, 1
    %v1262 = vsel %vm1244, %v1257, %v1261
    %v1263 = vrot.slane %v1222, 1
    %v1264 = vsel %vm1244, %v1259, %v1263
    %v1265 = vrot.slane %v1223, 1
    %v1266 = vsel %vm1244, %v1261, %v1265
    %v1267 = vrot.slane %v1224, 1
    %v1268 = vsel %vm1244, %v1263, %v1267
    %v1269 = vrot.slane %v1225, 1
    %v1270 = vsel %vm1244, %v1265, %v1269
    %v1271 = vrot.slane %v1226, 1
    %v1272 = vsel %vm1244, %v1267, %v1271
    %v1273 = vrot.slane %v1227, 1
    %v1274 = vsel %vm1244, %v1269, %v1273
    %v1291 = vmax.f32 %v1212, %v1247
    %v1292 = vmax.f32 %v1213, %v1250
    %v1293 = vmax.f32 %v1214, %v1252
    %v1294 = vmax.f32 %v1215, %v1254
    %v1295 = vmax.f32 %v1216, %v1256
    %v1296 = vmax.f32 %v1217, %v1258
    %v1297 = vmax.f32 %v1218, %v1260
    %v1298 = vmax.f32 %v1219, %v1262
    %v1299 = vmax.f32 %v1220, %v1264
    %v1300 = vmax.f32 %v1221, %v1266
    %v1301 = vmax.f32 %v1222, %v1268
    %v1302 = vmax.f32 %v1223, %v1270
    %v1303 = vmax.f32 %v1224, %v1272
    %v1304 = vmax.f32 %v1225, %v1274
    %v1305 = vmax.f32 %v1226, %v1271
    %v1306 = vmax.f32 %v1227, %v1273
    %v1307 = vpack.c.bf16 %v1293, %v1291
    %v1308 = vpack.c.bf16 %v1294, %v1292
    %v1309 = vpack.c.bf16 %v1297, %v1295
    %v1310 = vpack.c.bf16 %v1298, %v1296
    %v1311 = vpack.c.bf16 %v1301, %v1299
    %v1312 = vpack.c.bf16 %v1302, %v1300
    %v1313 = vpack.c.bf16 %v1305, %v1303
    %v1314 = vpack.c.bf16 %v1306, %v1304
    %v1319 = vunpack.c.l.b16 %v61
    %v1320 = vunpack.c.l.b16 %v62
    %v1321 = vunpack.c.l.b16 %v63
    %v1322 = vunpack.c.l.b16 %v64
    %v1323 = vpack.c.b16 %v1320, %v1319
    %v1324 = vpack.c.b16 %v1322, %v1321
    %vm1325 = vcmask 482304
    %v1327 = vsel %vm1325, %v1323, 0
    %v1330 = vsel %vm1325, %v1324, 0
    %vm1332 = vcmask 1045504
    %v1333 = vsel %vm254, 4294967295, 65535
    %v1334 = vsel %vm1332, %v1333, 0
    %v1336 = vand.u32 %v1313, %v1334
    %v1339 = vand.u32 %v1314, %v1334
    %1341 = vmatprep.subr.bf16.mxu0 0
    %1342 = vmatpush1.bf16.msra.mxu0 0
    %1343 = vmatprep.subr.bf16.mxu0 0
    %1344 = vmatpush1.bf16.msra.mxu0 0
    %1345 = vmatprep.subr.bf16.mxu0 0
    %1346 = vmatpush1.bf16.msra.mxu0 0
    %1347 = vmatprep.subr.bf16.mxu0 0
    %1348 = vmatpush1.bf16.msra.mxu0 0
    %1349 = vmatprep.subr.bf16.mxu0 %v1339
    %1350 = vmatpush1.bf16.msra.mxu0 %v1336
    %1351 = vmatprep.subr.bf16.mxu0 %v1312
    %1352 = vmatpush1.bf16.msra.mxu0 %v1311
    %1353 = vmatprep.subr.bf16.mxu0 %v1310
    %1354 = vmatpush1.bf16.msra.mxu0 %v1309
    %1355 = vmatprep.subr.bf16.mxu0 %v1308
    %1356 = vmatpush1.bf16.msra.mxu0 %v1307
    %1357 = vmatprep.subr.bf16.mxu0 0
    %1358 = vmatpush2.bf16.msra.mxu0 0
    %1359 = vmatprep.subr.bf16.mxu0 0
    %1360 = vmatpush2.bf16.msra.mxu0 0
    %1361 = vmatprep.subr.bf16.mxu0 0
    %1362 = vmatpush2.bf16.msra.mxu0 0
    %1363 = vmatprep.subr.bf16.mxu0 0
    %1364 = vmatpush2.bf16.msra.mxu0 0
    %1365 = vmatprep.subr.bf16.mxu0 0
    %1366 = vmatpush2.bf16.msra.mxu0 0
    %1367 = vmatprep.subr.bf16.mxu0 0
    %1368 = vmatpush2.bf16.msra.mxu0 0
    %1369 = vmatprep.subr.bf16.mxu0 0
    %1370 = vmatpush2.bf16.msra.mxu0 0
    %1371 = vmatprep.subr.bf16.mxu0 0
    %1372 = vmatpush2.bf16.msra.mxu0 0
    %1373 = vmatprep.mubr.bf16.mxu0 0
    %1374 = vmatmul.mubr.bf16.gmra.mxu0 %v1327
    %v1375 = vpop.f32.mrf.mxu0
    %v1376 = vadd.f32 0.0, %v1375
    %v1377 = vpop.f32.mrf.mxu0
    %v1378 = vadd.f32 0.0, %v1377
    %v1379 = vpop.f32.mrf.mxu0
    %v1380 = vadd.f32 0.0, %v1379
    %v1381 = vpop.f32.mrf.mxu0
    %v1382 = vadd.f32 0.0, %v1381
    %1383 = vmatprep.mubr.bf16.mxu0 0
    %1384 = vmatmul.mubr.bf16.gmra.mxu0 %v1330
    %v1385 = vpop.f32.mrf.mxu0
    %v1386 = vadd.f32 0.0, %v1385
    %v1387 = vpop.f32.mrf.mxu0
    %v1388 = vadd.f32 0.0, %v1387
    %v1389 = vpop.f32.mrf.mxu0
    %v1390 = vadd.f32 0.0, %v1389
    %v1391 = vpop.f32.mrf.mxu0
    %v1392 = vadd.f32 0.0, %v1391
    %1393 = vdwg.mxu0
    %1402 = vrot.lane.b32.xlu0 %v1376, 122
    %v1403 = vpop.permute.xlu0 %1402
    %1404 = vrot.lane.b32.xlu0 %v1378, 122
    %v1405 = vpop.permute.xlu0 %1404
    %1406 = vrot.lane.b32.xlu0 %v1380, 122
    %v1407 = vpop.permute.xlu0 %1406
    %1408 = vrot.lane.b32.xlu0 %v1382, 122
    %v1409 = vpop.permute.xlu0 %1408
    %1410 = vrot.lane.b32.xlu0 %v1386, 122
    %v1411 = vpop.permute.xlu0 %1410
    %1412 = vrot.lane.b32.xlu0 %v1388, 122
    %v1413 = vpop.permute.xlu0 %1412
    %1414 = vrot.lane.b32.xlu0 %v1390, 122
    %v1415 = vpop.permute.xlu0 %1414
    %1416 = vrot.lane.b32.xlu0 %v1392, 122
    %v1417 = vpop.permute.xlu0 %1416
    %vm1418 = vcmask 998400
    %v1419 = vsel %vm1418, %v1403, %v1405
    %v1420 = vsel %vm1418, %v1407, %v1409
    %v1421 = vsel %vm1418, %v1411, %v1413
    %v1422 = vsel %vm1418, %v1415, %v1417
    %v1431 = vmax.f32 %v1376, %v1419
    %v1432 = vmax.f32 %v1378, %v1405
    %v1433 = vmax.f32 %v1380, %v1420
    %v1434 = vmax.f32 %v1382, %v1409
    %v1435 = vmax.f32 %v1386, %v1421
    %v1436 = vmax.f32 %v1388, %v1413
    %v1437 = vmax.f32 %v1390, %v1422
    %v1438 = vmax.f32 %v1392, %v1417
    %v1439 = vpack.c.bf16 %v1433, %v1431
    %v1440 = vpack.c.bf16 %v1434, %v1432
    %v1441 = vpack.c.bf16 %v1437, %v1435
    %v1442 = vpack.c.bf16 %v1438, %v1436
    %v1473 = vunpack.c.l.b16 %v65
    %v1474 = vunpack.c.l.b16 %v66
    %v1475 = vunpack.c.l.b16 %v67
    %v1476 = vunpack.c.l.b16 %v68
    %v1477 = vunpack.c.l.b16 %v69
    %v1478 = vunpack.c.l.b16 %v70
    %v1479 = vunpack.c.l.b16 %v71
    %v1480 = vunpack.c.l.b16 %v72
    %v1481 = vunpack.c.l.b16 %v73
    %v1482 = vunpack.c.l.b16 %v74
    %v1483 = vunpack.c.l.b16 %v75
    %v1484 = vunpack.c.l.b16 %v76
    %v1485 = vunpack.c.l.b16 %v77
    %v1486 = vunpack.c.l.b16 %v78
    %v1487 = vunpack.c.l.b16 %v79
    %v1488 = vunpack.c.l.b16 %v80
    %v1489 = vunpack.c.l.b16 %v81
    %v1490 = vunpack.c.l.b16 %v82
    %v1491 = vunpack.c.l.b16 %v83
    %v1492 = vunpack.c.l.b16 %v84
    %v1493 = vunpack.c.l.b16 %v85
    %v1494 = vunpack.c.l.b16 %v86
    %v1495 = vunpack.c.l.b16 %v87
    %v1496 = vunpack.c.l.b16 %v88
    %v1497 = vunpack.c.l.b16 %v89
    %v1498 = vunpack.c.l.b16 %v90
    %v1499 = vunpack.c.l.b16 %v91
    %v1500 = vunpack.c.l.b16 %v92
    %v1501 = vunpack.c.l.b16 %v93
    %v1502 = vunpack.c.l.b16 %v94
    %v1503 = vpack.c.b16 %v1474, %v1473
    %v1504 = vpack.c.b16 %v1476, %v1475
    %v1505 = vpack.c.b16 %v1478, %v1477
    %v1506 = vpack.c.b16 %v1480, %v1479
    %v1507 = vpack.c.b16 %v1482, %v1481
    %v1508 = vpack.c.b16 %v1484, %v1483
    %v1509 = vpack.c.b16 %v1486, %v1485
    %v1510 = vpack.c.b16 %v1488, %v1487
    %v1511 = vpack.c.b16 %v1490, %v1489
    %v1512 = vpack.c.b16 %v1492, %v1491
    %v1513 = vpack.c.b16 %v1494, %v1493
    %v1514 = vpack.c.b16 %v1496, %v1495
    %v1515 = vpack.c.b16 %v1498, %v1497
    %v1516 = vpack.c.b16 %v1500, %v1499
    %v1517 = vpack.c.b16 %v1502, %v1501
    %vm1532 = vcmask 867328
    %v1534 = vsel %vm1532, %v1440, 0
    %v1537 = vsel %vm1532, %v1442, 0
    %v1540 = vsel %vm254, %v1517, 0
    %1542 = vmatprep.subr.bf16.mxu0 0
    %1543 = vmatpush1.bf16.msra.mxu0 %v1510
    %1544 = vmatprep.subr.bf16.mxu0 0
    %1545 = vmatpush1.bf16.msra.mxu0 %v1509
    %1546 = vmatprep.subr.bf16.mxu0 0
    %1547 = vmatpush1.bf16.msra.mxu0 %v1508
    %1548 = vmatprep.subr.bf16.mxu0 0
    %1549 = vmatpush1.bf16.msra.mxu0 %v1507
    %1550 = vmatprep.subr.bf16.mxu0 0
    %1551 = vmatpush1.bf16.msra.mxu0 %v1506
    %1552 = vmatprep.subr.bf16.mxu0 0
    %1553 = vmatpush1.bf16.msra.mxu0 %v1505
    %1554 = vmatprep.subr.bf16.mxu0 0
    %1555 = vmatpush1.bf16.msra.mxu0 %v1504
    %1556 = vmatprep.subr.bf16.mxu0 0
    %1557 = vmatpush1.bf16.msra.mxu0 %v1503
    %1558 = vmatprep.subr.bf16.mxu0 0
    %1559 = vmatpush2.bf16.msra.mxu0 0
    %1560 = vmatprep.subr.bf16.mxu0 0
    %1561 = vmatpush2.bf16.msra.mxu0 %v1540
    %1562 = vmatprep.subr.bf16.mxu0 0
    %1563 = vmatpush2.bf16.msra.mxu0 %v1516
    %1564 = vmatprep.subr.bf16.mxu0 0
    %1565 = vmatpush2.bf16.msra.mxu0 %v1515
    %1566 = vmatprep.subr.bf16.mxu0 0
    %1567 = vmatpush2.bf16.msra.mxu0 %v1514
    %1568 = vmatprep.subr.bf16.mxu0 0
    %1569 = vmatpush2.bf16.msra.mxu0 %v1513
    %1570 = vmatprep.subr.bf16.mxu0 0
    %1571 = vmatpush2.bf16.msra.mxu0 %v1512
    %1572 = vmatprep.subr.bf16.mxu0 0
    %1573 = vmatpush2.bf16.msra.mxu0 %v1511
    %1574 = vmatprep.mubr.bf16.mxu0 %v1534
    %1575 = vmatmul.mubr.bf16.gmra.mxu0 %v1439
    %v1576 = vpop.f32.mrf.mxu0
    %v1577 = vadd.f32 0.0, %v1576
    %v1578 = vpop.f32.mrf.mxu0
    %v1579 = vpop.f32.mrf.mxu0
    %v1580 = vadd.f32 0.0, %v1579
    %v1581 = vpop.f32.mrf.mxu0
    %1582 = vmatprep.mubr.bf16.mxu0 %v1537
    %1583 = vmatmul.mubr.bf16.gmra.mxu0 %v1441
    %v1584 = vpop.f32.mrf.mxu0
    %v1585 = vadd.f32 0.0, %v1584
    %v1586 = vpop.f32.mrf.mxu0
    %v1587 = vpop.f32.mrf.mxu0
    %v1588 = vadd.f32 0.0, %v1587
    %v1589 = vpop.f32.mrf.mxu0
    %1590 = vdwg.mxu0
    %v1591 = vpack.c.bf16 %v1580, %v1577
    %v1592 = vpack.c.bf16 %v1585, %v1585
    %v1593 = vld [vmem:[%s3] sm:$0xff]
    %v1594 = vld [vmem:[%s3 + $0x8] sm:$0xf]
    %v1595 = vld [vmem:[%s3 + $0xc] sm:$0xff]
    %v1596 = vld [vmem:[%s3 + $0x14] sm:$0xf]
    %v1597 = vld [vmem:[%s3 + $0x18] sm:$0xff]
    %v1598 = vld [vmem:[%s3 + $0x20] sm:$0xf]
    %v1599 = vld [vmem:[%s3 + $0x24] sm:$0xff]
    %v1600 = vld [vmem:[%s3 + $0x2c] sm:$0xf]
    %v1601 = vld [vmem:[%s3 + $0x30] sm:$0xff]
    %v1602 = vld [vmem:[%s3 + $0x38] sm:$0xf]
    %v1603 = vld [vmem:[%s3 + $0x3c] sm:$0xff]
    %v1604 = vld [vmem:[%s3 + $0x44] sm:$0xf]
    %v1605 = vld [vmem:[%s3 + $0x48] sm:$0xff]
    %v1606 = vld [vmem:[%s3 + $0x50] sm:$0xf]
    %v1607 = vld [vmem:[%s3 + $0x54] sm:$0xff]
    %v1608 = vld [vmem:[%s3 + $0x5c] sm:$0xf]
    %v1609 = vld [vmem:[%s3 + $0x60] sm:$0xff]
    %v1610 = vld [vmem:[%s3 + $0x68] sm:$0xf]
    %v1611 = vld [vmem:[%s3 + $0x6c] sm:$0xff]
    %v1612 = vld [vmem:[%s3 + $0x74] sm:$0xf]
    %v1613 = vld [vmem:[%s3 + $0x78] sm:$0xff]
    %v1614 = vld [vmem:[%s3 + $0x80] sm:$0xf]
    %v1615 = vld [vmem:[%s3 + $0x84] sm:$0xff]
    %v1616 = vld [vmem:[%s3 + $0x8c] sm:$0xf]
    %v1617 = vld [vmem:[%s3 + $0x90] sm:$0xff]
    %v1618 = vld [vmem:[%s3 + $0x98] sm:$0xf]
    %v1619 = vld [vmem:[%s3 + $0x9c] sm:$0xff]
    %v1620 = vld [vmem:[%s3 + $0xa4] sm:$0xf]
    %v1621 = vld [vmem:[%s3 + $0xa8] sm:$0xff]
    %v1622 = vld [vmem:[%s3 + $0xb0] sm:$0xf]
    %v1623 = vpack.c.bf16 %v1588, %v1585
    %s1624 = scalar_lea.vmem %s3, 180
    %v1625 = vld [vmem:[%s1624] sm:$0xff]
    %v1626 = vld [vmem:[%s1624 + $0x8] sm:$0xf]
    %v1627 = vld [vmem:[%s1624 + $0xc] sm:$0xff]
    %v1628 = vld [vmem:[%s1624 + $0x14] sm:$0xf]
    %v1629 = vld [vmem:[%s1624 + $0x18] sm:$0xff]
    %v1630 = vld [vmem:[%s1624 + $0x20] sm:$0xf]
    %v1631 = vld [vmem:[%s1624 + $0x24] sm:$0xff]
    %v1632 = vld [vmem:[%s1624 + $0x2c] sm:$0xf]
    %v1633 = vld [vmem:[%s1624 + $0x30] sm:$0xff]
    %v1634 = vld [vmem:[%s1624 + $0x38] sm:$0xf]
    %v1635 = vld [vmem:[%s1624 + $0x3c] sm:$0xff]
    %v1636 = vld [vmem:[%s1624 + $0x44] sm:$0xf]
    %v1637 = vld [vmem:[%s1624 + $0x48] sm:$0xff]
    %v1638 = vld [vmem:[%s1624 + $0x50] sm:$0xf]
    %v1639 = vld [vmem:[%s1624 + $0x54] sm:$0xff]
    %v1640 = vld [vmem:[%s1624 + $0x5c] sm:$0xf]
    %v1641 = vld [vmem:[%s1624 + $0x60] sm:$0xff]
    %v1642 = vld [vmem:[%s1624 + $0x68] sm:$0xf]
    %v1643 = vld [vmem:[%s1624 + $0x6c] sm:$0xff]
    %v1644 = vld [vmem:[%s1624 + $0x74] sm:$0xf]
    %v1645 = vld [vmem:[%s1624 + $0x78] sm:$0xff]
    %v1646 = vld [vmem:[%s1624 + $0x80] sm:$0xf]
    %v1647 = vld [vmem:[%s1624 + $0x84] sm:$0xff]
    %v1648 = vld [vmem:[%s1624 + $0x8c] sm:$0xf]
    %v1649 = vld [vmem:[%s1624 + $0x90] sm:$0xff]
    %v1650 = vld [vmem:[%s1624 + $0x98] sm:$0xf]
    %v1651 = vld [vmem:[%s1624 + $0x9c] sm:$0xff]
    %v1652 = vld [vmem:[%s1624 + $0xa4] sm:$0xf]
    %v1653 = vld [vmem:[%s1624 + $0xa8] sm:$0xff]
    %v1654 = vld [vmem:[%s1624 + $0xb0] sm:$0xf]
    %v1656 = vshrl.u32 %v1591, 16
    %v1658 = vshll.u32 %v1591, 16
    %v1660 = vrot.slane %v1658, 1
    %v1661 = vor.u32 %v1656, %v1660
    %v1663 = vshll.u32 %v1623, 16
    %v1665 = vrot.slane %v1663, 1
    %v1666 = vsel %vm181, %v1661, %v1665
    %v1667 = vshrl.u32 %v1623, 16
    %v1669 = vor.u32 %v1667, %v1665
    %v1700 = vunpack.c.l.b16 %v1625
    %v1701 = vunpack.c.h.b16 %v1625
    %v1702 = vunpack.c.l.b16 %v1626
    %v1703 = vunpack.c.l.b16 %v1627
    %v1704 = vunpack.c.h.b16 %v1627
    %v1705 = vunpack.c.l.b16 %v1628
    %v1706 = vunpack.c.l.b16 %v1629
    %v1707 = vunpack.c.h.b16 %v1629
    %v1708 = vunpack.c.l.b16 %v1630
    %v1709 = vunpack.c.l.b16 %v1631
    %v1710 = vunpack.c.h.b16 %v1631
    %v1711 = vunpack.c.l.b16 %v1632
    %v1712 = vunpack.c.l.b16 %v1633
    %v1713 = vunpack.c.h.b16 %v1633
    %v1714 = vunpack.c.l.b16 %v1634
    %v1715 = vunpack.c.l.b16 %v1635
    %v1716 = vunpack.c.h.b16 %v1635
    %v1717 = vunpack.c.l.b16 %v1636
    %v1718 = vunpack.c.l.b16 %v1637
    %v1719 = vunpack.c.h.b16 %v1637
    %v1720 = vunpack.c.l.b16 %v1638
    %v1721 = vunpack.c.l.b16 %v1639
    %v1722 = vunpack.c.h.b16 %v1639
    %v1723 = vunpack.c.l.b16 %v1640
    %v1724 = vunpack.c.l.b16 %v1641
    %v1725 = vunpack.c.h.b16 %v1641
    %v1726 = vunpack.c.l.b16 %v1642
    %v1727 = vunpack.c.l.b16 %v1643
    %v1728 = vunpack.c.h.b16 %v1643
    %v1729 = vunpack.c.l.b16 %v1644
    %v1730 = vunpack.c.l.b16 %v1645
    %v1731 = vunpack.c.h.b16 %v1645
    %v1732 = vunpack.c.l.b16 %v1646
    %v1733 = vunpack.c.l.b16 %v1647
    %v1734 = vunpack.c.h.b16 %v1647
    %v1735 = vunpack.c.l.b16 %v1648
    %v1736 = vunpack.c.l.b16 %v1649
    %v1737 = vunpack.c.h.b16 %v1649
    %v1738 = vunpack.c.l.b16 %v1650
    %v1739 = vunpack.c.l.b16 %v1651
    %v1740 = vunpack.c.h.b16 %v1651
    %v1741 = vunpack.c.l.b16 %v1652
    %v1742 = vunpack.c.l.b16 %v1653
    %v1743 = vunpack.c.h.b16 %v1653
    %v1744 = vunpack.c.l.b16 %v1654
    %v1745 = vpack.c.b16 %v1703, %v1700
    %v1746 = vpack.c.b16 %v1704, %v1701
    %v1747 = vpack.c.b16 %v1705, %v1702
    %v1748 = vpack.c.b16 %v1709, %v1706
    %v1749 = vpack.c.b16 %v1710, %v1707
    %v1750 = vpack.c.b16 %v1711, %v1708
    %v1751 = vpack.c.b16 %v1715, %v1712
    %v1752 = vpack.c.b16 %v1716, %v1713
    %v1753 = vpack.c.b16 %v1717, %v1714
    %v1754 = vpack.c.b16 %v1721, %v1718
    %v1755 = vpack.c.b16 %v1722, %v1719
    %v1756 = vpack.c.b16 %v1723, %v1720
    %v1757 = vpack.c.b16 %v1727, %v1724
    %v1758 = vpack.c.b16 %v1728, %v1725
    %v1759 = vpack.c.b16 %v1729, %v1726
    %v1760 = vpack.c.b16 %v1733, %v1730
    %v1761 = vpack.c.b16 %v1734, %v1731
    %v1762 = vpack.c.b16 %v1735, %v1732
    %v1763 = vpack.c.b16 %v1739, %v1736
    %v1764 = vpack.c.b16 %v1740, %v1737
    %v1765 = vpack.c.b16 %v1741, %v1738
    %v1766 = vpack.c.b16 %v1742, %v1742
    %v1767 = vpack.c.b16 %v1743, %v1743
    %v1768 = vpack.c.b16 %v1744, %v1744
    %vm1790 = vcmask 982016
    %v1792 = vsel %vm1790, %v1666, 0
    %v1795 = vsel %vm1790, %v1669, 0
    %vm1797 = vcmask 1043456
    %v1799 = vsel %vm1797, %v1766, 0
    %v1802 = vsel %vm1797, %v1767, 0
    %v1805 = vsel %vm1797, %v1768, 0
    %1807 = vmatprep.subr.bf16.mxu0 %v1802
    %1808 = vmatpush1.bf16.msra.mxu0 %v1799
    %1809 = vmatprep.subr.bf16.mxu0 %v1764
    %1810 = vmatpush1.bf16.msra.mxu0 %v1763
    %1811 = vmatprep.subr.bf16.mxu0 %v1761
    %1812 = vmatpush1.bf16.msra.mxu0 %v1760
    %1813 = vmatprep.subr.bf16.mxu0 %v1758
    %1814 = vmatpush1.bf16.msra.mxu0 %v1757
    %1815 = vmatprep.subr.bf16.mxu0 %v1755
    %1816 = vmatpush1.bf16.msra.mxu0 %v1754
    %1817 = vmatprep.subr.bf16.mxu0 %v1752
    %1818 = vmatpush1.bf16.msra.mxu0 %v1751
    %1819 = vmatprep.subr.bf16.mxu0 %v1749
    %1820 = vmatpush1.bf16.msra.mxu0 %v1748
    %1821 = vmatprep.subr.bf16.mxu0 %v1746
    %1822 = vmatpush1.bf16.msra.mxu0 %v1745
    %1823 = vmatprep.subr.bf16.mxu0 0
    %1824 = vmatpush2.bf16.msra.mxu0 0
    %1825 = vmatprep.subr.bf16.mxu0 0
    %1826 = vmatpush2.bf16.msra.mxu0 0
    %1827 = vmatprep.subr.bf16.mxu0 0
    %1828 = vmatpush2.bf16.msra.mxu0 0
    %1829 = vmatprep.subr.bf16.mxu0 0
    %1830 = vmatpush2.bf16.msra.mxu0 0
    %1831 = vmatprep.subr.bf16.mxu0 0
    %1832 = vmatpush2.bf16.msra.mxu0 0
    %1833 = vmatprep.subr.bf16.mxu0 0
    %1834 = vmatpush2.bf16.msra.mxu0 0
    %1835 = vmatprep.subr.bf16.mxu0 0
    %1836 = vmatpush2.bf16.msra.mxu0 0
    %1837 = vmatprep.subr.bf16.mxu0 0
    %1838 = vmatpush2.bf16.msra.mxu0 0
    %1839 = vmatprep.mubr.bf16.mxu0 0
    %1840 = vmatmul.mubr.bf16.gmra.mxu0 %v1792
    %v1841 = vpop.f32.mrf.mxu0
    %v1842 = vadd.f32 0.0, %v1841
    %v1843 = vpop.f32.mrf.mxu0
    %v1844 = vadd.f32 0.0, %v1843
    %v1845 = vpop.f32.mrf.mxu0
    %v1846 = vadd.f32 0.0, %v1845
    %v1847 = vpop.f32.mrf.mxu0
    %v1848 = vadd.f32 0.0, %v1847
    %1849 = vmatprep.mubr.bf16.mxu0 0
    %1850 = vmatmul.mubr.bf16.gmra.mxu0 %v1795
    %v1851 = vpop.f32.mrf.mxu0
    %v1852 = vadd.f32 0.0, %v1851
    %v1853 = vpop.f32.mrf.mxu0
    %v1854 = vadd.f32 0.0, %v1853
    %v1855 = vpop.f32.mrf.mxu0
    %v1856 = vpop.f32.mrf.mxu0
    %1857 = vdwg.mxu0
    %1858 = vmatprep.subr.bf16.mxu0 0
    %1859 = vmatpush1.bf16.msra.mxu0 %v1805
    %1860 = vmatprep.subr.bf16.mxu0 0
    %1861 = vmatpush1.bf16.msra.mxu0 %v1765
    %1862 = vmatprep.subr.bf16.mxu0 0
    %1863 = vmatpush1.bf16.msra.mxu0 %v1762
    %1864 = vmatprep.subr.bf16.mxu0 0
    %1865 = vmatpush1.bf16.msra.mxu0 %v1759
    %1866 = vmatprep.subr.bf16.mxu0 0
    %1867 = vmatpush1.bf16.msra.mxu0 %v1756
    %1868 = vmatprep.subr.bf16.mxu0 0
    %1869 = vmatpush1.bf16.msra.mxu0 %v1753
    %1870 = vmatprep.subr.bf16.mxu0 0
    %1871 = vmatpush1.bf16.msra.mxu0 %v1750
    %1872 = vmatprep.subr.bf16.mxu0 0
    %1873 = vmatpush1.bf16.msra.mxu0 %v1747
    %1874 = vmatprep.subr.bf16.mxu0 0
    %1875 = vmatpush2.bf16.msra.mxu0 0
    %1876 = vmatprep.subr.bf16.mxu0 0
    %1877 = vmatpush2.bf16.msra.mxu0 0
    %1878 = vmatprep.subr.bf16.mxu0 0
    %1879 = vmatpush2.bf16.msra.mxu0 0
    %1880 = vmatprep.subr.bf16.mxu0 0
    %1881 = vmatpush2.bf16.msra.mxu0 0
    %1882 = vmatprep.subr.bf16.mxu0 0
    %1883 = vmatpush2.bf16.msra.mxu0 0
    %1884 = vmatprep.subr.bf16.mxu0 0
    %1885 = vmatpush2.bf16.msra.mxu0 0
    %1886 = vmatprep.subr.bf16.mxu0 0
    %1887 = vmatpush2.bf16.msra.mxu0 0
    %1888 = vmatprep.subr.bf16.mxu0 0
    %1889 = vmatpush2.bf16.msra.mxu0 0
    %1890 = vmatprep.mubr.bf16.mxu0 0
    %1891 = vmatmul.mubr.bf16.gmra.mxu0 %v1792
    %v1892 = vpop.f32.mrf.mxu0
    %v1893 = vadd.f32 0.0, %v1892
    %v1894 = vpop.f32.mrf.mxu0
    %v1895 = vpop.f32.mrf.mxu0
    %v1896 = vadd.f32 0.0, %v1895
    %v1897 = vpop.f32.mrf.mxu0
    %1898 = vmatprep.mubr.bf16.mxu0 0
    %1899 = vmatmul.mubr.bf16.gmra.mxu0 %v1795
    %v1900 = vpop.f32.mrf.mxu0
    %v1901 = vadd.f32 0.0, %v1900
    %v1902 = vpop.f32.mrf.mxu0
    %v1903 = vpop.f32.mrf.mxu0
    %v1904 = vpop.f32.mrf.mxu0
    %1905 = vdwg.mxu0
    %s1906 = scalar_lea.vmem %s3, 360
    %v1907 = vld [vmem:[%s1906] sm:$0xff]
    %v1908 = vld [vmem:[%s1906 + $0x8] sm:$0xf]
    %v1909 = vld [vmem:[%s1906 + $0xc] sm:$0xff]
    %v1910 = vld [vmem:[%s1906 + $0x14] sm:$0xf]
    %v1911 = vld [vmem:[%s1906 + $0x18] sm:$0xff]
    %v1912 = vld [vmem:[%s1906 + $0x20] sm:$0xf]
    %v1913 = vld [vmem:[%s1906 + $0x24] sm:$0xff]
    %v1914 = vld [vmem:[%s1906 + $0x2c] sm:$0xf]
    %v1915 = vld [vmem:[%s1906 + $0x30] sm:$0xff]
    %v1916 = vld [vmem:[%s1906 + $0x38] sm:$0xf]
    %v1917 = vld [vmem:[%s1906 + $0x3c] sm:$0xff]
    %v1918 = vld [vmem:[%s1906 + $0x44] sm:$0xf]
    %v1919 = vld [vmem:[%s1906 + $0x48] sm:$0xff]
    %v1920 = vld [vmem:[%s1906 + $0x50] sm:$0xf]
    %v1921 = vld [vmem:[%s1906 + $0x54] sm:$0xff]
    %v1922 = vld [vmem:[%s1906 + $0x5c] sm:$0xf]
    %v1923 = vld [vmem:[%s1906 + $0x60] sm:$0xff]
    %v1924 = vld [vmem:[%s1906 + $0x68] sm:$0xf]
    %v1925 = vld [vmem:[%s1906 + $0x6c] sm:$0xff]
    %v1926 = vld [vmem:[%s1906 + $0x74] sm:$0xf]
    %v1927 = vld [vmem:[%s1906 + $0x78] sm:$0xff]
    %v1928 = vld [vmem:[%s1906 + $0x80] sm:$0xf]
    %v1929 = vld [vmem:[%s1906 + $0x84] sm:$0xff]
    %v1930 = vld [vmem:[%s1906 + $0x8c] sm:$0xf]
    %v1931 = vld [vmem:[%s1906 + $0x90] sm:$0xff]
    %v1932 = vld [vmem:[%s1906 + $0x98] sm:$0xf]
    %v1933 = vld [vmem:[%s1906 + $0x9c] sm:$0xff]
    %v1934 = vld [vmem:[%s1906 + $0xa4] sm:$0xf]
    %v1935 = vld [vmem:[%s1906 + $0xa8] sm:$0xff]
    %v1936 = vld [vmem:[%s1906 + $0xb0] sm:$0xf]
    %s1937 = scalar_lea.vmem %s3, 540
    %v1938 = vld [vmem:[%s1937] sm:$0xff]
    %v1939 = vld [vmem:[%s1937 + $0x8] sm:$0xf]
    %v1940 = vld [vmem:[%s1937 + $0xc] sm:$0xff]
    %v1941 = vld [vmem:[%s1937 + $0x14] sm:$0xf]
    %v1942 = vld [vmem:[%s1937 + $0x18] sm:$0xff]
    %v1943 = vld [vmem:[%s1937 + $0x20] sm:$0xf]
    %v1944 = vld [vmem:[%s1937 + $0x24] sm:$0xff]
    %v1945 = vld [vmem:[%s1937 + $0x2c] sm:$0xf]
    %v1946 = vld [vmem:[%s1937 + $0x30] sm:$0xff]
    %v1947 = vld [vmem:[%s1937 + $0x38] sm:$0xf]
    %v1948 = vld [vmem:[%s1937 + $0x3c] sm:$0xff]
    %v1949 = vld [vmem:[%s1937 + $0x44] sm:$0xf]
    %v1950 = vld [vmem:[%s1937 + $0x48] sm:$0xff]
    %v1951 = vld [vmem:[%s1937 + $0x50] sm:$0xf]
    %v1952 = vld [vmem:[%s1937 + $0x54] sm:$0xff]
    %v1953 = vld [vmem:[%s1937 + $0x5c] sm:$0xf]
    %v1954 = vld [vmem:[%s1937 + $0x60] sm:$0xff]
    %v1955 = vld [vmem:[%s1937 + $0x68] sm:$0xf]
    %v1956 = vld [vmem:[%s1937 + $0x6c] sm:$0xff]
    %v1957 = vld [vmem:[%s1937 + $0x74] sm:$0xf]
    %v1958 = vld [vmem:[%s1937 + $0x78] sm:$0xff]
    %v1959 = vld [vmem:[%s1937 + $0x80] sm:$0xf]
    %v1960 = vld [vmem:[%s1937 + $0x84] sm:$0xff]
    %v1961 = vld [vmem:[%s1937 + $0x8c] sm:$0xf]
    %v1962 = vld [vmem:[%s1937 + $0x90] sm:$0xff]
    %v1963 = vld [vmem:[%s1937 + $0x98] sm:$0xf]
    %v1964 = vld [vmem:[%s1937 + $0x9c] sm:$0xff]
    %v1965 = vld [vmem:[%s1937 + $0xa4] sm:$0xf]
    %v1966 = vld [vmem:[%s1937 + $0xa8] sm:$0xff]
    %v1967 = vld [vmem:[%s1937 + $0xb0] sm:$0xf]
    %v1968 = vrot.slane %v1656, 1
    %v1969 = vrot.slane %v1658, 2
    %v1970 = vor.u32 %v1968, %v1969
    %v1971 = vrot.slane %v1667, 1
    %v1972 = vrot.slane %v1663, 2
    %v1973 = vor.u32 %v1971, %v1972
    %v1974 = vsel %vm348, %v1970, %v1973
    %v2005 = vunpack.c.l.b16 %v1938
    %v2006 = vunpack.c.h.b16 %v1938
    %v2007 = vunpack.c.l.b16 %v1939
    %v2008 = vunpack.c.l.b16 %v1940
    %v2009 = vunpack.c.h.b16 %v1940
    %v2010 = vunpack.c.l.b16 %v1941
    %v2011 = vunpack.c.l.b16 %v1942
    %v2012 = vunpack.c.h.b16 %v1942
    %v2013 = vunpack.c.l.b16 %v1943
    %v2014 = vunpack.c.l.b16 %v1944
    %v2015 = vunpack.c.h.b16 %v1944
    %v2016 = vunpack.c.l.b16 %v1945
    %v2017 = vunpack.c.l.b16 %v1946
    %v2018 = vunpack.c.h.b16 %v1946
    %v2019 = vunpack.c.l.b16 %v1947
    %v2020 = vunpack.c.l.b16 %v1948
    %v2021 = vunpack.c.h.b16 %v1948
    %v2022 = vunpack.c.l.b16 %v1949
    %v2023 = vunpack.c.l.b16 %v1950
    %v2024 = vunpack.c.h.b16 %v1950
    %v2025 = vunpack.c.l.b16 %v1951
    %v2026 = vunpack.c.l.b16 %v1952
    %v2027 = vunpack.c.h.b16 %v1952
    %v2028 = vunpack.c.l.b16 %v1953
    %v2029 = vunpack.c.l.b16 %v1954
    %v2030 = vunpack.c.h.b16 %v1954
    %v2031 = vunpack.c.l.b16 %v1955
    %v2032 = vunpack.c.l.b16 %v1956
    %v2033 = vunpack.c.h.b16 %v1956
    %v2034 = vunpack.c.l.b16 %v1957
    %v2035 = vunpack.c.l.b16 %v1958
    %v2036 = vunpack.c.h.b16 %v1958
    %v2037 = vunpack.c.l.b16 %v1959
    %v2038 = vunpack.c.l.b16 %v1960
    %v2039 = vunpack.c.h.b16 %v1960
    %v2040 = vunpack.c.l.b16 %v1961
    %v2041 = vunpack.c.l.b16 %v1962
    %v2042 = vunpack.c.h.b16 %v1962
    %v2043 = vunpack.c.l.b16 %v1963
    %v2044 = vunpack.c.l.b16 %v1964
    %v2045 = vunpack.c.h.b16 %v1964
    %v2046 = vunpack.c.l.b16 %v1965
    %v2047 = vunpack.c.l.b16 %v1966
    %v2048 = vunpack.c.h.b16 %v1966
    %v2049 = vunpack.c.l.b16 %v1967
    %v2050 = vpack.c.b16 %v2008, %v2005
    %v2051 = vpack.c.b16 %v2009, %v2006
    %v2052 = vpack.c.b16 %v2010, %v2007
    %v2053 = vpack.c.b16 %v2014, %v2011
    %v2054 = vpack.c.b16 %v2015, %v2012
    %v2055 = vpack.c.b16 %v2016, %v2013
    %v2056 = vpack.c.b16 %v2020, %v2017
    %v2057 = vpack.c.b16 %v2021, %v2018
    %v2058 = vpack.c.b16 %v2022, %v2019
    %v2059 = vpack.c.b16 %v2026, %v2023
    %v2060 = vpack.c.b16 %v2027, %v2024
    %v2061 = vpack.c.b16 %v2028, %v2025
    %v2062 = vpack.c.b16 %v2032, %v2029
    %v2063 = vpack.c.b16 %v2033, %v2030
    %v2064 = vpack.c.b16 %v2034, %v2031
    %v2065 = vpack.c.b16 %v2038, %v2035
    %v2066 = vpack.c.b16 %v2039, %v2036
    %v2067 = vpack.c.b16 %v2040, %v2037
    %v2068 = vpack.c.b16 %v2044, %v2041
    %v2069 = vpack.c.b16 %v2045, %v2042
    %v2070 = vpack.c.b16 %v2046, %v2043
    %v2071 = vpack.c.b16 %v2047, %v2047
    %v2072 = vpack.c.b16 %v2048, %v2048
    %v2073 = vpack.c.b16 %v2049, %v2049
    %v2096 = vsel %vm1790, %v1974, 0
    %v2099 = vsel %vm1790, %v1973, 0
    %v2102 = vsel %vm1797, %v2071, 0
    %v2105 = vsel %vm1797, %v2072, 0
    %v2108 = vsel %vm1797, %v2073, 0
    %2110 = vmatprep.subr.bf16.mxu0 %v2105
    %2111 = vmatpush1.bf16.msra.mxu0 %v2102
    %2112 = vmatprep.subr.bf16.mxu0 %v2069
    %2113 = vmatpush1.bf16.msra.mxu0 %v2068
    %2114 = vmatprep.subr.bf16.mxu0 %v2066
    %2115 = vmatpush1.bf16.msra.mxu0 %v2065
    %2116 = vmatprep.subr.bf16.mxu0 %v2063
    %2117 = vmatpush1.bf16.msra.mxu0 %v2062
    %2118 = vmatprep.subr.bf16.mxu0 %v2060
    %2119 = vmatpush1.bf16.msra.mxu0 %v2059
    %2120 = vmatprep.subr.bf16.mxu0 %v2057
    %2121 = vmatpush1.bf16.msra.mxu0 %v2056
    %2122 = vmatprep.subr.bf16.mxu0 %v2054
    %2123 = vmatpush1.bf16.msra.mxu0 %v2053
    %2124 = vmatprep.subr.bf16.mxu0 %v2051
    %2125 = vmatpush1.bf16.msra.mxu0 %v2050
    %2126 = vmatprep.subr.bf16.mxu0 0
    %2127 = vmatpush2.bf16.msra.mxu0 0
    %2128 = vmatprep.subr.bf16.mxu0 0
    %2129 = vmatpush2.bf16.msra.mxu0 0
    %2130 = vmatprep.subr.bf16.mxu0 0
    %2131 = vmatpush2.bf16.msra.mxu0 0
    %2132 = vmatprep.subr.bf16.mxu0 0
    %2133 = vmatpush2.bf16.msra.mxu0 0
    %2134 = vmatprep.subr.bf16.mxu0 0
    %2135 = vmatpush2.bf16.msra.mxu0 0
    %2136 = vmatprep.subr.bf16.mxu0 0
    %2137 = vmatpush2.bf16.msra.mxu0 0
    %2138 = vmatprep.subr.bf16.mxu0 0
    %2139 = vmatpush2.bf16.msra.mxu0 0
    %2140 = vmatprep.subr.bf16.mxu0 0
    %2141 = vmatpush2.bf16.msra.mxu0 0
    %2142 = vmatprep.mubr.bf16.mxu0 0
    %2143 = vmatmul.mubr.bf16.gmra.mxu0 %v2096
    %v2144 = vpop.f32.mrf.mxu0
    %v2145 = vadd.f32 0.0, %v2144
    %v2146 = vpop.f32.mrf.mxu0
    %v2147 = vadd.f32 0.0, %v2146
    %v2148 = vpop.f32.mrf.mxu0
    %v2149 = vadd.f32 0.0, %v2148
    %v2150 = vpop.f32.mrf.mxu0
    %v2151 = vadd.f32 0.0, %v2150
    %2152 = vmatprep.mubr.bf16.mxu0 0
    %2153 = vmatmul.mubr.bf16.gmra.mxu0 %v2099
    %v2154 = vpop.f32.mrf.mxu0
    %v2155 = vadd.f32 0.0, %v2154
    %v2156 = vpop.f32.mrf.mxu0
    %v2157 = vadd.f32 0.0, %v2156
    %v2158 = vpop.f32.mrf.mxu0
    %v2159 = vpop.f32.mrf.mxu0
    %2160 = vdwg.mxu0
    %2161 = vmatprep.subr.bf16.mxu0 0
    %2162 = vmatpush1.bf16.msra.mxu0 %v2108
    %2163 = vmatprep.subr.bf16.mxu0 0
    %2164 = vmatpush1.bf16.msra.mxu0 %v2070
    %2165 = vmatprep.subr.bf16.mxu0 0
    %2166 = vmatpush1.bf16.msra.mxu0 %v2067
    %2167 = vmatprep.subr.bf16.mxu0 0
    %2168 = vmatpush1.bf16.msra.mxu0 %v2064
    %2169 = vmatprep.subr.bf16.mxu0 0
    %2170 = vmatpush1.bf16.msra.mxu0 %v2061
    %2171 = vmatprep.subr.bf16.mxu0 0
    %2172 = vmatpush1.bf16.msra.mxu0 %v2058
    %2173 = vmatprep.subr.bf16.mxu0 0
    %2174 = vmatpush1.bf16.msra.mxu0 %v2055
    %2175 = vmatprep.subr.bf16.mxu0 0
    %2176 = vmatpush1.bf16.msra.mxu0 %v2052
    %2177 = vmatprep.subr.bf16.mxu0 0
    %2178 = vmatpush2.bf16.msra.mxu0 0
    %2179 = vmatprep.subr.bf16.mxu0 0
    %2180 = vmatpush2.bf16.msra.mxu0 0
    %2181 = vmatprep.subr.bf16.mxu0 0
    %2182 = vmatpush2.bf16.msra.mxu0 0
    %2183 = vmatprep.subr.bf16.mxu0 0
    %2184 = vmatpush2.bf16.msra.mxu0 0
    %2185 = vmatprep.subr.bf16.mxu0 0
    %2186 = vmatpush2.bf16.msra.mxu0 0
    %2187 = vmatprep.subr.bf16.mxu0 0
    %2188 = vmatpush2.bf16.msra.mxu0 0
    %2189 = vmatprep.subr.bf16.mxu0 0
    %2190 = vmatpush2.bf16.msra.mxu0 0
    %2191 = vmatprep.subr.bf16.mxu0 0
    %2192 = vmatpush2.bf16.msra.mxu0 0
    %2193 = vmatprep.mubr.bf16.mxu0 0
    %2194 = vmatmul.mubr.bf16.gmra.mxu0 %v2096
    %v2195 = vpop.f32.mrf.mxu0
    %v2196 = vadd.f32 0.0, %v2195
    %v2197 = vpop.f32.mrf.mxu0
    %v2198 = vpop.f32.mrf.mxu0
    %v2199 = vadd.f32 0.0, %v2198
    %v2200 = vpop.f32.mrf.mxu0
    %2201 = vmatprep.mubr.bf16.mxu0 0
    %2202 = vmatmul.mubr.bf16.gmra.mxu0 %v2099
    %v2203 = vpop.f32.mrf.mxu0
    %v2204 = vadd.f32 0.0, %v2203
    %v2205 = vpop.f32.mrf.mxu0
    %v2206 = vpop.f32.mrf.mxu0
    %v2207 = vpop.f32.mrf.mxu0
    %2208 = vdwg.mxu0
    %s2209 = scalar_lea.vmem %s3, 720
    %v2210 = vld [vmem:[%s2209] sm:$0xff]
    %v2211 = vld [vmem:[%s2209 + $0x8] sm:$0xf]
    %v2212 = vld [vmem:[%s2209 + $0xc] sm:$0xff]
    %v2213 = vld [vmem:[%s2209 + $0x14] sm:$0xf]
    %v2214 = vld [vmem:[%s2209 + $0x18] sm:$0xff]
    %v2215 = vld [vmem:[%s2209 + $0x20] sm:$0xf]
    %v2216 = vld [vmem:[%s2209 + $0x24] sm:$0xff]
    %v2217 = vld [vmem:[%s2209 + $0x2c] sm:$0xf]
    %v2218 = vld [vmem:[%s2209 + $0x30] sm:$0xff]
    %v2219 = vld [vmem:[%s2209 + $0x38] sm:$0xf]
    %v2220 = vld [vmem:[%s2209 + $0x3c] sm:$0xff]
    %v2221 = vld [vmem:[%s2209 + $0x44] sm:$0xf]
    %v2222 = vld [vmem:[%s2209 + $0x48] sm:$0xff]
    %v2223 = vld [vmem:[%s2209 + $0x50] sm:$0xf]
    %v2224 = vld [vmem:[%s2209 + $0x54] sm:$0xff]
    %v2225 = vld [vmem:[%s2209 + $0x5c] sm:$0xf]
    %v2226 = vld [vmem:[%s2209 + $0x60] sm:$0xff]
    %v2227 = vld [vmem:[%s2209 + $0x68] sm:$0xf]
    %v2228 = vld [vmem:[%s2209 + $0x6c] sm:$0xff]
    %v2229 = vld [vmem:[%s2209 + $0x74] sm:$0xf]
    %v2230 = vld [vmem:[%s2209 + $0x78] sm:$0xff]
    %v2231 = vld [vmem:[%s2209 + $0x80] sm:$0xf]
    %v2232 = vld [vmem:[%s2209 + $0x84] sm:$0xff]
    %v2233 = vld [vmem:[%s2209 + $0x8c] sm:$0xf]
    %v2234 = vld [vmem:[%s2209 + $0x90] sm:$0xff]
    %v2235 = vld [vmem:[%s2209 + $0x98] sm:$0xf]
    %v2236 = vld [vmem:[%s2209 + $0x9c] sm:$0xff]
    %v2237 = vld [vmem:[%s2209 + $0xa4] sm:$0xf]
    %v2238 = vld [vmem:[%s2209 + $0xa8] sm:$0xff]
    %v2239 = vld [vmem:[%s2209 + $0xb0] sm:$0xf]
    %s2240 = scalar_lea.vmem %s3, 900
    %v2241 = vld [vmem:[%s2240] sm:$0xff]
    %v2242 = vld [vmem:[%s2240 + $0x8] sm:$0xf]
    %v2243 = vld [vmem:[%s2240 + $0xc] sm:$0xff]
    %v2244 = vld [vmem:[%s2240 + $0x14] sm:$0xf]
    %v2245 = vld [vmem:[%s2240 + $0x18] sm:$0xff]
    %v2246 = vld [vmem:[%s2240 + $0x20] sm:$0xf]
    %v2247 = vld [vmem:[%s2240 + $0x24] sm:$0xff]
    %v2248 = vld [vmem:[%s2240 + $0x2c] sm:$0xf]
    %v2249 = vld [vmem:[%s2240 + $0x30] sm:$0xff]
    %v2250 = vld [vmem:[%s2240 + $0x38] sm:$0xf]
    %v2251 = vld [vmem:[%s2240 + $0x3c] sm:$0xff]
    %v2252 = vld [vmem:[%s2240 + $0x44] sm:$0xf]
    %v2253 = vld [vmem:[%s2240 + $0x48] sm:$0xff]
    %v2254 = vld [vmem:[%s2240 + $0x50] sm:$0xf]
    %v2255 = vld [vmem:[%s2240 + $0x54] sm:$0xff]
    %v2256 = vld [vmem:[%s2240 + $0x5c] sm:$0xf]
    %v2257 = vld [vmem:[%s2240 + $0x60] sm:$0xff]
    %v2258 = vld [vmem:[%s2240 + $0x68] sm:$0xf]
    %v2259 = vld [vmem:[%s2240 + $0x6c] sm:$0xff]
    %v2260 = vld [vmem:[%s2240 + $0x74] sm:$0xf]
    %v2261 = vld [vmem:[%s2240 + $0x78] sm:$0xff]
    %v2262 = vld [vmem:[%s2240 + $0x80] sm:$0xf]
    %v2263 = vld [vmem:[%s2240 + $0x84] sm:$0xff]
    %v2264 = vld [vmem:[%s2240 + $0x8c] sm:$0xf]
    %v2265 = vld [vmem:[%s2240 + $0x90] sm:$0xff]
    %v2266 = vld [vmem:[%s2240 + $0x98] sm:$0xf]
    %v2267 = vld [vmem:[%s2240 + $0x9c] sm:$0xff]
    %v2268 = vld [vmem:[%s2240 + $0xa4] sm:$0xf]
    %v2269 = vld [vmem:[%s2240 + $0xa8] sm:$0xff]
    %v2270 = vld [vmem:[%s2240 + $0xb0] sm:$0xf]
    %v2271 = vrot.slane %v1656, 2
    %v2272 = vrot.slane %v1658, 3
    %v2273 = vor.u32 %v2271, %v2272
    %v2274 = vrot.slane %v1667, 2
    %v2275 = vrot.slane %v1663, 3
    %v2276 = vor.u32 %v2274, %v2275
    %v2277 = vsel %vm498, %v2273, %v2276
    %v2308 = vunpack.c.l.b16 %v2241
    %v2309 = vunpack.c.h.b16 %v2241
    %v2310 = vunpack.c.l.b16 %v2242
    %v2311 = vunpack.c.l.b16 %v2243
    %v2312 = vunpack.c.h.b16 %v2243
    %v2313 = vunpack.c.l.b16 %v2244
    %v2314 = vunpack.c.l.b16 %v2245
    %v2315 = vunpack.c.h.b16 %v2245
    %v2316 = vunpack.c.l.b16 %v2246
    %v2317 = vunpack.c.l.b16 %v2247
    %v2318 = vunpack.c.h.b16 %v2247
    %v2319 = vunpack.c.l.b16 %v2248
    %v2320 = vunpack.c.l.b16 %v2249
    %v2321 = vunpack.c.h.b16 %v2249
    %v2322 = vunpack.c.l.b16 %v2250
    %v2323 = vunpack.c.l.b16 %v2251
    %v2324 = vunpack.c.h.b16 %v2251
    %v2325 = vunpack.c.l.b16 %v2252
    %v2326 = vunpack.c.l.b16 %v2253
    %v2327 = vunpack.c.h.b16 %v2253
    %v2328 = vunpack.c.l.b16 %v2254
    %v2329 = vunpack.c.l.b16 %v2255
    %v2330 = vunpack.c.h.b16 %v2255
    %v2331 = vunpack.c.l.b16 %v2256
    %v2332 = vunpack.c.l.b16 %v2257
    %v2333 = vunpack.c.h.b16 %v2257
    %v2334 = vunpack.c.l.b16 %v2258
    %v2335 = vunpack.c.l.b16 %v2259
    %v2336 = vunpack.c.h.b16 %v2259
    %v2337 = vunpack.c.l.b16 %v2260
    %v2338 = vunpack.c.l.b16 %v2261
    %v2339 = vunpack.c.h.b16 %v2261
    %v2340 = vunpack.c.l.b16 %v2262
    %v2341 = vunpack.c.l.b16 %v2263
    %v2342 = vunpack.c.h.b16 %v2263
    %v2343 = vunpack.c.l.b16 %v2264
    %v2344 = vunpack.c.l.b16 %v2265
    %v2345 = vunpack.c.h.b16 %v2265
    %v2346 = vunpack.c.l.b16 %v2266
    %v2347 = vunpack.c.l.b16 %v2267
    %v2348 = vunpack.c.h.b16 %v2267
    %v2349 = vunpack.c.l.b16 %v2268
    %v2350 = vunpack.c.l.b16 %v2269
    %v2351 = vunpack.c.h.b16 %v2269
    %v2352 = vunpack.c.l.b16 %v2270
    %v2353 = vpack.c.b16 %v2311, %v2308
    %v2354 = vpack.c.b16 %v2312, %v2309
    %v2355 = vpack.c.b16 %v2313, %v2310
    %v2356 = vpack.c.b16 %v2317, %v2314
    %v2357 = vpack.c.b16 %v2318, %v2315
    %v2358 = vpack.c.b16 %v2319, %v2316
    %v2359 = vpack.c.b16 %v2323, %v2320
    %v2360 = vpack.c.b16 %v2324, %v2321
    %v2361 = vpack.c.b16 %v2325, %v2322
    %v2362 = vpack.c.b16 %v2329, %v2326
    %v2363 = vpack.c.b16 %v2330, %v2327
    %v2364 = vpack.c.b16 %v2331, %v2328
    %v2365 = vpack.c.b16 %v2335, %v2332
    %v2366 = vpack.c.b16 %v2336, %v2333
    %v2367 = vpack.c.b16 %v2337, %v2334
    %v2368 = vpack.c.b16 %v2341, %v2338
    %v2369 = vpack.c.b16 %v2342, %v2339
    %v2370 = vpack.c.b16 %v2343, %v2340
    %v2371 = vpack.c.b16 %v2347, %v2344
    %v2372 = vpack.c.b16 %v2348, %v2345
    %v2373 = vpack.c.b16 %v2349, %v2346
    %v2374 = vpack.c.b16 %v2350, %v2350
    %v2375 = vpack.c.b16 %v2351, %v2351
    %v2376 = vpack.c.b16 %v2352, %v2352
    %v2399 = vsel %vm1790, %v2277, 0
    %v2402 = vsel %vm1790, %v2276, 0
    %v2405 = vsel %vm1797, %v2374, 0
    %v2408 = vsel %vm1797, %v2375, 0
    %v2411 = vsel %vm1797, %v2376, 0
    %2413 = vmatprep.subr.bf16.mxu0 %v2408
    %2414 = vmatpush1.bf16.msra.mxu0 %v2405
    %2415 = vmatprep.subr.bf16.mxu0 %v2372
    %2416 = vmatpush1.bf16.msra.mxu0 %v2371
    %2417 = vmatprep.subr.bf16.mxu0 %v2369
    %2418 = vmatpush1.bf16.msra.mxu0 %v2368
    %2419 = vmatprep.subr.bf16.mxu0 %v2366
    %2420 = vmatpush1.bf16.msra.mxu0 %v2365
    %2421 = vmatprep.subr.bf16.mxu0 %v2363
    %2422 = vmatpush1.bf16.msra.mxu0 %v2362
    %2423 = vmatprep.subr.bf16.mxu0 %v2360
    %2424 = vmatpush1.bf16.msra.mxu0 %v2359
    %2425 = vmatprep.subr.bf16.mxu0 %v2357
    %2426 = vmatpush1.bf16.msra.mxu0 %v2356
    %2427 = vmatprep.subr.bf16.mxu0 %v2354
    %2428 = vmatpush1.bf16.msra.mxu0 %v2353
    %2429 = vmatprep.subr.bf16.mxu0 0
    %2430 = vmatpush2.bf16.msra.mxu0 0
    %2431 = vmatprep.subr.bf16.mxu0 0
    %2432 = vmatpush2.bf16.msra.mxu0 0
    %2433 = vmatprep.subr.bf16.mxu0 0
    %2434 = vmatpush2.bf16.msra.mxu0 0
    %2435 = vmatprep.subr.bf16.mxu0 0
    %2436 = vmatpush2.bf16.msra.mxu0 0
    %2437 = vmatprep.subr.bf16.mxu0 0
    %2438 = vmatpush2.bf16.msra.mxu0 0
    %2439 = vmatprep.subr.bf16.mxu0 0
    %2440 = vmatpush2.bf16.msra.mxu0 0
    %2441 = vmatprep.subr.bf16.mxu0 0
    %2442 = vmatpush2.bf16.msra.mxu0 0
    %2443 = vmatprep.subr.bf16.mxu0 0
    %2444 = vmatpush2.bf16.msra.mxu0 0
    %2445 = vmatprep.mubr.bf16.mxu0 0
    %2446 = vmatmul.mubr.bf16.gmra.mxu0 %v2399
    %v2447 = vpop.f32.mrf.mxu0
    %v2448 = vadd.f32 0.0, %v2447
    %v2449 = vpop.f32.mrf.mxu0
    %v2450 = vadd.f32 0.0, %v2449
    %v2451 = vpop.f32.mrf.mxu0
    %v2452 = vadd.f32 0.0, %v2451
    %v2453 = vpop.f32.mrf.mxu0
    %v2454 = vadd.f32 0.0, %v2453
    %2455 = vmatprep.mubr.bf16.mxu0 0
    %2456 = vmatmul.mubr.bf16.gmra.mxu0 %v2402
    %v2457 = vpop.f32.mrf.mxu0
    %v2458 = vadd.f32 0.0, %v2457
    %v2459 = vpop.f32.mrf.mxu0
    %v2460 = vadd.f32 0.0, %v2459
    %v2461 = vpop.f32.mrf.mxu0
    %v2462 = vpop.f32.mrf.mxu0
    %2463 = vdwg.mxu0
    %2464 = vmatprep.subr.bf16.mxu0 0
    %2465 = vmatpush1.bf16.msra.mxu0 %v2411
    %2466 = vmatprep.subr.bf16.mxu0 0
    %2467 = vmatpush1.bf16.msra.mxu0 %v2373
    %2468 = vmatprep.subr.bf16.mxu0 0
    %2469 = vmatpush1.bf16.msra.mxu0 %v2370
    %2470 = vmatprep.subr.bf16.mxu0 0
    %2471 = vmatpush1.bf16.msra.mxu0 %v2367
    %2472 = vmatprep.subr.bf16.mxu0 0
    %2473 = vmatpush1.bf16.msra.mxu0 %v2364
    %2474 = vmatprep.subr.bf16.mxu0 0
    %2475 = vmatpush1.bf16.msra.mxu0 %v2361
    %2476 = vmatprep.subr.bf16.mxu0 0
    %2477 = vmatpush1.bf16.msra.mxu0 %v2358
    %2478 = vmatprep.subr.bf16.mxu0 0
    %2479 = vmatpush1.bf16.msra.mxu0 %v2355
    %2480 = vmatprep.subr.bf16.mxu0 0
    %2481 = vmatpush2.bf16.msra.mxu0 0
    %2482 = vmatprep.subr.bf16.mxu0 0
    %2483 = vmatpush2.bf16.msra.mxu0 0
    %2484 = vmatprep.subr.bf16.mxu0 0
    %2485 = vmatpush2.bf16.msra.mxu0 0
    %2486 = vmatprep.subr.bf16.mxu0 0
    %2487 = vmatpush2.bf16.msra.mxu0 0
    %2488 = vmatprep.subr.bf16.mxu0 0
    %2489 = vmatpush2.bf16.msra.mxu0 0
    %2490 = vmatprep.subr.bf16.mxu0 0
    %2491 = vmatpush2.bf16.msra.mxu0 0
    %2492 = vmatprep.subr.bf16.mxu0 0
    %2493 = vmatpush2.bf16.msra.mxu0 0
    %2494 = vmatprep.subr.bf16.mxu0 0
    %2495 = vmatpush2.bf16.msra.mxu0 0
    %2496 = vmatprep.mubr.bf16.mxu0 0
    %2497 = vmatmul.mubr.bf16.gmra.mxu0 %v2399
    %v2498 = vpop.f32.mrf.mxu0
    %v2499 = vadd.f32 0.0, %v2498
    %v2500 = vpop.f32.mrf.mxu0
    %v2501 = vpop.f32.mrf.mxu0
    %v2502 = vadd.f32 0.0, %v2501
    %v2503 = vpop.f32.mrf.mxu0
    %2504 = vmatprep.mubr.bf16.mxu0 0
    %2505 = vmatmul.mubr.bf16.gmra.mxu0 %v2402
    %v2506 = vpop.f32.mrf.mxu0
    %v2507 = vadd.f32 0.0, %v2506
    %v2508 = vpop.f32.mrf.mxu0
    %v2509 = vpop.f32.mrf.mxu0
    %v2510 = vpop.f32.mrf.mxu0
    %2511 = vdwg.mxu0
    %s2512 = scalar_lea.vmem %s3, 1080
    %v2513 = vld [vmem:[%s2512] sm:$0xff]
    %v2514 = vld [vmem:[%s2512 + $0x8] sm:$0xf]
    %v2515 = vld [vmem:[%s2512 + $0xc] sm:$0xff]
    %v2516 = vld [vmem:[%s2512 + $0x14] sm:$0xf]
    %v2517 = vld [vmem:[%s2512 + $0x18] sm:$0xff]
    %v2518 = vld [vmem:[%s2512 + $0x20] sm:$0xf]
    %v2519 = vld [vmem:[%s2512 + $0x24] sm:$0xff]
    %v2520 = vld [vmem:[%s2512 + $0x2c] sm:$0xf]
    %v2521 = vld [vmem:[%s2512 + $0x30] sm:$0xff]
    %v2522 = vld [vmem:[%s2512 + $0x38] sm:$0xf]
    %v2523 = vld [vmem:[%s2512 + $0x3c] sm:$0xff]
    %v2524 = vld [vmem:[%s2512 + $0x44] sm:$0xf]
    %v2525 = vld [vmem:[%s2512 + $0x48] sm:$0xff]
    %v2526 = vld [vmem:[%s2512 + $0x50] sm:$0xf]
    %v2527 = vld [vmem:[%s2512 + $0x54] sm:$0xff]
    %v2528 = vld [vmem:[%s2512 + $0x5c] sm:$0xf]
    %v2529 = vld [vmem:[%s2512 + $0x60] sm:$0xff]
    %v2530 = vld [vmem:[%s2512 + $0x68] sm:$0xf]
    %v2531 = vld [vmem:[%s2512 + $0x6c] sm:$0xff]
    %v2532 = vld [vmem:[%s2512 + $0x74] sm:$0xf]
    %v2533 = vld [vmem:[%s2512 + $0x78] sm:$0xff]
    %v2534 = vld [vmem:[%s2512 + $0x80] sm:$0xf]
    %v2535 = vld [vmem:[%s2512 + $0x84] sm:$0xff]
    %v2536 = vld [vmem:[%s2512 + $0x8c] sm:$0xf]
    %v2537 = vld [vmem:[%s2512 + $0x90] sm:$0xff]
    %v2538 = vld [vmem:[%s2512 + $0x98] sm:$0xf]
    %v2539 = vld [vmem:[%s2512 + $0x9c] sm:$0xff]
    %v2540 = vld [vmem:[%s2512 + $0xa4] sm:$0xf]
    %v2541 = vld [vmem:[%s2512 + $0xa8] sm:$0xff]
    %v2542 = vld [vmem:[%s2512 + $0xb0] sm:$0xf]
    %v2545 = vrot.slane %v1591, 3
    %v2546 = vrot.slane %v1623, 3
    %v2547 = vsel %vm650, %v2545, %v2546
    %v2578 = vunpack.c.l.b16 %v2513
    %v2579 = vunpack.c.h.b16 %v2513
    %v2580 = vunpack.c.l.b16 %v2514
    %v2581 = vunpack.c.l.b16 %v2515
    %v2582 = vunpack.c.h.b16 %v2515
    %v2583 = vunpack.c.l.b16 %v2516
    %v2584 = vunpack.c.l.b16 %v2517
    %v2585 = vunpack.c.h.b16 %v2517
    %v2586 = vunpack.c.l.b16 %v2518
    %v2587 = vunpack.c.l.b16 %v2519
    %v2588 = vunpack.c.h.b16 %v2519
    %v2589 = vunpack.c.l.b16 %v2520
    %v2590 = vunpack.c.l.b16 %v2521
    %v2591 = vunpack.c.h.b16 %v2521
    %v2592 = vunpack.c.l.b16 %v2522
    %v2593 = vunpack.c.l.b16 %v2523
    %v2594 = vunpack.c.h.b16 %v2523
    %v2595 = vunpack.c.l.b16 %v2524
    %v2596 = vunpack.c.l.b16 %v2525
    %v2597 = vunpack.c.h.b16 %v2525
    %v2598 = vunpack.c.l.b16 %v2526
    %v2599 = vunpack.c.l.b16 %v2527
    %v2600 = vunpack.c.h.b16 %v2527
    %v2601 = vunpack.c.l.b16 %v2528
    %v2602 = vunpack.c.l.b16 %v2529
    %v2603 = vunpack.c.h.b16 %v2529
    %v2604 = vunpack.c.l.b16 %v2530
    %v2605 = vunpack.c.l.b16 %v2531
    %v2606 = vunpack.c.h.b16 %v2531
    %v2607 = vunpack.c.l.b16 %v2532
    %v2608 = vunpack.c.l.b16 %v2533
    %v2609 = vunpack.c.h.b16 %v2533
    %v2610 = vunpack.c.l.b16 %v2534
    %v2611 = vunpack.c.l.b16 %v2535
    %v2612 = vunpack.c.h.b16 %v2535
    %v2613 = vunpack.c.l.b16 %v2536
    %v2614 = vunpack.c.l.b16 %v2537
    %v2615 = vunpack.c.h.b16 %v2537
    %v2616 = vunpack.c.l.b16 %v2538
    %v2617 = vunpack.c.l.b16 %v2539
    %v2618 = vunpack.c.h.b16 %v2539
    %v2619 = vunpack.c.l.b16 %v2540
    %v2620 = vunpack.c.l.b16 %v2541
    %v2621 = vunpack.c.h.b16 %v2541
    %v2622 = vunpack.c.l.b16 %v2542
    %v2623 = vpack.c.b16 %v2581, %v2578
    %v2624 = vpack.c.b16 %v2582, %v2579
    %v2625 = vpack.c.b16 %v2583, %v2580
    %v2626 = vpack.c.b16 %v2587, %v2584
    %v2627 = vpack.c.b16 %v2588, %v2585
    %v2628 = vpack.c.b16 %v2589, %v2586
    %v2629 = vpack.c.b16 %v2593, %v2590
    %v2630 = vpack.c.b16 %v2594, %v2591
    %v2631 = vpack.c.b16 %v2595, %v2592
    %v2632 = vpack.c.b16 %v2599, %v2596
    %v2633 = vpack.c.b16 %v2600, %v2597
    %v2634 = vpack.c.b16 %v2601, %v2598
    %v2635 = vpack.c.b16 %v2605, %v2602
    %v2636 = vpack.c.b16 %v2606, %v2603
    %v2637 = vpack.c.b16 %v2607, %v2604
    %v2638 = vpack.c.b16 %v2611, %v2608
    %v2639 = vpack.c.b16 %v2612, %v2609
    %v2640 = vpack.c.b16 %v2613, %v2610
    %v2641 = vpack.c.b16 %v2617, %v2614
    %v2642 = vpack.c.b16 %v2618, %v2615
    %v2643 = vpack.c.b16 %v2619, %v2616
    %v2644 = vpack.c.b16 %v2620, %v2620
    %v2645 = vpack.c.b16 %v2621, %v2621
    %v2646 = vpack.c.b16 %v2622, %v2622
    %v2669 = vsel %vm1790, %v2547, 0
    %v2672 = vsel %vm1790, %v2546, 0
    %v2675 = vsel %vm1797, %v2644, 0
    %v2678 = vsel %vm1797, %v2645, 0
    %v2681 = vsel %vm1797, %v2646, 0
    %2683 = vmatprep.subr.bf16.mxu0 %v2678
    %2684 = vmatpush1.bf16.msra.mxu0 %v2675
    %2685 = vmatprep.subr.bf16.mxu0 %v2642
    %2686 = vmatpush1.bf16.msra.mxu0 %v2641
    %2687 = vmatprep.subr.bf16.mxu0 %v2639
    %2688 = vmatpush1.bf16.msra.mxu0 %v2638
    %2689 = vmatprep.subr.bf16.mxu0 %v2636
    %2690 = vmatpush1.bf16.msra.mxu0 %v2635
    %2691 = vmatprep.subr.bf16.mxu0 %v2633
    %2692 = vmatpush1.bf16.msra.mxu0 %v2632
    %2693 = vmatprep.subr.bf16.mxu0 %v2630
    %2694 = vmatpush1.bf16.msra.mxu0 %v2629
    %2695 = vmatprep.subr.bf16.mxu0 %v2627
    %2696 = vmatpush1.bf16.msra.mxu0 %v2626
    %2697 = vmatprep.subr.bf16.mxu0 %v2624
    %2698 = vmatpush1.bf16.msra.mxu0 %v2623
    %2699 = vmatprep.subr.bf16.mxu0 0
    %2700 = vmatpush2.bf16.msra.mxu0 0
    %2701 = vmatprep.subr.bf16.mxu0 0
    %2702 = vmatpush2.bf16.msra.mxu0 0
    %2703 = vmatprep.subr.bf16.mxu0 0
    %2704 = vmatpush2.bf16.msra.mxu0 0
    %2705 = vmatprep.subr.bf16.mxu0 0
    %2706 = vmatpush2.bf16.msra.mxu0 0
    %2707 = vmatprep.subr.bf16.mxu0 0
    %2708 = vmatpush2.bf16.msra.mxu0 0
    %2709 = vmatprep.subr.bf16.mxu0 0
    %2710 = vmatpush2.bf16.msra.mxu0 0
    %2711 = vmatprep.subr.bf16.mxu0 0
    %2712 = vmatpush2.bf16.msra.mxu0 0
    %2713 = vmatprep.subr.bf16.mxu0 0
    %2714 = vmatpush2.bf16.msra.mxu0 0
    %2715 = vmatprep.mubr.bf16.mxu0 0
    %2716 = vmatmul.mubr.bf16.gmra.mxu0 %v2669
    %v2717 = vpop.f32.mrf.mxu0
    %v2718 = vadd.f32 0.0, %v2717
    %v2719 = vpop.f32.mrf.mxu0
    %v2720 = vadd.f32 0.0, %v2719
    %v2721 = vpop.f32.mrf.mxu0
    %v2722 = vadd.f32 0.0, %v2721
    %v2723 = vpop.f32.mrf.mxu0
    %v2724 = vadd.f32 0.0, %v2723
    %2725 = vmatprep.mubr.bf16.mxu0 0
    %2726 = vmatmul.mubr.bf16.gmra.mxu0 %v2672
    %v2727 = vpop.f32.mrf.mxu0
    %v2728 = vadd.f32 0.0, %v2727
    %v2729 = vpop.f32.mrf.mxu0
    %v2730 = vadd.f32 0.0, %v2729
    %v2731 = vpop.f32.mrf.mxu0
    %v2732 = vpop.f32.mrf.mxu0
    %2733 = vdwg.mxu0
    %2734 = vmatprep.subr.bf16.mxu0 0
    %2735 = vmatpush1.bf16.msra.mxu0 %v2681
    %2736 = vmatprep.subr.bf16.mxu0 0
    %2737 = vmatpush1.bf16.msra.mxu0 %v2643
    %2738 = vmatprep.subr.bf16.mxu0 0
    %2739 = vmatpush1.bf16.msra.mxu0 %v2640
    %2740 = vmatprep.subr.bf16.mxu0 0
    %2741 = vmatpush1.bf16.msra.mxu0 %v2637
    %2742 = vmatprep.subr.bf16.mxu0 0
    %2743 = vmatpush1.bf16.msra.mxu0 %v2634
    %2744 = vmatprep.subr.bf16.mxu0 0
    %2745 = vmatpush1.bf16.msra.mxu0 %v2631
    %2746 = vmatprep.subr.bf16.mxu0 0
    %2747 = vmatpush1.bf16.msra.mxu0 %v2628
    %2748 = vmatprep.subr.bf16.mxu0 0
    %2749 = vmatpush1.bf16.msra.mxu0 %v2625
    %2750 = vmatprep.subr.bf16.mxu0 0
    %2751 = vmatpush2.bf16.msra.mxu0 0
    %2752 = vmatprep.subr.bf16.mxu0 0
    %2753 = vmatpush2.bf16.msra.mxu0 0
    %2754 = vmatprep.subr.bf16.mxu0 0
    %2755 = vmatpush2.bf16.msra.mxu0 0
    %2756 = vmatprep.subr.bf16.mxu0 0
    %2757 = vmatpush2.bf16.msra.mxu0 0
    %2758 = vmatprep.subr.bf16.mxu0 0
    %2759 = vmatpush2.bf16.msra.mxu0 0
    %2760 = vmatprep.subr.bf16.mxu0 0
    %2761 = vmatpush2.bf16.msra.mxu0 0
    %2762 = vmatprep.subr.bf16.mxu0 0
    %2763 = vmatpush2.bf16.msra.mxu0 0
    %2764 = vmatprep.subr.bf16.mxu0 0
    %2765 = vmatpush2.bf16.msra.mxu0 0
    %2766 = vmatprep.mubr.bf16.mxu0 0
    %2767 = vmatmul.mubr.bf16.gmra.mxu0 %v2669
    %v2768 = vpop.f32.mrf.mxu0
    %v2769 = vadd.f32 0.0, %v2768
    %v2770 = vpop.f32.mrf.mxu0
    %v2771 = vpop.f32.mrf.mxu0
    %v2772 = vadd.f32 0.0, %v2771
    %v2773 = vpop.f32.mrf.mxu0
    %2774 = vmatprep.mubr.bf16.mxu0 0
    %2775 = vmatmul.mubr.bf16.gmra.mxu0 %v2672
    %v2776 = vpop.f32.mrf.mxu0
    %v2777 = vadd.f32 0.0, %v2776
    %v2778 = vpop.f32.mrf.mxu0
    %v2779 = vpop.f32.mrf.mxu0
    %v2780 = vpop.f32.mrf.mxu0
    %2781 = vdwg.mxu0
    %v2812 = vunpack.c.l.b16 %v1593
    %v2813 = vunpack.c.h.b16 %v1593
    %v2814 = vunpack.c.l.b16 %v1594
    %v2815 = vunpack.c.l.b16 %v1595
    %v2816 = vunpack.c.h.b16 %v1595
    %v2817 = vunpack.c.l.b16 %v1596
    %v2818 = vunpack.c.l.b16 %v1597
    %v2819 = vunpack.c.h.b16 %v1597
    %v2820 = vunpack.c.l.b16 %v1598
    %v2821 = vunpack.c.l.b16 %v1599
    %v2822 = vunpack.c.h.b16 %v1599
    %v2823 = vunpack.c.l.b16 %v1600
    %v2824 = vunpack.c.l.b16 %v1601
    %v2825 = vunpack.c.h.b16 %v1601
    %v2826 = vunpack.c.l.b16 %v1602
    %v2827 = vunpack.c.l.b16 %v1603
    %v2828 = vunpack.c.h.b16 %v1603
    %v2829 = vunpack.c.l.b16 %v1604
    %v2830 = vunpack.c.l.b16 %v1605
    %v2831 = vunpack.c.h.b16 %v1605
    %v2832 = vunpack.c.l.b16 %v1606
    %v2833 = vunpack.c.l.b16 %v1607
    %v2834 = vunpack.c.h.b16 %v1607
    %v2835 = vunpack.c.l.b16 %v1608
    %v2836 = vunpack.c.l.b16 %v1609
    %v2837 = vunpack.c.h.b16 %v1609
    %v2838 = vunpack.c.l.b16 %v1610
    %v2839 = vunpack.c.l.b16 %v1611
    %v2840 = vunpack.c.h.b16 %v1611
    %v2841 = vunpack.c.l.b16 %v1612
    %v2842 = vunpack.c.l.b16 %v1613
    %v2843 = vunpack.c.h.b16 %v1613
    %v2844 = vunpack.c.l.b16 %v1614
    %v2845 = vunpack.c.l.b16 %v1615
    %v2846 = vunpack.c.h.b16 %v1615
    %v2847 = vunpack.c.l.b16 %v1616
    %v2848 = vunpack.c.l.b16 %v1617
    %v2849 = vunpack.c.h.b16 %v1617
    %v2850 = vunpack.c.l.b16 %v1618
    %v2851 = vunpack.c.l.b16 %v1619
    %v2852 = vunpack.c.h.b16 %v1619
    %v2853 = vunpack.c.l.b16 %v1620
    %v2854 = vunpack.c.l.b16 %v1621
    %v2855 = vunpack.c.h.b16 %v1621
    %v2856 = vunpack.c.l.b16 %v1622
    %v2857 = vpack.c.b16 %v2815, %v2812
    %v2858 = vpack.c.b16 %v2816, %v2813
    %v2859 = vpack.c.b16 %v2817, %v2814
    %v2860 = vpack.c.b16 %v2821, %v2818
    %v2861 = vpack.c.b16 %v2822, %v2819
    %v2862 = vpack.c.b16 %v2823, %v2820
    %v2863 = vpack.c.b16 %v2827, %v2824
    %v2864 = vpack.c.b16 %v2828, %v2825
    %v2865 = vpack.c.b16 %v2829, %v2826
    %v2866 = vpack.c.b16 %v2833, %v2830
    %v2867 = vpack.c.b16 %v2834, %v2831
    %v2868 = vpack.c.b16 %v2835, %v2832
    %v2869 = vpack.c.b16 %v2839, %v2836
    %v2870 = vpack.c.b16 %v2840, %v2837
    %v2871 = vpack.c.b16 %v2841, %v2838
    %v2872 = vpack.c.b16 %v2845, %v2842
    %v2873 = vpack.c.b16 %v2846, %v2843
    %v2874 = vpack.c.b16 %v2847, %v2844
    %v2875 = vpack.c.b16 %v2851, %v2848
    %v2876 = vpack.c.b16 %v2852, %v2849
    %v2877 = vpack.c.b16 %v2853, %v2850
    %v2878 = vpack.c.b16 %v2854, %v2854
    %v2879 = vpack.c.b16 %v2855, %v2855
    %v2880 = vpack.c.b16 %v2856, %v2856
    %v2902 = vsel %vm1790, %v1591, 0
    %v2905 = vsel %vm1790, %v1592, 0
    %v2908 = vsel %vm1797, %v2878, 0
    %v2911 = vsel %vm1797, %v2879, 0
    %v2914 = vsel %vm1797, %v2880, 0
    %2916 = vmatprep.subr.bf16.mxu0 %v2911
    %2917 = vmatpush1.bf16.msra.mxu0 %v2908
    %2918 = vmatprep.subr.bf16.mxu0 %v2876
    %2919 = vmatpush1.bf16.msra.mxu0 %v2875
    %2920 = vmatprep.subr.bf16.mxu0 %v2873
    %2921 = vmatpush1.bf16.msra.mxu0 %v2872
    %2922 = vmatprep.subr.bf16.mxu0 %v2870
    %2923 = vmatpush1.bf16.msra.mxu0 %v2869
    %2924 = vmatprep.subr.bf16.mxu0 %v2867
    %2925 = vmatpush1.bf16.msra.mxu0 %v2866
    %2926 = vmatprep.subr.bf16.mxu0 %v2864
    %2927 = vmatpush1.bf16.msra.mxu0 %v2863
    %2928 = vmatprep.subr.bf16.mxu0 %v2861
    %2929 = vmatpush1.bf16.msra.mxu0 %v2860
    %2930 = vmatprep.subr.bf16.mxu0 %v2858
    %2931 = vmatpush1.bf16.msra.mxu0 %v2857
    %2932 = vmatprep.subr.bf16.mxu0 0
    %2933 = vmatpush2.bf16.msra.mxu0 0
    %2934 = vmatprep.subr.bf16.mxu0 0
    %2935 = vmatpush2.bf16.msra.mxu0 0
    %2936 = vmatprep.subr.bf16.mxu0 0
    %2937 = vmatpush2.bf16.msra.mxu0 0
    %2938 = vmatprep.subr.bf16.mxu0 0
    %2939 = vmatpush2.bf16.msra.mxu0 0
    %2940 = vmatprep.subr.bf16.mxu0 0
    %2941 = vmatpush2.bf16.msra.mxu0 0
    %2942 = vmatprep.subr.bf16.mxu0 0
    %2943 = vmatpush2.bf16.msra.mxu0 0
    %2944 = vmatprep.subr.bf16.mxu0 0
    %2945 = vmatpush2.bf16.msra.mxu0 0
    %2946 = vmatprep.subr.bf16.mxu0 0
    %2947 = vmatpush2.bf16.msra.mxu0 0
    %2948 = vmatprep.mubr.bf16.mxu0 0
    %2949 = vmatmul.mubr.bf16.gmra.mxu0 %v2902
    %v2950 = vpop.f32.mrf.mxu0
    %v2951 = vadd.f32 %v1842, %v2950
    %v2952 = vpop.f32.mrf.mxu0
    %v2953 = vadd.f32 %v1844, %v2952
    %v2954 = vpop.f32.mrf.mxu0
    %v2955 = vadd.f32 %v1846, %v2954
    %v2956 = vpop.f32.mrf.mxu0
    %v2957 = vadd.f32 %v1848, %v2956
    %2958 = vmatprep.mubr.bf16.mxu0 0
    %2959 = vmatmul.mubr.bf16.gmra.mxu0 %v2905
    %v2960 = vpop.f32.mrf.mxu0
    %v2961 = vadd.f32 %v1852, %v2960
    %v2962 = vpop.f32.mrf.mxu0
    %v2963 = vadd.f32 %v1854, %v2962
    %v2964 = vpop.f32.mrf.mxu0
    %v2965 = vpop.f32.mrf.mxu0
    %2966 = vdwg.mxu0
    %2967 = vmatprep.subr.bf16.mxu0 0
    %2968 = vmatpush1.bf16.msra.mxu0 %v2914
    %2969 = vmatprep.subr.bf16.mxu0 0
    %2970 = vmatpush1.bf16.msra.mxu0 %v2877
    %2971 = vmatprep.subr.bf16.mxu0 0
    %2972 = vmatpush1.bf16.msra.mxu0 %v2874
    %2973 = vmatprep.subr.bf16.mxu0 0
    %2974 = vmatpush1.bf16.msra.mxu0 %v2871
    %2975 = vmatprep.subr.bf16.mxu0 0
    %2976 = vmatpush1.bf16.msra.mxu0 %v2868
    %2977 = vmatprep.subr.bf16.mxu0 0
    %2978 = vmatpush1.bf16.msra.mxu0 %v2865
    %2979 = vmatprep.subr.bf16.mxu0 0
    %2980 = vmatpush1.bf16.msra.mxu0 %v2862
    %2981 = vmatprep.subr.bf16.mxu0 0
    %2982 = vmatpush1.bf16.msra.mxu0 %v2859
    %2983 = vmatprep.subr.bf16.mxu0 0
    %2984 = vmatpush2.bf16.msra.mxu0 0
    %2985 = vmatprep.subr.bf16.mxu0 0
    %2986 = vmatpush2.bf16.msra.mxu0 0
    %2987 = vmatprep.subr.bf16.mxu0 0
    %2988 = vmatpush2.bf16.msra.mxu0 0
    %2989 = vmatprep.subr.bf16.mxu0 0
    %2990 = vmatpush2.bf16.msra.mxu0 0
    %2991 = vmatprep.subr.bf16.mxu0 0
    %2992 = vmatpush2.bf16.msra.mxu0 0
    %2993 = vmatprep.subr.bf16.mxu0 0
    %2994 = vmatpush2.bf16.msra.mxu0 0
    %2995 = vmatprep.subr.bf16.mxu0 0
    %2996 = vmatpush2.bf16.msra.mxu0 0
    %2997 = vmatprep.subr.bf16.mxu0 0
    %2998 = vmatpush2.bf16.msra.mxu0 0
    %2999 = vmatprep.mubr.bf16.mxu0 0
    %3000 = vmatmul.mubr.bf16.gmra.mxu0 %v2902
    %v3001 = vpop.f32.mrf.mxu0
    %v3002 = vadd.f32 %v1893, %v3001
    %v3003 = vpop.f32.mrf.mxu0
    %v3004 = vpop.f32.mrf.mxu0
    %v3005 = vadd.f32 %v1896, %v3004
    %v3006 = vpop.f32.mrf.mxu0
    %3007 = vmatprep.mubr.bf16.mxu0 0
    %3008 = vmatmul.mubr.bf16.gmra.mxu0 %v2905
    %v3009 = vpop.f32.mrf.mxu0
    %v3010 = vadd.f32 %v1901, %v3009
    %v3011 = vpop.f32.mrf.mxu0
    %v3012 = vpop.f32.mrf.mxu0
    %v3013 = vpop.f32.mrf.mxu0
    %3014 = vdwg.mxu0
    %v3015 = vrot.slane %v1591, 1
    %v3016 = vrot.slane %v1623, 1
    %v3017 = vsel %vm894, %v3015, %v3016
    %v3048 = vunpack.c.l.b16 %v1907
    %v3049 = vunpack.c.h.b16 %v1907
    %v3050 = vunpack.c.l.b16 %v1908
    %v3051 = vunpack.c.l.b16 %v1909
    %v3052 = vunpack.c.h.b16 %v1909
    %v3053 = vunpack.c.l.b16 %v1910
    %v3054 = vunpack.c.l.b16 %v1911
    %v3055 = vunpack.c.h.b16 %v1911
    %v3056 = vunpack.c.l.b16 %v1912
    %v3057 = vunpack.c.l.b16 %v1913
    %v3058 = vunpack.c.h.b16 %v1913
    %v3059 = vunpack.c.l.b16 %v1914
    %v3060 = vunpack.c.l.b16 %v1915
    %v3061 = vunpack.c.h.b16 %v1915
    %v3062 = vunpack.c.l.b16 %v1916
    %v3063 = vunpack.c.l.b16 %v1917
    %v3064 = vunpack.c.h.b16 %v1917
    %v3065 = vunpack.c.l.b16 %v1918
    %v3066 = vunpack.c.l.b16 %v1919
    %v3067 = vunpack.c.h.b16 %v1919
    %v3068 = vunpack.c.l.b16 %v1920
    %v3069 = vunpack.c.l.b16 %v1921
    %v3070 = vunpack.c.h.b16 %v1921
    %v3071 = vunpack.c.l.b16 %v1922
    %v3072 = vunpack.c.l.b16 %v1923
    %v3073 = vunpack.c.h.b16 %v1923
    %v3074 = vunpack.c.l.b16 %v1924
    %v3075 = vunpack.c.l.b16 %v1925
    %v3076 = vunpack.c.h.b16 %v1925
    %v3077 = vunpack.c.l.b16 %v1926
    %v3078 = vunpack.c.l.b16 %v1927
    %v3079 = vunpack.c.h.b16 %v1927
    %v3080 = vunpack.c.l.b16 %v1928
    %v3081 = vunpack.c.l.b16 %v1929
    %v3082 = vunpack.c.h.b16 %v1929
    %v3083 = vunpack.c.l.b16 %v1930
    %v3084 = vunpack.c.l.b16 %v1931
    %v3085 = vunpack.c.h.b16 %v1931
    %v3086 = vunpack.c.l.b16 %v1932
    %v3087 = vunpack.c.l.b16 %v1933
    %v3088 = vunpack.c.h.b16 %v1933
    %v3089 = vunpack.c.l.b16 %v1934
    %v3090 = vunpack.c.l.b16 %v1935
    %v3091 = vunpack.c.h.b16 %v1935
    %v3092 = vunpack.c.l.b16 %v1936
    %v3093 = vpack.c.b16 %v3051, %v3048
    %v3094 = vpack.c.b16 %v3052, %v3049
    %v3095 = vpack.c.b16 %v3053, %v3050
    %v3096 = vpack.c.b16 %v3057, %v3054
    %v3097 = vpack.c.b16 %v3058, %v3055
    %v3098 = vpack.c.b16 %v3059, %v3056
    %v3099 = vpack.c.b16 %v3063, %v3060
    %v3100 = vpack.c.b16 %v3064, %v3061
    %v3101 = vpack.c.b16 %v3065, %v3062
    %v3102 = vpack.c.b16 %v3069, %v3066
    %v3103 = vpack.c.b16 %v3070, %v3067
    %v3104 = vpack.c.b16 %v3071, %v3068
    %v3105 = vpack.c.b16 %v3075, %v3072
    %v3106 = vpack.c.b16 %v3076, %v3073
    %v3107 = vpack.c.b16 %v3077, %v3074
    %v3108 = vpack.c.b16 %v3081, %v3078
    %v3109 = vpack.c.b16 %v3082, %v3079
    %v3110 = vpack.c.b16 %v3083, %v3080
    %v3111 = vpack.c.b16 %v3087, %v3084
    %v3112 = vpack.c.b16 %v3088, %v3085
    %v3113 = vpack.c.b16 %v3089, %v3086
    %v3114 = vpack.c.b16 %v3090, %v3090
    %v3115 = vpack.c.b16 %v3091, %v3091
    %v3116 = vpack.c.b16 %v3092, %v3092
    %v3139 = vsel %vm1790, %v3017, 0
    %v3142 = vsel %vm1790, %v3016, 0
    %v3145 = vsel %vm1797, %v3114, 0
    %v3148 = vsel %vm1797, %v3115, 0
    %v3151 = vsel %vm1797, %v3116, 0
    %3153 = vmatprep.subr.bf16.mxu0 %v3148
    %3154 = vmatpush1.bf16.msra.mxu0 %v3145
    %3155 = vmatprep.subr.bf16.mxu0 %v3112
    %3156 = vmatpush1.bf16.msra.mxu0 %v3111
    %3157 = vmatprep.subr.bf16.mxu0 %v3109
    %3158 = vmatpush1.bf16.msra.mxu0 %v3108
    %3159 = vmatprep.subr.bf16.mxu0 %v3106
    %3160 = vmatpush1.bf16.msra.mxu0 %v3105
    %3161 = vmatprep.subr.bf16.mxu0 %v3103
    %3162 = vmatpush1.bf16.msra.mxu0 %v3102
    %3163 = vmatprep.subr.bf16.mxu0 %v3100
    %3164 = vmatpush1.bf16.msra.mxu0 %v3099
    %3165 = vmatprep.subr.bf16.mxu0 %v3097
    %3166 = vmatpush1.bf16.msra.mxu0 %v3096
    %3167 = vmatprep.subr.bf16.mxu0 %v3094
    %3168 = vmatpush1.bf16.msra.mxu0 %v3093
    %3169 = vmatprep.subr.bf16.mxu0 0
    %3170 = vmatpush2.bf16.msra.mxu0 0
    %3171 = vmatprep.subr.bf16.mxu0 0
    %3172 = vmatpush2.bf16.msra.mxu0 0
    %3173 = vmatprep.subr.bf16.mxu0 0
    %3174 = vmatpush2.bf16.msra.mxu0 0
    %3175 = vmatprep.subr.bf16.mxu0 0
    %3176 = vmatpush2.bf16.msra.mxu0 0
    %3177 = vmatprep.subr.bf16.mxu0 0
    %3178 = vmatpush2.bf16.msra.mxu0 0
    %3179 = vmatprep.subr.bf16.mxu0 0
    %3180 = vmatpush2.bf16.msra.mxu0 0
    %3181 = vmatprep.subr.bf16.mxu0 0
    %3182 = vmatpush2.bf16.msra.mxu0 0
    %3183 = vmatprep.subr.bf16.mxu0 0
    %3184 = vmatpush2.bf16.msra.mxu0 0
    %3185 = vmatprep.mubr.bf16.mxu0 0
    %3186 = vmatmul.mubr.bf16.gmra.mxu0 %v3139
    %v3187 = vpop.f32.mrf.mxu0
    %v3188 = vadd.f32 %v2145, %v3187
    %v3189 = vpop.f32.mrf.mxu0
    %v3190 = vadd.f32 %v2147, %v3189
    %v3191 = vpop.f32.mrf.mxu0
    %v3192 = vadd.f32 %v2149, %v3191
    %v3193 = vpop.f32.mrf.mxu0
    %v3194 = vadd.f32 %v2151, %v3193
    %3195 = vmatprep.mubr.bf16.mxu0 0
    %3196 = vmatmul.mubr.bf16.gmra.mxu0 %v3142
    %v3197 = vpop.f32.mrf.mxu0
    %v3198 = vadd.f32 %v2155, %v3197
    %v3199 = vpop.f32.mrf.mxu0
    %v3200 = vadd.f32 %v2157, %v3199
    %v3201 = vpop.f32.mrf.mxu0
    %v3202 = vpop.f32.mrf.mxu0
    %3203 = vdwg.mxu0
    %3204 = vmatprep.subr.bf16.mxu0 0
    %3205 = vmatpush1.bf16.msra.mxu0 %v3151
    %3206 = vmatprep.subr.bf16.mxu0 0
    %3207 = vmatpush1.bf16.msra.mxu0 %v3113
    %3208 = vmatprep.subr.bf16.mxu0 0
    %3209 = vmatpush1.bf16.msra.mxu0 %v3110
    %3210 = vmatprep.subr.bf16.mxu0 0
    %3211 = vmatpush1.bf16.msra.mxu0 %v3107
    %3212 = vmatprep.subr.bf16.mxu0 0
    %3213 = vmatpush1.bf16.msra.mxu0 %v3104
    %3214 = vmatprep.subr.bf16.mxu0 0
    %3215 = vmatpush1.bf16.msra.mxu0 %v3101
    %3216 = vmatprep.subr.bf16.mxu0 0
    %3217 = vmatpush1.bf16.msra.mxu0 %v3098
    %3218 = vmatprep.subr.bf16.mxu0 0
    %3219 = vmatpush1.bf16.msra.mxu0 %v3095
    %3220 = vmatprep.subr.bf16.mxu0 0
    %3221 = vmatpush2.bf16.msra.mxu0 0
    %3222 = vmatprep.subr.bf16.mxu0 0
    %3223 = vmatpush2.bf16.msra.mxu0 0
    %3224 = vmatprep.subr.bf16.mxu0 0
    %3225 = vmatpush2.bf16.msra.mxu0 0
    %3226 = vmatprep.subr.bf16.mxu0 0
    %3227 = vmatpush2.bf16.msra.mxu0 0
    %3228 = vmatprep.subr.bf16.mxu0 0
    %3229 = vmatpush2.bf16.msra.mxu0 0
    %3230 = vmatprep.subr.bf16.mxu0 0
    %3231 = vmatpush2.bf16.msra.mxu0 0
    %3232 = vmatprep.subr.bf16.mxu0 0
    %3233 = vmatpush2.bf16.msra.mxu0 0
    %3234 = vmatprep.subr.bf16.mxu0 0
    %3235 = vmatpush2.bf16.msra.mxu0 0
    %3236 = vmatprep.mubr.bf16.mxu0 0
    %3237 = vmatmul.mubr.bf16.gmra.mxu0 %v3139
    %v3238 = vpop.f32.mrf.mxu0
    %v3239 = vadd.f32 %v2196, %v3238
    %v3240 = vpop.f32.mrf.mxu0
    %v3241 = vpop.f32.mrf.mxu0
    %v3242 = vadd.f32 %v2199, %v3241
    %v3243 = vpop.f32.mrf.mxu0
    %3244 = vmatprep.mubr.bf16.mxu0 0
    %3245 = vmatmul.mubr.bf16.gmra.mxu0 %v3142
    %v3246 = vpop.f32.mrf.mxu0
    %v3247 = vadd.f32 %v2204, %v3246
    %v3248 = vpop.f32.mrf.mxu0
    %v3249 = vpop.f32.mrf.mxu0
    %v3250 = vpop.f32.mrf.mxu0
    %3251 = vdwg.mxu0
    %v3252 = vadd.f32 %v2951, %v3188
    %v3253 = vadd.f32 %v2953, %v3190
    %v3254 = vadd.f32 %v3002, %v3239
    %v3255 = vadd.f32 %v2955, %v3192
    %v3256 = vadd.f32 %v2957, %v3194
    %v3257 = vadd.f32 %v3005, %v3242
    %v3258 = vadd.f32 %v2961, %v3198
    %v3259 = vadd.f32 %v2963, %v3200
    %v3260 = vadd.f32 %v3010, %v3247
    %v3261 = vrot.slane %v1591, 2
    %v3262 = vrot.slane %v1623, 2
    %v3263 = vsel %vm1037, %v3261, %v3262
    %v3294 = vunpack.c.l.b16 %v2210
    %v3295 = vunpack.c.h.b16 %v2210
    %v3296 = vunpack.c.l.b16 %v2211
    %v3297 = vunpack.c.l.b16 %v2212
    %v3298 = vunpack.c.h.b16 %v2212
    %v3299 = vunpack.c.l.b16 %v2213
    %v3300 = vunpack.c.l.b16 %v2214
    %v3301 = vunpack.c.h.b16 %v2214
    %v3302 = vunpack.c.l.b16 %v2215
    %v3303 = vunpack.c.l.b16 %v2216
    %v3304 = vunpack.c.h.b16 %v2216
    %v3305 = vunpack.c.l.b16 %v2217
    %v3306 = vunpack.c.l.b16 %v2218
    %v3307 = vunpack.c.h.b16 %v2218
    %v3308 = vunpack.c.l.b16 %v2219
    %v3309 = vunpack.c.l.b16 %v2220
    %v3310 = vunpack.c.h.b16 %v2220
    %v3311 = vunpack.c.l.b16 %v2221
    %v3312 = vunpack.c.l.b16 %v2222
    %v3313 = vunpack.c.h.b16 %v2222
    %v3314 = vunpack.c.l.b16 %v2223
    %v3315 = vunpack.c.l.b16 %v2224
    %v3316 = vunpack.c.h.b16 %v2224
    %v3317 = vunpack.c.l.b16 %v2225
    %v3318 = vunpack.c.l.b16 %v2226
    %v3319 = vunpack.c.h.b16 %v2226
    %v3320 = vunpack.c.l.b16 %v2227
    %v3321 = vunpack.c.l.b16 %v2228
    %v3322 = vunpack.c.h.b16 %v2228
    %v3323 = vunpack.c.l.b16 %v2229
    %v3324 = vunpack.c.l.b16 %v2230
    %v3325 = vunpack.c.h.b16 %v2230
    %v3326 = vunpack.c.l.b16 %v2231
    %v3327 = vunpack.c.l.b16 %v2232
    %v3328 = vunpack.c.h.b16 %v2232
    %v3329 = vunpack.c.l.b16 %v2233
    %v3330 = vunpack.c.l.b16 %v2234
    %v3331 = vunpack.c.h.b16 %v2234
    %v3332 = vunpack.c.l.b16 %v2235
    %v3333 = vunpack.c.l.b16 %v2236
    %v3334 = vunpack.c.h.b16 %v2236
    %v3335 = vunpack.c.l.b16 %v2237
    %v3336 = vunpack.c.l.b16 %v2238
    %v3337 = vunpack.c.h.b16 %v2238
    %v3338 = vunpack.c.l.b16 %v2239
    %v3339 = vpack.c.b16 %v3297, %v3294
    %v3340 = vpack.c.b16 %v3298, %v3295
    %v3341 = vpack.c.b16 %v3299, %v3296
    %v3342 = vpack.c.b16 %v3303, %v3300
    %v3343 = vpack.c.b16 %v3304, %v3301
    %v3344 = vpack.c.b16 %v3305, %v3302
    %v3345 = vpack.c.b16 %v3309, %v3306
    %v3346 = vpack.c.b16 %v3310, %v3307
    %v3347 = vpack.c.b16 %v3311, %v3308
    %v3348 = vpack.c.b16 %v3315, %v3312
    %v3349 = vpack.c.b16 %v3316, %v3313
    %v3350 = vpack.c.b16 %v3317, %v3314
    %v3351 = vpack.c.b16 %v3321, %v3318
    %v3352 = vpack.c.b16 %v3322, %v3319
    %v3353 = vpack.c.b16 %v3323, %v3320
    %v3354 = vpack.c.b16 %v3327, %v3324
    %v3355 = vpack.c.b16 %v3328, %v3325
    %v3356 = vpack.c.b16 %v3329, %v3326
    %v3357 = vpack.c.b16 %v3333, %v3330
    %v3358 = vpack.c.b16 %v3334, %v3331
    %v3359 = vpack.c.b16 %v3335, %v3332
    %v3360 = vpack.c.b16 %v3336, %v3336
    %v3361 = vpack.c.b16 %v3337, %v3337
    %v3362 = vpack.c.b16 %v3338, %v3338
    %v3385 = vsel %vm1790, %v3263, 0
    %v3388 = vsel %vm1790, %v3262, 0
    %v3391 = vsel %vm1797, %v3360, 0
    %v3394 = vsel %vm1797, %v3361, 0
    %v3397 = vsel %vm1797, %v3362, 0
    %3399 = vmatprep.subr.bf16.mxu0 %v3394
    %3400 = vmatpush1.bf16.msra.mxu0 %v3391
    %3401 = vmatprep.subr.bf16.mxu0 %v3358
    %3402 = vmatpush1.bf16.msra.mxu0 %v3357
    %3403 = vmatprep.subr.bf16.mxu0 %v3355
    %3404 = vmatpush1.bf16.msra.mxu0 %v3354
    %3405 = vmatprep.subr.bf16.mxu0 %v3352
    %3406 = vmatpush1.bf16.msra.mxu0 %v3351
    %3407 = vmatprep.subr.bf16.mxu0 %v3349
    %3408 = vmatpush1.bf16.msra.mxu0 %v3348
    %3409 = vmatprep.subr.bf16.mxu0 %v3346
    %3410 = vmatpush1.bf16.msra.mxu0 %v3345
    %3411 = vmatprep.subr.bf16.mxu0 %v3343
    %3412 = vmatpush1.bf16.msra.mxu0 %v3342
    %3413 = vmatprep.subr.bf16.mxu0 %v3340
    %3414 = vmatpush1.bf16.msra.mxu0 %v3339
    %3415 = vmatprep.subr.bf16.mxu0 0
    %3416 = vmatpush2.bf16.msra.mxu0 0
    %3417 = vmatprep.subr.bf16.mxu0 0
    %3418 = vmatpush2.bf16.msra.mxu0 0
    %3419 = vmatprep.subr.bf16.mxu0 0
    %3420 = vmatpush2.bf16.msra.mxu0 0
    %3421 = vmatprep.subr.bf16.mxu0 0
    %3422 = vmatpush2.bf16.msra.mxu0 0
    %3423 = vmatprep.subr.bf16.mxu0 0
    %3424 = vmatpush2.bf16.msra.mxu0 0
    %3425 = vmatprep.subr.bf16.mxu0 0
    %3426 = vmatpush2.bf16.msra.mxu0 0
    %3427 = vmatprep.subr.bf16.mxu0 0
    %3428 = vmatpush2.bf16.msra.mxu0 0
    %3429 = vmatprep.subr.bf16.mxu0 0
    %3430 = vmatpush2.bf16.msra.mxu0 0
    %3431 = vmatprep.mubr.bf16.mxu0 0
    %3432 = vmatmul.mubr.bf16.gmra.mxu0 %v3385
    %v3433 = vpop.f32.mrf.mxu0
    %v3434 = vadd.f32 %v2448, %v3433
    %v3435 = vpop.f32.mrf.mxu0
    %v3436 = vadd.f32 %v2450, %v3435
    %v3437 = vpop.f32.mrf.mxu0
    %v3438 = vadd.f32 %v2452, %v3437
    %v3439 = vpop.f32.mrf.mxu0
    %v3440 = vadd.f32 %v2454, %v3439
    %3441 = vmatprep.mubr.bf16.mxu0 0
    %3442 = vmatmul.mubr.bf16.gmra.mxu0 %v3388
    %v3443 = vpop.f32.mrf.mxu0
    %v3444 = vadd.f32 %v2458, %v3443
    %v3445 = vpop.f32.mrf.mxu0
    %v3446 = vadd.f32 %v2460, %v3445
    %v3447 = vpop.f32.mrf.mxu0
    %v3448 = vpop.f32.mrf.mxu0
    %3449 = vdwg.mxu0
    %3450 = vmatprep.subr.bf16.mxu0 0
    %3451 = vmatpush1.bf16.msra.mxu0 %v3397
    %3452 = vmatprep.subr.bf16.mxu0 0
    %3453 = vmatpush1.bf16.msra.mxu0 %v3359
    %3454 = vmatprep.subr.bf16.mxu0 0
    %3455 = vmatpush1.bf16.msra.mxu0 %v3356
    %3456 = vmatprep.subr.bf16.mxu0 0
    %3457 = vmatpush1.bf16.msra.mxu0 %v3353
    %3458 = vmatprep.subr.bf16.mxu0 0
    %3459 = vmatpush1.bf16.msra.mxu0 %v3350
    %3460 = vmatprep.subr.bf16.mxu0 0
    %3461 = vmatpush1.bf16.msra.mxu0 %v3347
    %3462 = vmatprep.subr.bf16.mxu0 0
    %3463 = vmatpush1.bf16.msra.mxu0 %v3344
    %3464 = vmatprep.subr.bf16.mxu0 0
    %3465 = vmatpush1.bf16.msra.mxu0 %v3341
    %3466 = vmatprep.subr.bf16.mxu0 0
    %3467 = vmatpush2.bf16.msra.mxu0 0
    %3468 = vmatprep.subr.bf16.mxu0 0
    %3469 = vmatpush2.bf16.msra.mxu0 0
    %3470 = vmatprep.subr.bf16.mxu0 0
    %3471 = vmatpush2.bf16.msra.mxu0 0
    %3472 = vmatprep.subr.bf16.mxu0 0
    %3473 = vmatpush2.bf16.msra.mxu0 0
    %3474 = vmatprep.subr.bf16.mxu0 0
    %3475 = vmatpush2.bf16.msra.mxu0 0
    %3476 = vmatprep.subr.bf16.mxu0 0
    %3477 = vmatpush2.bf16.msra.mxu0 0
    %3478 = vmatprep.subr.bf16.mxu0 0
    %3479 = vmatpush2.bf16.msra.mxu0 0
    %3480 = vmatprep.subr.bf16.mxu0 0
    %3481 = vmatpush2.bf16.msra.mxu0 0
    %3482 = vmatprep.mubr.bf16.mxu0 0
    %3483 = vmatmul.mubr.bf16.gmra.mxu0 %v3385
    %v3484 = vpop.f32.mrf.mxu0
    %v3485 = vadd.f32 %v2499, %v3484
    %v3486 = vpop.f32.mrf.mxu0
    %v3487 = vpop.f32.mrf.mxu0
    %v3488 = vadd.f32 %v2502, %v3487
    %v3489 = vpop.f32.mrf.mxu0
    %3490 = vmatprep.mubr.bf16.mxu0 0
    %3491 = vmatmul.mubr.bf16.gmra.mxu0 %v3388
    %v3492 = vpop.f32.mrf.mxu0
    %v3493 = vadd.f32 %v2507, %v3492
    %v3494 = vpop.f32.mrf.mxu0
    %v3495 = vpop.f32.mrf.mxu0
    %v3496 = vpop.f32.mrf.mxu0
    %3497 = vdwg.mxu0
    %v3498 = vadd.f32 %v3434, %v2718
    %v3499 = vadd.f32 %v3436, %v2720
    %v3500 = vadd.f32 %v3485, %v2769
    %v3501 = vadd.f32 %v3438, %v2722
    %v3502 = vadd.f32 %v3440, %v2724
    %v3503 = vadd.f32 %v3488, %v2772
    %v3504 = vadd.f32 %v3444, %v2728
    %v3505 = vadd.f32 %v3446, %v2730
    %v3506 = vadd.f32 %v3493, %v2777
    %v3507 = vadd.f32 %v3252, %v3498
    %v3508 = vadd.f32 %v3253, %v3499
    %v3509 = vadd.f32 %v3254, %v3500
    %v3510 = vadd.f32 %v3255, %v3501
    %v3511 = vadd.f32 %v3256, %v3502
    %v3512 = vadd.f32 %v3257, %v3503
    %v3513 = vadd.f32 %v3258, %v3504
    %v3514 = vadd.f32 %v3259, %v3505
    %v3515 = vadd.f32 %v3260, %v3506
    %v3516 = vadd.f32 %v3507, %v46
    %v3517 = vadd.f32 %v3508, %v50
    %v3518 = vadd.f32 %v3509, %v54
    %v3519 = vadd.f32 %v3510, %v46
    %v3520 = vadd.f32 %v3511, %v50
    %v3521 = vadd.f32 %v3512, %v54
    %v3522 = vadd.f32 %v3513, %v46
    %v3523 = vadd.f32 %v3514, %v50
    %v3524 = vadd.f32 %v3515, %v54
    %v3525 = vmax.f32 %v3516, 0.0
    %v3526 = vmax.f32 %v3517, 0.0
    %v3527 = vmax.f32 %v3518, 0.0
    %v3528 = vmax.f32 %v3519, 0.0
    %v3529 = vmax.f32 %v3520, 0.0
    %v3530 = vmax.f32 %v3521, 0.0
    %v3531 = vmax.f32 %v3522, 0.0
    %v3532 = vmax.f32 %v3523, 0.0
    %v3533 = vmax.f32 %v3524, 0.0
    %v3543 = vrot.slane %v3525, 1
    %v3544 = vrot.slane %v3528, 1
    %v3545 = vsel %vm1244, %v3543, %v3544
    %v3546 = vrot.slane %v3526, 1
    %v3547 = vrot.slane %v3529, 1
    %v3548 = vsel %vm1244, %v3546, %v3547
    %v3549 = vrot.slane %v3527, 1
    %v3550 = vrot.slane %v3530, 1
    %v3551 = vsel %vm1244, %v3549, %v3550
    %v3552 = vrot.slane %v3531, 1
    %v3553 = vsel %vm1244, %v3544, %v3552
    %v3554 = vrot.slane %v3532, 1
    %v3555 = vsel %vm1244, %v3547, %v3554
    %v3556 = vrot.slane %v3533, 1
    %v3557 = vsel %vm1244, %v3550, %v3556
    %v3567 = vmax.f32 %v3525, %v3545
    %v3568 = vmax.f32 %v3526, %v3548
    %v3569 = vmax.f32 %v3527, %v3551
    %v3570 = vmax.f32 %v3528, %v3553
    %v3571 = vmax.f32 %v3529, %v3555
    %v3572 = vmax.f32 %v3530, %v3557
    %v3573 = vmax.f32 %v3531, %v3552
    %v3574 = vmax.f32 %v3532, %v3554
    %v3575 = vmax.f32 %v3533, %v3556
    %3585 = vrot.lane.b32.xlu0 %v3567, 112
    %v3586 = vpop.permute.xlu0 %3585
    %3587 = vrot.lane.b32.xlu0 %v3568, 112
    %v3588 = vpop.permute.xlu0 %3587
    %3589 = vrot.lane.b32.xlu0 %v3569, 112
    %v3590 = vpop.permute.xlu0 %3589
    %3591 = vrot.lane.b32.xlu0 %v3570, 112
    %v3592 = vpop.permute.xlu0 %3591
    %3593 = vrot.lane.b32.xlu0 %v3571, 112
    %v3594 = vpop.permute.xlu0 %3593
    %3595 = vrot.lane.b32.xlu0 %v3572, 112
    %v3596 = vpop.permute.xlu0 %3595
    %3597 = vrot.lane.b32.xlu0 %v3573, 112
    %v3598 = vpop.permute.xlu0 %3597
    %3599 = vrot.lane.b32.xlu0 %v3574, 112
    %v3600 = vpop.permute.xlu0 %3599
    %3601 = vrot.lane.b32.xlu0 %v3575, 112
    %v3602 = vpop.permute.xlu0 %3601
    %vm3603 = vcmask 916480
    %v3604 = vsel %vm3603, %v3586, %v3588
    %v3605 = vsel %vm3603, %v3588, %v3590
    %v3606 = vsel %vm3603, %v3592, %v3594
    %v3607 = vsel %vm3603, %v3594, %v3596
    %v3608 = vsel %vm3603, %v3598, %v3600
    %v3609 = vsel %vm3603, %v3600, %v3602
    %v3619 = vmax.f32 %v3567, %v3604
    %v3620 = vmax.f32 %v3568, %v3605
    %v3621 = vmax.f32 %v3569, %v3590
    %v3622 = vmax.f32 %v3570, %v3606
    %v3623 = vmax.f32 %v3571, %v3607
    %v3624 = vmax.f32 %v3572, %v3596
    %v3625 = vmax.f32 %v3573, %v3608
    %v3626 = vmax.f32 %v3574, %v3609
    %v3627 = vmax.f32 %v3575, %v3602
    %v3628 = vpack.c.bf16 %v3622, %v3619
    %v3629 = vpack.c.bf16 %v3623, %v3620
    %v3630 = vpack.c.bf16 %v3624, %v3621
    %v3631 = vpack.c.bf16 %v3625, %v3625
    %v3632 = vpack.c.bf16 %v3626, %v3626
    %v3633 = vpack.c.bf16 %v3627, %v3627
    %v3668 = vunpack.c.l.b16 %v95
    %v3669 = vunpack.c.h.b16 %v95
    %v3670 = vunpack.c.l.b16 %v96
    %v3671 = vunpack.c.h.b16 %v96
    %v3672 = vunpack.c.l.b16 %v97
    %v3673 = vunpack.c.h.b16 %v97
    %v3674 = vunpack.c.l.b16 %v98
    %v3675 = vunpack.c.h.b16 %v98
    %v3676 = vunpack.c.l.b16 %v99
    %v3677 = vunpack.c.h.b16 %v99
    %v3678 = vunpack.c.l.b16 %v100
    %v3679 = vunpack.c.h.b16 %v100
    %v3680 = vunpack.c.l.b16 %v101
    %v3681 = vunpack.c.h.b16 %v101
    %v3682 = vunpack.c.l.b16 %v102
    %v3683 = vunpack.c.h.b16 %v102
    %v3684 = vunpack.c.l.b16 %v103
    %v3685 = vunpack.c.h.b16 %v103
    %v3686 = vunpack.c.l.b16 %v104
    %v3687 = vunpack.c.h.b16 %v104
    %v3688 = vunpack.c.l.b16 %v105
    %v3689 = vunpack.c.h.b16 %v105
    %v3690 = vunpack.c.l.b16 %v106
    %v3691 = vunpack.c.h.b16 %v106
    %v3692 = vunpack.c.l.b16 %v107
    %v3693 = vunpack.c.h.b16 %v107
    %v3694 = vunpack.c.l.b16 %v108
    %v3695 = vunpack.c.h.b16 %v108
    %v3696 = vunpack.c.l.b16 %v109
    %v3697 = vunpack.c.h.b16 %v109
    %v3698 = vunpack.c.l.b16 %v110
    %v3699 = vunpack.c.h.b16 %v110
    %v3700 = vunpack.c.l.b16 %v111
    %v3701 = vunpack.c.h.b16 %v111
    %v3702 = vunpack.c.l.b16 %v112
    %v3703 = vunpack.c.h.b16 %v112
    %v3704 = vunpack.c.l.b16 %v113
    %v3705 = vunpack.c.h.b16 %v113
    %v3706 = vunpack.c.l.b16 %v114
    %v3707 = vunpack.c.h.b16 %v114
    %v3708 = vunpack.c.l.b16 %v115
    %v3709 = vunpack.c.h.b16 %v115
    %v3710 = vunpack.c.l.b16 %v116
    %v3711 = vunpack.c.h.b16 %v116
    %v3712 = vunpack.c.l.b16 %v117
    %v3713 = vunpack.c.h.b16 %v117
    %v3714 = vunpack.c.l.b16 %v118
    %v3715 = vunpack.c.h.b16 %v118
    %v3716 = vunpack.c.l.b16 %v119
    %v3717 = vunpack.c.h.b16 %v119
    %v3718 = vunpack.c.l.b16 %v120
    %v3719 = vunpack.c.h.b16 %v120
    %v3720 = vunpack.c.l.b16 %v121
    %v3721 = vunpack.c.h.b16 %v121
    %v3722 = vunpack.c.l.b16 %v122
    %v3723 = vunpack.c.h.b16 %v122
    %v3724 = vunpack.c.l.b16 %v123
    %v3725 = vunpack.c.h.b16 %v123
    %v3726 = vunpack.c.l.b16 %v124
    %v3727 = vunpack.c.h.b16 %v124
    %v3728 = vunpack.c.l.b16 %v125
    %v3729 = vunpack.c.h.b16 %v125
    %v3730 = vunpack.c.l.b16 %v126
    %v3731 = vunpack.c.h.b16 %v126
    %v3732 = vunpack.c.l.b16 %v127
    %v3733 = vunpack.c.h.b16 %v127
    %v3734 = vunpack.c.l.b16 %v128
    %v3735 = vunpack.c.h.b16 %v128
    %v3736 = vpack.c.b16 %v3670, %v3668
    %v3737 = vpack.c.b16 %v3671, %v3669
    %v3738 = vpack.c.b16 %v3674, %v3672
    %v3739 = vpack.c.b16 %v3675, %v3673
    %v3740 = vpack.c.b16 %v3678, %v3676
    %v3741 = vpack.c.b16 %v3679, %v3677
    %v3742 = vpack.c.b16 %v3682, %v3680
    %v3743 = vpack.c.b16 %v3683, %v3681
    %v3744 = vpack.c.b16 %v3686, %v3684
    %v3745 = vpack.c.b16 %v3687, %v3685
    %v3746 = vpack.c.b16 %v3690, %v3688
    %v3747 = vpack.c.b16 %v3691, %v3689
    %v3748 = vpack.c.b16 %v3694, %v3692
    %v3749 = vpack.c.b16 %v3695, %v3693
    %v3750 = vpack.c.b16 %v3698, %v3696
    %v3751 = vpack.c.b16 %v3699, %v3697
    %v3752 = vpack.c.b16 %v3702, %v3700
    %v3753 = vpack.c.b16 %v3703, %v3701
    %v3754 = vpack.c.b16 %v3706, %v3704
    %v3755 = vpack.c.b16 %v3707, %v3705
    %v3756 = vpack.c.b16 %v3710, %v3708
    %v3757 = vpack.c.b16 %v3711, %v3709
    %v3758 = vpack.c.b16 %v3714, %v3712
    %v3759 = vpack.c.b16 %v3715, %v3713
    %v3760 = vpack.c.b16 %v3718, %v3716
    %v3761 = vpack.c.b16 %v3719, %v3717
    %v3762 = vpack.c.b16 %v3722, %v3720
    %v3763 = vpack.c.b16 %v3723, %v3721
    %v3764 = vpack.c.b16 %v3726, %v3724
    %v3765 = vpack.c.b16 %v3727, %v3725
    %v3766 = vpack.c.b16 %v3730, %v3728
    %v3767 = vpack.c.b16 %v3731, %v3729
    %v3768 = vpack.c.b16 %v3734, %v3732
    %v3769 = vpack.c.b16 %v3735, %v3733
    %vm3804 = vcmask 130048
    %v3806 = vsel %vm3804, %v3630, 0
    %v3809 = vsel %vm3804, %v3633, 0
    %3811 = vmatprep.subr.bf16.mxu0 %v3751
    %3812 = vmatpush1.bf16.msra.mxu0 %v3750
    %3813 = vmatprep.subr.bf16.mxu0 %v3749
    %3814 = vmatpush1.bf16.msra.mxu0 %v3748
    %3815 = vmatprep.subr.bf16.mxu0 %v3747
    %3816 = vmatpush1.bf16.msra.mxu0 %v3746
    %3817 = vmatprep.subr.bf16.mxu0 %v3745
    %3818 = vmatpush1.bf16.msra.mxu0 %v3744
    %3819 = vmatprep.subr.bf16.mxu0 %v3743
    %3820 = vmatpush1.bf16.msra.mxu0 %v3742
    %3821 = vmatprep.subr.bf16.mxu0 %v3741
    %3822 = vmatpush1.bf16.msra.mxu0 %v3740
    %3823 = vmatprep.subr.bf16.mxu0 %v3739
    %3824 = vmatpush1.bf16.msra.mxu0 %v3738
    %3825 = vmatprep.subr.bf16.mxu0 %v3737
    %3826 = vmatpush1.bf16.msra.mxu0 %v3736
    %3827 = vmatprep.subr.bf16.mxu0 %v3767
    %3828 = vmatpush2.bf16.msra.mxu0 %v3766
    %3829 = vmatprep.subr.bf16.mxu0 %v3765
    %3830 = vmatpush2.bf16.msra.mxu0 %v3764
    %3831 = vmatprep.subr.bf16.mxu0 %v3763
    %3832 = vmatpush2.bf16.msra.mxu0 %v3762
    %3833 = vmatprep.subr.bf16.mxu0 %v3761
    %3834 = vmatpush2.bf16.msra.mxu0 %v3760
    %3835 = vmatprep.subr.bf16.mxu0 %v3759
    %3836 = vmatpush2.bf16.msra.mxu0 %v3758
    %3837 = vmatprep.subr.bf16.mxu0 %v3757
    %3838 = vmatpush2.bf16.msra.mxu0 %v3756
    %3839 = vmatprep.subr.bf16.mxu0 %v3755
    %3840 = vmatpush2.bf16.msra.mxu0 %v3754
    %3841 = vmatprep.subr.bf16.mxu0 %v3753
    %3842 = vmatpush2.bf16.msra.mxu0 %v3752
    %3843 = vmatprep.mubr.bf16.mxu0 %v3629
    %3844 = vmatmul.mubr.bf16.gmra.mxu0 %v3628
    %v3845 = vpop.f32.mrf.mxu0
    %v3846 = vadd.f32 0.0, %v3845
    %v3847 = vpop.f32.mrf.mxu0
    %v3848 = vadd.f32 0.0, %v3847
    %v3849 = vpop.f32.mrf.mxu0
    %v3850 = vadd.f32 0.0, %v3849
    %v3851 = vpop.f32.mrf.mxu0
    %v3852 = vadd.f32 0.0, %v3851
    %3853 = vmatprep.mubr.bf16.mxu0 %v3632
    %3854 = vmatmul.mubr.bf16.gmra.mxu0 %v3631
    %v3855 = vpop.f32.mrf.mxu0
    %v3856 = vadd.f32 0.0, %v3855
    %v3857 = vpop.f32.mrf.mxu0
    %v3858 = vadd.f32 0.0, %v3857
    %v3859 = vpop.f32.mrf.mxu0
    %v3860 = vpop.f32.mrf.mxu0
    %3861 = vdwg.mxu0
    %3862 = vmatprep.subr.bf16.mxu0 0
    %3863 = vmatpush1.bf16.msra.mxu0 0
    %3864 = vmatprep.subr.bf16.mxu0 0
    %3865 = vmatpush1.bf16.msra.mxu0 0
    %3866 = vmatprep.subr.bf16.mxu0 0
    %3867 = vmatpush1.bf16.msra.mxu0 0
    %3868 = vmatprep.subr.bf16.mxu0 0
    %3869 = vmatpush1.bf16.msra.mxu0 0
    %3870 = vmatprep.subr.bf16.mxu0 0
    %3871 = vmatpush1.bf16.msra.mxu0 0
    %3872 = vmatprep.subr.bf16.mxu0 0
    %3873 = vmatpush1.bf16.msra.mxu0 0
    %3874 = vmatprep.subr.bf16.mxu0 0
    %3875 = vmatpush1.bf16.msra.mxu0 0
    %3876 = vmatprep.subr.bf16.mxu0 %v3769
    %3877 = vmatpush1.bf16.msra.mxu0 %v3768
    %3878 = vmatprep.subr.bf16.mxu0 0
    %3879 = vmatpush2.bf16.msra.mxu0 0
    %3880 = vmatprep.subr.bf16.mxu0 0
    %3881 = vmatpush2.bf16.msra.mxu0 0
    %3882 = vmatprep.subr.bf16.mxu0 0
    %3883 = vmatpush2.bf16.msra.mxu0 0
    %3884 = vmatprep.subr.bf16.mxu0 0
    %3885 = vmatpush2.bf16.msra.mxu0 0
    %3886 = vmatprep.subr.bf16.mxu0 0
    %3887 = vmatpush2.bf16.msra.mxu0 0
    %3888 = vmatprep.subr.bf16.mxu0 0
    %3889 = vmatpush2.bf16.msra.mxu0 0
    %3890 = vmatprep.subr.bf16.mxu0 0
    %3891 = vmatpush2.bf16.msra.mxu0 0
    %3892 = vmatprep.subr.bf16.mxu0 0
    %3893 = vmatpush2.bf16.msra.mxu0 0
    %3894 = vmatprep.mubr.bf16.mxu0 0
    %3895 = vmatmul.mubr.bf16.gmra.mxu0 %v3806
    %v3896 = vpop.f32.mrf.mxu0
    %v3897 = vadd.f32 %v3846, %v3896
    %v3898 = vpop.f32.mrf.mxu0
    %v3899 = vadd.f32 %v3848, %v3898
    %v3900 = vpop.f32.mrf.mxu0
    %v3901 = vadd.f32 %v3850, %v3900
    %v3902 = vpop.f32.mrf.mxu0
    %v3903 = vadd.f32 %v3852, %v3902
    %3904 = vmatprep.mubr.bf16.mxu0 0
    %3905 = vmatmul.mubr.bf16.gmra.mxu0 %v3809
    %v3906 = vpop.f32.mrf.mxu0
    %v3907 = vadd.f32 %v3856, %v3906
    %v3908 = vpop.f32.mrf.mxu0
    %v3909 = vadd.f32 %v3858, %v3908
    %v3910 = vpop.f32.mrf.mxu0
    %v3911 = vpop.f32.mrf.mxu0
    %3912 = vdwg.mxu0
    %s3913 = scalar_lea.vmem %s0, 72
    %v3914 = vld [vmem:[%s3913] sm:$0xff]
    %v3915 = vld [vmem:[%s3913 + $0x8] sm:$0xff]
    %v3916 = vld [vmem:[%s3913 + $0x10] sm:$0xff]
    %v3917 = vld [vmem:[%s3913 + $0x18] sm:$0xff]
    %v3918 = vld [vmem:[%s3913 + $0x20] sm:$0xff]
    %v3919 = vld [vmem:[%s3913 + $0x28] sm:$0xff]
    %v3920 = vld [vmem:[%s3913 + $0x30] sm:$0xff]
    %v3921 = vld [vmem:[%s3913 + $0x38] sm:$0xff]
    %v3922 = vld [vmem:[%s3913 + $0x40] sm:$0x3]
    %v3923 = vpack.c.bf16 %v3915, %v3914
    %v3924 = vpack.c.bf16 %v3917, %v3916
    %v3925 = vpack.c.bf16 %v3919, %v3918
    %v3926 = vpack.c.bf16 %v3921, %v3920
    %v3928 = vshrl.u32 %v3923, 16
    %v3930 = vshll.u32 %v3923, 16
    %v3932 = vrot.slane %v3930, 1
    %v3933 = vor.u32 %v3928, %v3932
    %v3935 = vshll.u32 %v3924, 16
    %v3937 = vrot.slane %v3935, 1
    %v3938 = vsel %vm181, %v3933, %v3937
    %v3939 = vshrl.u32 %v3924, 16
    %v3941 = vor.u32 %v3939, %v3937
    %v3943 = vshll.u32 %v3925, 16
    %v3945 = vrot.slane %v3943, 1
    %v3946 = vsel %vm181, %v3941, %v3945
    %v3947 = vshrl.u32 %v3925, 16
    %v3949 = vor.u32 %v3947, %v3945
    %v3951 = vshll.u32 %v3926, 16
    %v3953 = vrot.slane %v3951, 1
    %v3954 = vsel %vm181, %v3949, %v3953
    %v3955 = vshrl.u32 %v3926, 16
    %v3957 = vor.u32 %v3955, %v3953
    %v3959 = vsel %vm241, %v3938, 0
    %v3962 = vsel %vm241, %v3946, 0
    %v3965 = vsel %vm241, %v3954, 0
    %v3968 = vsel %vm241, %v3957, 0
    %3970 = vmatprep.subr.bf16.mxu0 0
    %3971 = vmatpush1.bf16.msra.mxu0 0
    %3972 = vmatprep.subr.bf16.mxu0 0
    %3973 = vmatpush1.bf16.msra.mxu0 0
    %3974 = vmatprep.subr.bf16.mxu0 0
    %3975 = vmatpush1.bf16.msra.mxu0 0
    %3976 = vmatprep.subr.bf16.mxu0 0
    %3977 = vmatpush1.bf16.msra.mxu0 0
    %3978 = vmatprep.subr.bf16.mxu0 0
    %3979 = vmatpush1.bf16.msra.mxu0 0
    %3980 = vmatprep.subr.bf16.mxu0 %v259
    %3981 = vmatpush1.bf16.msra.mxu0 %v256
    %3982 = vmatprep.subr.bf16.mxu0 %v234
    %3983 = vmatpush1.bf16.msra.mxu0 %v233
    %3984 = vmatprep.subr.bf16.mxu0 %v232
    %3985 = vmatpush1.bf16.msra.mxu0 %v231
    %3986 = vmatprep.subr.bf16.mxu0 0
    %3987 = vmatpush2.bf16.msra.mxu0 0
    %3988 = vmatprep.subr.bf16.mxu0 0
    %3989 = vmatpush2.bf16.msra.mxu0 0
    %3990 = vmatprep.subr.bf16.mxu0 0
    %3991 = vmatpush2.bf16.msra.mxu0 0
    %3992 = vmatprep.subr.bf16.mxu0 0
    %3993 = vmatpush2.bf16.msra.mxu0 0
    %3994 = vmatprep.subr.bf16.mxu0 0
    %3995 = vmatpush2.bf16.msra.mxu0 0
    %3996 = vmatprep.subr.bf16.mxu0 0
    %3997 = vmatpush2.bf16.msra.mxu0 0
    %3998 = vmatprep.subr.bf16.mxu0 0
    %3999 = vmatpush2.bf16.msra.mxu0 0
    %4000 = vmatprep.subr.bf16.mxu0 0
    %4001 = vmatpush2.bf16.msra.mxu0 0
    %4002 = vmatprep.mubr.bf16.mxu0 0
    %4003 = vmatmul.mubr.bf16.gmra.mxu0 %v3959
    %v4004 = vpop.f32.mrf.mxu0
    %v4005 = vadd.f32 0.0, %v4004
    %v4006 = vpop.f32.mrf.mxu0
    %v4007 = vadd.f32 0.0, %v4006
    %v4008 = vpop.f32.mrf.mxu0
    %v4009 = vadd.f32 0.0, %v4008
    %v4010 = vpop.f32.mrf.mxu0
    %v4011 = vadd.f32 0.0, %v4010
    %4012 = vmatprep.mubr.bf16.mxu0 0
    %4013 = vmatmul.mubr.bf16.gmra.mxu0 %v3962
    %v4014 = vpop.f32.mrf.mxu0
    %v4015 = vadd.f32 0.0, %v4014
    %v4016 = vpop.f32.mrf.mxu0
    %v4017 = vadd.f32 0.0, %v4016
    %v4018 = vpop.f32.mrf.mxu0
    %v4019 = vadd.f32 0.0, %v4018
    %v4020 = vpop.f32.mrf.mxu0
    %v4021 = vadd.f32 0.0, %v4020
    %4022 = vmatprep.mubr.bf16.mxu0 0
    %4023 = vmatmul.mubr.bf16.gmra.mxu0 %v3965
    %v4024 = vpop.f32.mrf.mxu0
    %v4025 = vadd.f32 0.0, %v4024
    %v4026 = vpop.f32.mrf.mxu0
    %v4027 = vadd.f32 0.0, %v4026
    %v4028 = vpop.f32.mrf.mxu0
    %v4029 = vadd.f32 0.0, %v4028
    %v4030 = vpop.f32.mrf.mxu0
    %v4031 = vadd.f32 0.0, %v4030
    %4032 = vmatprep.mubr.bf16.mxu0 0
    %4033 = vmatmul.mubr.bf16.gmra.mxu0 %v3968
    %v4034 = vpop.f32.mrf.mxu0
    %v4035 = vadd.f32 0.0, %v4034
    %v4036 = vpop.f32.mrf.mxu0
    %v4037 = vadd.f32 0.0, %v4036
    %v4038 = vpop.f32.mrf.mxu0
    %v4039 = vadd.f32 0.0, %v4038
    %v4040 = vpop.f32.mrf.mxu0
    %v4041 = vadd.f32 0.0, %v4040
    %4042 = vdwg.mxu0
    %v4043 = vrot.slane %v3928, 1
    %v4044 = vrot.slane %v3930, 2
    %v4045 = vor.u32 %v4043, %v4044
    %v4046 = vrot.slane %v3939, 1
    %v4047 = vrot.slane %v3935, 2
    %v4048 = vor.u32 %v4046, %v4047
    %v4049 = vsel %vm348, %v4045, %v4048
    %v4050 = vrot.slane %v3947, 1
    %v4051 = vrot.slane %v3943, 2
    %v4052 = vor.u32 %v4050, %v4051
    %v4053 = vsel %vm348, %v4048, %v4052
    %v4054 = vrot.slane %v3955, 1
    %v4055 = vrot.slane %v3951, 2
    %v4056 = vor.u32 %v4054, %v4055
    %v4057 = vsel %vm348, %v4052, %v4056
    %v4059 = vsel %vm241, %v4049, 0
    %v4062 = vsel %vm241, %v4053, 0
    %v4065 = vsel %vm241, %v4057, 0
    %v4068 = vsel %vm241, %v4056, 0
    %4070 = vmatprep.subr.bf16.mxu0 0
    %4071 = vmatpush1.bf16.msra.mxu0 0
    %4072 = vmatprep.subr.bf16.mxu0 0
    %4073 = vmatpush1.bf16.msra.mxu0 0
    %4074 = vmatprep.subr.bf16.mxu0 0
    %4075 = vmatpush1.bf16.msra.mxu0 0
    %4076 = vmatprep.subr.bf16.mxu0 0
    %4077 = vmatpush1.bf16.msra.mxu0 0
    %4078 = vmatprep.subr.bf16.mxu0 0
    %4079 = vmatpush1.bf16.msra.mxu0 0
    %4080 = vmatprep.subr.bf16.mxu0 %v408
    %4081 = vmatpush1.bf16.msra.mxu0 %v405
    %4082 = vmatprep.subr.bf16.mxu0 %v385
    %4083 = vmatpush1.bf16.msra.mxu0 %v384
    %4084 = vmatprep.subr.bf16.mxu0 %v383
    %4085 = vmatpush1.bf16.msra.mxu0 %v382
    %4086 = vmatprep.subr.bf16.mxu0 0
    %4087 = vmatpush2.bf16.msra.mxu0 0
    %4088 = vmatprep.subr.bf16.mxu0 0
    %4089 = vmatpush2.bf16.msra.mxu0 0
    %4090 = vmatprep.subr.bf16.mxu0 0
    %4091 = vmatpush2.bf16.msra.mxu0 0
    %4092 = vmatprep.subr.bf16.mxu0 0
    %4093 = vmatpush2.bf16.msra.mxu0 0
    %4094 = vmatprep.subr.bf16.mxu0 0
    %4095 = vmatpush2.bf16.msra.mxu0 0
    %4096 = vmatprep.subr.bf16.mxu0 0
    %4097 = vmatpush2.bf16.msra.mxu0 0
    %4098 = vmatprep.subr.bf16.mxu0 0
    %4099 = vmatpush2.bf16.msra.mxu0 0
    %4100 = vmatprep.subr.bf16.mxu0 0
    %4101 = vmatpush2.bf16.msra.mxu0 0
    %4102 = vmatprep.mubr.bf16.mxu0 0
    %4103 = vmatmul.mubr.bf16.gmra.mxu0 %v4059
    %v4104 = vpop.f32.mrf.mxu0
    %v4105 = vadd.f32 0.0, %v4104
    %v4106 = vpop.f32.mrf.mxu0
    %v4107 = vadd.f32 0.0, %v4106
    %v4108 = vpop.f32.mrf.mxu0
    %v4109 = vadd.f32 0.0, %v4108
    %v4110 = vpop.f32.mrf.mxu0
    %v4111 = vadd.f32 0.0, %v4110
    %4112 = vmatprep.mubr.bf16.mxu0 0
    %4113 = vmatmul.mubr.bf16.gmra.mxu0 %v4062
    %v4114 = vpop.f32.mrf.mxu0
    %v4115 = vadd.f32 0.0, %v4114
    %v4116 = vpop.f32.mrf.mxu0
    %v4117 = vadd.f32 0.0, %v4116
    %v4118 = vpop.f32.mrf.mxu0
    %v4119 = vadd.f32 0.0, %v4118
    %v4120 = vpop.f32.mrf.mxu0
    %v4121 = vadd.f32 0.0, %v4120
    %4122 = vmatprep.mubr.bf16.mxu0 0
    %4123 = vmatmul.mubr.bf16.gmra.mxu0 %v4065
    %v4124 = vpop.f32.mrf.mxu0
    %v4125 = vadd.f32 0.0, %v4124
    %v4126 = vpop.f32.mrf.mxu0
    %v4127 = vadd.f32 0.0, %v4126
    %v4128 = vpop.f32.mrf.mxu0
    %v4129 = vadd.f32 0.0, %v4128
    %v4130 = vpop.f32.mrf.mxu0
    %v4131 = vadd.f32 0.0, %v4130
    %4132 = vmatprep.mubr.bf16.mxu0 0
    %4133 = vmatmul.mubr.bf16.gmra.mxu0 %v4068
    %v4134 = vpop.f32.mrf.mxu0
    %v4135 = vadd.f32 0.0, %v4134
    %v4136 = vpop.f32.mrf.mxu0
    %v4137 = vadd.f32 0.0, %v4136
    %v4138 = vpop.f32.mrf.mxu0
    %v4139 = vadd.f32 0.0, %v4138
    %v4140 = vpop.f32.mrf.mxu0
    %v4141 = vadd.f32 0.0, %v4140
    %4142 = vdwg.mxu0
    %v4143 = vpack.c.bf16 %v3922, %v3922
    %v4144 = vrot.slane %v3928, 2
    %v4145 = vrot.slane %v3930, 3
    %v4146 = vor.u32 %v4144, %v4145
    %v4147 = vrot.slane %v3939, 2
    %v4148 = vrot.slane %v3935, 3
    %v4149 = vor.u32 %v4147, %v4148
    %v4150 = vsel %vm498, %v4146, %v4149
    %v4151 = vrot.slane %v3947, 2
    %v4152 = vrot.slane %v3943, 3
    %v4153 = vor.u32 %v4151, %v4152
    %v4154 = vsel %vm498, %v4149, %v4153
    %v4155 = vrot.slane %v3955, 2
    %v4156 = vrot.slane %v3951, 3
    %v4157 = vor.u32 %v4155, %v4156
    %v4158 = vsel %vm498, %v4153, %v4157
    %v4160 = vshll.u32 %v4143, 16
    %v4162 = vrot.slane %v4160, 3
    %v4163 = vsel %vm498, %v4157, %v4162
    %v4165 = vsel %vm241, %v4150, 0
    %v4168 = vsel %vm241, %v4154, 0
    %v4171 = vsel %vm241, %v4158, 0
    %v4174 = vsel %vm241, %v4163, 0
    %4176 = vmatprep.subr.bf16.mxu0 0
    %4177 = vmatpush1.bf16.msra.mxu0 0
    %4178 = vmatprep.subr.bf16.mxu0 0
    %4179 = vmatpush1.bf16.msra.mxu0 0
    %4180 = vmatprep.subr.bf16.mxu0 0
    %4181 = vmatpush1.bf16.msra.mxu0 0
    %4182 = vmatprep.subr.bf16.mxu0 0
    %4183 = vmatpush1.bf16.msra.mxu0 0
    %4184 = vmatprep.subr.bf16.mxu0 0
    %4185 = vmatpush1.bf16.msra.mxu0 0
    %4186 = vmatprep.subr.bf16.mxu0 %v563
    %4187 = vmatpush1.bf16.msra.mxu0 %v560
    %4188 = vmatprep.subr.bf16.mxu0 %v540
    %4189 = vmatpush1.bf16.msra.mxu0 %v539
    %4190 = vmatprep.subr.bf16.mxu0 %v538
    %4191 = vmatpush1.bf16.msra.mxu0 %v537
    %4192 = vmatprep.subr.bf16.mxu0 0
    %4193 = vmatpush2.bf16.msra.mxu0 0
    %4194 = vmatprep.subr.bf16.mxu0 0
    %4195 = vmatpush2.bf16.msra.mxu0 0
    %4196 = vmatprep.subr.bf16.mxu0 0
    %4197 = vmatpush2.bf16.msra.mxu0 0
    %4198 = vmatprep.subr.bf16.mxu0 0
    %4199 = vmatpush2.bf16.msra.mxu0 0
    %4200 = vmatprep.subr.bf16.mxu0 0
    %4201 = vmatpush2.bf16.msra.mxu0 0
    %4202 = vmatprep.subr.bf16.mxu0 0
    %4203 = vmatpush2.bf16.msra.mxu0 0
    %4204 = vmatprep.subr.bf16.mxu0 0
    %4205 = vmatpush2.bf16.msra.mxu0 0
    %4206 = vmatprep.subr.bf16.mxu0 0
    %4207 = vmatpush2.bf16.msra.mxu0 0
    %4208 = vmatprep.mubr.bf16.mxu0 0
    %4209 = vmatmul.mubr.bf16.gmra.mxu0 %v4165
    %v4210 = vpop.f32.mrf.mxu0
    %v4211 = vadd.f32 0.0, %v4210
    %v4212 = vpop.f32.mrf.mxu0
    %v4213 = vadd.f32 0.0, %v4212
    %v4214 = vpop.f32.mrf.mxu0
    %v4215 = vadd.f32 0.0, %v4214
    %v4216 = vpop.f32.mrf.mxu0
    %v4217 = vadd.f32 0.0, %v4216
    %4218 = vmatprep.mubr.bf16.mxu0 0
    %4219 = vmatmul.mubr.bf16.gmra.mxu0 %v4168
    %v4220 = vpop.f32.mrf.mxu0
    %v4221 = vadd.f32 0.0, %v4220
    %v4222 = vpop.f32.mrf.mxu0
    %v4223 = vadd.f32 0.0, %v4222
    %v4224 = vpop.f32.mrf.mxu0
    %v4225 = vadd.f32 0.0, %v4224
    %v4226 = vpop.f32.mrf.mxu0
    %v4227 = vadd.f32 0.0, %v4226
    %4228 = vmatprep.mubr.bf16.mxu0 0
    %4229 = vmatmul.mubr.bf16.gmra.mxu0 %v4171
    %v4230 = vpop.f32.mrf.mxu0
    %v4231 = vadd.f32 0.0, %v4230
    %v4232 = vpop.f32.mrf.mxu0
    %v4233 = vadd.f32 0.0, %v4232
    %v4234 = vpop.f32.mrf.mxu0
    %v4235 = vadd.f32 0.0, %v4234
    %v4236 = vpop.f32.mrf.mxu0
    %v4237 = vadd.f32 0.0, %v4236
    %4238 = vmatprep.mubr.bf16.mxu0 0
    %4239 = vmatmul.mubr.bf16.gmra.mxu0 %v4174
    %v4240 = vpop.f32.mrf.mxu0
    %v4241 = vadd.f32 0.0, %v4240
    %v4242 = vpop.f32.mrf.mxu0
    %v4243 = vadd.f32 0.0, %v4242
    %v4244 = vpop.f32.mrf.mxu0
    %v4245 = vadd.f32 0.0, %v4244
    %v4246 = vpop.f32.mrf.mxu0
    %v4247 = vadd.f32 0.0, %v4246
    %4248 = vdwg.mxu0
    %v4254 = vrot.slane %v3923, 3
    %v4255 = vrot.slane %v3924, 3
    %v4256 = vsel %vm650, %v4254, %v4255
    %v4257 = vrot.slane %v3925, 3
    %v4258 = vsel %vm650, %v4255, %v4257
    %v4259 = vrot.slane %v3926, 3
    %v4260 = vsel %vm650, %v4257, %v4259
    %v4261 = vrot.slane %v4143, 3
    %v4262 = vsel %vm650, %v4259, %v4261
    %v4264 = vsel %vm241, %v4256, 0
    %v4267 = vsel %vm241, %v4258, 0
    %v4270 = vsel %vm241, %v4260, 0
    %v4273 = vsel %vm241, %v4262, 0
    %4275 = vmatprep.subr.bf16.mxu0 0
    %4276 = vmatpush1.bf16.msra.mxu0 0
    %4277 = vmatprep.subr.bf16.mxu0 0
    %4278 = vmatpush1.bf16.msra.mxu0 0
    %4279 = vmatprep.subr.bf16.mxu0 0
    %4280 = vmatpush1.bf16.msra.mxu0 0
    %4281 = vmatprep.subr.bf16.mxu0 0
    %4282 = vmatpush1.bf16.msra.mxu0 0
    %4283 = vmatprep.subr.bf16.mxu0 0
    %4284 = vmatpush1.bf16.msra.mxu0 0
    %4285 = vmatprep.subr.bf16.mxu0 %v704
    %4286 = vmatpush1.bf16.msra.mxu0 %v701
    %4287 = vmatprep.subr.bf16.mxu0 %v681
    %4288 = vmatpush1.bf16.msra.mxu0 %v680
    %4289 = vmatprep.subr.bf16.mxu0 %v679
    %4290 = vmatpush1.bf16.msra.mxu0 %v678
    %4291 = vmatprep.subr.bf16.mxu0 0
    %4292 = vmatpush2.bf16.msra.mxu0 0
    %4293 = vmatprep.subr.bf16.mxu0 0
    %4294 = vmatpush2.bf16.msra.mxu0 0
    %4295 = vmatprep.subr.bf16.mxu0 0
    %4296 = vmatpush2.bf16.msra.mxu0 0
    %4297 = vmatprep.subr.bf16.mxu0 0
    %4298 = vmatpush2.bf16.msra.mxu0 0
    %4299 = vmatprep.subr.bf16.mxu0 0
    %4300 = vmatpush2.bf16.msra.mxu0 0
    %4301 = vmatprep.subr.bf16.mxu0 0
    %4302 = vmatpush2.bf16.msra.mxu0 0
    %4303 = vmatprep.subr.bf16.mxu0 0
    %4304 = vmatpush2.bf16.msra.mxu0 0
    %4305 = vmatprep.subr.bf16.mxu0 0
    %4306 = vmatpush2.bf16.msra.mxu0 0
    %4307 = vmatprep.mubr.bf16.mxu0 0
    %4308 = vmatmul.mubr.bf16.gmra.mxu0 %v4264
    %v4309 = vpop.f32.mrf.mxu0
    %v4310 = vadd.f32 0.0, %v4309
    %v4311 = vpop.f32.mrf.mxu0
    %v4312 = vadd.f32 0.0, %v4311
    %v4313 = vpop.f32.mrf.mxu0
    %v4314 = vadd.f32 0.0, %v4313
    %v4315 = vpop.f32.mrf.mxu0
    %v4316 = vadd.f32 0.0, %v4315
    %4317 = vmatprep.mubr.bf16.mxu0 0
    %4318 = vmatmul.mubr.bf16.gmra.mxu0 %v4267
    %v4319 = vpop.f32.mrf.mxu0
    %v4320 = vadd.f32 0.0, %v4319
    %v4321 = vpop.f32.mrf.mxu0
    %v4322 = vadd.f32 0.0, %v4321
    %v4323 = vpop.f32.mrf.mxu0
    %v4324 = vadd.f32 0.0, %v4323
    %v4325 = vpop.f32.mrf.mxu0
    %v4326 = vadd.f32 0.0, %v4325
    %4327 = vmatprep.mubr.bf16.mxu0 0
    %4328 = vmatmul.mubr.bf16.gmra.mxu0 %v4270
    %v4329 = vpop.f32.mrf.mxu0
    %v4330 = vadd.f32 0.0, %v4329
    %v4331 = vpop.f32.mrf.mxu0
    %v4332 = vadd.f32 0.0, %v4331
    %v4333 = vpop.f32.mrf.mxu0
    %v4334 = vadd.f32 0.0, %v4333
    %v4335 = vpop.f32.mrf.mxu0
    %v4336 = vadd.f32 0.0, %v4335
    %4337 = vmatprep.mubr.bf16.mxu0 0
    %4338 = vmatmul.mubr.bf16.gmra.mxu0 %v4273
    %v4339 = vpop.f32.mrf.mxu0
    %v4340 = vadd.f32 0.0, %v4339
    %v4341 = vpop.f32.mrf.mxu0
    %v4342 = vadd.f32 0.0, %v4341
    %v4343 = vpop.f32.mrf.mxu0
    %v4344 = vadd.f32 0.0, %v4343
    %v4345 = vpop.f32.mrf.mxu0
    %v4346 = vadd.f32 0.0, %v4345
    %4347 = vdwg.mxu0
    %v4348 = vsel %vm241, %v3923, 0
    %v4350 = vsel %vm241, %v3924, 0
    %v4352 = vsel %vm241, %v3925, 0
    %v4354 = vsel %vm241, %v3926, 0
    %4356 = vmatprep.subr.bf16.mxu0 0
    %4357 = vmatpush1.bf16.msra.mxu0 0
    %4358 = vmatprep.subr.bf16.mxu0 0
    %4359 = vmatpush1.bf16.msra.mxu0 0
    %4360 = vmatprep.subr.bf16.mxu0 0
    %4361 = vmatpush1.bf16.msra.mxu0 0
    %4362 = vmatprep.subr.bf16.mxu0 0
    %4363 = vmatpush1.bf16.msra.mxu0 0
    %4364 = vmatprep.subr.bf16.mxu0 0
    %4365 = vmatpush1.bf16.msra.mxu0 0
    %4366 = vmatprep.subr.bf16.mxu0 %v819
    %4367 = vmatpush1.bf16.msra.mxu0 %v816
    %4368 = vmatprep.subr.bf16.mxu0 %v800
    %4369 = vmatpush1.bf16.msra.mxu0 %v799
    %4370 = vmatprep.subr.bf16.mxu0 %v798
    %4371 = vmatpush1.bf16.msra.mxu0 %v797
    %4372 = vmatprep.subr.bf16.mxu0 0
    %4373 = vmatpush2.bf16.msra.mxu0 0
    %4374 = vmatprep.subr.bf16.mxu0 0
    %4375 = vmatpush2.bf16.msra.mxu0 0
    %4376 = vmatprep.subr.bf16.mxu0 0
    %4377 = vmatpush2.bf16.msra.mxu0 0
    %4378 = vmatprep.subr.bf16.mxu0 0
    %4379 = vmatpush2.bf16.msra.mxu0 0
    %4380 = vmatprep.subr.bf16.mxu0 0
    %4381 = vmatpush2.bf16.msra.mxu0 0
    %4382 = vmatprep.subr.bf16.mxu0 0
    %4383 = vmatpush2.bf16.msra.mxu0 0
    %4384 = vmatprep.subr.bf16.mxu0 0
    %4385 = vmatpush2.bf16.msra.mxu0 0
    %4386 = vmatprep.subr.bf16.mxu0 0
    %4387 = vmatpush2.bf16.msra.mxu0 0
    %4388 = vmatprep.mubr.bf16.mxu0 0
    %4389 = vmatmul.mubr.bf16.gmra.mxu0 %v4348
    %v4390 = vpop.f32.mrf.mxu0
    %v4391 = vadd.f32 %v4005, %v4390
    %v4392 = vpop.f32.mrf.mxu0
    %v4393 = vadd.f32 %v4007, %v4392
    %v4394 = vpop.f32.mrf.mxu0
    %v4395 = vadd.f32 %v4009, %v4394
    %v4396 = vpop.f32.mrf.mxu0
    %v4397 = vadd.f32 %v4011, %v4396
    %4398 = vmatprep.mubr.bf16.mxu0 0
    %4399 = vmatmul.mubr.bf16.gmra.mxu0 %v4350
    %v4400 = vpop.f32.mrf.mxu0
    %v4401 = vadd.f32 %v4015, %v4400
    %v4402 = vpop.f32.mrf.mxu0
    %v4403 = vadd.f32 %v4017, %v4402
    %v4404 = vpop.f32.mrf.mxu0
    %v4405 = vadd.f32 %v4019, %v4404
    %v4406 = vpop.f32.mrf.mxu0
    %v4407 = vadd.f32 %v4021, %v4406
    %4408 = vmatprep.mubr.bf16.mxu0 0
    %4409 = vmatmul.mubr.bf16.gmra.mxu0 %v4352
    %v4410 = vpop.f32.mrf.mxu0
    %v4411 = vadd.f32 %v4025, %v4410
    %v4412 = vpop.f32.mrf.mxu0
    %v4413 = vadd.f32 %v4027, %v4412
    %v4414 = vpop.f32.mrf.mxu0
    %v4415 = vadd.f32 %v4029, %v4414
    %v4416 = vpop.f32.mrf.mxu0
    %v4417 = vadd.f32 %v4031, %v4416
    %4418 = vmatprep.mubr.bf16.mxu0 0
    %4419 = vmatmul.mubr.bf16.gmra.mxu0 %v4354
    %v4420 = vpop.f32.mrf.mxu0
    %v4421 = vadd.f32 %v4035, %v4420
    %v4422 = vpop.f32.mrf.mxu0
    %v4423 = vadd.f32 %v4037, %v4422
    %v4424 = vpop.f32.mrf.mxu0
    %v4425 = vadd.f32 %v4039, %v4424
    %v4426 = vpop.f32.mrf.mxu0
    %v4427 = vadd.f32 %v4041, %v4426
    %4428 = vdwg.mxu0
    %v4429 = vrot.slane %v3923, 1
    %v4430 = vrot.slane %v3924, 1
    %v4431 = vsel %vm894, %v4429, %v4430
    %v4432 = vrot.slane %v3925, 1
    %v4433 = vsel %vm894, %v4430, %v4432
    %v4434 = vrot.slane %v3926, 1
    %v4435 = vsel %vm894, %v4432, %v4434
    %v4437 = vsel %vm241, %v4431, 0
    %v4440 = vsel %vm241, %v4433, 0
    %v4443 = vsel %vm241, %v4435, 0
    %v4446 = vsel %vm241, %v4434, 0
    %4448 = vmatprep.subr.bf16.mxu0 0
    %4449 = vmatpush1.bf16.msra.mxu0 0
    %4450 = vmatprep.subr.bf16.mxu0 0
    %4451 = vmatpush1.bf16.msra.mxu0 0
    %4452 = vmatprep.subr.bf16.mxu0 0
    %4453 = vmatpush1.bf16.msra.mxu0 0
    %4454 = vmatprep.subr.bf16.mxu0 0
    %4455 = vmatpush1.bf16.msra.mxu0 0
    %4456 = vmatprep.subr.bf16.mxu0 0
    %4457 = vmatpush1.bf16.msra.mxu0 0
    %4458 = vmatprep.subr.bf16.mxu0 %v946
    %4459 = vmatpush1.bf16.msra.mxu0 %v943
    %4460 = vmatprep.subr.bf16.mxu0 %v923
    %4461 = vmatpush1.bf16.msra.mxu0 %v922
    %4462 = vmatprep.subr.bf16.mxu0 %v921
    %4463 = vmatpush1.bf16.msra.mxu0 %v920
    %4464 = vmatprep.subr.bf16.mxu0 0
    %4465 = vmatpush2.bf16.msra.mxu0 0
    %4466 = vmatprep.subr.bf16.mxu0 0
    %4467 = vmatpush2.bf16.msra.mxu0 0
    %4468 = vmatprep.subr.bf16.mxu0 0
    %4469 = vmatpush2.bf16.msra.mxu0 0
    %4470 = vmatprep.subr.bf16.mxu0 0
    %4471 = vmatpush2.bf16.msra.mxu0 0
    %4472 = vmatprep.subr.bf16.mxu0 0
    %4473 = vmatpush2.bf16.msra.mxu0 0
    %4474 = vmatprep.subr.bf16.mxu0 0
    %4475 = vmatpush2.bf16.msra.mxu0 0
    %4476 = vmatprep.subr.bf16.mxu0 0
    %4477 = vmatpush2.bf16.msra.mxu0 0
    %4478 = vmatprep.subr.bf16.mxu0 0
    %4479 = vmatpush2.bf16.msra.mxu0 0
    %4480 = vmatprep.mubr.bf16.mxu0 0
    %4481 = vmatmul.mubr.bf16.gmra.mxu0 %v4437
    %v4482 = vpop.f32.mrf.mxu0
    %v4483 = vadd.f32 %v4105, %v4482
    %v4484 = vpop.f32.mrf.mxu0
    %v4485 = vadd.f32 %v4107, %v4484
    %v4486 = vpop.f32.mrf.mxu0
    %v4487 = vadd.f32 %v4109, %v4486
    %v4488 = vpop.f32.mrf.mxu0
    %v4489 = vadd.f32 %v4111, %v4488
    %4490 = vmatprep.mubr.bf16.mxu0 0
    %4491 = vmatmul.mubr.bf16.gmra.mxu0 %v4440
    %v4492 = vpop.f32.mrf.mxu0
    %v4493 = vadd.f32 %v4115, %v4492
    %v4494 = vpop.f32.mrf.mxu0
    %v4495 = vadd.f32 %v4117, %v4494
    %v4496 = vpop.f32.mrf.mxu0
    %v4497 = vadd.f32 %v4119, %v4496
    %v4498 = vpop.f32.mrf.mxu0
    %v4499 = vadd.f32 %v4121, %v4498
    %4500 = vmatprep.mubr.bf16.mxu0 0
    %4501 = vmatmul.mubr.bf16.gmra.mxu0 %v4443
    %v4502 = vpop.f32.mrf.mxu0
    %v4503 = vadd.f32 %v4125, %v4502
    %v4504 = vpop.f32.mrf.mxu0
    %v4505 = vadd.f32 %v4127, %v4504
    %v4506 = vpop.f32.mrf.mxu0
    %v4507 = vadd.f32 %v4129, %v4506
    %v4508 = vpop.f32.mrf.mxu0
    %v4509 = vadd.f32 %v4131, %v4508
    %4510 = vmatprep.mubr.bf16.mxu0 0
    %4511 = vmatmul.mubr.bf16.gmra.mxu0 %v4446
    %v4512 = vpop.f32.mrf.mxu0
    %v4513 = vadd.f32 %v4135, %v4512
    %v4514 = vpop.f32.mrf.mxu0
    %v4515 = vadd.f32 %v4137, %v4514
    %v4516 = vpop.f32.mrf.mxu0
    %v4517 = vadd.f32 %v4139, %v4516
    %v4518 = vpop.f32.mrf.mxu0
    %v4519 = vadd.f32 %v4141, %v4518
    %4520 = vdwg.mxu0
    %v4521 = vadd.f32 %v4391, %v4483
    %v4522 = vadd.f32 %v4393, %v4485
    %v4523 = vadd.f32 %v4395, %v4487
    %v4524 = vadd.f32 %v4397, %v4489
    %v4525 = vadd.f32 %v4401, %v4493
    %v4526 = vadd.f32 %v4403, %v4495
    %v4527 = vadd.f32 %v4405, %v4497
    %v4528 = vadd.f32 %v4407, %v4499
    %v4529 = vadd.f32 %v4411, %v4503
    %v4530 = vadd.f32 %v4413, %v4505
    %v4531 = vadd.f32 %v4415, %v4507
    %v4532 = vadd.f32 %v4417, %v4509
    %v4533 = vadd.f32 %v4421, %v4513
    %v4534 = vadd.f32 %v4423, %v4515
    %v4535 = vadd.f32 %v4425, %v4517
    %v4536 = vadd.f32 %v4427, %v4519
    %v4537 = vrot.slane %v3923, 2
    %v4538 = vrot.slane %v3924, 2
    %v4539 = vsel %vm1037, %v4537, %v4538
    %v4540 = vrot.slane %v3925, 2
    %v4541 = vsel %vm1037, %v4538, %v4540
    %v4542 = vrot.slane %v3926, 2
    %v4543 = vsel %vm1037, %v4540, %v4542
    %v4545 = vsel %vm241, %v4539, 0
    %v4548 = vsel %vm241, %v4541, 0
    %v4551 = vsel %vm241, %v4543, 0
    %v4554 = vsel %vm241, %v4542, 0
    %4556 = vmatprep.subr.bf16.mxu0 0
    %4557 = vmatpush1.bf16.msra.mxu0 0
    %4558 = vmatprep.subr.bf16.mxu0 0
    %4559 = vmatpush1.bf16.msra.mxu0 0
    %4560 = vmatprep.subr.bf16.mxu0 0
    %4561 = vmatpush1.bf16.msra.mxu0 0
    %4562 = vmatprep.subr.bf16.mxu0 0
    %4563 = vmatpush1.bf16.msra.mxu0 0
    %4564 = vmatprep.subr.bf16.mxu0 0
    %4565 = vmatpush1.bf16.msra.mxu0 0
    %4566 = vmatprep.subr.bf16.mxu0 %v1089
    %4567 = vmatpush1.bf16.msra.mxu0 %v1086
    %4568 = vmatprep.subr.bf16.mxu0 %v1066
    %4569 = vmatpush1.bf16.msra.mxu0 %v1065
    %4570 = vmatprep.subr.bf16.mxu0 %v1064
    %4571 = vmatpush1.bf16.msra.mxu0 %v1063
    %4572 = vmatprep.subr.bf16.mxu0 0
    %4573 = vmatpush2.bf16.msra.mxu0 0
    %4574 = vmatprep.subr.bf16.mxu0 0
    %4575 = vmatpush2.bf16.msra.mxu0 0
    %4576 = vmatprep.subr.bf16.mxu0 0
    %4577 = vmatpush2.bf16.msra.mxu0 0
    %4578 = vmatprep.subr.bf16.mxu0 0
    %4579 = vmatpush2.bf16.msra.mxu0 0
    %4580 = vmatprep.subr.bf16.mxu0 0
    %4581 = vmatpush2.bf16.msra.mxu0 0
    %4582 = vmatprep.subr.bf16.mxu0 0
    %4583 = vmatpush2.bf16.msra.mxu0 0
    %4584 = vmatprep.subr.bf16.mxu0 0
    %4585 = vmatpush2.bf16.msra.mxu0 0
    %4586 = vmatprep.subr.bf16.mxu0 0
    %4587 = vmatpush2.bf16.msra.mxu0 0
    %4588 = vmatprep.mubr.bf16.mxu0 0
    %4589 = vmatmul.mubr.bf16.gmra.mxu0 %v4545
    %v4590 = vpop.f32.mrf.mxu0
    %v4591 = vadd.f32 %v4211, %v4590
    %v4592 = vpop.f32.mrf.mxu0
    %v4593 = vadd.f32 %v4213, %v4592
    %v4594 = vpop.f32.mrf.mxu0
    %v4595 = vadd.f32 %v4215, %v4594
    %v4596 = vpop.f32.mrf.mxu0
    %v4597 = vadd.f32 %v4217, %v4596
    %4598 = vmatprep.mubr.bf16.mxu0 0
    %4599 = vmatmul.mubr.bf16.gmra.mxu0 %v4548
    %v4600 = vpop.f32.mrf.mxu0
    %v4601 = vadd.f32 %v4221, %v4600
    %v4602 = vpop.f32.mrf.mxu0
    %v4603 = vadd.f32 %v4223, %v4602
    %v4604 = vpop.f32.mrf.mxu0
    %v4605 = vadd.f32 %v4225, %v4604
    %v4606 = vpop.f32.mrf.mxu0
    %v4607 = vadd.f32 %v4227, %v4606
    %4608 = vmatprep.mubr.bf16.mxu0 0
    %4609 = vmatmul.mubr.bf16.gmra.mxu0 %v4551
    %v4610 = vpop.f32.mrf.mxu0
    %v4611 = vadd.f32 %v4231, %v4610
    %v4612 = vpop.f32.mrf.mxu0
    %v4613 = vadd.f32 %v4233, %v4612
    %v4614 = vpop.f32.mrf.mxu0
    %v4615 = vadd.f32 %v4235, %v4614
    %v4616 = vpop.f32.mrf.mxu0
    %v4617 = vadd.f32 %v4237, %v4616
    %4618 = vmatprep.mubr.bf16.mxu0 0
    %4619 = vmatmul.mubr.bf16.gmra.mxu0 %v4554
    %v4620 = vpop.f32.mrf.mxu0
    %v4621 = vadd.f32 %v4241, %v4620
    %v4622 = vpop.f32.mrf.mxu0
    %v4623 = vadd.f32 %v4243, %v4622
    %v4624 = vpop.f32.mrf.mxu0
    %v4625 = vadd.f32 %v4245, %v4624
    %v4626 = vpop.f32.mrf.mxu0
    %v4627 = vadd.f32 %v4247, %v4626
    %4628 = vdwg.mxu0
    %v4629 = vadd.f32 %v4591, %v4310
    %v4630 = vadd.f32 %v4593, %v4312
    %v4631 = vadd.f32 %v4595, %v4314
    %v4632 = vadd.f32 %v4597, %v4316
    %v4633 = vadd.f32 %v4601, %v4320
    %v4634 = vadd.f32 %v4603, %v4322
    %v4635 = vadd.f32 %v4605, %v4324
    %v4636 = vadd.f32 %v4607, %v4326
    %v4637 = vadd.f32 %v4611, %v4330
    %v4638 = vadd.f32 %v4613, %v4332
    %v4639 = vadd.f32 %v4615, %v4334
    %v4640 = vadd.f32 %v4617, %v4336
    %v4641 = vadd.f32 %v4621, %v4340
    %v4642 = vadd.f32 %v4623, %v4342
    %v4643 = vadd.f32 %v4625, %v4344
    %v4644 = vadd.f32 %v4627, %v4346
    %v4645 = vadd.f32 %v4521, %v4629
    %v4646 = vadd.f32 %v4522, %v4630
    %v4647 = vadd.f32 %v4523, %v4631
    %v4648 = vadd.f32 %v4524, %v4632
    %v4649 = vadd.f32 %v4525, %v4633
    %v4650 = vadd.f32 %v4526, %v4634
    %v4651 = vadd.f32 %v4527, %v4635
    %v4652 = vadd.f32 %v4528, %v4636
    %v4653 = vadd.f32 %v4529, %v4637
    %v4654 = vadd.f32 %v4530, %v4638
    %v4655 = vadd.f32 %v4531, %v4639
    %v4656 = vadd.f32 %v4532, %v4640
    %v4657 = vadd.f32 %v4533, %v4641
    %v4658 = vadd.f32 %v4534, %v4642
    %v4659 = vadd.f32 %v4535, %v4643
    %v4660 = vadd.f32 %v4536, %v4644
    %v4661 = vadd.f32 %v4645, %v33
    %v4662 = vadd.f32 %v4646, %v37
    %v4663 = vadd.f32 %v4647, %v33
    %v4664 = vadd.f32 %v4648, %v37
    %v4665 = vadd.f32 %v4649, %v33
    %v4666 = vadd.f32 %v4650, %v37
    %v4667 = vadd.f32 %v4651, %v33
    %v4668 = vadd.f32 %v4652, %v37
    %v4669 = vadd.f32 %v4653, %v33
    %v4670 = vadd.f32 %v4654, %v37
    %v4671 = vadd.f32 %v4655, %v33
    %v4672 = vadd.f32 %v4656, %v37
    %v4673 = vadd.f32 %v4657, %v33
    %v4674 = vadd.f32 %v4658, %v37
    %v4675 = vadd.f32 %v4659, %v33
    %v4676 = vadd.f32 %v4660, %v37
    %v4677 = vmax.f32 %v4661, 0.0
    %v4678 = vmax.f32 %v4662, 0.0
    %v4679 = vmax.f32 %v4663, 0.0
    %v4680 = vmax.f32 %v4664, 0.0
    %v4681 = vmax.f32 %v4665, 0.0
    %v4682 = vmax.f32 %v4666, 0.0
    %v4683 = vmax.f32 %v4667, 0.0
    %v4684 = vmax.f32 %v4668, 0.0
    %v4685 = vmax.f32 %v4669, 0.0
    %v4686 = vmax.f32 %v4670, 0.0
    %v4687 = vmax.f32 %v4671, 0.0
    %v4688 = vmax.f32 %v4672, 0.0
    %v4689 = vmax.f32 %v4673, 0.0
    %v4690 = vmax.f32 %v4674, 0.0
    %v4691 = vmax.f32 %v4675, 0.0
    %v4692 = vmax.f32 %v4676, 0.0
    %v4709 = vrot.slane %v4677, 1
    %v4710 = vrot.slane %v4679, 1
    %v4711 = vsel %vm1244, %v4709, %v4710
    %v4712 = vrot.slane %v4678, 1
    %v4713 = vrot.slane %v4680, 1
    %v4714 = vsel %vm1244, %v4712, %v4713
    %v4715 = vrot.slane %v4681, 1
    %v4716 = vsel %vm1244, %v4710, %v4715
    %v4717 = vrot.slane %v4682, 1
    %v4718 = vsel %vm1244, %v4713, %v4717
    %v4719 = vrot.slane %v4683, 1
    %v4720 = vsel %vm1244, %v4715, %v4719
    %v4721 = vrot.slane %v4684, 1
    %v4722 = vsel %vm1244, %v4717, %v4721
    %v4723 = vrot.slane %v4685, 1
    %v4724 = vsel %vm1244, %v4719, %v4723
    %v4725 = vrot.slane %v4686, 1
    %v4726 = vsel %vm1244, %v4721, %v4725
    %v4727 = vrot.slane %v4687, 1
    %v4728 = vsel %vm1244, %v4723, %v4727
    %v4729 = vrot.slane %v4688, 1
    %v4730 = vsel %vm1244, %v4725, %v4729
    %v4731 = vrot.slane %v4689, 1
    %v4732 = vsel %vm1244, %v4727, %v4731
    %v4733 = vrot.slane %v4690, 1
    %v4734 = vsel %vm1244, %v4729, %v4733
    %v4735 = vrot.slane %v4691, 1
    %v4736 = vsel %vm1244, %v4731, %v4735
    %v4737 = vrot.slane %v4692, 1
    %v4738 = vsel %vm1244, %v4733, %v4737
    %v4755 = vmax.f32 %v4677, %v4711
    %v4756 = vmax.f32 %v4678, %v4714
    %v4757 = vmax.f32 %v4679, %v4716
    %v4758 = vmax.f32 %v4680, %v4718
    %v4759 = vmax.f32 %v4681, %v4720
    %v4760 = vmax.f32 %v4682, %v4722
    %v4761 = vmax.f32 %v4683, %v4724
    %v4762 = vmax.f32 %v4684, %v4726
    %v4763 = vmax.f32 %v4685, %v4728
    %v4764 = vmax.f32 %v4686, %v4730
    %v4765 = vmax.f32 %v4687, %v4732
    %v4766 = vmax.f32 %v4688, %v4734
    %v4767 = vmax.f32 %v4689, %v4736
    %v4768 = vmax.f32 %v4690, %v4738
    %v4769 = vmax.f32 %v4691, %v4735
    %v4770 = vmax.f32 %v4692, %v4737
    %v4771 = vpack.c.bf16 %v4757, %v4755
    %v4772 = vpack.c.bf16 %v4758, %v4756
    %v4773 = vpack.c.bf16 %v4761, %v4759
    %v4774 = vpack.c.bf16 %v4762, %v4760
    %v4775 = vpack.c.bf16 %v4765, %v4763
    %v4776 = vpack.c.bf16 %v4766, %v4764
    %v4777 = vpack.c.bf16 %v4769, %v4767
    %v4778 = vpack.c.bf16 %v4770, %v4768
    %v4780 = vand.u32 %v4777, %v1334
    %v4783 = vand.u32 %v4778, %v1334
    %4785 = vmatprep.subr.bf16.mxu0 0
    %4786 = vmatpush1.bf16.msra.mxu0 0
    %4787 = vmatprep.subr.bf16.mxu0 0
    %4788 = vmatpush1.bf16.msra.mxu0 0
    %4789 = vmatprep.subr.bf16.mxu0 0
    %4790 = vmatpush1.bf16.msra.mxu0 0
    %4791 = vmatprep.subr.bf16.mxu0 0
    %4792 = vmatpush1.bf16.msra.mxu0 0
    %4793 = vmatprep.subr.bf16.mxu0 %v4783
    %4794 = vmatpush1.bf16.msra.mxu0 %v4780
    %4795 = vmatprep.subr.bf16.mxu0 %v4776
    %4796 = vmatpush1.bf16.msra.mxu0 %v4775
    %4797 = vmatprep.subr.bf16.mxu0 %v4774
    %4798 = vmatpush1.bf16.msra.mxu0 %v4773
    %4799 = vmatprep.subr.bf16.mxu0 %v4772
    %4800 = vmatpush1.bf16.msra.mxu0 %v4771
    %4801 = vmatprep.subr.bf16.mxu0 0
    %4802 = vmatpush2.bf16.msra.mxu0 0
    %4803 = vmatprep.subr.bf16.mxu0 0
    %4804 = vmatpush2.bf16.msra.mxu0 0
    %4805 = vmatprep.subr.bf16.mxu0 0
    %4806 = vmatpush2.bf16.msra.mxu0 0
    %4807 = vmatprep.subr.bf16.mxu0 0
    %4808 = vmatpush2.bf16.msra.mxu0 0
    %4809 = vmatprep.subr.bf16.mxu0 0
    %4810 = vmatpush2.bf16.msra.mxu0 0
    %4811 = vmatprep.subr.bf16.mxu0 0
    %4812 = vmatpush2.bf16.msra.mxu0 0
    %4813 = vmatprep.subr.bf16.mxu0 0
    %4814 = vmatpush2.bf16.msra.mxu0 0
    %4815 = vmatprep.subr.bf16.mxu0 0
    %4816 = vmatpush2.bf16.msra.mxu0 0
    %4817 = vmatprep.mubr.bf16.mxu0 0
    %4818 = vmatmul.mubr.bf16.gmra.mxu0 %v1327
    %v4819 = vpop.f32.mrf.mxu0
    %v4820 = vadd.f32 0.0, %v4819
    %v4821 = vpop.f32.mrf.mxu0
    %v4822 = vadd.f32 0.0, %v4821
    %v4823 = vpop.f32.mrf.mxu0
    %v4824 = vadd.f32 0.0, %v4823
    %v4825 = vpop.f32.mrf.mxu0
    %v4826 = vadd.f32 0.0, %v4825
    %4827 = vmatprep.mubr.bf16.mxu0 0
    %4828 = vmatmul.mubr.bf16.gmra.mxu0 %v1330
    %v4829 = vpop.f32.mrf.mxu0
    %v4830 = vadd.f32 0.0, %v4829
    %v4831 = vpop.f32.mrf.mxu0
    %v4832 = vadd.f32 0.0, %v4831
    %v4833 = vpop.f32.mrf.mxu0
    %v4834 = vadd.f32 0.0, %v4833
    %v4835 = vpop.f32.mrf.mxu0
    %v4836 = vadd.f32 0.0, %v4835
    %4837 = vdwg.mxu0
    %4846 = vrot.lane.b32.xlu0 %v4820, 122
    %v4847 = vpop.permute.xlu0 %4846
    %4848 = vrot.lane.b32.xlu0 %v4822, 122
    %v4849 = vpop.permute.xlu0 %4848
    %4850 = vrot.lane.b32.xlu0 %v4824, 122
    %v4851 = vpop.permute.xlu0 %4850
    %4852 = vrot.lane.b32.xlu0 %v4826, 122
    %v4853 = vpop.permute.xlu0 %4852
    %4854 = vrot.lane.b32.xlu0 %v4830, 122
    %v4855 = vpop.permute.xlu0 %4854
    %4856 = vrot.lane.b32.xlu0 %v4832, 122
    %v4857 = vpop.permute.xlu0 %4856
    %4858 = vrot.lane.b32.xlu0 %v4834, 122
    %v4859 = vpop.permute.xlu0 %4858
    %4860 = vrot.lane.b32.xlu0 %v4836, 122
    %v4861 = vpop.permute.xlu0 %4860
    %v4862 = vsel %vm1418, %v4847, %v4849
    %v4863 = vsel %vm1418, %v4851, %v4853
    %v4864 = vsel %vm1418, %v4855, %v4857
    %v4865 = vsel %vm1418, %v4859, %v4861
    %v4874 = vmax.f32 %v4820, %v4862
    %v4875 = vmax.f32 %v4822, %v4849
    %v4876 = vmax.f32 %v4824, %v4863
    %v4877 = vmax.f32 %v4826, %v4853
    %v4878 = vmax.f32 %v4830, %v4864
    %v4879 = vmax.f32 %v4832, %v4857
    %v4880 = vmax.f32 %v4834, %v4865
    %v4881 = vmax.f32 %v4836, %v4861
    %v4882 = vpack.c.bf16 %v4876, %v4874
    %v4883 = vpack.c.bf16 %v4877, %v4875
    %v4884 = vpack.c.bf16 %v4880, %v4878
    %v4885 = vpack.c.bf16 %v4881, %v4879
    %v4887 = vsel %vm1532, %v4883, 0
    %v4890 = vsel %vm1532, %v4885, 0
    %4892 = vmatprep.subr.bf16.mxu0 0
    %4893 = vmatpush1.bf16.msra.mxu0 %v1510
    %4894 = vmatprep.subr.bf16.mxu0 0
    %4895 = vmatpush1.bf16.msra.mxu0 %v1509
    %4896 = vmatprep.subr.bf16.mxu0 0
    %4897 = vmatpush1.bf16.msra.mxu0 %v1508
    %4898 = vmatprep.subr.bf16.mxu0 0
    %4899 = vmatpush1.bf16.msra.mxu0 %v1507
    %4900 = vmatprep.subr.bf16.mxu0 0
    %4901 = vmatpush1.bf16.msra.mxu0 %v1506
    %4902 = vmatprep.subr.bf16.mxu0 0
    %4903 = vmatpush1.bf16.msra.mxu0 %v1505
    %4904 = vmatprep.subr.bf16.mxu0 0
    %4905 = vmatpush1.bf16.msra.mxu0 %v1504
    %4906 = vmatprep.subr.bf16.mxu0 0
    %4907 = vmatpush1.bf16.msra.mxu0 %v1503
    %4908 = vmatprep.subr.bf16.mxu0 0
    %4909 = vmatpush2.bf16.msra.mxu0 0
    %4910 = vmatprep.subr.bf16.mxu0 0
    %4911 = vmatpush2.bf16.msra.mxu0 %v1540
    %4912 = vmatprep.subr.bf16.mxu0 0
    %4913 = vmatpush2.bf16.msra.mxu0 %v1516
    %4914 = vmatprep.subr.bf16.mxu0 0
    %4915 = vmatpush2.bf16.msra.mxu0 %v1515
    %4916 = vmatprep.subr.bf16.mxu0 0
    %4917 = vmatpush2.bf16.msra.mxu0 %v1514
    %4918 = vmatprep.subr.bf16.mxu0 0
    %4919 = vmatpush2.bf16.msra.mxu0 %v1513
    %4920 = vmatprep.subr.bf16.mxu0 0
    %4921 = vmatpush2.bf16.msra.mxu0 %v1512
    %4922 = vmatprep.subr.bf16.mxu0 0
    %4923 = vmatpush2.bf16.msra.mxu0 %v1511
    %4924 = vmatprep.mubr.bf16.mxu0 %v4887
    %4925 = vmatmul.mubr.bf16.gmra.mxu0 %v4882
    %v4926 = vpop.f32.mrf.mxu0
    %v4927 = vadd.f32 0.0, %v4926
    %v4928 = vpop.f32.mrf.mxu0
    %v4929 = vpop.f32.mrf.mxu0
    %v4930 = vadd.f32 0.0, %v4929
    %v4931 = vpop.f32.mrf.mxu0
    %4932 = vmatprep.mubr.bf16.mxu0 %v4890
    %4933 = vmatmul.mubr.bf16.gmra.mxu0 %v4884
    %v4934 = vpop.f32.mrf.mxu0
    %v4935 = vadd.f32 0.0, %v4934
    %v4936 = vpop.f32.mrf.mxu0
    %v4937 = vpop.f32.mrf.mxu0
    %v4938 = vadd.f32 0.0, %v4937
    %v4939 = vpop.f32.mrf.mxu0
    %4940 = vdwg.mxu0
    %v4941 = vpack.c.bf16 %v4930, %v4927
    %v4942 = vpack.c.bf16 %v4935, %v4935
    %v4943 = vpack.c.bf16 %v4938, %v4935
    %v4945 = vshrl.u32 %v4941, 16
    %v4947 = vshll.u32 %v4941, 16
    %v4949 = vrot.slane %v4947, 1
    %v4950 = vor.u32 %v4945, %v4949
    %v4952 = vshll.u32 %v4943, 16
    %v4954 = vrot.slane %v4952, 1
    %v4955 = vsel %vm181, %v4950, %v4954
    %v4956 = vshrl.u32 %v4943, 16
    %v4958 = vor.u32 %v4956, %v4954
    %v4960 = vsel %vm1790, %v4955, 0
    %v4963 = vsel %vm1790, %v4958, 0
    %4965 = vmatprep.subr.bf16.mxu0 %v1802
    %4966 = vmatpush1.bf16.msra.mxu0 %v1799
    %4967 = vmatprep.subr.bf16.mxu0 %v1764
    %4968 = vmatpush1.bf16.msra.mxu0 %v1763
    %4969 = vmatprep.subr.bf16.mxu0 %v1761
    %4970 = vmatpush1.bf16.msra.mxu0 %v1760
    %4971 = vmatprep.subr.bf16.mxu0 %v1758
    %4972 = vmatpush1.bf16.msra.mxu0 %v1757
    %4973 = vmatprep.subr.bf16.mxu0 %v1755
    %4974 = vmatpush1.bf16.msra.mxu0 %v1754
    %4975 = vmatprep.subr.bf16.mxu0 %v1752
    %4976 = vmatpush1.bf16.msra.mxu0 %v1751
    %4977 = vmatprep.subr.bf16.mxu0 %v1749
    %4978 = vmatpush1.bf16.msra.mxu0 %v1748
    %4979 = vmatprep.subr.bf16.mxu0 %v1746
    %4980 = vmatpush1.bf16.msra.mxu0 %v1745
    %4981 = vmatprep.subr.bf16.mxu0 0
    %4982 = vmatpush2.bf16.msra.mxu0 0
    %4983 = vmatprep.subr.bf16.mxu0 0
    %4984 = vmatpush2.bf16.msra.mxu0 0
    %4985 = vmatprep.subr.bf16.mxu0 0
    %4986 = vmatpush2.bf16.msra.mxu0 0
    %4987 = vmatprep.subr.bf16.mxu0 0
    %4988 = vmatpush2.bf16.msra.mxu0 0
    %4989 = vmatprep.subr.bf16.mxu0 0
    %4990 = vmatpush2.bf16.msra.mxu0 0
    %4991 = vmatprep.subr.bf16.mxu0 0
    %4992 = vmatpush2.bf16.msra.mxu0 0
    %4993 = vmatprep.subr.bf16.mxu0 0
    %4994 = vmatpush2.bf16.msra.mxu0 0
    %4995 = vmatprep.subr.bf16.mxu0 0
    %4996 = vmatpush2.bf16.msra.mxu0 0
    %4997 = vmatprep.mubr.bf16.mxu0 0
    %4998 = vmatmul.mubr.bf16.gmra.mxu0 %v4960
    %v4999 = vpop.f32.mrf.mxu0
    %v5000 = vadd.f32 0.0, %v4999
    %v5001 = vpop.f32.mrf.mxu0
    %v5002 = vadd.f32 0.0, %v5001
    %v5003 = vpop.f32.mrf.mxu0
    %v5004 = vadd.f32 0.0, %v5003
    %v5005 = vpop.f32.mrf.mxu0
    %v5006 = vadd.f32 0.0, %v5005
    %5007 = vmatprep.mubr.bf16.mxu0 0
    %5008 = vmatmul.mubr.bf16.gmra.mxu0 %v4963
    %v5009 = vpop.f32.mrf.mxu0
    %v5010 = vadd.f32 0.0, %v5009
    %v5011 = vpop.f32.mrf.mxu0
    %v5012 = vadd.f32 0.0, %v5011
    %v5013 = vpop.f32.mrf.mxu0
    %v5014 = vpop.f32.mrf.mxu0
    %5015 = vdwg.mxu0
    %5016 = vmatprep.subr.bf16.mxu0 0
    %5017 = vmatpush1.bf16.msra.mxu0 %v1805
    %5018 = vmatprep.subr.bf16.mxu0 0
    %5019 = vmatpush1.bf16.msra.mxu0 %v1765
    %5020 = vmatprep.subr.bf16.mxu0 0
    %5021 = vmatpush1.bf16.msra.mxu0 %v1762
    %5022 = vmatprep.subr.bf16.mxu0 0
    %5023 = vmatpush1.bf16.msra.mxu0 %v1759
    %5024 = vmatprep.subr.bf16.mxu0 0
    %5025 = vmatpush1.bf16.msra.mxu0 %v1756
    %5026 = vmatprep.subr.bf16.mxu0 0
    %5027 = vmatpush1.bf16.msra.mxu0 %v1753
    %5028 = vmatprep.subr.bf16.mxu0 0
    %5029 = vmatpush1.bf16.msra.mxu0 %v1750
    %5030 = vmatprep.subr.bf16.mxu0 0
    %5031 = vmatpush1.bf16.msra.mxu0 %v1747
    %5032 = vmatprep.subr.bf16.mxu0 0
    %5033 = vmatpush2.bf16.msra.mxu0 0
    %5034 = vmatprep.subr.bf16.mxu0 0
    %5035 = vmatpush2.bf16.msra.mxu0 0
    %5036 = vmatprep.subr.bf16.mxu0 0
    %5037 = vmatpush2.bf16.msra.mxu0 0
    %5038 = vmatprep.subr.bf16.mxu0 0
    %5039 = vmatpush2.bf16.msra.mxu0 0
    %5040 = vmatprep.subr.bf16.mxu0 0
    %5041 = vmatpush2.bf16.msra.mxu0 0
    %5042 = vmatprep.subr.bf16.mxu0 0
    %5043 = vmatpush2.bf16.msra.mxu0 0
    %5044 = vmatprep.subr.bf16.mxu0 0
    %5045 = vmatpush2.bf16.msra.mxu0 0
    %5046 = vmatprep.subr.bf16.mxu0 0
    %5047 = vmatpush2.bf16.msra.mxu0 0
    %5048 = vmatprep.mubr.bf16.mxu0 0
    %5049 = vmatmul.mubr.bf16.gmra.mxu0 %v4960
    %v5050 = vpop.f32.mrf.mxu0
    %v5051 = vadd.f32 0.0, %v5050
    %v5052 = vpop.f32.mrf.mxu0
    %v5053 = vpop.f32.mrf.mxu0
    %v5054 = vadd.f32 0.0, %v5053
    %v5055 = vpop.f32.mrf.mxu0
    %5056 = vmatprep.mubr.bf16.mxu0 0
    %5057 = vmatmul.mubr.bf16.gmra.mxu0 %v4963
    %v5058 = vpop.f32.mrf.mxu0
    %v5059 = vadd.f32 0.0, %v5058
    %v5060 = vpop.f32.mrf.mxu0
    %v5061 = vpop.f32.mrf.mxu0
    %v5062 = vpop.f32.mrf.mxu0
    %5063 = vdwg.mxu0
    %v5064 = vrot.slane %v4945, 1
    %v5065 = vrot.slane %v4947, 2
    %v5066 = vor.u32 %v5064, %v5065
    %v5067 = vrot.slane %v4956, 1
    %v5068 = vrot.slane %v4952, 2
    %v5069 = vor.u32 %v5067, %v5068
    %v5070 = vsel %vm348, %v5066, %v5069
    %v5072 = vsel %vm1790, %v5070, 0
    %v5075 = vsel %vm1790, %v5069, 0
    %5077 = vmatprep.subr.bf16.mxu0 %v2105
    %5078 = vmatpush1.bf16.msra.mxu0 %v2102
    %5079 = vmatprep.subr.bf16.mxu0 %v2069
    %5080 = vmatpush1.bf16.msra.mxu0 %v2068
    %5081 = vmatprep.subr.bf16.mxu0 %v2066
    %5082 = vmatpush1.bf16.msra.mxu0 %v2065
    %5083 = vmatprep.subr.bf16.mxu0 %v2063
    %5084 = vmatpush1.bf16.msra.mxu0 %v2062
    %5085 = vmatprep.subr.bf16.mxu0 %v2060
    %5086 = vmatpush1.bf16.msra.mxu0 %v2059
    %5087 = vmatprep.subr.bf16.mxu0 %v2057
    %5088 = vmatpush1.bf16.msra.mxu0 %v2056
    %5089 = vmatprep.subr.bf16.mxu0 %v2054
    %5090 = vmatpush1.bf16.msra.mxu0 %v2053
    %5091 = vmatprep.subr.bf16.mxu0 %v2051
    %5092 = vmatpush1.bf16.msra.mxu0 %v2050
    %5093 = vmatprep.subr.bf16.mxu0 0
    %5094 = vmatpush2.bf16.msra.mxu0 0
    %5095 = vmatprep.subr.bf16.mxu0 0
    %5096 = vmatpush2.bf16.msra.mxu0 0
    %5097 = vmatprep.subr.bf16.mxu0 0
    %5098 = vmatpush2.bf16.msra.mxu0 0
    %5099 = vmatprep.subr.bf16.mxu0 0
    %5100 = vmatpush2.bf16.msra.mxu0 0
    %5101 = vmatprep.subr.bf16.mxu0 0
    %5102 = vmatpush2.bf16.msra.mxu0 0
    %5103 = vmatprep.subr.bf16.mxu0 0
    %5104 = vmatpush2.bf16.msra.mxu0 0
    %5105 = vmatprep.subr.bf16.mxu0 0
    %5106 = vmatpush2.bf16.msra.mxu0 0
    %5107 = vmatprep.subr.bf16.mxu0 0
    %5108 = vmatpush2.bf16.msra.mxu0 0
    %5109 = vmatprep.mubr.bf16.mxu0 0
    %5110 = vmatmul.mubr.bf16.gmra.mxu0 %v5072
    %v5111 = vpop.f32.mrf.mxu0
    %v5112 = vadd.f32 0.0, %v5111
    %v5113 = vpop.f32.mrf.mxu0
    %v5114 = vadd.f32 0.0, %v5113
    %v5115 = vpop.f32.mrf.mxu0
    %v5116 = vadd.f32 0.0, %v5115
    %v5117 = vpop.f32.mrf.mxu0
    %v5118 = vadd.f32 0.0, %v5117
    %5119 = vmatprep.mubr.bf16.mxu0 0
    %5120 = vmatmul.mubr.bf16.gmra.mxu0 %v5075
    %v5121 = vpop.f32.mrf.mxu0
    %v5122 = vadd.f32 0.0, %v5121
    %v5123 = vpop.f32.mrf.mxu0
    %v5124 = vadd.f32 0.0, %v5123
    %v5125 = vpop.f32.mrf.mxu0
    %v5126 = vpop.f32.mrf.mxu0
    %5127 = vdwg.mxu0
    %5128 = vmatprep.subr.bf16.mxu0 0
    %5129 = vmatpush1.bf16.msra.mxu0 %v2108
    %5130 = vmatprep.subr.bf16.mxu0 0
    %5131 = vmatpush1.bf16.msra.mxu0 %v2070
    %5132 = vmatprep.subr.bf16.mxu0 0
    %5133 = vmatpush1.bf16.msra.mxu0 %v2067
    %5134 = vmatprep.subr.bf16.mxu0 0
    %5135 = vmatpush1.bf16.msra.mxu0 %v2064
    %5136 = vmatprep.subr.bf16.mxu0 0
    %5137 = vmatpush1.bf16.msra.mxu0 %v2061
    %5138 = vmatprep.subr.bf16.mxu0 0
    %5139 = vmatpush1.bf16.msra.mxu0 %v2058
    %5140 = vmatprep.subr.bf16.mxu0 0
    %5141 = vmatpush1.bf16.msra.mxu0 %v2055
    %5142 = vmatprep.subr.bf16.mxu0 0
    %5143 = vmatpush1.bf16.msra.mxu0 %v2052
    %5144 = vmatprep.subr.bf16.mxu0 0
    %5145 = vmatpush2.bf16.msra.mxu0 0
    %5146 = vmatprep.subr.bf16.mxu0 0
    %5147 = vmatpush2.bf16.msra.mxu0 0
    %5148 = vmatprep.subr.bf16.mxu0 0
    %5149 = vmatpush2.bf16.msra.mxu0 0
    %5150 = vmatprep.subr.bf16.mxu0 0
    %5151 = vmatpush2.bf16.msra.mxu0 0
    %5152 = vmatprep.subr.bf16.mxu0 0
    %5153 = vmatpush2.bf16.msra.mxu0 0
    %5154 = vmatprep.subr.bf16.mxu0 0
    %5155 = vmatpush2.bf16.msra.mxu0 0
    %5156 = vmatprep.subr.bf16.mxu0 0
    %5157 = vmatpush2.bf16.msra.mxu0 0
    %5158 = vmatprep.subr.bf16.mxu0 0
    %5159 = vmatpush2.bf16.msra.mxu0 0
    %5160 = vmatprep.mubr.bf16.mxu0 0
    %5161 = vmatmul.mubr.bf16.gmra.mxu0 %v5072
    %v5162 = vpop.f32.mrf.mxu0
    %v5163 = vadd.f32 0.0, %v5162
    %v5164 = vpop.f32.mrf.mxu0
    %v5165 = vpop.f32.mrf.mxu0
    %v5166 = vadd.f32 0.0, %v5165
    %v5167 = vpop.f32.mrf.mxu0
    %5168 = vmatprep.mubr.bf16.mxu0 0
    %5169 = vmatmul.mubr.bf16.gmra.mxu0 %v5075
    %v5170 = vpop.f32.mrf.mxu0
    %v5171 = vadd.f32 0.0, %v5170
    %v5172 = vpop.f32.mrf.mxu0
    %v5173 = vpop.f32.mrf.mxu0
    %v5174 = vpop.f32.mrf.mxu0
    %5175 = vdwg.mxu0
    %v5176 = vrot.slane %v4945, 2
    %v5177 = vrot.slane %v4947, 3
    %v5178 = vor.u32 %v5176, %v5177
    %v5179 = vrot.slane %v4956, 2
    %v5180 = vrot.slane %v4952, 3
    %v5181 = vor.u32 %v5179, %v5180
    %v5182 = vsel %vm498, %v5178, %v5181
    %v5184 = vsel %vm1790, %v5182, 0
    %v5187 = vsel %vm1790, %v5181, 0
    %5189 = vmatprep.subr.bf16.mxu0 %v2408
    %5190 = vmatpush1.bf16.msra.mxu0 %v2405
    %5191 = vmatprep.subr.bf16.mxu0 %v2372
    %5192 = vmatpush1.bf16.msra.mxu0 %v2371
    %5193 = vmatprep.subr.bf16.mxu0 %v2369
    %5194 = vmatpush1.bf16.msra.mxu0 %v2368
    %5195 = vmatprep.subr.bf16.mxu0 %v2366
    %5196 = vmatpush1.bf16.msra.mxu0 %v2365
    %5197 = vmatprep.subr.bf16.mxu0 %v2363
    %5198 = vmatpush1.bf16.msra.mxu0 %v2362
    %5199 = vmatprep.subr.bf16.mxu0 %v2360
    %5200 = vmatpush1.bf16.msra.mxu0 %v2359
    %5201 = vmatprep.subr.bf16.mxu0 %v2357
    %5202 = vmatpush1.bf16.msra.mxu0 %v2356
    %5203 = vmatprep.subr.bf16.mxu0 %v2354
    %5204 = vmatpush1.bf16.msra.mxu0 %v2353
    %5205 = vmatprep.subr.bf16.mxu0 0
    %5206 = vmatpush2.bf16.msra.mxu0 0
    %5207 = vmatprep.subr.bf16.mxu0 0
    %5208 = vmatpush2.bf16.msra.mxu0 0
    %5209 = vmatprep.subr.bf16.mxu0 0
    %5210 = vmatpush2.bf16.msra.mxu0 0
    %5211 = vmatprep.subr.bf16.mxu0 0
    %5212 = vmatpush2.bf16.msra.mxu0 0
    %5213 = vmatprep.subr.bf16.mxu0 0
    %5214 = vmatpush2.bf16.msra.mxu0 0
    %5215 = vmatprep.subr.bf16.mxu0 0
    %5216 = vmatpush2.bf16.msra.mxu0 0
    %5217 = vmatprep.subr.bf16.mxu0 0
    %5218 = vmatpush2.bf16.msra.mxu0 0
    %5219 = vmatprep.subr.bf16.mxu0 0
    %5220 = vmatpush2.bf16.msra.mxu0 0
    %5221 = vmatprep.mubr.bf16.mxu0 0
    %5222 = vmatmul.mubr.bf16.gmra.mxu0 %v5184
    %v5223 = vpop.f32.mrf.mxu0
    %v5224 = vadd.f32 0.0, %v5223
    %v5225 = vpop.f32.mrf.mxu0
    %v5226 = vadd.f32 0.0, %v5225
    %v5227 = vpop.f32.mrf.mxu0
    %v5228 = vadd.f32 0.0, %v5227
    %v5229 = vpop.f32.mrf.mxu0
    %v5230 = vadd.f32 0.0, %v5229
    %5231 = vmatprep.mubr.bf16.mxu0 0
    %5232 = vmatmul.mubr.bf16.gmra.mxu0 %v5187
    %v5233 = vpop.f32.mrf.mxu0
    %v5234 = vadd.f32 0.0, %v5233
    %v5235 = vpop.f32.mrf.mxu0
    %v5236 = vadd.f32 0.0, %v5235
    %v5237 = vpop.f32.mrf.mxu0
    %v5238 = vpop.f32.mrf.mxu0
    %5239 = vdwg.mxu0
    %5240 = vmatprep.subr.bf16.mxu0 0
    %5241 = vmatpush1.bf16.msra.mxu0 %v2411
    %5242 = vmatprep.subr.bf16.mxu0 0
    %5243 = vmatpush1.bf16.msra.mxu0 %v2373
    %5244 = vmatprep.subr.bf16.mxu0 0
    %5245 = vmatpush1.bf16.msra.mxu0 %v2370
    %5246 = vmatprep.subr.bf16.mxu0 0
    %5247 = vmatpush1.bf16.msra.mxu0 %v2367
    %5248 = vmatprep.subr.bf16.mxu0 0
    %5249 = vmatpush1.bf16.msra.mxu0 %v2364
    %5250 = vmatprep.subr.bf16.mxu0 0
    %5251 = vmatpush1.bf16.msra.mxu0 %v2361
    %5252 = vmatprep.subr.bf16.mxu0 0
    %5253 = vmatpush1.bf16.msra.mxu0 %v2358
    %5254 = vmatprep.subr.bf16.mxu0 0
    %5255 = vmatpush1.bf16.msra.mxu0 %v2355
    %5256 = vmatprep.subr.bf16.mxu0 0
    %5257 = vmatpush2.bf16.msra.mxu0 0
    %5258 = vmatprep.subr.bf16.mxu0 0
    %5259 = vmatpush2.bf16.msra.mxu0 0
    %5260 = vmatprep.subr.bf16.mxu0 0
    %5261 = vmatpush2.bf16.msra.mxu0 0
    %5262 = vmatprep.subr.bf16.mxu0 0
    %5263 = vmatpush2.bf16.msra.mxu0 0
    %5264 = vmatprep.subr.bf16.mxu0 0
    %5265 = vmatpush2.bf16.msra.mxu0 0
    %5266 = vmatprep.subr.bf16.mxu0 0
    %5267 = vmatpush2.bf16.msra.mxu0 0
    %5268 = vmatprep.subr.bf16.mxu0 0
    %5269 = vmatpush2.bf16.msra.mxu0 0
    %5270 = vmatprep.subr.bf16.mxu0 0
    %5271 = vmatpush2.bf16.msra.mxu0 0
    %5272 = vmatprep.mubr.bf16.mxu0 0
    %5273 = vmatmul.mubr.bf16.gmra.mxu0 %v5184
    %v5274 = vpop.f32.mrf.mxu0
    %v5275 = vadd.f32 0.0, %v5274
    %v5276 = vpop.f32.mrf.mxu0
    %v5277 = vpop.f32.mrf.mxu0
    %v5278 = vadd.f32 0.0, %v5277
    %v5279 = vpop.f32.mrf.mxu0
    %5280 = vmatprep.mubr.bf16.mxu0 0
    %5281 = vmatmul.mubr.bf16.gmra.mxu0 %v5187
    %v5282 = vpop.f32.mrf.mxu0
    %v5283 = vadd.f32 0.0, %v5282
    %v5284 = vpop.f32.mrf.mxu0
    %v5285 = vpop.f32.mrf.mxu0
    %v5286 = vpop.f32.mrf.mxu0
    %5287 = vdwg.mxu0
    %v5290 = vrot.slane %v4941, 3
    %v5291 = vrot.slane %v4943, 3
    %v5292 = vsel %vm650, %v5290, %v5291
    %v5294 = vsel %vm1790, %v5292, 0
    %v5297 = vsel %vm1790, %v5291, 0
    %5299 = vmatprep.subr.bf16.mxu0 %v2678
    %5300 = vmatpush1.bf16.msra.mxu0 %v2675
    %5301 = vmatprep.subr.bf16.mxu0 %v2642
    %5302 = vmatpush1.bf16.msra.mxu0 %v2641
    %5303 = vmatprep.subr.bf16.mxu0 %v2639
    %5304 = vmatpush1.bf16.msra.mxu0 %v2638
    %5305 = vmatprep.subr.bf16.mxu0 %v2636
    %5306 = vmatpush1.bf16.msra.mxu0 %v2635
    %5307 = vmatprep.subr.bf16.mxu0 %v2633
    %5308 = vmatpush1.bf16.msra.mxu0 %v2632
    %5309 = vmatprep.subr.bf16.mxu0 %v2630
    %5310 = vmatpush1.bf16.msra.mxu0 %v2629
    %5311 = vmatprep.subr.bf16.mxu0 %v2627
    %5312 = vmatpush1.bf16.msra.mxu0 %v2626
    %5313 = vmatprep.subr.bf16.mxu0 %v2624
    %5314 = vmatpush1.bf16.msra.mxu0 %v2623
    %5315 = vmatprep.subr.bf16.mxu0 0
    %5316 = vmatpush2.bf16.msra.mxu0 0
    %5317 = vmatprep.subr.bf16.mxu0 0
    %5318 = vmatpush2.bf16.msra.mxu0 0
    %5319 = vmatprep.subr.bf16.mxu0 0
    %5320 = vmatpush2.bf16.msra.mxu0 0
    %5321 = vmatprep.subr.bf16.mxu0 0
    %5322 = vmatpush2.bf16.msra.mxu0 0
    %5323 = vmatprep.subr.bf16.mxu0 0
    %5324 = vmatpush2.bf16.msra.mxu0 0
    %5325 = vmatprep.subr.bf16.mxu0 0
    %5326 = vmatpush2.bf16.msra.mxu0 0
    %5327 = vmatprep.subr.bf16.mxu0 0
    %5328 = vmatpush2.bf16.msra.mxu0 0
    %5329 = vmatprep.subr.bf16.mxu0 0
    %5330 = vmatpush2.bf16.msra.mxu0 0
    %5331 = vmatprep.mubr.bf16.mxu0 0
    %5332 = vmatmul.mubr.bf16.gmra.mxu0 %v5294
    %v5333 = vpop.f32.mrf.mxu0
    %v5334 = vadd.f32 0.0, %v5333
    %v5335 = vpop.f32.mrf.mxu0
    %v5336 = vadd.f32 0.0, %v5335
    %v5337 = vpop.f32.mrf.mxu0
    %v5338 = vadd.f32 0.0, %v5337
    %v5339 = vpop.f32.mrf.mxu0
    %v5340 = vadd.f32 0.0, %v5339
    %5341 = vmatprep.mubr.bf16.mxu0 0
    %5342 = vmatmul.mubr.bf16.gmra.mxu0 %v5297
    %v5343 = vpop.f32.mrf.mxu0
    %v5344 = vadd.f32 0.0, %v5343
    %v5345 = vpop.f32.mrf.mxu0
    %v5346 = vadd.f32 0.0, %v5345
    %v5347 = vpop.f32.mrf.mxu0
    %v5348 = vpop.f32.mrf.mxu0
    %5349 = vdwg.mxu0
    %5350 = vmatprep.subr.bf16.mxu0 0
    %5351 = vmatpush1.bf16.msra.mxu0 %v2681
    %5352 = vmatprep.subr.bf16.mxu0 0
    %5353 = vmatpush1.bf16.msra.mxu0 %v2643
    %5354 = vmatprep.subr.bf16.mxu0 0
    %5355 = vmatpush1.bf16.msra.mxu0 %v2640
    %5356 = vmatprep.subr.bf16.mxu0 0
    %5357 = vmatpush1.bf16.msra.mxu0 %v2637
    %5358 = vmatprep.subr.bf16.mxu0 0
    %5359 = vmatpush1.bf16.msra.mxu0 %v2634
    %5360 = vmatprep.subr.bf16.mxu0 0
    %5361 = vmatpush1.bf16.msra.mxu0 %v2631
    %5362 = vmatprep.subr.bf16.mxu0 0
    %5363 = vmatpush1.bf16.msra.mxu0 %v2628
    %5364 = vmatprep.subr.bf16.mxu0 0
    %5365 = vmatpush1.bf16.msra.mxu0 %v2625
    %5366 = vmatprep.subr.bf16.mxu0 0
    %5367 = vmatpush2.bf16.msra.mxu0 0
    %5368 = vmatprep.subr.bf16.mxu0 0
    %5369 = vmatpush2.bf16.msra.mxu0 0
    %5370 = vmatprep.subr.bf16.mxu0 0
    %5371 = vmatpush2.bf16.msra.mxu0 0
    %5372 = vmatprep.subr.bf16.mxu0 0
    %5373 = vmatpush2.bf16.msra.mxu0 0
    %5374 = vmatprep.subr.bf16.mxu0 0
    %5375 = vmatpush2.bf16.msra.mxu0 0
    %5376 = vmatprep.subr.bf16.mxu0 0
    %5377 = vmatpush2.bf16.msra.mxu0 0
    %5378 = vmatprep.subr.bf16.mxu0 0
    %5379 = vmatpush2.bf16.msra.mxu0 0
    %5380 = vmatprep.subr.bf16.mxu0 0
    %5381 = vmatpush2.bf16.msra.mxu0 0
    %5382 = vmatprep.mubr.bf16.mxu0 0
    %5383 = vmatmul.mubr.bf16.gmra.mxu0 %v5294
    %v5384 = vpop.f32.mrf.mxu0
    %v5385 = vadd.f32 0.0, %v5384
    %v5386 = vpop.f32.mrf.mxu0
    %v5387 = vpop.f32.mrf.mxu0
    %v5388 = vadd.f32 0.0, %v5387
    %v5389 = vpop.f32.mrf.mxu0
    %5390 = vmatprep.mubr.bf16.mxu0 0
    %5391 = vmatmul.mubr.bf16.gmra.mxu0 %v5297
    %v5392 = vpop.f32.mrf.mxu0
    %v5393 = vadd.f32 0.0, %v5392
    %v5394 = vpop.f32.mrf.mxu0
    %v5395 = vpop.f32.mrf.mxu0
    %v5396 = vpop.f32.mrf.mxu0
    %5397 = vdwg.mxu0
    %v5398 = vsel %vm1790, %v4941, 0
    %v5401 = vsel %vm1790, %v4942, 0
    %5403 = vmatprep.subr.bf16.mxu0 %v2911
    %5404 = vmatpush1.bf16.msra.mxu0 %v2908
    %5405 = vmatprep.subr.bf16.mxu0 %v2876
    %5406 = vmatpush1.bf16.msra.mxu0 %v2875
    %5407 = vmatprep.subr.bf16.mxu0 %v2873
    %5408 = vmatpush1.bf16.msra.mxu0 %v2872
    %5409 = vmatprep.subr.bf16.mxu0 %v2870
    %5410 = vmatpush1.bf16.msra.mxu0 %v2869
    %5411 = vmatprep.subr.bf16.mxu0 %v2867
    %5412 = vmatpush1.bf16.msra.mxu0 %v2866
    %5413 = vmatprep.subr.bf16.mxu0 %v2864
    %5414 = vmatpush1.bf16.msra.mxu0 %v2863
    %5415 = vmatprep.subr.bf16.mxu0 %v2861
    %5416 = vmatpush1.bf16.msra.mxu0 %v2860
    %5417 = vmatprep.subr.bf16.mxu0 %v2858
    %5418 = vmatpush1.bf16.msra.mxu0 %v2857
    %5419 = vmatprep.subr.bf16.mxu0 0
    %5420 = vmatpush2.bf16.msra.mxu0 0
    %5421 = vmatprep.subr.bf16.mxu0 0
    %5422 = vmatpush2.bf16.msra.mxu0 0
    %5423 = vmatprep.subr.bf16.mxu0 0
    %5424 = vmatpush2.bf16.msra.mxu0 0
    %5425 = vmatprep.subr.bf16.mxu0 0
    %5426 = vmatpush2.bf16.msra.mxu0 0
    %5427 = vmatprep.subr.bf16.mxu0 0
    %5428 = vmatpush2.bf16.msra.mxu0 0
    %5429 = vmatprep.subr.bf16.mxu0 0
    %5430 = vmatpush2.bf16.msra.mxu0 0
    %5431 = vmatprep.subr.bf16.mxu0 0
    %5432 = vmatpush2.bf16.msra.mxu0 0
    %5433 = vmatprep.subr.bf16.mxu0 0
    %5434 = vmatpush2.bf16.msra.mxu0 0
    %5435 = vmatprep.mubr.bf16.mxu0 0
    %5436 = vmatmul.mubr.bf16.gmra.mxu0 %v5398
    %v5437 = vpop.f32.mrf.mxu0
    %v5438 = vadd.f32 %v5000, %v5437
    %v5439 = vpop.f32.mrf.mxu0
    %v5440 = vadd.f32 %v5002, %v5439
    %v5441 = vpop.f32.mrf.mxu0
    %v5442 = vadd.f32 %v5004, %v5441
    %v5443 = vpop.f32.mrf.mxu0
    %v5444 = vadd.f32 %v5006, %v5443
    %5445 = vmatprep.mubr.bf16.mxu0 0
    %5446 = vmatmul.mubr.bf16.gmra.mxu0 %v5401
    %v5447 = vpop.f32.mrf.mxu0
    %v5448 = vadd.f32 %v5010, %v5447
    %v5449 = vpop.f32.mrf.mxu0
    %v5450 = vadd.f32 %v5012, %v5449
    %v5451 = vpop.f32.mrf.mxu0
    %v5452 = vpop.f32.mrf.mxu0
    %5453 = vdwg.mxu0
    %5454 = vmatprep.subr.bf16.mxu0 0
    %5455 = vmatpush1.bf16.msra.mxu0 %v2914
    %5456 = vmatprep.subr.bf16.mxu0 0
    %5457 = vmatpush1.bf16.msra.mxu0 %v2877
    %5458 = vmatprep.subr.bf16.mxu0 0
    %5459 = vmatpush1.bf16.msra.mxu0 %v2874
    %5460 = vmatprep.subr.bf16.mxu0 0
    %5461 = vmatpush1.bf16.msra.mxu0 %v2871
    %5462 = vmatprep.subr.bf16.mxu0 0
    %5463 = vmatpush1.bf16.msra.mxu0 %v2868
    %5464 = vmatprep.subr.bf16.mxu0 0
    %5465 = vmatpush1.bf16.msra.mxu0 %v2865
    %5466 = vmatprep.subr.bf16.mxu0 0
    %5467 = vmatpush1.bf16.msra.mxu0 %v2862
    %5468 = vmatprep.subr.bf16.mxu0 0
    %5469 = vmatpush1.bf16.msra.mxu0 %v2859
    %5470 = vmatprep.subr.bf16.mxu0 0
    %5471 = vmatpush2.bf16.msra.mxu0 0
    %5472 = vmatprep.subr.bf16.mxu0 0
    %5473 = vmatpush2.bf16.msra.mxu0 0
    %5474 = vmatprep.subr.bf16.mxu0 0
    %5475 = vmatpush2.bf16.msra.mxu0 0
    %5476 = vmatprep.subr.bf16.mxu0 0
    %5477 = vmatpush2.bf16.msra.mxu0 0
    %5478 = vmatprep.subr.bf16.mxu0 0
    %5479 = vmatpush2.bf16.msra.mxu0 0
    %5480 = vmatprep.subr.bf16.mxu0 0
    %5481 = vmatpush2.bf16.msra.mxu0 0
    %5482 = vmatprep.subr.bf16.mxu0 0
    %5483 = vmatpush2.bf16.msra.mxu0 0
    %5484 = vmatprep.subr.bf16.mxu0 0
    %5485 = vmatpush2.bf16.msra.mxu0 0
    %5486 = vmatprep.mubr.bf16.mxu0 0
    %5487 = vmatmul.mubr.bf16.gmra.mxu0 %v5398
    %v5488 = vpop.f32.mrf.mxu0
    %v5489 = vadd.f32 %v5051, %v5488
    %v5490 = vpop.f32.mrf.mxu0
    %v5491 = vpop.f32.mrf.mxu0
    %v5492 = vadd.f32 %v5054, %v5491
    %v5493 = vpop.f32.mrf.mxu0
    %5494 = vmatprep.mubr.bf16.mxu0 0
    %5495 = vmatmul.mubr.bf16.gmra.mxu0 %v5401
    %v5496 = vpop.f32.mrf.mxu0
    %v5497 = vadd.f32 %v5059, %v5496
    %v5498 = vpop.f32.mrf.mxu0
    %v5499 = vpop.f32.mrf.mxu0
    %v5500 = vpop.f32.mrf.mxu0
    %5501 = vdwg.mxu0
    %v5502 = vrot.slane %v4941, 1
    %v5503 = vrot.slane %v4943, 1
    %v5504 = vsel %vm894, %v5502, %v5503
    %v5506 = vsel %vm1790, %v5504, 0
    %v5509 = vsel %vm1790, %v5503, 0
    %5511 = vmatprep.subr.bf16.mxu0 %v3148
    %5512 = vmatpush1.bf16.msra.mxu0 %v3145
    %5513 = vmatprep.subr.bf16.mxu0 %v3112
    %5514 = vmatpush1.bf16.msra.mxu0 %v3111
    %5515 = vmatprep.subr.bf16.mxu0 %v3109
    %5516 = vmatpush1.bf16.msra.mxu0 %v3108
    %5517 = vmatprep.subr.bf16.mxu0 %v3106
    %5518 = vmatpush1.bf16.msra.mxu0 %v3105
    %5519 = vmatprep.subr.bf16.mxu0 %v3103
    %5520 = vmatpush1.bf16.msra.mxu0 %v3102
    %5521 = vmatprep.subr.bf16.mxu0 %v3100
    %5522 = vmatpush1.bf16.msra.mxu0 %v3099
    %5523 = vmatprep.subr.bf16.mxu0 %v3097
    %5524 = vmatpush1.bf16.msra.mxu0 %v3096
    %5525 = vmatprep.subr.bf16.mxu0 %v3094
    %5526 = vmatpush1.bf16.msra.mxu0 %v3093
    %5527 = vmatprep.subr.bf16.mxu0 0
    %5528 = vmatpush2.bf16.msra.mxu0 0
    %5529 = vmatprep.subr.bf16.mxu0 0
    %5530 = vmatpush2.bf16.msra.mxu0 0
    %5531 = vmatprep.subr.bf16.mxu0 0
    %5532 = vmatpush2.bf16.msra.mxu0 0
    %5533 = vmatprep.subr.bf16.mxu0 0
    %5534 = vmatpush2.bf16.msra.mxu0 0
    %5535 = vmatprep.subr.bf16.mxu0 0
    %5536 = vmatpush2.bf16.msra.mxu0 0
    %5537 = vmatprep.subr.bf16.mxu0 0
    %5538 = vmatpush2.bf16.msra.mxu0 0
    %5539 = vmatprep.subr.bf16.mxu0 0
    %5540 = vmatpush2.bf16.msra.mxu0 0
    %5541 = vmatprep.subr.bf16.mxu0 0
    %5542 = vmatpush2.bf16.msra.mxu0 0
    %5543 = vmatprep.mubr.bf16.mxu0 0
    %5544 = vmatmul.mubr.bf16.gmra.mxu0 %v5506
    %v5545 = vpop.f32.mrf.mxu0
    %v5546 = vadd.f32 %v5112, %v5545
    %v5547 = vpop.f32.mrf.mxu0
    %v5548 = vadd.f32 %v5114, %v5547
    %v5549 = vpop.f32.mrf.mxu0
    %v5550 = vadd.f32 %v5116, %v5549
    %v5551 = vpop.f32.mrf.mxu0
    %v5552 = vadd.f32 %v5118, %v5551
    %5553 = vmatprep.mubr.bf16.mxu0 0
    %5554 = vmatmul.mubr.bf16.gmra.mxu0 %v5509
    %v5555 = vpop.f32.mrf.mxu0
    %v5556 = vadd.f32 %v5122, %v5555
    %v5557 = vpop.f32.mrf.mxu0
    %v5558 = vadd.f32 %v5124, %v5557
    %v5559 = vpop.f32.mrf.mxu0
    %v5560 = vpop.f32.mrf.mxu0
    %5561 = vdwg.mxu0
    %5562 = vmatprep.subr.bf16.mxu0 0
    %5563 = vmatpush1.bf16.msra.mxu0 %v3151
    %5564 = vmatprep.subr.bf16.mxu0 0
    %5565 = vmatpush1.bf16.msra.mxu0 %v3113
    %5566 = vmatprep.subr.bf16.mxu0 0
    %5567 = vmatpush1.bf16.msra.mxu0 %v3110
    %5568 = vmatprep.subr.bf16.mxu0 0
    %5569 = vmatpush1.bf16.msra.mxu0 %v3107
    %5570 = vmatprep.subr.bf16.mxu0 0
    %5571 = vmatpush1.bf16.msra.mxu0 %v3104
    %5572 = vmatprep.subr.bf16.mxu0 0
    %5573 = vmatpush1.bf16.msra.mxu0 %v3101
    %5574 = vmatprep.subr.bf16.mxu0 0
    %5575 = vmatpush1.bf16.msra.mxu0 %v3098
    %5576 = vmatprep.subr.bf16.mxu0 0
    %5577 = vmatpush1.bf16.msra.mxu0 %v3095
    %5578 = vmatprep.subr.bf16.mxu0 0
    %5579 = vmatpush2.bf16.msra.mxu0 0
    %5580 = vmatprep.subr.bf16.mxu0 0
    %5581 = vmatpush2.bf16.msra.mxu0 0
    %5582 = vmatprep.subr.bf16.mxu0 0
    %5583 = vmatpush2.bf16.msra.mxu0 0
    %5584 = vmatprep.subr.bf16.mxu0 0
    %5585 = vmatpush2.bf16.msra.mxu0 0
    %5586 = vmatprep.subr.bf16.mxu0 0
    %5587 = vmatpush2.bf16.msra.mxu0 0
    %5588 = vmatprep.subr.bf16.mxu0 0
    %5589 = vmatpush2.bf16.msra.mxu0 0
    %5590 = vmatprep.subr.bf16.mxu0 0
    %5591 = vmatpush2.bf16.msra.mxu0 0
    %5592 = vmatprep.subr.bf16.mxu0 0
    %5593 = vmatpush2.bf16.msra.mxu0 0
    %5594 = vmatprep.mubr.bf16.mxu0 0
    %5595 = vmatmul.mubr.bf16.gmra.mxu0 %v5506
    %v5596 = vpop.f32.mrf.mxu0
    %v5597 = vadd.f32 %v5163, %v5596
    %v5598 = vpop.f32.mrf.mxu0
    %v5599 = vpop.f32.mrf.mxu0
    %v5600 = vadd.f32 %v5166, %v5599
    %v5601 = vpop.f32.mrf.mxu0
    %5602 = vmatprep.mubr.bf16.mxu0 0
    %5603 = vmatmul.mubr.bf16.gmra.mxu0 %v5509
    %v5604 = vpop.f32.mrf.mxu0
    %v5605 = vadd.f32 %v5171, %v5604
    %v5606 = vpop.f32.mrf.mxu0
    %v5607 = vpop.f32.mrf.mxu0
    %v5608 = vpop.f32.mrf.mxu0
    %5609 = vdwg.mxu0
    %v5610 = vadd.f32 %v5438, %v5546
    %v5611 = vadd.f32 %v5440, %v5548
    %v5612 = vadd.f32 %v5489, %v5597
    %v5613 = vadd.f32 %v5442, %v5550
    %v5614 = vadd.f32 %v5444, %v5552
    %v5615 = vadd.f32 %v5492, %v5600
    %v5616 = vadd.f32 %v5448, %v5556
    %v5617 = vadd.f32 %v5450, %v5558
    %v5618 = vadd.f32 %v5497, %v5605
    %v5619 = vrot.slane %v4941, 2
    %v5620 = vrot.slane %v4943, 2
    %v5621 = vsel %vm1037, %v5619, %v5620
    %v5623 = vsel %vm1790, %v5621, 0
    %v5626 = vsel %vm1790, %v5620, 0
    %5628 = vmatprep.subr.bf16.mxu0 %v3394
    %5629 = vmatpush1.bf16.msra.mxu0 %v3391
    %5630 = vmatprep.subr.bf16.mxu0 %v3358
    %5631 = vmatpush1.bf16.msra.mxu0 %v3357
    %5632 = vmatprep.subr.bf16.mxu0 %v3355
    %5633 = vmatpush1.bf16.msra.mxu0 %v3354
    %5634 = vmatprep.subr.bf16.mxu0 %v3352
    %5635 = vmatpush1.bf16.msra.mxu0 %v3351
    %5636 = vmatprep.subr.bf16.mxu0 %v3349
    %5637 = vmatpush1.bf16.msra.mxu0 %v3348
    %5638 = vmatprep.subr.bf16.mxu0 %v3346
    %5639 = vmatpush1.bf16.msra.mxu0 %v3345
    %5640 = vmatprep.subr.bf16.mxu0 %v3343
    %5641 = vmatpush1.bf16.msra.mxu0 %v3342
    %5642 = vmatprep.subr.bf16.mxu0 %v3340
    %5643 = vmatpush1.bf16.msra.mxu0 %v3339
    %5644 = vmatprep.subr.bf16.mxu0 0
    %5645 = vmatpush2.bf16.msra.mxu0 0
    %5646 = vmatprep.subr.bf16.mxu0 0
    %5647 = vmatpush2.bf16.msra.mxu0 0
    %5648 = vmatprep.subr.bf16.mxu0 0
    %5649 = vmatpush2.bf16.msra.mxu0 0
    %5650 = vmatprep.subr.bf16.mxu0 0
    %5651 = vmatpush2.bf16.msra.mxu0 0
    %5652 = vmatprep.subr.bf16.mxu0 0
    %5653 = vmatpush2.bf16.msra.mxu0 0
    %5654 = vmatprep.subr.bf16.mxu0 0
    %5655 = vmatpush2.bf16.msra.mxu0 0
    %5656 = vmatprep.subr.bf16.mxu0 0
    %5657 = vmatpush2.bf16.msra.mxu0 0
    %5658 = vmatprep.subr.bf16.mxu0 0
    %5659 = vmatpush2.bf16.msra.mxu0 0
    %5660 = vmatprep.mubr.bf16.mxu0 0
    %5661 = vmatmul.mubr.bf16.gmra.mxu0 %v5623
    %v5662 = vpop.f32.mrf.mxu0
    %v5663 = vadd.f32 %v5224, %v5662
    %v5664 = vpop.f32.mrf.mxu0
    %v5665 = vadd.f32 %v5226, %v5664
    %v5666 = vpop.f32.mrf.mxu0
    %v5667 = vadd.f32 %v5228, %v5666
    %v5668 = vpop.f32.mrf.mxu0
    %v5669 = vadd.f32 %v5230, %v5668
    %5670 = vmatprep.mubr.bf16.mxu0 0
    %5671 = vmatmul.mubr.bf16.gmra.mxu0 %v5626
    %v5672 = vpop.f32.mrf.mxu0
    %v5673 = vadd.f32 %v5234, %v5672
    %v5674 = vpop.f32.mrf.mxu0
    %v5675 = vadd.f32 %v5236, %v5674
    %v5676 = vpop.f32.mrf.mxu0
    %v5677 = vpop.f32.mrf.mxu0
    %5678 = vdwg.mxu0
    %5679 = vmatprep.subr.bf16.mxu0 0
    %5680 = vmatpush1.bf16.msra.mxu0 %v3397
    %5681 = vmatprep.subr.bf16.mxu0 0
    %5682 = vmatpush1.bf16.msra.mxu0 %v3359
    %5683 = vmatprep.subr.bf16.mxu0 0
    %5684 = vmatpush1.bf16.msra.mxu0 %v3356
    %5685 = vmatprep.subr.bf16.mxu0 0
    %5686 = vmatpush1.bf16.msra.mxu0 %v3353
    %5687 = vmatprep.subr.bf16.mxu0 0
    %5688 = vmatpush1.bf16.msra.mxu0 %v3350
    %5689 = vmatprep.subr.bf16.mxu0 0
    %5690 = vmatpush1.bf16.msra.mxu0 %v3347
    %5691 = vmatprep.subr.bf16.mxu0 0
    %5692 = vmatpush1.bf16.msra.mxu0 %v3344
    %5693 = vmatprep.subr.bf16.mxu0 0
    %5694 = vmatpush1.bf16.msra.mxu0 %v3341
    %5695 = vmatprep.subr.bf16.mxu0 0
    %5696 = vmatpush2.bf16.msra.mxu0 0
    %5697 = vmatprep.subr.bf16.mxu0 0
    %5698 = vmatpush2.bf16.msra.mxu0 0
    %5699 = vmatprep.subr.bf16.mxu0 0
    %5700 = vmatpush2.bf16.msra.mxu0 0
    %5701 = vmatprep.subr.bf16.mxu0 0
    %5702 = vmatpush2.bf16.msra.mxu0 0
    %5703 = vmatprep.subr.bf16.mxu0 0
    %5704 = vmatpush2.bf16.msra.mxu0 0
    %5705 = vmatprep.subr.bf16.mxu0 0
    %5706 = vmatpush2.bf16.msra.mxu0 0
    %5707 = vmatprep.subr.bf16.mxu0 0
    %5708 = vmatpush2.bf16.msra.mxu0 0
    %5709 = vmatprep.subr.bf16.mxu0 0
    %5710 = vmatpush2.bf16.msra.mxu0 0
    %5711 = vmatprep.mubr.bf16.mxu0 0
    %5712 = vmatmul.mubr.bf16.gmra.mxu0 %v5623
    %v5713 = vpop.f32.mrf.mxu0
    %v5714 = vadd.f32 %v5275, %v5713
    %v5715 = vpop.f32.mrf.mxu0
    %v5716 = vpop.f32.mrf.mxu0
    %v5717 = vadd.f32 %v5278, %v5716
    %v5718 = vpop.f32.mrf.mxu0
    %5719 = vmatprep.mubr.bf16.mxu0 0
    %5720 = vmatmul.mubr.bf16.gmra.mxu0 %v5626
    %v5721 = vpop.f32.mrf.mxu0
    %v5722 = vadd.f32 %v5283, %v5721
    %v5723 = vpop.f32.mrf.mxu0
    %v5724 = vpop.f32.mrf.mxu0
    %v5725 = vpop.f32.mrf.mxu0
    %5726 = vdwg.mxu0
    %v5727 = vadd.f32 %v5663, %v5334
    %v5728 = vadd.f32 %v5665, %v5336
    %v5729 = vadd.f32 %v5714, %v5385
    %v5730 = vadd.f32 %v5667, %v5338
    %v5731 = vadd.f32 %v5669, %v5340
    %v5732 = vadd.f32 %v5717, %v5388
    %v5733 = vadd.f32 %v5673, %v5344
    %v5734 = vadd.f32 %v5675, %v5346
    %v5735 = vadd.f32 %v5722, %v5393
    %v5736 = vadd.f32 %v5610, %v5727
    %v5737 = vadd.f32 %v5611, %v5728
    %v5738 = vadd.f32 %v5612, %v5729
    %v5739 = vadd.f32 %v5613, %v5730
    %v5740 = vadd.f32 %v5614, %v5731
    %v5741 = vadd.f32 %v5615, %v5732
    %v5742 = vadd.f32 %v5616, %v5733
    %v5743 = vadd.f32 %v5617, %v5734
    %v5744 = vadd.f32 %v5618, %v5735
    %v5745 = vadd.f32 %v5736, %v46
    %v5746 = vadd.f32 %v5737, %v50
    %v5747 = vadd.f32 %v5738, %v54
    %v5748 = vadd.f32 %v5739, %v46
    %v5749 = vadd.f32 %v5740, %v50
    %v5750 = vadd.f32 %v5741, %v54
    %v5751 = vadd.f32 %v5742, %v46
    %v5752 = vadd.f32 %v5743, %v50
    %v5753 = vadd.f32 %v5744, %v54
    %v5754 = vmax.f32 %v5745, 0.0
    %v5755 = vmax.f32 %v5746, 0.0
    %v5756 = vmax.f32 %v5747, 0.0
    %v5757 = vmax.f32 %v5748, 0.0
    %v5758 = vmax.f32 %v5749, 0.0
    %v5759 = vmax.f32 %v5750, 0.0
    %v5760 = vmax.f32 %v5751, 0.0
    %v5761 = vmax.f32 %v5752, 0.0
    %v5762 = vmax.f32 %v5753, 0.0
    %v5772 = vrot.slane %v5754, 1
    %v5773 = vrot.slane %v5757, 1
    %v5774 = vsel %vm1244, %v5772, %v5773
    %v5775 = vrot.slane %v5755, 1
    %v5776 = vrot.slane %v5758, 1
    %v5777 = vsel %vm1244, %v5775, %v5776
    %v5778 = vrot.slane %v5756, 1
    %v5779 = vrot.slane %v5759, 1
    %v5780 = vsel %vm1244, %v5778, %v5779
    %v5781 = vrot.slane %v5760, 1
    %v5782 = vsel %vm1244, %v5773, %v5781
    %v5783 = vrot.slane %v5761, 1
    %v5784 = vsel %vm1244, %v5776, %v5783
    %v5785 = vrot.slane %v5762, 1
    %v5786 = vsel %vm1244, %v5779, %v5785
    %v5796 = vmax.f32 %v5754, %v5774
    %v5797 = vmax.f32 %v5755, %v5777
    %v5798 = vmax.f32 %v5756, %v5780
    %v5799 = vmax.f32 %v5757, %v5782
    %v5800 = vmax.f32 %v5758, %v5784
    %v5801 = vmax.f32 %v5759, %v5786
    %v5802 = vmax.f32 %v5760, %v5781
    %v5803 = vmax.f32 %v5761, %v5783
    %v5804 = vmax.f32 %v5762, %v5785
    %5814 = vrot.lane.b32.xlu0 %v5796, 112
    %v5815 = vpop.permute.xlu0 %5814
    %5816 = vrot.lane.b32.xlu0 %v5797, 112
    %v5817 = vpop.permute.xlu0 %5816
    %5818 = vrot.lane.b32.xlu0 %v5798, 112
    %v5819 = vpop.permute.xlu0 %5818
    %5820 = vrot.lane.b32.xlu0 %v5799, 112
    %v5821 = vpop.permute.xlu0 %5820
    %5822 = vrot.lane.b32.xlu0 %v5800, 112
    %v5823 = vpop.permute.xlu0 %5822
    %5824 = vrot.lane.b32.xlu0 %v5801, 112
    %v5825 = vpop.permute.xlu0 %5824
    %5826 = vrot.lane.b32.xlu0 %v5802, 112
    %v5827 = vpop.permute.xlu0 %5826
    %5828 = vrot.lane.b32.xlu0 %v5803, 112
    %v5829 = vpop.permute.xlu0 %5828
    %5830 = vrot.lane.b32.xlu0 %v5804, 112
    %v5831 = vpop.permute.xlu0 %5830
    %v5832 = vsel %vm3603, %v5815, %v5817
    %v5833 = vsel %vm3603, %v5817, %v5819
    %v5834 = vsel %vm3603, %v5821, %v5823
    %v5835 = vsel %vm3603, %v5823, %v5825
    %v5836 = vsel %vm3603, %v5827, %v5829
    %v5837 = vsel %vm3603, %v5829, %v5831
    %v5847 = vmax.f32 %v5796, %v5832
    %v5848 = vmax.f32 %v5797, %v5833
    %v5849 = vmax.f32 %v5798, %v5819
    %v5850 = vmax.f32 %v5799, %v5834
    %v5851 = vmax.f32 %v5800, %v5835
    %v5852 = vmax.f32 %v5801, %v5825
    %v5853 = vmax.f32 %v5802, %v5836
    %v5854 = vmax.f32 %v5803, %v5837
    %v5855 = vmax.f32 %v5804, %v5831
    %v5856 = vpack.c.bf16 %v5850, %v5847
    %v5857 = vpack.c.bf16 %v5851, %v5848
    %v5858 = vpack.c.bf16 %v5852, %v5849
    %v5859 = vpack.c.bf16 %v5853, %v5853
    %v5860 = vpack.c.bf16 %v5854, %v5854
    %v5861 = vpack.c.bf16 %v5855, %v5855
    %v5863 = vsel %vm3804, %v5858, 0
    %v5866 = vsel %vm3804, %v5861, 0
    %5868 = vmatprep.subr.bf16.mxu0 %v3751
    %5869 = vmatpush1.bf16.msra.mxu0 %v3750
    %5870 = vmatprep.subr.bf16.mxu0 %v3749
    %5871 = vmatpush1.bf16.msra.mxu0 %v3748
    %5872 = vmatprep.subr.bf16.mxu0 %v3747
    %5873 = vmatpush1.bf16.msra.mxu0 %v3746
    %5874 = vmatprep.subr.bf16.mxu0 %v3745
    %5875 = vmatpush1.bf16.msra.mxu0 %v3744
    %5876 = vmatprep.subr.bf16.mxu0 %v3743
    %5877 = vmatpush1.bf16.msra.mxu0 %v3742
    %5878 = vmatprep.subr.bf16.mxu0 %v3741
    %5879 = vmatpush1.bf16.msra.mxu0 %v3740
    %5880 = vmatprep.subr.bf16.mxu0 %v3739
    %5881 = vmatpush1.bf16.msra.mxu0 %v3738
    %5882 = vmatprep.subr.bf16.mxu0 %v3737
    %5883 = vmatpush1.bf16.msra.mxu0 %v3736
    %5884 = vmatprep.subr.bf16.mxu0 %v3767
    %5885 = vmatpush2.bf16.msra.mxu0 %v3766
    %5886 = vmatprep.subr.bf16.mxu0 %v3765
    %5887 = vmatpush2.bf16.msra.mxu0 %v3764
    %5888 = vmatprep.subr.bf16.mxu0 %v3763
    %5889 = vmatpush2.bf16.msra.mxu0 %v3762
    %5890 = vmatprep.subr.bf16.mxu0 %v3761
    %5891 = vmatpush2.bf16.msra.mxu0 %v3760
    %5892 = vmatprep.subr.bf16.mxu0 %v3759
    %5893 = vmatpush2.bf16.msra.mxu0 %v3758
    %5894 = vmatprep.subr.bf16.mxu0 %v3757
    %5895 = vmatpush2.bf16.msra.mxu0 %v3756
    %5896 = vmatprep.subr.bf16.mxu0 %v3755
    %5897 = vmatpush2.bf16.msra.mxu0 %v3754
    %5898 = vmatprep.subr.bf16.mxu0 %v3753
    %5899 = vmatpush2.bf16.msra.mxu0 %v3752
    %5900 = vmatprep.mubr.bf16.mxu0 %v5857
    %5901 = vmatmul.mubr.bf16.gmra.mxu0 %v5856
    %v5902 = vpop.f32.mrf.mxu0
    %v5903 = vadd.f32 0.0, %v5902
    %v5904 = vpop.f32.mrf.mxu0
    %v5905 = vadd.f32 0.0, %v5904
    %v5906 = vpop.f32.mrf.mxu0
    %v5907 = vadd.f32 0.0, %v5906
    %v5908 = vpop.f32.mrf.mxu0
    %v5909 = vadd.f32 0.0, %v5908
    %5910 = vmatprep.mubr.bf16.mxu0 %v5860
    %5911 = vmatmul.mubr.bf16.gmra.mxu0 %v5859
    %v5912 = vpop.f32.mrf.mxu0
    %v5913 = vadd.f32 0.0, %v5912
    %v5914 = vpop.f32.mrf.mxu0
    %v5915 = vadd.f32 0.0, %v5914
    %v5916 = vpop.f32.mrf.mxu0
    %v5917 = vpop.f32.mrf.mxu0
    %5918 = vdwg.mxu0
    %5919 = vmatprep.subr.bf16.mxu0 0
    %5920 = vmatpush1.bf16.msra.mxu0 0
    %5921 = vmatprep.subr.bf16.mxu0 0
    %5922 = vmatpush1.bf16.msra.mxu0 0
    %5923 = vmatprep.subr.bf16.mxu0 0
    %5924 = vmatpush1.bf16.msra.mxu0 0
    %5925 = vmatprep.subr.bf16.mxu0 0
    %5926 = vmatpush1.bf16.msra.mxu0 0
    %5927 = vmatprep.subr.bf16.mxu0 0
    %5928 = vmatpush1.bf16.msra.mxu0 0
    %5929 = vmatprep.subr.bf16.mxu0 0
    %5930 = vmatpush1.bf16.msra.mxu0 0
    %5931 = vmatprep.subr.bf16.mxu0 0
    %5932 = vmatpush1.bf16.msra.mxu0 0
    %5933 = vmatprep.subr.bf16.mxu0 %v3769
    %5934 = vmatpush1.bf16.msra.mxu0 %v3768
    %5935 = vmatprep.subr.bf16.mxu0 0
    %5936 = vmatpush2.bf16.msra.mxu0 0
    %5937 = vmatprep.subr.bf16.mxu0 0
    %5938 = vmatpush2.bf16.msra.mxu0 0
    %5939 = vmatprep.subr.bf16.mxu0 0
    %5940 = vmatpush2.bf16.msra.mxu0 0
    %5941 = vmatprep.subr.bf16.mxu0 0
    %5942 = vmatpush2.bf16.msra.mxu0 0
    %5943 = vmatprep.subr.bf16.mxu0 0
    %5944 = vmatpush2.bf16.msra.mxu0 0
    %5945 = vmatprep.subr.bf16.mxu0 0
    %5946 = vmatpush2.bf16.msra.mxu0 0
    %5947 = vmatprep.subr.bf16.mxu0 0
    %5948 = vmatpush2.bf16.msra.mxu0 0
    %5949 = vmatprep.subr.bf16.mxu0 0
    %5950 = vmatpush2.bf16.msra.mxu0 0
    %5951 = vmatprep.mubr.bf16.mxu0 0
    %5952 = vmatmul.mubr.bf16.gmra.mxu0 %v5863
    %v5953 = vpop.f32.mrf.mxu0
    %v5954 = vadd.f32 %v5903, %v5953
    %v5955 = vpop.f32.mrf.mxu0
    %v5956 = vadd.f32 %v5905, %v5955
    %v5957 = vpop.f32.mrf.mxu0
    %v5958 = vadd.f32 %v5907, %v5957
    %v5959 = vpop.f32.mrf.mxu0
    %v5960 = vadd.f32 %v5909, %v5959
    %5961 = vmatprep.mubr.bf16.mxu0 0
    %5962 = vmatmul.mubr.bf16.gmra.mxu0 %v5866
    %v5963 = vpop.f32.mrf.mxu0
    %v5964 = vadd.f32 %v5913, %v5963
    %v5965 = vpop.f32.mrf.mxu0
    %v5966 = vadd.f32 %v5915, %v5965
    %v5967 = vpop.f32.mrf.mxu0
    %v5968 = vpop.f32.mrf.mxu0
    %5969 = vdwg.mxu0
    %v5972 = vrot.slane %v5954, 7
    %v5973 = vrot.slane %v5956, 7
    %vm5976 = vcmask 1040384
    %v5977 = vsel %vm5976, %v3897, %v5972
    %v5978 = vsel %vm5976, %v3899, %v5973
    %v5979 = vpack.c.bf16 %v5977, %v5977
    %v5980 = vpack.c.bf16 %v5978, %v5978
    %v5981 = vld [vmem:[%s5] sm:$0xf]
    %v5982 = vld [vmem:[%s5 + $0x4] sm:$0xf]
    %v5983 = vld [vmem:[%s5 + $0x8] sm:$0xf]
    %v5984 = vld [vmem:[%s5 + $0xc] sm:$0xf]
    %v5985 = vld [vmem:[%s5 + $0x10] sm:$0xf]
    %v5986 = vld [vmem:[%s5 + $0x14] sm:$0xf]
    %v5987 = vld [vmem:[%s5 + $0x18] sm:$0xf]
    %v5988 = vld [vmem:[%s5 + $0x1c] sm:$0xf]
    %v5989 = vld [vmem:[%s5 + $0x20] sm:$0xf]
    %v5990 = vld [vmem:[%s5 + $0x24] sm:$0xf]
    %v5991 = vld [vmem:[%s5 + $0x28] sm:$0xf]
    %v5992 = vld [vmem:[%s5 + $0x2c] sm:$0xf]
    %v5993 = vld [vmem:[%s5 + $0x30] sm:$0xf]
    %v5994 = vld [vmem:[%s5 + $0x34] sm:$0xf]
    %v5995 = vld [vmem:[%s5 + $0x38] sm:$0xf]
    %v5996 = vld [vmem:[%s5 + $0x3c] sm:$0xf]
    %v5997 = vld [vmem:[%s5 + $0x40] sm:$0xf]
    %v5998 = vld [vmem:[%s5 + $0x44] sm:$0xf]
    %v6017 = vunpack.c.l.b16 %v5981
    %v6018 = vunpack.c.l.b16 %v5982
    %v6019 = vunpack.c.l.b16 %v5983
    %v6020 = vunpack.c.l.b16 %v5984
    %v6021 = vunpack.c.l.b16 %v5985
    %v6022 = vunpack.c.l.b16 %v5986
    %v6023 = vunpack.c.l.b16 %v5987
    %v6024 = vunpack.c.l.b16 %v5988
    %v6025 = vunpack.c.l.b16 %v5989
    %v6026 = vunpack.c.l.b16 %v5990
    %v6027 = vunpack.c.l.b16 %v5991
    %v6028 = vunpack.c.l.b16 %v5992
    %v6029 = vunpack.c.l.b16 %v5993
    %v6030 = vunpack.c.l.b16 %v5994
    %v6031 = vunpack.c.l.b16 %v5995
    %v6032 = vunpack.c.l.b16 %v5996
    %v6033 = vunpack.c.l.b16 %v5997
    %v6034 = vunpack.c.l.b16 %v5998
    %v6035 = vpack.c.b16 %v6018, %v6017
    %v6036 = vpack.c.b16 %v6020, %v6019
    %v6037 = vpack.c.b16 %v6022, %v6021
    %v6038 = vpack.c.b16 %v6024, %v6023
    %v6039 = vpack.c.b16 %v6026, %v6025
    %v6040 = vpack.c.b16 %v6028, %v6027
    %v6041 = vpack.c.b16 %v6030, %v6029
    %v6042 = vpack.c.b16 %v6032, %v6031
    %v6043 = vpack.c.b16 %v6034, %v6033
    %v6054 = vsel %vm3804, %v5980, 0
    %6056 = vmatprep.subr.bf16.mxu0 0
    %6057 = vmatpush1.bf16.msra.mxu0 %v6042
    %6058 = vmatprep.subr.bf16.mxu0 0
    %6059 = vmatpush1.bf16.msra.mxu0 %v6041
    %6060 = vmatprep.subr.bf16.mxu0 0
    %6061 = vmatpush1.bf16.msra.mxu0 %v6040
    %6062 = vmatprep.subr.bf16.mxu0 0
    %6063 = vmatpush1.bf16.msra.mxu0 %v6039
    %6064 = vmatprep.subr.bf16.mxu0 0
    %6065 = vmatpush1.bf16.msra.mxu0 %v6038
    %6066 = vmatprep.subr.bf16.mxu0 0
    %6067 = vmatpush1.bf16.msra.mxu0 %v6037
    %6068 = vmatprep.subr.bf16.mxu0 0
    %6069 = vmatpush1.bf16.msra.mxu0 %v6036
    %6070 = vmatprep.subr.bf16.mxu0 0
    %6071 = vmatpush1.bf16.msra.mxu0 %v6035
    %6072 = vmatprep.subr.bf16.mxu0 0
    %6073 = vmatpush2.bf16.msra.mxu0 0
    %6074 = vmatprep.subr.bf16.mxu0 0
    %6075 = vmatpush2.bf16.msra.mxu0 0
    %6076 = vmatprep.subr.bf16.mxu0 0
    %6077 = vmatpush2.bf16.msra.mxu0 0
    %6078 = vmatprep.subr.bf16.mxu0 0
    %6079 = vmatpush2.bf16.msra.mxu0 0
    %6080 = vmatprep.subr.bf16.mxu0 0
    %6081 = vmatpush2.bf16.msra.mxu0 0
    %6082 = vmatprep.subr.bf16.mxu0 0
    %6083 = vmatpush2.bf16.msra.mxu0 0
    %6084 = vmatprep.subr.bf16.mxu0 0
    %6085 = vmatpush2.bf16.msra.mxu0 0
    %6086 = vmatprep.subr.bf16.mxu0 0
    %6087 = vmatpush2.bf16.msra.mxu0 %v6043
    %6088 = vmatprep.mubr.bf16.mxu0 %v6054
    %6089 = vmatmul.mubr.bf16.gmra.mxu0 %v5979
    %v6090 = vpop.f32.mrf.mxu0
    %v6091 = vadd.f32 0.0, %v6090
    %v6092 = vpop.f32.mrf.mxu0
    %v6093 = vpop.f32.mrf.mxu0
    %v6094 = vpop.f32.mrf.mxu0
    %6095 = vdwg.mxu0
    %v6096 = vadd.f32 %v58, %v6091
    %v6099 = vrot.slane %v3897, 2
    %v6100 = vrot.slane %v3899, 2
    %v6103 = vrot.slane %v5954, 1
    %v6104 = vrot.slane %v5956, 1
    %v6107 = vsel %vm5976, %v6099, %v6103
    %v6108 = vsel %vm5976, %v6100, %v6104
    %v6109 = vpack.c.bf16 %v6107, %v6107
    %v6110 = vpack.c.bf16 %v6108, %v6108
    %s6111 = scalar_lea.vmem %s5, 72
    %v6112 = vld [vmem:[%s6111] sm:$0xf]
    %v6113 = vld [vmem:[%s6111 + $0x4] sm:$0xf]
    %v6114 = vld [vmem:[%s6111 + $0x8] sm:$0xf]
    %v6115 = vld [vmem:[%s6111 + $0xc] sm:$0xf]
    %v6116 = vld [vmem:[%s6111 + $0x10] sm:$0xf]
    %v6117 = vld [vmem:[%s6111 + $0x14] sm:$0xf]
    %v6118 = vld [vmem:[%s6111 + $0x18] sm:$0xf]
    %v6119 = vld [vmem:[%s6111 + $0x1c] sm:$0xf]
    %v6120 = vld [vmem:[%s6111 + $0x20] sm:$0xf]
    %v6121 = vld [vmem:[%s6111 + $0x24] sm:$0xf]
    %v6122 = vld [vmem:[%s6111 + $0x28] sm:$0xf]
    %v6123 = vld [vmem:[%s6111 + $0x2c] sm:$0xf]
    %v6124 = vld [vmem:[%s6111 + $0x30] sm:$0xf]
    %v6125 = vld [vmem:[%s6111 + $0x34] sm:$0xf]
    %v6126 = vld [vmem:[%s6111 + $0x38] sm:$0xf]
    %v6127 = vld [vmem:[%s6111 + $0x3c] sm:$0xf]
    %v6128 = vld [vmem:[%s6111 + $0x40] sm:$0xf]
    %v6129 = vld [vmem:[%s6111 + $0x44] sm:$0xf]
    %v6148 = vunpack.c.l.b16 %v6112
    %v6149 = vunpack.c.l.b16 %v6113
    %v6150 = vunpack.c.l.b16 %v6114
    %v6151 = vunpack.c.l.b16 %v6115
    %v6152 = vunpack.c.l.b16 %v6116
    %v6153 = vunpack.c.l.b16 %v6117
    %v6154 = vunpack.c.l.b16 %v6118
    %v6155 = vunpack.c.l.b16 %v6119
    %v6156 = vunpack.c.l.b16 %v6120
    %v6157 = vunpack.c.l.b16 %v6121
    %v6158 = vunpack.c.l.b16 %v6122
    %v6159 = vunpack.c.l.b16 %v6123
    %v6160 = vunpack.c.l.b16 %v6124
    %v6161 = vunpack.c.l.b16 %v6125
    %v6162 = vunpack.c.l.b16 %v6126
    %v6163 = vunpack.c.l.b16 %v6127
    %v6164 = vunpack.c.l.b16 %v6128
    %v6165 = vunpack.c.l.b16 %v6129
    %v6166 = vpack.c.b16 %v6149, %v6148
    %v6167 = vpack.c.b16 %v6151, %v6150
    %v6168 = vpack.c.b16 %v6153, %v6152
    %v6169 = vpack.c.b16 %v6155, %v6154
    %v6170 = vpack.c.b16 %v6157, %v6156
    %v6171 = vpack.c.b16 %v6159, %v6158
    %v6172 = vpack.c.b16 %v6161, %v6160
    %v6173 = vpack.c.b16 %v6163, %v6162
    %v6174 = vpack.c.b16 %v6165, %v6164
    %v6185 = vsel %vm3804, %v6110, 0
    %6187 = vmatprep.subr.bf16.mxu0 0
    %6188 = vmatpush1.bf16.msra.mxu0 %v6173
    %6189 = vmatprep.subr.bf16.mxu0 0
    %6190 = vmatpush1.bf16.msra.mxu0 %v6172
    %6191 = vmatprep.subr.bf16.mxu0 0
    %6192 = vmatpush1.bf16.msra.mxu0 %v6171
    %6193 = vmatprep.subr.bf16.mxu0 0
    %6194 = vmatpush1.bf16.msra.mxu0 %v6170
    %6195 = vmatprep.subr.bf16.mxu0 0
    %6196 = vmatpush1.bf16.msra.mxu0 %v6169
    %6197 = vmatprep.subr.bf16.mxu0 0
    %6198 = vmatpush1.bf16.msra.mxu0 %v6168
    %6199 = vmatprep.subr.bf16.mxu0 0
    %6200 = vmatpush1.bf16.msra.mxu0 %v6167
    %6201 = vmatprep.subr.bf16.mxu0 0
    %6202 = vmatpush1.bf16.msra.mxu0 %v6166
    %6203 = vmatprep.subr.bf16.mxu0 0
    %6204 = vmatpush2.bf16.msra.mxu0 0
    %6205 = vmatprep.subr.bf16.mxu0 0
    %6206 = vmatpush2.bf16.msra.mxu0 0
    %6207 = vmatprep.subr.bf16.mxu0 0
    %6208 = vmatpush2.bf16.msra.mxu0 0
    %6209 = vmatprep.subr.bf16.mxu0 0
    %6210 = vmatpush2.bf16.msra.mxu0 0
    %6211 = vmatprep.subr.bf16.mxu0 0
    %6212 = vmatpush2.bf16.msra.mxu0 0
    %6213 = vmatprep.subr.bf16.mxu0 0
    %6214 = vmatpush2.bf16.msra.mxu0 0
    %6215 = vmatprep.subr.bf16.mxu0 0
    %6216 = vmatpush2.bf16.msra.mxu0 0
    %6217 = vmatprep.subr.bf16.mxu0 0
    %6218 = vmatpush2.bf16.msra.mxu0 %v6174
    %6219 = vmatprep.mubr.bf16.mxu0 %v6185
    %6220 = vmatmul.mubr.bf16.gmra.mxu0 %v6109
    %v6221 = vpop.f32.mrf.mxu0
    %v6222 = vadd.f32 0.0, %v6221
    %v6223 = vpop.f32.mrf.mxu0
    %v6224 = vpop.f32.mrf.mxu0
    %v6225 = vpop.f32.mrf.mxu0
    %6226 = vdwg.mxu0
    %v6227 = vadd.f32 %v6096, %v6222
    %v6228 = vrot.slane %v3897, 4
    %v6229 = vrot.slane %v3899, 4
    %v6232 = vrot.slane %v5954, 3
    %v6233 = vrot.slane %v5956, 3
    %v6236 = vsel %vm5976, %v6228, %v6232
    %v6237 = vsel %vm5976, %v6229, %v6233
    %v6238 = vpack.c.bf16 %v6236, %v6236
    %v6239 = vpack.c.bf16 %v6237, %v6237
    %s6240 = scalar_lea.vmem %s5, 144
    %v6241 = vld [vmem:[%s6240] sm:$0xf]
    %v6242 = vld [vmem:[%s6240 + $0x4] sm:$0xf]
    %v6243 = vld [vmem:[%s6240 + $0x8] sm:$0xf]
    %v6244 = vld [vmem:[%s6240 + $0xc] sm:$0xf]
    %v6245 = vld [vmem:[%s6240 + $0x10] sm:$0xf]
    %v6246 = vld [vmem:[%s6240 + $0x14] sm:$0xf]
    %v6247 = vld [vmem:[%s6240 + $0x18] sm:$0xf]
    %v6248 = vld [vmem:[%s6240 + $0x1c] sm:$0xf]
    %v6249 = vld [vmem:[%s6240 + $0x20] sm:$0xf]
    %v6250 = vld [vmem:[%s6240 + $0x24] sm:$0xf]
    %v6251 = vld [vmem:[%s6240 + $0x28] sm:$0xf]
    %v6252 = vld [vmem:[%s6240 + $0x2c] sm:$0xf]
    %v6253 = vld [vmem:[%s6240 + $0x30] sm:$0xf]
    %v6254 = vld [vmem:[%s6240 + $0x34] sm:$0xf]
    %v6255 = vld [vmem:[%s6240 + $0x38] sm:$0xf]
    %v6256 = vld [vmem:[%s6240 + $0x3c] sm:$0xf]
    %v6257 = vld [vmem:[%s6240 + $0x40] sm:$0xf]
    %v6258 = vld [vmem:[%s6240 + $0x44] sm:$0xf]
    %v6277 = vunpack.c.l.b16 %v6241
    %v6278 = vunpack.c.l.b16 %v6242
    %v6279 = vunpack.c.l.b16 %v6243
    %v6280 = vunpack.c.l.b16 %v6244
    %v6281 = vunpack.c.l.b16 %v6245
    %v6282 = vunpack.c.l.b16 %v6246
    %v6283 = vunpack.c.l.b16 %v6247
    %v6284 = vunpack.c.l.b16 %v6248
    %v6285 = vunpack.c.l.b16 %v6249
    %v6286 = vunpack.c.l.b16 %v6250
    %v6287 = vunpack.c.l.b16 %v6251
    %v6288 = vunpack.c.l.b16 %v6252
    %v6289 = vunpack.c.l.b16 %v6253
    %v6290 = vunpack.c.l.b16 %v6254
    %v6291 = vunpack.c.l.b16 %v6255
    %v6292 = vunpack.c.l.b16 %v6256
    %v6293 = vunpack.c.l.b16 %v6257
    %v6294 = vunpack.c.l.b16 %v6258
    %v6295 = vpack.c.b16 %v6278, %v6277
    %v6296 = vpack.c.b16 %v6280, %v6279
    %v6297 = vpack.c.b16 %v6282, %v6281
    %v6298 = vpack.c.b16 %v6284, %v6283
    %v6299 = vpack.c.b16 %v6286, %v6285
    %v6300 = vpack.c.b16 %v6288, %v6287
    %v6301 = vpack.c.b16 %v6290, %v6289
    %v6302 = vpack.c.b16 %v6292, %v6291
    %v6303 = vpack.c.b16 %v6294, %v6293
    %v6314 = vsel %vm3804, %v6239, 0
    %6316 = vmatprep.subr.bf16.mxu0 0
    %6317 = vmatpush1.bf16.msra.mxu0 %v6302
    %6318 = vmatprep.subr.bf16.mxu0 0
    %6319 = vmatpush1.bf16.msra.mxu0 %v6301
    %6320 = vmatprep.subr.bf16.mxu0 0
    %6321 = vmatpush1.bf16.msra.mxu0 %v6300
    %6322 = vmatprep.subr.bf16.mxu0 0
    %6323 = vmatpush1.bf16.msra.mxu0 %v6299
    %6324 = vmatprep.subr.bf16.mxu0 0
    %6325 = vmatpush1.bf16.msra.mxu0 %v6298
    %6326 = vmatprep.subr.bf16.mxu0 0
    %6327 = vmatpush1.bf16.msra.mxu0 %v6297
    %6328 = vmatprep.subr.bf16.mxu0 0
    %6329 = vmatpush1.bf16.msra.mxu0 %v6296
    %6330 = vmatprep.subr.bf16.mxu0 0
    %6331 = vmatpush1.bf16.msra.mxu0 %v6295
    %6332 = vmatprep.subr.bf16.mxu0 0
    %6333 = vmatpush2.bf16.msra.mxu0 0
    %6334 = vmatprep.subr.bf16.mxu0 0
    %6335 = vmatpush2.bf16.msra.mxu0 0
    %6336 = vmatprep.subr.bf16.mxu0 0
    %6337 = vmatpush2.bf16.msra.mxu0 0
    %6338 = vmatprep.subr.bf16.mxu0 0
    %6339 = vmatpush2.bf16.msra.mxu0 0
    %6340 = vmatprep.subr.bf16.mxu0 0
    %6341 = vmatpush2.bf16.msra.mxu0 0
    %6342 = vmatprep.subr.bf16.mxu0 0
    %6343 = vmatpush2.bf16.msra.mxu0 0
    %6344 = vmatprep.subr.bf16.mxu0 0
    %6345 = vmatpush2.bf16.msra.mxu0 0
    %6346 = vmatprep.subr.bf16.mxu0 0
    %6347 = vmatpush2.bf16.msra.mxu0 %v6303
    %6348 = vmatprep.mubr.bf16.mxu0 %v6314
    %6349 = vmatmul.mubr.bf16.gmra.mxu0 %v6238
    %v6350 = vpop.f32.mrf.mxu0
    %v6351 = vadd.f32 0.0, %v6350
    %v6352 = vpop.f32.mrf.mxu0
    %v6353 = vpop.f32.mrf.mxu0
    %v6354 = vpop.f32.mrf.mxu0
    %6355 = vdwg.mxu0
    %v6356 = vadd.f32 %v6227, %v6351
    %v6357 = vrot.slane %v3897, 6
    %v6358 = vrot.slane %v3899, 6
    %v6361 = vrot.slane %v5954, 5
    %v6362 = vrot.slane %v5956, 5
    %v6365 = vsel %vm5976, %v6357, %v6361
    %v6366 = vsel %vm5976, %v6358, %v6362
    %v6367 = vpack.c.bf16 %v6365, %v6365
    %v6368 = vpack.c.bf16 %v6366, %v6366
    %s6369 = scalar_lea.vmem %s5, 216
    %v6370 = vld [vmem:[%s6369] sm:$0xf]
    %v6371 = vld [vmem:[%s6369 + $0x4] sm:$0xf]
    %v6372 = vld [vmem:[%s6369 + $0x8] sm:$0xf]
    %v6373 = vld [vmem:[%s6369 + $0xc] sm:$0xf]
    %v6374 = vld [vmem:[%s6369 + $0x10] sm:$0xf]
    %v6375 = vld [vmem:[%s6369 + $0x14] sm:$0xf]
    %v6376 = vld [vmem:[%s6369 + $0x18] sm:$0xf]
    %v6377 = vld [vmem:[%s6369 + $0x1c] sm:$0xf]
    %v6378 = vld [vmem:[%s6369 + $0x20] sm:$0xf]
    %v6379 = vld [vmem:[%s6369 + $0x24] sm:$0xf]
    %v6380 = vld [vmem:[%s6369 + $0x28] sm:$0xf]
    %v6381 = vld [vmem:[%s6369 + $0x2c] sm:$0xf]
    %v6382 = vld [vmem:[%s6369 + $0x30] sm:$0xf]
    %v6383 = vld [vmem:[%s6369 + $0x34] sm:$0xf]
    %v6384 = vld [vmem:[%s6369 + $0x38] sm:$0xf]
    %v6385 = vld [vmem:[%s6369 + $0x3c] sm:$0xf]
    %v6386 = vld [vmem:[%s6369 + $0x40] sm:$0xf]
    %v6387 = vld [vmem:[%s6369 + $0x44] sm:$0xf]
    %v6406 = vunpack.c.l.b16 %v6370
    %v6407 = vunpack.c.l.b16 %v6371
    %v6408 = vunpack.c.l.b16 %v6372
    %v6409 = vunpack.c.l.b16 %v6373
    %v6410 = vunpack.c.l.b16 %v6374
    %v6411 = vunpack.c.l.b16 %v6375
    %v6412 = vunpack.c.l.b16 %v6376
    %v6413 = vunpack.c.l.b16 %v6377
    %v6414 = vunpack.c.l.b16 %v6378
    %v6415 = vunpack.c.l.b16 %v6379
    %v6416 = vunpack.c.l.b16 %v6380
    %v6417 = vunpack.c.l.b16 %v6381
    %v6418 = vunpack.c.l.b16 %v6382
    %v6419 = vunpack.c.l.b16 %v6383
    %v6420 = vunpack.c.l.b16 %v6384
    %v6421 = vunpack.c.l.b16 %v6385
    %v6422 = vunpack.c.l.b16 %v6386
    %v6423 = vunpack.c.l.b16 %v6387
    %v6424 = vpack.c.b16 %v6407, %v6406
    %v6425 = vpack.c.b16 %v6409, %v6408
    %v6426 = vpack.c.b16 %v6411, %v6410
    %v6427 = vpack.c.b16 %v6413, %v6412
    %v6428 = vpack.c.b16 %v6415, %v6414
    %v6429 = vpack.c.b16 %v6417, %v6416
    %v6430 = vpack.c.b16 %v6419, %v6418
    %v6431 = vpack.c.b16 %v6421, %v6420
    %v6432 = vpack.c.b16 %v6423, %v6422
    %v6443 = vsel %vm3804, %v6368, 0
    %6445 = vmatprep.subr.bf16.mxu0 0
    %6446 = vmatpush1.bf16.msra.mxu0 %v6431
    %6447 = vmatprep.subr.bf16.mxu0 0
    %6448 = vmatpush1.bf16.msra.mxu0 %v6430
    %6449 = vmatprep.subr.bf16.mxu0 0
    %6450 = vmatpush1.bf16.msra.mxu0 %v6429
    %6451 = vmatprep.subr.bf16.mxu0 0
    %6452 = vmatpush1.bf16.msra.mxu0 %v6428
    %6453 = vmatprep.subr.bf16.mxu0 0
    %6454 = vmatpush1.bf16.msra.mxu0 %v6427
    %6455 = vmatprep.subr.bf16.mxu0 0
    %6456 = vmatpush1.bf16.msra.mxu0 %v6426
    %6457 = vmatprep.subr.bf16.mxu0 0
    %6458 = vmatpush1.bf16.msra.mxu0 %v6425
    %6459 = vmatprep.subr.bf16.mxu0 0
    %6460 = vmatpush1.bf16.msra.mxu0 %v6424
    %6461 = vmatprep.subr.bf16.mxu0 0
    %6462 = vmatpush2.bf16.msra.mxu0 0
    %6463 = vmatprep.subr.bf16.mxu0 0
    %6464 = vmatpush2.bf16.msra.mxu0 0
    %6465 = vmatprep.subr.bf16.mxu0 0
    %6466 = vmatpush2.bf16.msra.mxu0 0
    %6467 = vmatprep.subr.bf16.mxu0 0
    %6468 = vmatpush2.bf16.msra.mxu0 0
    %6469 = vmatprep.subr.bf16.mxu0 0
    %6470 = vmatpush2.bf16.msra.mxu0 0
    %6471 = vmatprep.subr.bf16.mxu0 0
    %6472 = vmatpush2.bf16.msra.mxu0 0
    %6473 = vmatprep.subr.bf16.mxu0 0
    %6474 = vmatpush2.bf16.msra.mxu0 0
    %6475 = vmatprep.subr.bf16.mxu0 0
    %6476 = vmatpush2.bf16.msra.mxu0 %v6432
    %6477 = vmatprep.mubr.bf16.mxu0 %v6443
    %6478 = vmatmul.mubr.bf16.gmra.mxu0 %v6367
    %v6479 = vpop.f32.mrf.mxu0
    %v6480 = vadd.f32 0.0, %v6479
    %v6481 = vpop.f32.mrf.mxu0
    %v6482 = vpop.f32.mrf.mxu0
    %v6483 = vpop.f32.mrf.mxu0
    %6484 = vdwg.mxu0
    %v6485 = vadd.f32 %v6356, %v6480
    %v6488 = vrot.slane %v5958, 7
    %v6489 = vrot.slane %v5960, 7
    %v6492 = vsel %vm5976, %v3901, %v6488
    %v6493 = vsel %vm5976, %v3903, %v6489
    %v6494 = vpack.c.bf16 %v6492, %v6492
    %v6495 = vpack.c.bf16 %v6493, %v6493
    %s6496 = scalar_lea.vmem %s5, 288
    %v6497 = vld [vmem:[%s6496] sm:$0xf]
    %v6498 = vld [vmem:[%s6496 + $0x4] sm:$0xf]
    %v6499 = vld [vmem:[%s6496 + $0x8] sm:$0xf]
    %v6500 = vld [vmem:[%s6496 + $0xc] sm:$0xf]
    %v6501 = vld [vmem:[%s6496 + $0x10] sm:$0xf]
    %v6502 = vld [vmem:[%s6496 + $0x14] sm:$0xf]
    %v6503 = vld [vmem:[%s6496 + $0x18] sm:$0xf]
    %v6504 = vld [vmem:[%s6496 + $0x1c] sm:$0xf]
    %v6505 = vld [vmem:[%s6496 + $0x20] sm:$0xf]
    %v6506 = vld [vmem:[%s6496 + $0x24] sm:$0xf]
    %v6507 = vld [vmem:[%s6496 + $0x28] sm:$0xf]
    %v6508 = vld [vmem:[%s6496 + $0x2c] sm:$0xf]
    %v6509 = vld [vmem:[%s6496 + $0x30] sm:$0xf]
    %v6510 = vld [vmem:[%s6496 + $0x34] sm:$0xf]
    %v6511 = vld [vmem:[%s6496 + $0x38] sm:$0xf]
    %v6512 = vld [vmem:[%s6496 + $0x3c] sm:$0xf]
    %v6513 = vld [vmem:[%s6496 + $0x40] sm:$0xf]
    %v6514 = vld [vmem:[%s6496 + $0x44] sm:$0xf]
    %v6533 = vunpack.c.l.b16 %v6497
    %v6534 = vunpack.c.l.b16 %v6498
    %v6535 = vunpack.c.l.b16 %v6499
    %v6536 = vunpack.c.l.b16 %v6500
    %v6537 = vunpack.c.l.b16 %v6501
    %v6538 = vunpack.c.l.b16 %v6502
    %v6539 = vunpack.c.l.b16 %v6503
    %v6540 = vunpack.c.l.b16 %v6504
    %v6541 = vunpack.c.l.b16 %v6505
    %v6542 = vunpack.c.l.b16 %v6506
    %v6543 = vunpack.c.l.b16 %v6507
    %v6544 = vunpack.c.l.b16 %v6508
    %v6545 = vunpack.c.l.b16 %v6509
    %v6546 = vunpack.c.l.b16 %v6510
    %v6547 = vunpack.c.l.b16 %v6511
    %v6548 = vunpack.c.l.b16 %v6512
    %v6549 = vunpack.c.l.b16 %v6513
    %v6550 = vunpack.c.l.b16 %v6514
    %v6551 = vpack.c.b16 %v6534, %v6533
    %v6552 = vpack.c.b16 %v6536, %v6535
    %v6553 = vpack.c.b16 %v6538, %v6537
    %v6554 = vpack.c.b16 %v6540, %v6539
    %v6555 = vpack.c.b16 %v6542, %v6541
    %v6556 = vpack.c.b16 %v6544, %v6543
    %v6557 = vpack.c.b16 %v6546, %v6545
    %v6558 = vpack.c.b16 %v6548, %v6547
    %v6559 = vpack.c.b16 %v6550, %v6549
    %v6570 = vsel %vm3804, %v6495, 0
    %6572 = vmatprep.subr.bf16.mxu0 0
    %6573 = vmatpush1.bf16.msra.mxu0 %v6558
    %6574 = vmatprep.subr.bf16.mxu0 0
    %6575 = vmatpush1.bf16.msra.mxu0 %v6557
    %6576 = vmatprep.subr.bf16.mxu0 0
    %6577 = vmatpush1.bf16.msra.mxu0 %v6556
    %6578 = vmatprep.subr.bf16.mxu0 0
    %6579 = vmatpush1.bf16.msra.mxu0 %v6555
    %6580 = vmatprep.subr.bf16.mxu0 0
    %6581 = vmatpush1.bf16.msra.mxu0 %v6554
    %6582 = vmatprep.subr.bf16.mxu0 0
    %6583 = vmatpush1.bf16.msra.mxu0 %v6553
    %6584 = vmatprep.subr.bf16.mxu0 0
    %6585 = vmatpush1.bf16.msra.mxu0 %v6552
    %6586 = vmatprep.subr.bf16.mxu0 0
    %6587 = vmatpush1.bf16.msra.mxu0 %v6551
    %6588 = vmatprep.subr.bf16.mxu0 0
    %6589 = vmatpush2.bf16.msra.mxu0 0
    %6590 = vmatprep.subr.bf16.mxu0 0
    %6591 = vmatpush2.bf16.msra.mxu0 0
    %6592 = vmatprep.subr.bf16.mxu0 0
    %6593 = vmatpush2.bf16.msra.mxu0 0
    %6594 = vmatprep.subr.bf16.mxu0 0
    %6595 = vmatpush2.bf16.msra.mxu0 0
    %6596 = vmatprep.subr.bf16.mxu0 0
    %6597 = vmatpush2.bf16.msra.mxu0 0
    %6598 = vmatprep.subr.bf16.mxu0 0
    %6599 = vmatpush2.bf16.msra.mxu0 0
    %6600 = vmatprep.subr.bf16.mxu0 0
    %6601 = vmatpush2.bf16.msra.mxu0 0
    %6602 = vmatprep.subr.bf16.mxu0 0
    %6603 = vmatpush2.bf16.msra.mxu0 %v6559
    %6604 = vmatprep.mubr.bf16.mxu0 %v6570
    %6605 = vmatmul.mubr.bf16.gmra.mxu0 %v6494
    %v6606 = vpop.f32.mrf.mxu0
    %v6607 = vadd.f32 0.0, %v6606
    %v6608 = vpop.f32.mrf.mxu0
    %v6609 = vpop.f32.mrf.mxu0
    %v6610 = vpop.f32.mrf.mxu0
    %6611 = vdwg.mxu0
    %v6612 = vadd.f32 %v6485, %v6607
    %v6615 = vrot.slane %v3901, 2
    %v6616 = vrot.slane %v3903, 2
    %v6619 = vrot.slane %v5958, 1
    %v6620 = vrot.slane %v5960, 1
    %v6623 = vsel %vm5976, %v6615, %v6619
    %v6624 = vsel %vm5976, %v6616, %v6620
    %v6625 = vpack.c.bf16 %v6623, %v6623
    %v6626 = vpack.c.bf16 %v6624, %v6624
    %s6627 = scalar_lea.vmem %s5, 360
    %v6628 = vld [vmem:[%s6627] sm:$0xf]
    %v6629 = vld [vmem:[%s6627 + $0x4] sm:$0xf]
    %v6630 = vld [vmem:[%s6627 + $0x8] sm:$0xf]
    %v6631 = vld [vmem:[%s6627 + $0xc] sm:$0xf]
    %v6632 = vld [vmem:[%s6627 + $0x10] sm:$0xf]
    %v6633 = vld [vmem:[%s6627 + $0x14] sm:$0xf]
    %v6634 = vld [vmem:[%s6627 + $0x18] sm:$0xf]
    %v6635 = vld [vmem:[%s6627 + $0x1c] sm:$0xf]
    %v6636 = vld [vmem:[%s6627 + $0x20] sm:$0xf]
    %v6637 = vld [vmem:[%s6627 + $0x24] sm:$0xf]
    %v6638 = vld [vmem:[%s6627 + $0x28] sm:$0xf]
    %v6639 = vld [vmem:[%s6627 + $0x2c] sm:$0xf]
    %v6640 = vld [vmem:[%s6627 + $0x30] sm:$0xf]
    %v6641 = vld [vmem:[%s6627 + $0x34] sm:$0xf]
    %v6642 = vld [vmem:[%s6627 + $0x38] sm:$0xf]
    %v6643 = vld [vmem:[%s6627 + $0x3c] sm:$0xf]
    %v6644 = vld [vmem:[%s6627 + $0x40] sm:$0xf]
    %v6645 = vld [vmem:[%s6627 + $0x44] sm:$0xf]
    %v6664 = vunpack.c.l.b16 %v6628
    %v6665 = vunpack.c.l.b16 %v6629
    %v6666 = vunpack.c.l.b16 %v6630
    %v6667 = vunpack.c.l.b16 %v6631
    %v6668 = vunpack.c.l.b16 %v6632
    %v6669 = vunpack.c.l.b16 %v6633
    %v6670 = vunpack.c.l.b16 %v6634
    %v6671 = vunpack.c.l.b16 %v6635
    %v6672 = vunpack.c.l.b16 %v6636
    %v6673 = vunpack.c.l.b16 %v6637
    %v6674 = vunpack.c.l.b16 %v6638
    %v6675 = vunpack.c.l.b16 %v6639
    %v6676 = vunpack.c.l.b16 %v6640
    %v6677 = vunpack.c.l.b16 %v6641
    %v6678 = vunpack.c.l.b16 %v6642
    %v6679 = vunpack.c.l.b16 %v6643
    %v6680 = vunpack.c.l.b16 %v6644
    %v6681 = vunpack.c.l.b16 %v6645
    %v6682 = vpack.c.b16 %v6665, %v6664
    %v6683 = vpack.c.b16 %v6667, %v6666
    %v6684 = vpack.c.b16 %v6669, %v6668
    %v6685 = vpack.c.b16 %v6671, %v6670
    %v6686 = vpack.c.b16 %v6673, %v6672
    %v6687 = vpack.c.b16 %v6675, %v6674
    %v6688 = vpack.c.b16 %v6677, %v6676
    %v6689 = vpack.c.b16 %v6679, %v6678
    %v6690 = vpack.c.b16 %v6681, %v6680
    %v6701 = vsel %vm3804, %v6626, 0
    %6703 = vmatprep.subr.bf16.mxu0 0
    %6704 = vmatpush1.bf16.msra.mxu0 %v6689
    %6705 = vmatprep.subr.bf16.mxu0 0
    %6706 = vmatpush1.bf16.msra.mxu0 %v6688
    %6707 = vmatprep.subr.bf16.mxu0 0
    %6708 = vmatpush1.bf16.msra.mxu0 %v6687
    %6709 = vmatprep.subr.bf16.mxu0 0
    %6710 = vmatpush1.bf16.msra.mxu0 %v6686
    %6711 = vmatprep.subr.bf16.mxu0 0
    %6712 = vmatpush1.bf16.msra.mxu0 %v6685
    %6713 = vmatprep.subr.bf16.mxu0 0
    %6714 = vmatpush1.bf16.msra.mxu0 %v6684
    %6715 = vmatprep.subr.bf16.mxu0 0
    %6716 = vmatpush1.bf16.msra.mxu0 %v6683
    %6717 = vmatprep.subr.bf16.mxu0 0
    %6718 = vmatpush1.bf16.msra.mxu0 %v6682
    %6719 = vmatprep.subr.bf16.mxu0 0
    %6720 = vmatpush2.bf16.msra.mxu0 0
    %6721 = vmatprep.subr.bf16.mxu0 0
    %6722 = vmatpush2.bf16.msra.mxu0 0
    %6723 = vmatprep.subr.bf16.mxu0 0
    %6724 = vmatpush2.bf16.msra.mxu0 0
    %6725 = vmatprep.subr.bf16.mxu0 0
    %6726 = vmatpush2.bf16.msra.mxu0 0
    %6727 = vmatprep.subr.bf16.mxu0 0
    %6728 = vmatpush2.bf16.msra.mxu0 0
    %6729 = vmatprep.subr.bf16.mxu0 0
    %6730 = vmatpush2.bf16.msra.mxu0 0
    %6731 = vmatprep.subr.bf16.mxu0 0
    %6732 = vmatpush2.bf16.msra.mxu0 0
    %6733 = vmatprep.subr.bf16.mxu0 0
    %6734 = vmatpush2.bf16.msra.mxu0 %v6690
    %6735 = vmatprep.mubr.bf16.mxu0 %v6701
    %6736 = vmatmul.mubr.bf16.gmra.mxu0 %v6625
    %v6737 = vpop.f32.mrf.mxu0
    %v6738 = vadd.f32 0.0, %v6737
    %v6739 = vpop.f32.mrf.mxu0
    %v6740 = vpop.f32.mrf.mxu0
    %v6741 = vpop.f32.mrf.mxu0
    %6742 = vdwg.mxu0
    %v6743 = vadd.f32 %v6612, %v6738
    %v6744 = vrot.slane %v3901, 4
    %v6745 = vrot.slane %v3903, 4
    %v6748 = vrot.slane %v5958, 3
    %v6749 = vrot.slane %v5960, 3
    %v6752 = vsel %vm5976, %v6744, %v6748
    %v6753 = vsel %vm5976, %v6745, %v6749
    %v6754 = vpack.c.bf16 %v6752, %v6752
    %v6755 = vpack.c.bf16 %v6753, %v6753
    %s6756 = scalar_lea.vmem %s5, 432
    %v6757 = vld [vmem:[%s6756] sm:$0xf]
    %v6758 = vld [vmem:[%s6756 + $0x4] sm:$0xf]
    %v6759 = vld [vmem:[%s6756 + $0x8] sm:$0xf]
    %v6760 = vld [vmem:[%s6756 + $0xc] sm:$0xf]
    %v6761 = vld [vmem:[%s6756 + $0x10] sm:$0xf]
    %v6762 = vld [vmem:[%s6756 + $0x14] sm:$0xf]
    %v6763 = vld [vmem:[%s6756 + $0x18] sm:$0xf]
    %v6764 = vld [vmem:[%s6756 + $0x1c] sm:$0xf]
    %v6765 = vld [vmem:[%s6756 + $0x20] sm:$0xf]
    %v6766 = vld [vmem:[%s6756 + $0x24] sm:$0xf]
    %v6767 = vld [vmem:[%s6756 + $0x28] sm:$0xf]
    %v6768 = vld [vmem:[%s6756 + $0x2c] sm:$0xf]
    %v6769 = vld [vmem:[%s6756 + $0x30] sm:$0xf]
    %v6770 = vld [vmem:[%s6756 + $0x34] sm:$0xf]
    %v6771 = vld [vmem:[%s6756 + $0x38] sm:$0xf]
    %v6772 = vld [vmem:[%s6756 + $0x3c] sm:$0xf]
    %v6773 = vld [vmem:[%s6756 + $0x40] sm:$0xf]
    %v6774 = vld [vmem:[%s6756 + $0x44] sm:$0xf]
    %v6793 = vunpack.c.l.b16 %v6757
    %v6794 = vunpack.c.l.b16 %v6758
    %v6795 = vunpack.c.l.b16 %v6759
    %v6796 = vunpack.c.l.b16 %v6760
    %v6797 = vunpack.c.l.b16 %v6761
    %v6798 = vunpack.c.l.b16 %v6762
    %v6799 = vunpack.c.l.b16 %v6763
    %v6800 = vunpack.c.l.b16 %v6764
    %v6801 = vunpack.c.l.b16 %v6765
    %v6802 = vunpack.c.l.b16 %v6766
    %v6803 = vunpack.c.l.b16 %v6767
    %v6804 = vunpack.c.l.b16 %v6768
    %v6805 = vunpack.c.l.b16 %v6769
    %v6806 = vunpack.c.l.b16 %v6770
    %v6807 = vunpack.c.l.b16 %v6771
    %v6808 = vunpack.c.l.b16 %v6772
    %v6809 = vunpack.c.l.b16 %v6773
    %v6810 = vunpack.c.l.b16 %v6774
    %v6811 = vpack.c.b16 %v6794, %v6793
    %v6812 = vpack.c.b16 %v6796, %v6795
    %v6813 = vpack.c.b16 %v6798, %v6797
    %v6814 = vpack.c.b16 %v6800, %v6799
    %v6815 = vpack.c.b16 %v6802, %v6801
    %v6816 = vpack.c.b16 %v6804, %v6803
    %v6817 = vpack.c.b16 %v6806, %v6805
    %v6818 = vpack.c.b16 %v6808, %v6807
    %v6819 = vpack.c.b16 %v6810, %v6809
    %v6830 = vsel %vm3804, %v6755, 0
    %6832 = vmatprep.subr.bf16.mxu0 0
    %6833 = vmatpush1.bf16.msra.mxu0 %v6818
    %6834 = vmatprep.subr.bf16.mxu0 0
    %6835 = vmatpush1.bf16.msra.mxu0 %v6817
    %6836 = vmatprep.subr.bf16.mxu0 0
    %6837 = vmatpush1.bf16.msra.mxu0 %v6816
    %6838 = vmatprep.subr.bf16.mxu0 0
    %6839 = vmatpush1.bf16.msra.mxu0 %v6815
    %6840 = vmatprep.subr.bf16.mxu0 0
    %6841 = vmatpush1.bf16.msra.mxu0 %v6814
    %6842 = vmatprep.subr.bf16.mxu0 0
    %6843 = vmatpush1.bf16.msra.mxu0 %v6813
    %6844 = vmatprep.subr.bf16.mxu0 0
    %6845 = vmatpush1.bf16.msra.mxu0 %v6812
    %6846 = vmatprep.subr.bf16.mxu0 0
    %6847 = vmatpush1.bf16.msra.mxu0 %v6811
    %6848 = vmatprep.subr.bf16.mxu0 0
    %6849 = vmatpush2.bf16.msra.mxu0 0
    %6850 = vmatprep.subr.bf16.mxu0 0
    %6851 = vmatpush2.bf16.msra.mxu0 0
    %6852 = vmatprep.subr.bf16.mxu0 0
    %6853 = vmatpush2.bf16.msra.mxu0 0
    %6854 = vmatprep.subr.bf16.mxu0 0
    %6855 = vmatpush2.bf16.msra.mxu0 0
    %6856 = vmatprep.subr.bf16.mxu0 0
    %6857 = vmatpush2.bf16.msra.mxu0 0
    %6858 = vmatprep.subr.bf16.mxu0 0
    %6859 = vmatpush2.bf16.msra.mxu0 0
    %6860 = vmatprep.subr.bf16.mxu0 0
    %6861 = vmatpush2.bf16.msra.mxu0 0
    %6862 = vmatprep.subr.bf16.mxu0 0
    %6863 = vmatpush2.bf16.msra.mxu0 %v6819
    %6864 = vmatprep.mubr.bf16.mxu0 %v6830
    %6865 = vmatmul.mubr.bf16.gmra.mxu0 %v6754
    %v6866 = vpop.f32.mrf.mxu0
    %v6867 = vadd.f32 0.0, %v6866
    %v6868 = vpop.f32.mrf.mxu0
    %v6869 = vpop.f32.mrf.mxu0
    %v6870 = vpop.f32.mrf.mxu0
    %6871 = vdwg.mxu0
    %v6872 = vadd.f32 %v6743, %v6867
    %v6873 = vrot.slane %v3901, 6
    %v6874 = vrot.slane %v3903, 6
    %v6877 = vrot.slane %v5958, 5
    %v6878 = vrot.slane %v5960, 5
    %v6881 = vsel %vm5976, %v6873, %v6877
    %v6882 = vsel %vm5976, %v6874, %v6878
    %v6883 = vpack.c.bf16 %v6881, %v6881
    %v6884 = vpack.c.bf16 %v6882, %v6882
    %s6885 = scalar_lea.vmem %s5, 504
    %v6886 = vld [vmem:[%s6885] sm:$0xf]
    %v6887 = vld [vmem:[%s6885 + $0x4] sm:$0xf]
    %v6888 = vld [vmem:[%s6885 + $0x8] sm:$0xf]
    %v6889 = vld [vmem:[%s6885 + $0xc] sm:$0xf]
    %v6890 = vld [vmem:[%s6885 + $0x10] sm:$0xf]
    %v6891 = vld [vmem:[%s6885 + $0x14] sm:$0xf]
    %v6892 = vld [vmem:[%s6885 + $0x18] sm:$0xf]
    %v6893 = vld [vmem:[%s6885 + $0x1c] sm:$0xf]
    %v6894 = vld [vmem:[%s6885 + $0x20] sm:$0xf]
    %v6895 = vld [vmem:[%s6885 + $0x24] sm:$0xf]
    %v6896 = vld [vmem:[%s6885 + $0x28] sm:$0xf]
    %v6897 = vld [vmem:[%s6885 + $0x2c] sm:$0xf]
    %v6898 = vld [vmem:[%s6885 + $0x30] sm:$0xf]
    %v6899 = vld [vmem:[%s6885 + $0x34] sm:$0xf]
    %v6900 = vld [vmem:[%s6885 + $0x38] sm:$0xf]
    %v6901 = vld [vmem:[%s6885 + $0x3c] sm:$0xf]
    %v6902 = vld [vmem:[%s6885 + $0x40] sm:$0xf]
    %v6903 = vld [vmem:[%s6885 + $0x44] sm:$0xf]
    %v6922 = vunpack.c.l.b16 %v6886
    %v6923 = vunpack.c.l.b16 %v6887
    %v6924 = vunpack.c.l.b16 %v6888
    %v6925 = vunpack.c.l.b16 %v6889
    %v6926 = vunpack.c.l.b16 %v6890
    %v6927 = vunpack.c.l.b16 %v6891
    %v6928 = vunpack.c.l.b16 %v6892
    %v6929 = vunpack.c.l.b16 %v6893
    %v6930 = vunpack.c.l.b16 %v6894
    %v6931 = vunpack.c.l.b16 %v6895
    %v6932 = vunpack.c.l.b16 %v6896
    %v6933 = vunpack.c.l.b16 %v6897
    %v6934 = vunpack.c.l.b16 %v6898
    %v6935 = vunpack.c.l.b16 %v6899
    %v6936 = vunpack.c.l.b16 %v6900
    %v6937 = vunpack.c.l.b16 %v6901
    %v6938 = vunpack.c.l.b16 %v6902
    %v6939 = vunpack.c.l.b16 %v6903
    %v6940 = vpack.c.b16 %v6923, %v6922
    %v6941 = vpack.c.b16 %v6925, %v6924
    %v6942 = vpack.c.b16 %v6927, %v6926
    %v6943 = vpack.c.b16 %v6929, %v6928
    %v6944 = vpack.c.b16 %v6931, %v6930
    %v6945 = vpack.c.b16 %v6933, %v6932
    %v6946 = vpack.c.b16 %v6935, %v6934
    %v6947 = vpack.c.b16 %v6937, %v6936
    %v6948 = vpack.c.b16 %v6939, %v6938
    %v6959 = vsel %vm3804, %v6884, 0
    %6961 = vmatprep.subr.bf16.mxu0 0
    %6962 = vmatpush1.bf16.msra.mxu0 %v6947
    %6963 = vmatprep.subr.bf16.mxu0 0
    %6964 = vmatpush1.bf16.msra.mxu0 %v6946
    %6965 = vmatprep.subr.bf16.mxu0 0
    %6966 = vmatpush1.bf16.msra.mxu0 %v6945
    %6967 = vmatprep.subr.bf16.mxu0 0
    %6968 = vmatpush1.bf16.msra.mxu0 %v6944
    %6969 = vmatprep.subr.bf16.mxu0 0
    %6970 = vmatpush1.bf16.msra.mxu0 %v6943
    %6971 = vmatprep.subr.bf16.mxu0 0
    %6972 = vmatpush1.bf16.msra.mxu0 %v6942
    %6973 = vmatprep.subr.bf16.mxu0 0
    %6974 = vmatpush1.bf16.msra.mxu0 %v6941
    %6975 = vmatprep.subr.bf16.mxu0 0
    %6976 = vmatpush1.bf16.msra.mxu0 %v6940
    %6977 = vmatprep.subr.bf16.mxu0 0
    %6978 = vmatpush2.bf16.msra.mxu0 0
    %6979 = vmatprep.subr.bf16.mxu0 0
    %6980 = vmatpush2.bf16.msra.mxu0 0
    %6981 = vmatprep.subr.bf16.mxu0 0
    %6982 = vmatpush2.bf16.msra.mxu0 0
    %6983 = vmatprep.subr.bf16.mxu0 0
    %6984 = vmatpush2.bf16.msra.mxu0 0
    %6985 = vmatprep.subr.bf16.mxu0 0
    %6986 = vmatpush2.bf16.msra.mxu0 0
    %6987 = vmatprep.subr.bf16.mxu0 0
    %6988 = vmatpush2.bf16.msra.mxu0 0
    %6989 = vmatprep.subr.bf16.mxu0 0
    %6990 = vmatpush2.bf16.msra.mxu0 0
    %6991 = vmatprep.subr.bf16.mxu0 0
    %6992 = vmatpush2.bf16.msra.mxu0 %v6948
    %6993 = vmatprep.mubr.bf16.mxu0 %v6959
    %6994 = vmatmul.mubr.bf16.gmra.mxu0 %v6883
    %v6995 = vpop.f32.mrf.mxu0
    %v6996 = vadd.f32 0.0, %v6995
    %v6997 = vpop.f32.mrf.mxu0
    %v6998 = vpop.f32.mrf.mxu0
    %v6999 = vpop.f32.mrf.mxu0
    %7000 = vdwg.mxu0
    %v7001 = vadd.f32 %v6872, %v6996
    %v7004 = vrot.slane %v5964, 7
    %v7005 = vrot.slane %v5966, 7
    %v7008 = vsel %vm5976, %v3907, %v7004
    %v7009 = vsel %vm5976, %v3909, %v7005
    %v7010 = vpack.c.bf16 %v7008, %v7008
    %v7011 = vpack.c.bf16 %v7009, %v7009
    %s7012 = scalar_lea.vmem %s5, 576
    %v7013 = vld [vmem:[%s7012] sm:$0xf]
    %v7014 = vld [vmem:[%s7012 + $0x4] sm:$0xf]
    %v7015 = vld [vmem:[%s7012 + $0x8] sm:$0xf]
    %v7016 = vld [vmem:[%s7012 + $0xc] sm:$0xf]
    %v7017 = vld [vmem:[%s7012 + $0x10] sm:$0xf]
    %v7018 = vld [vmem:[%s7012 + $0x14] sm:$0xf]
    %v7019 = vld [vmem:[%s7012 + $0x18] sm:$0xf]
    %v7020 = vld [vmem:[%s7012 + $0x1c] sm:$0xf]
    %v7021 = vld [vmem:[%s7012 + $0x20] sm:$0xf]
    %v7022 = vld [vmem:[%s7012 + $0x24] sm:$0xf]
    %v7023 = vld [vmem:[%s7012 + $0x28] sm:$0xf]
    %v7024 = vld [vmem:[%s7012 + $0x2c] sm:$0xf]
    %v7025 = vld [vmem:[%s7012 + $0x30] sm:$0xf]
    %v7026 = vld [vmem:[%s7012 + $0x34] sm:$0xf]
    %v7027 = vld [vmem:[%s7012 + $0x38] sm:$0xf]
    %v7028 = vld [vmem:[%s7012 + $0x3c] sm:$0xf]
    %v7029 = vld [vmem:[%s7012 + $0x40] sm:$0xf]
    %v7030 = vld [vmem:[%s7012 + $0x44] sm:$0xf]
    %v7049 = vunpack.c.l.b16 %v7013
    %v7050 = vunpack.c.l.b16 %v7014
    %v7051 = vunpack.c.l.b16 %v7015
    %v7052 = vunpack.c.l.b16 %v7016
    %v7053 = vunpack.c.l.b16 %v7017
    %v7054 = vunpack.c.l.b16 %v7018
    %v7055 = vunpack.c.l.b16 %v7019
    %v7056 = vunpack.c.l.b16 %v7020
    %v7057 = vunpack.c.l.b16 %v7021
    %v7058 = vunpack.c.l.b16 %v7022
    %v7059 = vunpack.c.l.b16 %v7023
    %v7060 = vunpack.c.l.b16 %v7024
    %v7061 = vunpack.c.l.b16 %v7025
    %v7062 = vunpack.c.l.b16 %v7026
    %v7063 = vunpack.c.l.b16 %v7027
    %v7064 = vunpack.c.l.b16 %v7028
    %v7065 = vunpack.c.l.b16 %v7029
    %v7066 = vunpack.c.l.b16 %v7030
    %v7067 = vpack.c.b16 %v7050, %v7049
    %v7068 = vpack.c.b16 %v7052, %v7051
    %v7069 = vpack.c.b16 %v7054, %v7053
    %v7070 = vpack.c.b16 %v7056, %v7055
    %v7071 = vpack.c.b16 %v7058, %v7057
    %v7072 = vpack.c.b16 %v7060, %v7059
    %v7073 = vpack.c.b16 %v7062, %v7061
    %v7074 = vpack.c.b16 %v7064, %v7063
    %v7075 = vpack.c.b16 %v7066, %v7065
    %v7086 = vsel %vm3804, %v7011, 0
    %7088 = vmatprep.subr.bf16.mxu0 0
    %7089 = vmatpush1.bf16.msra.mxu0 %v7074
    %7090 = vmatprep.subr.bf16.mxu0 0
    %7091 = vmatpush1.bf16.msra.mxu0 %v7073
    %7092 = vmatprep.subr.bf16.mxu0 0
    %7093 = vmatpush1.bf16.msra.mxu0 %v7072
    %7094 = vmatprep.subr.bf16.mxu0 0
    %7095 = vmatpush1.bf16.msra.mxu0 %v7071
    %7096 = vmatprep.subr.bf16.mxu0 0
    %7097 = vmatpush1.bf16.msra.mxu0 %v7070
    %7098 = vmatprep.subr.bf16.mxu0 0
    %7099 = vmatpush1.bf16.msra.mxu0 %v7069
    %7100 = vmatprep.subr.bf16.mxu0 0
    %7101 = vmatpush1.bf16.msra.mxu0 %v7068
    %7102 = vmatprep.subr.bf16.mxu0 0
    %7103 = vmatpush1.bf16.msra.mxu0 %v7067
    %7104 = vmatprep.subr.bf16.mxu0 0
    %7105 = vmatpush2.bf16.msra.mxu0 0
    %7106 = vmatprep.subr.bf16.mxu0 0
    %7107 = vmatpush2.bf16.msra.mxu0 0
    %7108 = vmatprep.subr.bf16.mxu0 0
    %7109 = vmatpush2.bf16.msra.mxu0 0
    %7110 = vmatprep.subr.bf16.mxu0 0
    %7111 = vmatpush2.bf16.msra.mxu0 0
    %7112 = vmatprep.subr.bf16.mxu0 0
    %7113 = vmatpush2.bf16.msra.mxu0 0
    %7114 = vmatprep.subr.bf16.mxu0 0
    %7115 = vmatpush2.bf16.msra.mxu0 0
    %7116 = vmatprep.subr.bf16.mxu0 0
    %7117 = vmatpush2.bf16.msra.mxu0 0
    %7118 = vmatprep.subr.bf16.mxu0 0
    %7119 = vmatpush2.bf16.msra.mxu0 %v7075
    %7120 = vmatprep.mubr.bf16.mxu0 %v7086
    %7121 = vmatmul.mubr.bf16.gmra.mxu0 %v7010
    %v7122 = vpop.f32.mrf.mxu0
    %v7123 = vadd.f32 0.0, %v7122
    %v7124 = vpop.f32.mrf.mxu0
    %v7125 = vpop.f32.mrf.mxu0
    %v7126 = vpop.f32.mrf.mxu0
    %7127 = vdwg.mxu0
    %v7128 = vadd.f32 %v7001, %v7123
    %v7131 = vrot.slane %v3907, 2
    %v7132 = vrot.slane %v3909, 2
    %v7135 = vrot.slane %v5964, 1
    %v7136 = vrot.slane %v5966, 1
    %v7139 = vsel %vm5976, %v7131, %v7135
    %v7140 = vsel %vm5976, %v7132, %v7136
    %v7141 = vpack.c.bf16 %v7139, %v7139
    %v7142 = vpack.c.bf16 %v7140, %v7140
    %s7143 = scalar_lea.vmem %s5, 648
    %v7144 = vld [vmem:[%s7143] sm:$0xf]
    %v7145 = vld [vmem:[%s7143 + $0x4] sm:$0xf]
    %v7146 = vld [vmem:[%s7143 + $0x8] sm:$0xf]
    %v7147 = vld [vmem:[%s7143 + $0xc] sm:$0xf]
    %v7148 = vld [vmem:[%s7143 + $0x10] sm:$0xf]
    %v7149 = vld [vmem:[%s7143 + $0x14] sm:$0xf]
    %v7150 = vld [vmem:[%s7143 + $0x18] sm:$0xf]
    %v7151 = vld [vmem:[%s7143 + $0x1c] sm:$0xf]
    %v7152 = vld [vmem:[%s7143 + $0x20] sm:$0xf]
    %v7153 = vld [vmem:[%s7143 + $0x24] sm:$0xf]
    %v7154 = vld [vmem:[%s7143 + $0x28] sm:$0xf]
    %v7155 = vld [vmem:[%s7143 + $0x2c] sm:$0xf]
    %v7156 = vld [vmem:[%s7143 + $0x30] sm:$0xf]
    %v7157 = vld [vmem:[%s7143 + $0x34] sm:$0xf]
    %v7158 = vld [vmem:[%s7143 + $0x38] sm:$0xf]
    %v7159 = vld [vmem:[%s7143 + $0x3c] sm:$0xf]
    %v7160 = vld [vmem:[%s7143 + $0x40] sm:$0xf]
    %v7161 = vld [vmem:[%s7143 + $0x44] sm:$0xf]
    %v7180 = vunpack.c.l.b16 %v7144
    %v7181 = vunpack.c.l.b16 %v7145
    %v7182 = vunpack.c.l.b16 %v7146
    %v7183 = vunpack.c.l.b16 %v7147
    %v7184 = vunpack.c.l.b16 %v7148
    %v7185 = vunpack.c.l.b16 %v7149
    %v7186 = vunpack.c.l.b16 %v7150
    %v7187 = vunpack.c.l.b16 %v7151
    %v7188 = vunpack.c.l.b16 %v7152
    %v7189 = vunpack.c.l.b16 %v7153
    %v7190 = vunpack.c.l.b16 %v7154
    %v7191 = vunpack.c.l.b16 %v7155
    %v7192 = vunpack.c.l.b16 %v7156
    %v7193 = vunpack.c.l.b16 %v7157
    %v7194 = vunpack.c.l.b16 %v7158
    %v7195 = vunpack.c.l.b16 %v7159
    %v7196 = vunpack.c.l.b16 %v7160
    %v7197 = vunpack.c.l.b16 %v7161
    %v7198 = vpack.c.b16 %v7181, %v7180
    %v7199 = vpack.c.b16 %v7183, %v7182
    %v7200 = vpack.c.b16 %v7185, %v7184
    %v7201 = vpack.c.b16 %v7187, %v7186
    %v7202 = vpack.c.b16 %v7189, %v7188
    %v7203 = vpack.c.b16 %v7191, %v7190
    %v7204 = vpack.c.b16 %v7193, %v7192
    %v7205 = vpack.c.b16 %v7195, %v7194
    %v7206 = vpack.c.b16 %v7197, %v7196
    %v7217 = vsel %vm3804, %v7142, 0
    %7219 = vmatprep.subr.bf16.mxu0 0
    %7220 = vmatpush1.bf16.msra.mxu0 %v7205
    %7221 = vmatprep.subr.bf16.mxu0 0
    %7222 = vmatpush1.bf16.msra.mxu0 %v7204
    %7223 = vmatprep.subr.bf16.mxu0 0
    %7224 = vmatpush1.bf16.msra.mxu0 %v7203
    %7225 = vmatprep.subr.bf16.mxu0 0
    %7226 = vmatpush1.bf16.msra.mxu0 %v7202
    %7227 = vmatprep.subr.bf16.mxu0 0
    %7228 = vmatpush1.bf16.msra.mxu0 %v7201
    %7229 = vmatprep.subr.bf16.mxu0 0
    %7230 = vmatpush1.bf16.msra.mxu0 %v7200
    %7231 = vmatprep.subr.bf16.mxu0 0
    %7232 = vmatpush1.bf16.msra.mxu0 %v7199
    %7233 = vmatprep.subr.bf16.mxu0 0
    %7234 = vmatpush1.bf16.msra.mxu0 %v7198
    %7235 = vmatprep.subr.bf16.mxu0 0
    %7236 = vmatpush2.bf16.msra.mxu0 0
    %7237 = vmatprep.subr.bf16.mxu0 0
    %7238 = vmatpush2.bf16.msra.mxu0 0
    %7239 = vmatprep.subr.bf16.mxu0 0
    %7240 = vmatpush2.bf16.msra.mxu0 0
    %7241 = vmatprep.subr.bf16.mxu0 0
    %7242 = vmatpush2.bf16.msra.mxu0 0
    %7243 = vmatprep.subr.bf16.mxu0 0
    %7244 = vmatpush2.bf16.msra.mxu0 0
    %7245 = vmatprep.subr.bf16.mxu0 0
    %7246 = vmatpush2.bf16.msra.mxu0 0
    %7247 = vmatprep.subr.bf16.mxu0 0
    %7248 = vmatpush2.bf16.msra.mxu0 0
    %7249 = vmatprep.subr.bf16.mxu0 0
    %7250 = vmatpush2.bf16.msra.mxu0 %v7206
    %7251 = vmatprep.mubr.bf16.mxu0 %v7217
    %7252 = vmatmul.mubr.bf16.gmra.mxu0 %v7141
    %v7253 = vpop.f32.mrf.mxu0
    %v7254 = vadd.f32 0.0, %v7253
    %v7255 = vpop.f32.mrf.mxu0
    %v7256 = vpop.f32.mrf.mxu0
    %v7257 = vpop.f32.mrf.mxu0
    %7258 = vdwg.mxu0
    %v7259 = vadd.f32 %v7128, %v7254
    %v7260 = vrot.slane %v3907, 4
    %v7261 = vrot.slane %v3909, 4
    %v7264 = vrot.slane %v5964, 3
    %v7265 = vrot.slane %v5966, 3
    %v7268 = vsel %vm5976, %v7260, %v7264
    %v7269 = vsel %vm5976, %v7261, %v7265
    %v7270 = vpack.c.bf16 %v7268, %v7268
    %v7271 = vpack.c.bf16 %v7269, %v7269
    %s7272 = scalar_lea.vmem %s5, 720
    %v7273 = vld [vmem:[%s7272] sm:$0xf]
    %v7274 = vld [vmem:[%s7272 + $0x4] sm:$0xf]
    %v7275 = vld [vmem:[%s7272 + $0x8] sm:$0xf]
    %v7276 = vld [vmem:[%s7272 + $0xc] sm:$0xf]
    %v7277 = vld [vmem:[%s7272 + $0x10] sm:$0xf]
    %v7278 = vld [vmem:[%s7272 + $0x14] sm:$0xf]
    %v7279 = vld [vmem:[%s7272 + $0x18] sm:$0xf]
    %v7280 = vld [vmem:[%s7272 + $0x1c] sm:$0xf]
    %v7281 = vld [vmem:[%s7272 + $0x20] sm:$0xf]
    %v7282 = vld [vmem:[%s7272 + $0x24] sm:$0xf]
    %v7283 = vld [vmem:[%s7272 + $0x28] sm:$0xf]
    %v7284 = vld [vmem:[%s7272 + $0x2c] sm:$0xf]
    %v7285 = vld [vmem:[%s7272 + $0x30] sm:$0xf]
    %v7286 = vld [vmem:[%s7272 + $0x34] sm:$0xf]
    %v7287 = vld [vmem:[%s7272 + $0x38] sm:$0xf]
    %v7288 = vld [vmem:[%s7272 + $0x3c] sm:$0xf]
    %v7289 = vld [vmem:[%s7272 + $0x40] sm:$0xf]
    %v7290 = vld [vmem:[%s7272 + $0x44] sm:$0xf]
    %v7309 = vunpack.c.l.b16 %v7273
    %v7310 = vunpack.c.l.b16 %v7274
    %v7311 = vunpack.c.l.b16 %v7275
    %v7312 = vunpack.c.l.b16 %v7276
    %v7313 = vunpack.c.l.b16 %v7277
    %v7314 = vunpack.c.l.b16 %v7278
    %v7315 = vunpack.c.l.b16 %v7279
    %v7316 = vunpack.c.l.b16 %v7280
    %v7317 = vunpack.c.l.b16 %v7281
    %v7318 = vunpack.c.l.b16 %v7282
    %v7319 = vunpack.c.l.b16 %v7283
    %v7320 = vunpack.c.l.b16 %v7284
    %v7321 = vunpack.c.l.b16 %v7285
    %v7322 = vunpack.c.l.b16 %v7286
    %v7323 = vunpack.c.l.b16 %v7287
    %v7324 = vunpack.c.l.b16 %v7288
    %v7325 = vunpack.c.l.b16 %v7289
    %v7326 = vunpack.c.l.b16 %v7290
    %v7327 = vpack.c.b16 %v7310, %v7309
    %v7328 = vpack.c.b16 %v7312, %v7311
    %v7329 = vpack.c.b16 %v7314, %v7313
    %v7330 = vpack.c.b16 %v7316, %v7315
    %v7331 = vpack.c.b16 %v7318, %v7317
    %v7332 = vpack.c.b16 %v7320, %v7319
    %v7333 = vpack.c.b16 %v7322, %v7321
    %v7334 = vpack.c.b16 %v7324, %v7323
    %v7335 = vpack.c.b16 %v7326, %v7325
    %v7346 = vsel %vm3804, %v7271, 0
    %7348 = vmatprep.subr.bf16.mxu0 0
    %7349 = vmatpush1.bf16.msra.mxu0 %v7334
    %7350 = vmatprep.subr.bf16.mxu0 0
    %7351 = vmatpush1.bf16.msra.mxu0 %v7333
    %7352 = vmatprep.subr.bf16.mxu0 0
    %7353 = vmatpush1.bf16.msra.mxu0 %v7332
    %7354 = vmatprep.subr.bf16.mxu0 0
    %7355 = vmatpush1.bf16.msra.mxu0 %v7331
    %7356 = vmatprep.subr.bf16.mxu0 0
    %7357 = vmatpush1.bf16.msra.mxu0 %v7330
    %7358 = vmatprep.subr.bf16.mxu0 0
    %7359 = vmatpush1.bf16.msra.mxu0 %v7329
    %7360 = vmatprep.subr.bf16.mxu0 0
    %7361 = vmatpush1.bf16.msra.mxu0 %v7328
    %7362 = vmatprep.subr.bf16.mxu0 0
    %7363 = vmatpush1.bf16.msra.mxu0 %v7327
    %7364 = vmatprep.subr.bf16.mxu0 0
    %7365 = vmatpush2.bf16.msra.mxu0 0
    %7366 = vmatprep.subr.bf16.mxu0 0
    %7367 = vmatpush2.bf16.msra.mxu0 0
    %7368 = vmatprep.subr.bf16.mxu0 0
    %7369 = vmatpush2.bf16.msra.mxu0 0
    %7370 = vmatprep.subr.bf16.mxu0 0
    %7371 = vmatpush2.bf16.msra.mxu0 0
    %7372 = vmatprep.subr.bf16.mxu0 0
    %7373 = vmatpush2.bf16.msra.mxu0 0
    %7374 = vmatprep.subr.bf16.mxu0 0
    %7375 = vmatpush2.bf16.msra.mxu0 0
    %7376 = vmatprep.subr.bf16.mxu0 0
    %7377 = vmatpush2.bf16.msra.mxu0 0
    %7378 = vmatprep.subr.bf16.mxu0 0
    %7379 = vmatpush2.bf16.msra.mxu0 %v7335
    %7380 = vmatprep.mubr.bf16.mxu0 %v7346
    %7381 = vmatmul.mubr.bf16.gmra.mxu0 %v7270
    %v7382 = vpop.f32.mrf.mxu0
    %v7383 = vadd.f32 0.0, %v7382
    %v7384 = vpop.f32.mrf.mxu0
    %v7385 = vpop.f32.mrf.mxu0
    %v7386 = vpop.f32.mrf.mxu0
    %7387 = vdwg.mxu0
    %v7388 = vadd.f32 %v7259, %v7383
    %v7389 = vrot.slane %v3907, 6
    %v7390 = vrot.slane %v3909, 6
    %v7393 = vrot.slane %v5964, 5
    %v7394 = vrot.slane %v5966, 5
    %v7397 = vsel %vm5976, %v7389, %v7393
    %v7398 = vsel %vm5976, %v7390, %v7394
    %v7399 = vpack.c.bf16 %v7397, %v7397
    %v7400 = vpack.c.bf16 %v7398, %v7398
    %s7401 = scalar_lea.vmem %s5, 792
    %v7402 = vld [vmem:[%s7401] sm:$0xf]
    %v7403 = vld [vmem:[%s7401 + $0x4] sm:$0xf]
    %v7404 = vld [vmem:[%s7401 + $0x8] sm:$0xf]
    %v7405 = vld [vmem:[%s7401 + $0xc] sm:$0xf]
    %v7406 = vld [vmem:[%s7401 + $0x10] sm:$0xf]
    %v7407 = vld [vmem:[%s7401 + $0x14] sm:$0xf]
    %v7408 = vld [vmem:[%s7401 + $0x18] sm:$0xf]
    %v7409 = vld [vmem:[%s7401 + $0x1c] sm:$0xf]
    %v7410 = vld [vmem:[%s7401 + $0x20] sm:$0xf]
    %v7411 = vld [vmem:[%s7401 + $0x24] sm:$0xf]
    %v7412 = vld [vmem:[%s7401 + $0x28] sm:$0xf]
    %v7413 = vld [vmem:[%s7401 + $0x2c] sm:$0xf]
    %v7414 = vld [vmem:[%s7401 + $0x30] sm:$0xf]
    %v7415 = vld [vmem:[%s7401 + $0x34] sm:$0xf]
    %v7416 = vld [vmem:[%s7401 + $0x38] sm:$0xf]
    %v7417 = vld [vmem:[%s7401 + $0x3c] sm:$0xf]
    %v7418 = vld [vmem:[%s7401 + $0x40] sm:$0xf]
    %v7419 = vld [vmem:[%s7401 + $0x44] sm:$0xf]
    %v7438 = vunpack.c.l.b16 %v7402
    %v7439 = vunpack.c.l.b16 %v7403
    %v7440 = vunpack.c.l.b16 %v7404
    %v7441 = vunpack.c.l.b16 %v7405
    %v7442 = vunpack.c.l.b16 %v7406
    %v7443 = vunpack.c.l.b16 %v7407
    %v7444 = vunpack.c.l.b16 %v7408
    %v7445 = vunpack.c.l.b16 %v7409
    %v7446 = vunpack.c.l.b16 %v7410
    %v7447 = vunpack.c.l.b16 %v7411
    %v7448 = vunpack.c.l.b16 %v7412
    %v7449 = vunpack.c.l.b16 %v7413
    %v7450 = vunpack.c.l.b16 %v7414
    %v7451 = vunpack.c.l.b16 %v7415
    %v7452 = vunpack.c.l.b16 %v7416
    %v7453 = vunpack.c.l.b16 %v7417
    %v7454 = vunpack.c.l.b16 %v7418
    %v7455 = vunpack.c.l.b16 %v7419
    %v7456 = vpack.c.b16 %v7439, %v7438
    %v7457 = vpack.c.b16 %v7441, %v7440
    %v7458 = vpack.c.b16 %v7443, %v7442
    %v7459 = vpack.c.b16 %v7445, %v7444
    %v7460 = vpack.c.b16 %v7447, %v7446
    %v7461 = vpack.c.b16 %v7449, %v7448
    %v7462 = vpack.c.b16 %v7451, %v7450
    %v7463 = vpack.c.b16 %v7453, %v7452
    %v7464 = vpack.c.b16 %v7455, %v7454
    %v7475 = vsel %vm3804, %v7400, 0
    %7477 = vmatprep.subr.bf16.mxu0 0
    %7478 = vmatpush1.bf16.msra.mxu0 %v7463
    %7479 = vmatprep.subr.bf16.mxu0 0
    %7480 = vmatpush1.bf16.msra.mxu0 %v7462
    %7481 = vmatprep.subr.bf16.mxu0 0
    %7482 = vmatpush1.bf16.msra.mxu0 %v7461
    %7483 = vmatprep.subr.bf16.mxu0 0
    %7484 = vmatpush1.bf16.msra.mxu0 %v7460
    %7485 = vmatprep.subr.bf16.mxu0 0
    %7486 = vmatpush1.bf16.msra.mxu0 %v7459
    %7487 = vmatprep.subr.bf16.mxu0 0
    %7488 = vmatpush1.bf16.msra.mxu0 %v7458
    %7489 = vmatprep.subr.bf16.mxu0 0
    %7490 = vmatpush1.bf16.msra.mxu0 %v7457
    %7491 = vmatprep.subr.bf16.mxu0 0
    %7492 = vmatpush1.bf16.msra.mxu0 %v7456
    %7493 = vmatprep.subr.bf16.mxu0 0
    %7494 = vmatpush2.bf16.msra.mxu0 0
    %7495 = vmatprep.subr.bf16.mxu0 0
    %7496 = vmatpush2.bf16.msra.mxu0 0
    %7497 = vmatprep.subr.bf16.mxu0 0
    %7498 = vmatpush2.bf16.msra.mxu0 0
    %7499 = vmatprep.subr.bf16.mxu0 0
    %7500 = vmatpush2.bf16.msra.mxu0 0
    %7501 = vmatprep.subr.bf16.mxu0 0
    %7502 = vmatpush2.bf16.msra.mxu0 0
    %7503 = vmatprep.subr.bf16.mxu0 0
    %7504 = vmatpush2.bf16.msra.mxu0 0
    %7505 = vmatprep.subr.bf16.mxu0 0
    %7506 = vmatpush2.bf16.msra.mxu0 0
    %7507 = vmatprep.subr.bf16.mxu0 0
    %7508 = vmatpush2.bf16.msra.mxu0 %v7464
    %7509 = vmatprep.mubr.bf16.mxu0 %v7475
    %7510 = vmatmul.mubr.bf16.gmra.mxu0 %v7399
    %v7511 = vpop.f32.mrf.mxu0
    %v7512 = vadd.f32 0.0, %v7511
    %v7513 = vpop.f32.mrf.mxu0
    %v7514 = vpop.f32.mrf.mxu0
    %v7515 = vpop.f32.mrf.mxu0
    %7516 = vdwg.mxu0
    %v7517 = vadd.f32 %v7388, %v7512
    %v7518 = vmax.f32 %v7517, 0.0
    %v7519 = vpack.c.bf16 %v7518, %v7518
    %v7535 = vunpack.c.l.b16 %v129
    %v7536 = vunpack.c.l.b16 %v130
    %v7537 = vunpack.c.l.b16 %v131
    %v7538 = vunpack.c.l.b16 %v132
    %v7539 = vunpack.c.l.b16 %v133
    %v7540 = vunpack.c.l.b16 %v134
    %v7541 = vunpack.c.l.b16 %v135
    %v7542 = vunpack.c.l.b16 %v136
    %v7543 = vunpack.c.l.b16 %v137
    %v7544 = vunpack.c.l.b16 %v138
    %v7545 = vunpack.c.l.b16 %v139
    %v7546 = vunpack.c.l.b16 %v140
    %v7547 = vunpack.c.l.b16 %v141
    %v7548 = vunpack.c.l.b16 %v142
    %v7549 = vunpack.c.l.b16 %v143
    %v7550 = vpack.c.b16 %v7536, %v7535
    %v7551 = vpack.c.b16 %v7538, %v7537
    %v7552 = vpack.c.b16 %v7540, %v7539
    %v7553 = vpack.c.b16 %v7542, %v7541
    %v7554 = vpack.c.b16 %v7544, %v7543
    %v7555 = vpack.c.b16 %v7546, %v7545
    %v7556 = vpack.c.b16 %v7548, %v7547
    %v7557 = vpack.c.b16 %v7549, %v7549
    %v7566 = vsel %vm1790, %v7519, 0
    %v7569 = vsel %vm1797, %v7557, 0
    %7571 = vmatprep.subr.bf16.mxu0 0
    %7572 = vmatpush1.bf16.msra.mxu0 %v7569
    %7573 = vmatprep.subr.bf16.mxu0 0
    %7574 = vmatpush1.bf16.msra.mxu0 %v7556
    %7575 = vmatprep.subr.bf16.mxu0 0
    %7576 = vmatpush1.bf16.msra.mxu0 %v7555
    %7577 = vmatprep.subr.bf16.mxu0 0
    %7578 = vmatpush1.bf16.msra.mxu0 %v7554
    %7579 = vmatprep.subr.bf16.mxu0 0
    %7580 = vmatpush1.bf16.msra.mxu0 %v7553
    %7581 = vmatprep.subr.bf16.mxu0 0
    %7582 = vmatpush1.bf16.msra.mxu0 %v7552
    %7583 = vmatprep.subr.bf16.mxu0 0
    %7584 = vmatpush1.bf16.msra.mxu0 %v7551
    %7585 = vmatprep.subr.bf16.mxu0 0
    %7586 = vmatpush1.bf16.msra.mxu0 %v7550
    %7587 = vmatprep.subr.bf16.mxu0 0
    %7588 = vmatpush2.bf16.msra.mxu0 0
    %7589 = vmatprep.subr.bf16.mxu0 0
    %7590 = vmatpush2.bf16.msra.mxu0 0
    %7591 = vmatprep.subr.bf16.mxu0 0
    %7592 = vmatpush2.bf16.msra.mxu0 0
    %7593 = vmatprep.subr.bf16.mxu0 0
    %7594 = vmatpush2.bf16.msra.mxu0 0
    %7595 = vmatprep.subr.bf16.mxu0 0
    %7596 = vmatpush2.bf16.msra.mxu0 0
    %7597 = vmatprep.subr.bf16.mxu0 0
    %7598 = vmatpush2.bf16.msra.mxu0 0
    %7599 = vmatprep.subr.bf16.mxu0 0
    %7600 = vmatpush2.bf16.msra.mxu0 0
    %7601 = vmatprep.subr.bf16.mxu0 0
    %7602 = vmatpush2.bf16.msra.mxu0 0
    %7603 = vmatprep.mubr.bf16.mxu0 0
    %7604 = vmatmul.mubr.bf16.gmra.mxu0 %v7566
    %v7605 = vpop.f32.mrf.mxu0
    %v7606 = vadd.f32 %v59, %v7605
    %v7607 = vpop.f32.mrf.mxu0
    %v7608 = vpop.f32.mrf.mxu0
    %v7609 = vpop.f32.mrf.mxu0
    %7610 = vdwg.mxu0
    %v7611 = vmax.f32 %v7606, 0.0
    %v7612 = vpack.c.bf16 %v7611, %v7611
    %v7624 = vunpack.c.l.b16 %v144
    %v7625 = vunpack.c.l.b16 %v145
    %v7626 = vunpack.c.l.b16 %v146
    %v7627 = vunpack.c.l.b16 %v147
    %v7628 = vunpack.c.l.b16 %v148
    %v7629 = vunpack.c.l.b16 %v149
    %v7630 = vunpack.c.l.b16 %v150
    %v7631 = vunpack.c.l.b16 %v151
    %v7632 = vunpack.c.l.b16 %v152
    %v7633 = vunpack.c.l.b16 %v153
    %v7634 = vunpack.c.l.b16 %v154
    %v7635 = vpack.c.b16 %v7625, %v7624
    %v7636 = vpack.c.b16 %v7627, %v7626
    %v7637 = vpack.c.b16 %v7629, %v7628
    %v7638 = vpack.c.b16 %v7631, %v7630
    %v7639 = vpack.c.b16 %v7633, %v7632
    %v7640 = vpack.c.b16 %v7634, %v7634
    %vm7646 = vcmask 687104
    %v7648 = vsel %vm7646, %v7612, 0
    %vm7650 = vcmask 1041408
    %v7652 = vsel %vm7650, %v7640, 0
    %7654 = vmatprep.subr.bf16.mxu0 0
    %7655 = vmatpush1.bf16.msra.mxu0 0
    %7656 = vmatprep.subr.bf16.mxu0 0
    %7657 = vmatpush1.bf16.msra.mxu0 0
    %7658 = vmatprep.subr.bf16.mxu0 0
    %7659 = vmatpush1.bf16.msra.mxu0 %v7652
    %7660 = vmatprep.subr.bf16.mxu0 0
    %7661 = vmatpush1.bf16.msra.mxu0 %v7639
    %7662 = vmatprep.subr.bf16.mxu0 0
    %7663 = vmatpush1.bf16.msra.mxu0 %v7638
    %7664 = vmatprep.subr.bf16.mxu0 0
    %7665 = vmatpush1.bf16.msra.mxu0 %v7637
    %7666 = vmatprep.subr.bf16.mxu0 0
    %7667 = vmatpush1.bf16.msra.mxu0 %v7636
    %7668 = vmatprep.subr.bf16.mxu0 0
    %7669 = vmatpush1.bf16.msra.mxu0 %v7635
    %7670 = vmatprep.subr.bf16.mxu0 0
    %7671 = vmatpush2.bf16.msra.mxu0 0
    %7672 = vmatprep.subr.bf16.mxu0 0
    %7673 = vmatpush2.bf16.msra.mxu0 0
    %7674 = vmatprep.subr.bf16.mxu0 0
    %7675 = vmatpush2.bf16.msra.mxu0 0
    %7676 = vmatprep.subr.bf16.mxu0 0
    %7677 = vmatpush2.bf16.msra.mxu0 0
    %7678 = vmatprep.subr.bf16.mxu0 0
    %7679 = vmatpush2.bf16.msra.mxu0 0
    %7680 = vmatprep.subr.bf16.mxu0 0
    %7681 = vmatpush2.bf16.msra.mxu0 0
    %7682 = vmatprep.subr.bf16.mxu0 0
    %7683 = vmatpush2.bf16.msra.mxu0 0
    %7684 = vmatprep.subr.bf16.mxu0 0
    %7685 = vmatpush2.bf16.msra.mxu0 0
    %7686 = vmatprep.mubr.bf16.mxu0 0
    %7687 = vmatmul.mubr.bf16.gmra.mxu0 %v7648
    %v7688 = vpop.f32.mrf.mxu0
    %v7689 = vadd.f32 %v60, %v7688
    %v7690 = vpop.f32.mrf.mxu0
    %v7691 = vpop.f32.mrf.mxu0
    %v7692 = vpop.f32.mrf.mxu0
    %7693 = vdwg.mxu0
    %vm7694 = vcmask 9216
    %7695 = vst.msk [vmem:[#allocation2] sm:$0x3] %vm7694, %v7689
    // Predicated region
    $region30: #{net_forward.1} parent=1 // pred_check
      _
    $region31: #{net_forward.1} parent=1 // pred_check_branch
      %7697 = sbr.rel (0) target = $region33
    $region32: #{net_forward.1} parent=1 // pred_region
      %s7699 = ssub.s32 32, 32
      %7700 = vsyncadd [#allocation3], %s7699
      %s7702 = sshll.u32 [#allocation2], 4
      %s7703 = int_to_ptr.vmem [resolvable:$true] %s7702
      %7705 = dma.vmem_to_hbm [thread:$0]  %s7703, 32, %s7, [#allocation3]
    $region33: #{net_forward.1} parent=1 // pred_fallthru
      _
    // Predicated region
    $region34: #{net_forward.1} parent=1 // pred_check
      _
    $region35: #{net_forward.1} parent=1 // pred_check_branch
      %7707 = sbr.rel (0) target = $region37
    $region36: #{net_forward.1} parent=1 // pred_region
      %7708 = dma.done [#allocation3], 32
    $region37: #{net_forward.1} parent=1 // pred_fallthru
      _
    %7709 = vsyncpa [#allocation3], 1

</llo_original>
